<compile_context>
chip_gen: v5e
topology: v5e:2x2
jax: 0.10.0
libtpu: 0.0.40
codegen_flags: <defaults>
</compile_context>

<pallas_src>
import functools

import numpy as np
import jax
import jax.numpy as jnp
from jax.experimental import pallas as pl
from jax.experimental.pallas import tpu as pltpu


# ----------------------------------------------------------------------------
# The single fused kernel
# ----------------------------------------------------------------------------

def _fused_kernel(*refs, meta, eps):
    """stem -> 4 SimAM BasicBlocks -> global mean pool -> bottleneck, one image
    per grid step.  Every conv is a 3-tap block-Toeplitz GEMM over a
    zero-row-padded VMEM row bank (lane-dense (rows, Wo*Cout) outputs)."""
    nblk = len(meta["blocks"])
    it = iter(refs)
    img_ref = next(it)
    stem_w, stem_s, stem_b = next(it), next(it), next(it)
    blk_params = [tuple(next(it) for _ in range(7)) for _ in range(nblk)]
    g_ref, wb_ref, bb_ref = next(it), next(it), next(it)
    out_first = next(it)
    blk_outs = [tuple(next(it) for _ in range(3)) for _ in range(nblk)]
    pool_ref, emb_ref = next(it), next(it)
    bank1, bank2 = next(it), next(it)

    def fill_bank(bank, x, h):
        # rows 1..h <- x ; rows 0 and h+1 <- 0 (vertical conv padding only;
        # the interior rows are always overwritten so no full-tile zeroing).
        n = x.shape[1]
        zrow = jnp.zeros((1, n), jnp.float32)
        bank[pl.ds(0, 1), pl.ds(0, n)] = zrow
        bank[pl.ds(h + 1, 1), pl.ds(0, n)] = zrow
        bank[pl.ds(1, h), pl.ds(0, n)] = x

    def conv3x3(bank, ho, stride, k, w_ref):
        # 3 accumulating MXU taps; stride-2 vertical taps are sublane-strided
        # reads; horizontal taps / stride / column padding live in the weight.
        acc = None
        for di in range(3):
            if stride == 1:
                if k == bank.shape[1]:
                    lhs = bank[pl.ds(di, ho), :]
                else:
                    lhs = bank[pl.ds(di, ho), pl.ds(0, k)]
            else:
                assert k == bank.shape[1]
                lhs = bank[pl.ds(di, ho, stride=stride), :]
            part = jnp.dot(lhs, w_ref[di], preferred_element_type=jnp.float32)
            acc = part if acc is None else acc + part
        return acc

    # ---------------- stem: conv3x3(pad=1) + folded BN + ReLU ----------------
    h0, w0 = img_ref.shape
    fill_bank(bank1, img_ref[...], h0)
    h = jnp.maximum(conv3x3(bank1, h0, 1, w0, stem_w) * stem_s[...] + stem_b[...],
                    0.0)
    out_first[...] = h

    # ---------------- SimAM BasicBlocks --------------------------------------
    for bi in range(nblk):
        bm = meta["blocks"][bi]
        w1, s1, b1, w2, s2, b2, amat = blk_params[bi]
        r1_ref, sim_ref, o_ref = blk_outs[bi]
        hc, wc, ho, wo = bm["h"], bm["w"], bm["ho"], bm["wo"]
        stride, cout = bm["stride"], bm["cout"]
        nc = wo * cout
        k1 = wc * bm["cin"]

        # conv1 (+ merged downsample 1x1+bn when present) + bn1 + relu
        fill_bank(bank1, h, hc)
        y1 = conv3x3(bank1, ho, stride, k1, w1) * s1[...] + b1[...]
        h1 = jnp.maximum(y1[:, :nc], 0.0)
        r1_ref[...] = h1
        identity = y1[:, nc:] if bm["has_ds"] else h

        # conv2 + bn2
        fill_bank(bank2, h1, ho)
        h2 = conv3x3(bank2, ho, 1, nc, w2) * s2[...] + b2[...]

        # SimAM (lane-major): per-channel spatial stats = row-sum followed by a
        # (1,128)@(128,128) channel sum/broadcast matmul (amat[i,j]=1 iff i%C==j%C).
        nsp = float(ho * wo)
        mu = jnp.dot(jnp.sum(h2, axis=0, keepdims=True), amat[...],
                     preferred_element_type=jnp.float32) * (1.0 / nsp)
        d = (h2 - mu) ** 2
        vsum = jnp.dot(jnp.sum(d, axis=0, keepdims=True), amat[...],
                       preferred_element_type=jnp.float32) * (1.0 / (nsp - 1.0))
        att = h2 * jax.nn.sigmoid(d / (4.0 * (vsum + eps)) + 0.5)
        sim_ref[...] = att

        # residual add + relu
        h = jnp.maximum(att + identity, 0.0)
        o_ref[...] = h

    # ---------------- head: global mean pool + linear bottleneck -------------
    bm = meta["blocks"][-1]
    rowsum = jnp.sum(h, axis=0, keepdims=True)                       # (1, Wo*C)
    pooled = jnp.dot(rowsum, g_ref[...], preferred_element_type=jnp.float32) \
        * (1.0 / float(bm["ho"] * bm["wo"]))
    pool_ref[...] = pooled
    emb_ref[...] = jnp.dot(pooled, wb_ref[...],
                           preferred_element_type=jnp.float32) + bb_ref[...]


# ----------------------------------------------------------------------------
# pallas_call builder (one call for the whole network)
# ----------------------------------------------------------------------------

def fused_forward(img, packed):
    """img: (B, H0, W0) f32 (already permuted)."""
    B, H0, W0 = img.shape
    meta = packed["meta"]
    stem, blocks, head = packed["stem"], packed["blocks"], packed["head"]

    def const_spec(a):
        if a.ndim == 2:
            return pl.BlockSpec(a.shape, lambda b: (0, 0))
        return pl.BlockSpec(a.shape, lambda b: (0, 0, 0))

    inputs = [img, stem["w"], stem["s"], stem["b"]]
    in_specs = [pl.BlockSpec((None, H0, W0), lambda b: (b, 0, 0)),
                const_spec(stem["w"]), const_spec(stem["s"]), const_spec(stem["b"])]
    for bp in blocks:
        for k in ("w1", "s1", "b1", "w2", "s2", "b2", "amat"):
            inputs.append(bp[k])
            in_specs.append(const_spec(bp[k]))
    for k in ("g", "wb", "bb"):
        inputs.append(head[k])
        in_specs.append(const_spec(head[k]))

    nc0 = W0 * meta["stem_cout"]
    out_shapes = [jax.ShapeDtypeStruct((B, H0, nc0), jnp.float32)]
    out_specs = [pl.BlockSpec((None, H0, nc0), lambda b: (b, 0, 0))]
    for bm in meta["blocks"]:
        nc = bm["wo"] * bm["cout"]
        for _ in range(3):
            out_shapes.append(jax.ShapeDtypeStruct((B, bm["ho"], nc), jnp.float32))
            out_specs.append(pl.BlockSpec((None, bm["ho"], nc), lambda b: (b, 0, 0)))
    c_last = meta["blocks"][-1]["cout"]
    emb_dim = head["wb"].shape[1]
    out_shapes.append(jax.ShapeDtypeStruct((B, 1, c_last), jnp.float32))
    out_specs.append(pl.BlockSpec((None, 1, c_last), lambda b: (b, 0, 0)))
    out_shapes.append(jax.ShapeDtypeStruct((B, 1, emb_dim), jnp.float32))
    out_specs.append(pl.BlockSpec((None, 1, emb_dim), lambda b: (b, 0, 0)))

    n_rows = max([H0] + [bm["h"] for bm in meta["blocks"]]) + 2
    n_lanes = max([W0] + [bm["w"] * bm["cin"] for bm in meta["blocks"]]
                  + [bm["wo"] * bm["cout"] for bm in meta["blocks"]])

    return pl.pallas_call(
        functools.partial(_fused_kernel, meta=meta, eps=1e-4),
        out_shape=tuple(out_shapes),
        grid=(B,),
        in_specs=in_specs,
        out_specs=tuple(out_specs),
        scratch_shapes=[pltpu.VMEM((n_rows, n_lanes), jnp.float32),   # conv1 bank
                        pltpu.VMEM((n_rows, n_lanes), jnp.float32)],  # conv2 bank
        compiler_params=pltpu.CompilerParams(dimension_semantics=("parallel",)),
    )(*inputs)


# ----------------------------------------------------------------------------
# Weight lowering (host, once): fold horizontal taps, horizontal stride and
# column zero-padding into block-Toeplitz GEMM weights with lane-dense columns.
# ----------------------------------------------------------------------------

def _lower_conv3x3(w, W, Wo, stride, n_total, col_offset):
    # w: (3,3,Cin,Cout) -> (3, W*Cin, n_total); consumes UNPADDED rows (the
    # column padding is implicit: out-of-range horizontal taps are dropped).
    _, _, Cin, Cout = w.shape
    wn = np.asarray(w, np.float32)
    out = np.zeros((3, W * Cin, n_total), np.float32)
    for di in range(3):
        for dj in range(3):
            for ow in range(Wo):
                iw = stride * ow + dj - 1
                if 0 <= iw < W:
                    out[di, iw * Cin:(iw + 1) * Cin,
                        col_offset + ow * Cout:col_offset + (ow + 1) * Cout] = wn[di, dj]
    return out


def _lower_conv1x1(w, W, Wo, stride, n_total, col_offset):
    # 1x1 stride-s downsample reads input (s*oh, s*ow) -> vertical tap di=1.
    wn = np.asarray(w, np.float32).reshape(w.shape[-2], w.shape[-1])
    Cin, Cout = wn.shape
    out = np.zeros((3, W * Cin, n_total), np.float32)
    for ow in range(Wo):
        iw = stride * ow
        out[1, iw * Cin:(iw + 1) * Cin,
            col_offset + ow * Cout:col_offset + (ow + 1) * Cout] = wn
    return out


def _chan_bcast_matrix(Wo, C):
    idx = np.arange(Wo * C) % C
    return (idx[:, None] == idx[None, :]).astype(np.float32)


def _chan_sum_matrix(Wo, C):
    idx = np.arange(Wo * C) % C
    return (idx[:, None] == np.arange(C)[None, :]).astype(np.float32)


# ----------------------------------------------------------------------------
# Deterministic synthetic model + packing
# ----------------------------------------------------------------------------

def _init_bn(key, c):
    k1, k2, k3, k4 = jax.random.split(key, 4)
    gamma = 1.0 + 0.1 * jax.random.normal(k1, (c,))
    beta = 0.1 * jax.random.normal(k2, (c,))
    rmean = 0.1 * jax.random.normal(k3, (c,))
    rvar = 1.0 + 0.1 * jax.random.uniform(k4, (c,))
    scale = gamma / jnp.sqrt(rvar + 1e-5)         # eval-mode BN folded
    bias = beta - rmean * scale
    return scale, bias


def _init_conv(key, cin, cout, kh, kw):
    return jax.random.normal(key, (kh, kw, cin, cout)) / jnp.sqrt(cin * kh * kw)


def init_params(key):
    keys = jax.random.split(key, 32)
    ki = iter(keys)
    c0 = 8
    front = {"conv1_w": _init_conv(next(ki), 1, c0, 3, 3)}
    front["bn1_scale"], front["bn1_bias"] = _init_bn(next(ki), c0)
    plan = [("layer1", c0, c0, 1), ("layer2", c0, 16, 2),
            ("layer3", 16, 32, 2), ("layer4", 32, 64, 2)]
    for name, cin, cout, stride in plan:
        blk = {"stride": stride, "conv1_w": _init_conv(next(ki), cin, cout, 3, 3)}
        blk["bn1_scale"], blk["bn1_bias"] = _init_bn(next(ki), cout)
        blk["conv2_w"] = _init_conv(next(ki), cout, cout, 3, 3)
        blk["bn2_scale"], blk["bn2_bias"] = _init_bn(next(ki), cout)
        if stride != 1 or cin != cout:
            ds = {"w": _init_conv(next(ki), cin, cout, 1, 1)}
            ds["scale"], ds["bias"] = _init_bn(next(ki), cout)
            blk["downsample"] = ds
        else:
            blk["downsample"] = None
        front[name] = [blk]                       # one BasicBlock per layer
    params = {"front": front}
    emb_dim = 32
    params["bottleneck_w"] = jax.random.normal(next(ki), (64, emb_dim)) / jnp.sqrt(64.0)
    params["bottleneck_b"] = 0.1 * jax.random.normal(next(ki), (emb_dim,))
    return params


def prepare_params(params, H0, W0):
    p = params["front"]
    C0 = int(p["conv1_w"].shape[-1])
    stem = {
        "w": jnp.asarray(_lower_conv3x3(p["conv1_w"], W0, W0, 1, W0 * C0, 0)),
        "s": jnp.asarray(np.tile(np.asarray(p["bn1_scale"], np.float32), W0).reshape(1, -1)),
        "b": jnp.asarray(np.tile(np.asarray(p["bn1_bias"], np.float32), W0).reshape(1, -1)),
    }
    meta = {"stem_cout": C0, "h0": H0, "w0": W0, "blocks": []}
    blocks = []
    H, W, C = H0, W0, C0
    for name in ["layer1", "layer2", "layer3", "layer4"]:
        blk = p[name][0]
        stride, Cin = blk["stride"], C
        Cout = int(blk["conv1_w"].shape[-1])
        Ho, Wo = H // stride, W // stride
        Nc = Wo * Cout
        has_ds = blk["downsample"] is not None
        N1 = 2 * Nc if has_ds else Nc
        w1 = _lower_conv3x3(blk["conv1_w"], W, Wo, stride, N1, 0)
        s1 = np.tile(np.asarray(blk["bn1_scale"], np.float32), Wo)
        b1 = np.tile(np.asarray(blk["bn1_bias"], np.float32), Wo)
        if has_ds:
            ds = blk["downsample"]
            w1 = w1 + _lower_conv1x1(ds["w"], W, Wo, stride, N1, Nc)
            s1 = np.concatenate([s1, np.tile(np.asarray(ds["scale"], np.float32), Wo)])
            b1 = np.concatenate([b1, np.tile(np.asarray(ds["bias"], np.float32), Wo)])
        blocks.append({
            "w1": jnp.asarray(w1), "s1": jnp.asarray(s1.reshape(1, -1)),
            "b1": jnp.asarray(b1.reshape(1, -1)),
            "w2": jnp.asarray(_lower_conv3x3(blk["conv2_w"], Wo, Wo, 1, Nc, 0)),
            "s2": jnp.asarray(np.tile(np.asarray(blk["bn2_scale"], np.float32), Wo).reshape(1, -1)),
            "b2": jnp.asarray(np.tile(np.asarray(blk["bn2_bias"], np.float32), Wo).reshape(1, -1)),
            "amat": jnp.asarray(_chan_bcast_matrix(Wo, Cout)),
        })
        meta["blocks"].append({"name": name, "cin": Cin, "cout": Cout, "stride": stride,
                               "has_ds": has_ds, "h": H, "w": W, "ho": Ho, "wo": Wo})
        H, W, C = Ho, Wo, Cout
    head = {"g": jnp.asarray(_chan_sum_matrix(W, C)),
            "wb": jnp.asarray(params["bottleneck_w"], jnp.float32),
            "bb": jnp.asarray(params["bottleneck_b"], jnp.float32).reshape(1, -1)}
    return {"stem": stem, "blocks": blocks, "head": head, "meta": meta}


# ----------------------------------------------------------------------------
# GetActivations.forward
# ----------------------------------------------------------------------------

def _to_nchw(a, w, c):
    B, ho, _ = a.shape
    return jnp.transpose(a.reshape(B, ho, w, c), (0, 3, 1, 2))


def get_activations_forward(packed, x):
    """x: (B, T, F). Returns (activations, embedding) like the PyTorch module."""
    meta = packed["meta"]
    B = x.shape[0]
    img = jnp.transpose(x, (0, 2, 1))                 # permute(0,2,1): (B, F, T)
    outs = list(fused_forward(img, packed))

    activations = [{"first relu": _to_nchw(outs[0], meta["w0"], meta["stem_cout"])}]
    idx = 1
    for bm in meta["blocks"]:
        relu1, att, out = outs[idx], outs[idx + 1], outs[idx + 2]
        idx += 3
        activations.append({f"{bm['name']} relu": _to_nchw(relu1, bm["wo"], bm["cout"])})
        activations.append({"SimAM": _to_nchw(att, bm["wo"], bm["cout"])})
        activations.append({f"{bm['name']} relu": _to_nchw(out, bm["wo"], bm["cout"])})
    pooled = outs[idx].reshape(B, -1)
    emb = outs[idx + 1].reshape(B, -1)
    activations.append({"pooling": pooled})
    # TODO(synk): model.drop (Dropout) is identity in eval mode; skipped here.
    return activations, emb


# ----------------------------------------------------------------------------
# Pure-JAX reference (for correctness checking only)
# ----------------------------------------------------------------------------

def _reference_forward(params, x, eps=1e-4):
    p = params["front"]

    def conv(a, w, stride, pad):
        return jax.lax.conv_general_dilated(
            a, w, window_strides=(stride, stride),
            padding=[(pad, pad), (pad, pad)],
            dimension_numbers=("NHWC", "HWIO", "NHWC"),
            precision=jax.lax.Precision.HIGHEST)

    h = jnp.transpose(x, (0, 2, 1))[..., None]        # NHWC, C=1
    h = jax.nn.relu(conv(h, p["conv1_w"], 1, 1) * p["bn1_scale"] + p["bn1_bias"])
    acts = [h]
    for name in ["layer1", "layer2", "layer3", "layer4"]:
        blk = p[name][0]
        identity = h
        h1 = jax.nn.relu(conv(h, blk["conv1_w"], blk["stride"], 1)
                         * blk["bn1_scale"] + blk["bn1_bias"])
        acts.append(h1)
        h2 = conv(h1, blk["conv2_w"], 1, 1) * blk["bn2_scale"] + blk["bn2_bias"]
        _, H_, W_, _ = h2.shape
        mu = jnp.mean(h2, axis=(1, 2), keepdims=True)
        d = (h2 - mu) ** 2
        v = jnp.sum(d, axis=(1, 2), keepdims=True) / (H_ * W_ - 1)
        att = h2 * jax.nn.sigmoid(d / (4.0 * (v + eps)) + 0.5)
        acts.append(att)
        if blk["downsample"] is not None:
            ds = blk["downsample"]
            identity = conv(identity, ds["w"], blk["stride"], 0) * ds["scale"] + ds["bias"]
        h = jax.nn.relu(att + identity)
        acts.append(h)
    pooled = jnp.mean(h, axis=(1, 2))
    emb = pooled @ params["bottleneck_w"] + params["bottleneck_b"]
    return acts, pooled, emb


# ----------------------------------------------------------------------------
if __name__ == "__main__":
    key = jax.random.PRNGKey(0)
    pkey, xkey = jax.random.split(key)
    params = init_params(pkey)

    B, T, F = 2, 16, 16
    packed = prepare_params(params, H0=F, W0=T)
    x = jax.random.normal(xkey, (B, T, F), dtype=jnp.float32)

    fwd = jax.jit(functools.partial(get_activations_forward, packed))
    activations, emb = fwd(x)

    jax.block_until_ready(emb)
    for d in activations:
        for v in d.values():
            jax.block_until_ready(v)

    # Correctness vs a pure-JAX/XLA reference of the same synthetic model.
    ref_acts, ref_pool, ref_emb = _reference_forward(params, x)
    np.testing.assert_allclose(np.asarray(emb), np.asarray(ref_emb), rtol=5e-2, atol=5e-2)
    np.testing.assert_allclose(np.asarray(activations[-1]["pooling"]),
                               np.asarray(ref_pool), rtol=5e-2, atol=5e-2)
    for i, ref_a in enumerate(ref_acts):
        got = np.asarray(list(activations[i].values())[0])
        np.testing.assert_allclose(got, np.transpose(np.asarray(ref_a), (0, 3, 1, 2)),
                                   rtol=5e-2, atol=5e-2)

    assert emb.shape == (B, 32)
    assert activations[0]["first relu"].shape == (B, 8, 16, 16)   # NCHW
    assert activations[-1]["pooling"].shape == (B, 64)
    assert len(activations) == 14
    print("KERNEL_OK")
</pallas_src>

<mosaic_0001>
module attributes {stable_mosaic.version = 11 : i64} {
  func.func @_fused_kernel(%arg0: i32, %arg1: memref<1x16x16xf32, #tpu.memory_space<vmem>>, %arg2: memref<3x16x128xf32, #tpu.memory_space<vmem>>, %arg3: memref<1x128xf32, #tpu.memory_space<vmem>>, %arg4: memref<1x128xf32, #tpu.memory_space<vmem>>, %arg5: memref<3x128x128xf32, #tpu.memory_space<vmem>>, %arg6: memref<1x128xf32, #tpu.memory_space<vmem>>, %arg7: memref<1x128xf32, #tpu.memory_space<vmem>>, %arg8: memref<3x128x128xf32, #tpu.memory_space<vmem>>, %arg9: memref<1x128xf32, #tpu.memory_space<vmem>>, %arg10: memref<1x128xf32, #tpu.memory_space<vmem>>, %arg11: memref<128x128xf32, #tpu.memory_space<vmem>>, %arg12: memref<3x128x256xf32, #tpu.memory_space<vmem>>, %arg13: memref<1x256xf32, #tpu.memory_space<vmem>>, %arg14: memref<1x256xf32, #tpu.memory_space<vmem>>, %arg15: memref<3x128x128xf32, #tpu.memory_space<vmem>>, %arg16: memref<1x128xf32, #tpu.memory_space<vmem>>, %arg17: memref<1x128xf32, #tpu.memory_space<vmem>>, %arg18: memref<128x128xf32, #tpu.memory_space<vmem>>, %arg19: memref<3x128x256xf32, #tpu.memory_space<vmem>>, %arg20: memref<1x256xf32, #tpu.memory_space<vmem>>, %arg21: memref<1x256xf32, #tpu.memory_space<vmem>>, %arg22: memref<3x128x128xf32, #tpu.memory_space<vmem>>, %arg23: memref<1x128xf32, #tpu.memory_space<vmem>>, %arg24: memref<1x128xf32, #tpu.memory_space<vmem>>, %arg25: memref<128x128xf32, #tpu.memory_space<vmem>>, %arg26: memref<3x128x256xf32, #tpu.memory_space<vmem>>, %arg27: memref<1x256xf32, #tpu.memory_space<vmem>>, %arg28: memref<1x256xf32, #tpu.memory_space<vmem>>, %arg29: memref<3x128x128xf32, #tpu.memory_space<vmem>>, %arg30: memref<1x128xf32, #tpu.memory_space<vmem>>, %arg31: memref<1x128xf32, #tpu.memory_space<vmem>>, %arg32: memref<128x128xf32, #tpu.memory_space<vmem>>, %arg33: memref<128x64xf32, #tpu.memory_space<vmem>>, %arg34: memref<64x32xf32, #tpu.memory_space<vmem>>, %arg35: memref<1x32xf32, #tpu.memory_space<vmem>>, %arg36: memref<1x16x128xf32, #tpu.memory_space<vmem>>, %arg37: memref<1x16x128xf32, #tpu.memory_space<vmem>>, %arg38: memref<1x16x128xf32, #tpu.memory_space<vmem>>, %arg39: memref<1x16x128xf32, #tpu.memory_space<vmem>>, %arg40: memref<1x8x128xf32, #tpu.memory_space<vmem>>, %arg41: memref<1x8x128xf32, #tpu.memory_space<vmem>>, %arg42: memref<1x8x128xf32, #tpu.memory_space<vmem>>, %arg43: memref<1x4x128xf32, #tpu.memory_space<vmem>>, %arg44: memref<1x4x128xf32, #tpu.memory_space<vmem>>, %arg45: memref<1x4x128xf32, #tpu.memory_space<vmem>>, %arg46: memref<1x2x128xf32, #tpu.memory_space<vmem>>, %arg47: memref<1x2x128xf32, #tpu.memory_space<vmem>>, %arg48: memref<1x2x128xf32, #tpu.memory_space<vmem>>, %arg49: memref<1x1x64xf32, #tpu.memory_space<vmem>>, %arg50: memref<1x1x32xf32, #tpu.memory_space<vmem>>, %arg51: memref<18x128xf32, #tpu.memory_space<vmem>>, %arg52: memref<18x128xf32, #tpu.memory_space<vmem>>) attributes {dimension_semantics = [#tpu.dimension_semantics<parallel>], iteration_bounds = array<i64: 2>, scalar_prefetch = 0 : i64, scratch_operands = 2 : i64, tpu.core_type = #tpu.core_type<tc>, window_params = [{transform_indices = @transform_0, window_bounds = array<i64: 1, 16, 16>}, {pipeline_mode = #tpu.pipeline_mode<synchronous>, transform_indices = @transform_1, window_bounds = array<i64: 3, 16, 128>}, {pipeline_mode = #tpu.pipeline_mode<synchronous>, transform_indices = @transform_2, window_bounds = array<i64: 1, 128>}, {pipeline_mode = #tpu.pipeline_mode<synchronous>, transform_indices = @transform_3, window_bounds = array<i64: 1, 128>}, {pipeline_mode = #tpu.pipeline_mode<synchronous>, transform_indices = @transform_4, window_bounds = array<i64: 3, 128, 128>}, {pipeline_mode = #tpu.pipeline_mode<synchronous>, transform_indices = @transform_5, window_bounds = array<i64: 1, 128>}, {pipeline_mode = #tpu.pipeline_mode<synchronous>, transform_indices = @transform_6, window_bounds = array<i64: 1, 128>}, {pipeline_mode = #tpu.pipeline_mode<synchronous>, transform_indices = @transform_7, window_bounds = array<i64: 3, 128, 128>}, {pipeline_mode = #tpu.pipeline_mode<synchronous>, transform_indices = @transform_8, window_bounds = array<i64: 1, 128>}, {pipeline_mode = #tpu.pipeline_mode<synchronous>, transform_indices = @transform_9, window_bounds = array<i64: 1, 128>}, {pipeline_mode = #tpu.pipeline_mode<synchronous>, transform_indices = @transform_10, window_bounds = array<i64: 128, 128>}, {pipeline_mode = #tpu.pipeline_mode<synchronous>, transform_indices = @transform_11, window_bounds = array<i64: 3, 128, 256>}, {pipeline_mode = #tpu.pipeline_mode<synchronous>, transform_indices = @transform_12, window_bounds = array<i64: 1, 256>}, {pipeline_mode = #tpu.pipeline_mode<synchronous>, transform_indices = @transform_13, window_bounds = array<i64: 1, 256>}, {pipeline_mode = #tpu.pipeline_mode<synchronous>, transform_indices = @transform_14, window_bounds = array<i64: 3, 128, 128>}, {pipeline_mode = #tpu.pipeline_mode<synchronous>, transform_indices = @transform_15, window_bounds = array<i64: 1, 128>}, {pipeline_mode = #tpu.pipeline_mode<synchronous>, transform_indices = @transform_16, window_bounds = array<i64: 1, 128>}, {pipeline_mode = #tpu.pipeline_mode<synchronous>, transform_indices = @transform_17, window_bounds = array<i64: 128, 128>}, {pipeline_mode = #tpu.pipeline_mode<synchronous>, transform_indices = @transform_18, window_bounds = array<i64: 3, 128, 256>}, {pipeline_mode = #tpu.pipeline_mode<synchronous>, transform_indices = @transform_19, window_bounds = array<i64: 1, 256>}, {pipeline_mode = #tpu.pipeline_mode<synchronous>, transform_indices = @transform_20, window_bounds = array<i64: 1, 256>}, {pipeline_mode = #tpu.pipeline_mode<synchronous>, transform_indices = @transform_21, window_bounds = array<i64: 3, 128, 128>}, {pipeline_mode = #tpu.pipeline_mode<synchronous>, transform_indices = @transform_22, window_bounds = array<i64: 1, 128>}, {pipeline_mode = #tpu.pipeline_mode<synchronous>, transform_indices = @transform_23, window_bounds = array<i64: 1, 128>}, {pipeline_mode = #tpu.pipeline_mode<synchronous>, transform_indices = @transform_24, window_bounds = array<i64: 128, 128>}, {pipeline_mode = #tpu.pipeline_mode<synchronous>, transform_indices = @transform_25, window_bounds = array<i64: 3, 128, 256>}, {pipeline_mode = #tpu.pipeline_mode<synchronous>, transform_indices = @transform_26, window_bounds = array<i64: 1, 256>}, {pipeline_mode = #tpu.pipeline_mode<synchronous>, transform_indices = @transform_27, window_bounds = array<i64: 1, 256>}, {pipeline_mode = #tpu.pipeline_mode<synchronous>, transform_indices = @transform_28, window_bounds = array<i64: 3, 128, 128>}, {pipeline_mode = #tpu.pipeline_mode<synchronous>, transform_indices = @transform_29, window_bounds = array<i64: 1, 128>}, {pipeline_mode = #tpu.pipeline_mode<synchronous>, transform_indices = @transform_30, window_bounds = array<i64: 1, 128>}, {pipeline_mode = #tpu.pipeline_mode<synchronous>, transform_indices = @transform_31, window_bounds = array<i64: 128, 128>}, {pipeline_mode = #tpu.pipeline_mode<synchronous>, transform_indices = @transform_32, window_bounds = array<i64: 128, 64>}, {pipeline_mode = #tpu.pipeline_mode<synchronous>, transform_indices = @transform_33, window_bounds = array<i64: 64, 32>}, {pipeline_mode = #tpu.pipeline_mode<synchronous>, transform_indices = @transform_34, window_bounds = array<i64: 1, 32>}, {transform_indices = @transform_35, window_bounds = array<i64: 1, 16, 128>}, {transform_indices = @transform_36, window_bounds = array<i64: 1, 16, 128>}, {transform_indices = @transform_37, window_bounds = array<i64: 1, 16, 128>}, {transform_indices = @transform_38, window_bounds = array<i64: 1, 16, 128>}, {transform_indices = @transform_39, window_bounds = array<i64: 1, 8, 128>}, {transform_indices = @transform_40, window_bounds = array<i64: 1, 8, 128>}, {transform_indices = @transform_41, window_bounds = array<i64: 1, 8, 128>}, {transform_indices = @transform_42, window_bounds = array<i64: 1, 4, 128>}, {transform_indices = @transform_43, window_bounds = array<i64: 1, 4, 128>}, {transform_indices = @transform_44, window_bounds = array<i64: 1, 4, 128>}, {transform_indices = @transform_45, window_bounds = array<i64: 1, 2, 128>}, {transform_indices = @transform_46, window_bounds = array<i64: 1, 2, 128>}, {transform_indices = @transform_47, window_bounds = array<i64: 1, 2, 128>}, {transform_indices = @transform_48, window_bounds = array<i64: 1, 1, 64>}, {transform_indices = @transform_49, window_bounds = array<i64: 1, 1, 32>}]} {
    %c0 = arith.constant 0 : index
    %c0_0 = arith.constant 0 : index
    %c0_1 = arith.constant 0 : index
    %0 = vector.load %arg1[%c0, %c0_0, %c0_1] : memref<1x16x16xf32, #tpu.memory_space<vmem>>, vector<1x16x16xf32>
    %1 = vector.shape_cast %0 : vector<1x16x16xf32> to vector<16x16xf32>
    %cst = arith.constant 0.000000e+00 : f32
    %2 = vector.broadcast %cst : f32 to vector<1x16xf32>
    %c0_2 = arith.constant 0 : index
    %c0_3 = arith.constant 0 : index
    %3 = vector.load %arg51[%c0_2, %c0_3] : memref<18x128xf32, #tpu.memory_space<vmem>>, vector<1x16xf32>
    tpu.vector_store %arg51[%c0_2, %c0_3], %2 {strides = array<i32>} : memref<18x128xf32, #tpu.memory_space<vmem>>, vector<1x16xf32>,
    %c17 = arith.constant 17 : index
    %c0_4 = arith.constant 0 : index
    %4 = vector.load %arg51[%c17, %c0_4] : memref<18x128xf32, #tpu.memory_space<vmem>>, vector<1x16xf32>
    tpu.vector_store %arg51[%c17, %c0_4], %2 {strides = array<i32>} : memref<18x128xf32, #tpu.memory_space<vmem>>, vector<1x16xf32>,
    %c1 = arith.constant 1 : index
    %c0_5 = arith.constant 0 : index
    %5 = vector.load %arg51[%c1, %c0_5] : memref<18x128xf32, #tpu.memory_space<vmem>>, vector<16x16xf32>
    tpu.vector_store %arg51[%c1, %c0_5], %1 {strides = array<i32>} : memref<18x128xf32, #tpu.memory_space<vmem>>, vector<16x16xf32>,
    %c0_6 = arith.constant 0 : index
    %c0_7 = arith.constant 0 : index
    %6 = vector.load %arg51[%c0_6, %c0_7] : memref<18x128xf32, #tpu.memory_space<vmem>>, vector<16x16xf32>
    %c0_8 = arith.constant 0 : index
    %c0_9 = arith.constant 0 : index
    %c0_10 = arith.constant 0 : index
    %7 = vector.load %arg2[%c0_8, %c0_9, %c0_10] : memref<3x16x128xf32, #tpu.memory_space<vmem>>, vector<1x16x128xf32>
    %8 = vector.shape_cast %7 : vector<1x16x128xf32> to vector<16x128xf32>
    %cst_11 = arith.constant dense<0.000000e+00> : vector<16x128xf32>
    %9 = tpu.matmul %6, %8, %cst_11 {dimension_numbers = #tpu.dot_dimension_numbers<[1], [0], [0], [1], [0, 0, 1, 1], [], []>} : vector<16x16xf32>, vector<16x128xf32>, vector<16x128xf32> -> vector<16x128xf32>
    %c1_12 = arith.constant 1 : index
    %c0_13 = arith.constant 0 : index
    %10 = vector.load %arg51[%c1_12, %c0_13] : memref<18x128xf32, #tpu.memory_space<vmem>>, vector<16x16xf32>
    %c1_14 = arith.constant 1 : index
    %c0_15 = arith.constant 0 : index
    %c0_16 = arith.constant 0 : index
    %11 = vector.load %arg2[%c1_14, %c0_15, %c0_16] : memref<3x16x128xf32, #tpu.memory_space<vmem>>, vector<1x16x128xf32>
    %12 = vector.shape_cast %11 : vector<1x16x128xf32> to vector<16x128xf32>
    %cst_17 = arith.constant dense<0.000000e+00> : vector<16x128xf32>
    %13 = tpu.matmul %10, %12, %cst_17 {dimension_numbers = #tpu.dot_dimension_numbers<[1], [0], [0], [1], [0, 0, 1, 1], [], []>} : vector<16x16xf32>, vector<16x128xf32>, vector<16x128xf32> -> vector<16x128xf32>
    %14 = arith.addf %9, %13 : vector<16x128xf32>
    %c2 = arith.constant 2 : index
    %c0_18 = arith.constant 0 : index
    %15 = vector.load %arg51[%c2, %c0_18] : memref<18x128xf32, #tpu.memory_space<vmem>>, vector<16x16xf32>
    %c2_19 = arith.constant 2 : index
    %c0_20 = arith.constant 0 : index
    %c0_21 = arith.constant 0 : index
    %16 = vector.load %arg2[%c2_19, %c0_20, %c0_21] : memref<3x16x128xf32, #tpu.memory_space<vmem>>, vector<1x16x128xf32>
    %17 = vector.shape_cast %16 : vector<1x16x128xf32> to vector<16x128xf32>
    %cst_22 = arith.constant dense<0.000000e+00> : vector<16x128xf32>
    %18 = tpu.matmul %15, %17, %cst_22 {dimension_numbers = #tpu.dot_dimension_numbers<[1], [0], [0], [1], [0, 0, 1, 1], [], []>} : vector<16x16xf32>, vector<16x128xf32>, vector<16x128xf32> -> vector<16x128xf32>
    %19 = arith.addf %14, %18 : vector<16x128xf32>
    %c0_23 = arith.constant 0 : index
    %c0_24 = arith.constant 0 : index
    %20 = vector.load %arg3[%c0_23, %c0_24] : memref<1x128xf32, #tpu.memory_space<vmem>>, vector<1x128xf32>
    %21 = vector.broadcast %20 : vector<1x128xf32> to vector<16x128xf32>
    %22 = arith.mulf %19, %21 : vector<16x128xf32>
    %c0_25 = arith.constant 0 : index
    %c0_26 = arith.constant 0 : index
    %23 = vector.load %arg4[%c0_25, %c0_26] : memref<1x128xf32, #tpu.memory_space<vmem>>, vector<1x128xf32>
    %24 = vector.broadcast %23 : vector<1x128xf32> to vector<16x128xf32>
    %25 = arith.addf %22, %24 : vector<16x128xf32>
    %cst_27 = arith.constant 0.000000e+00 : f32
    %26 = vector.broadcast %cst_27 : f32 to vector<16x128xf32>
    %27 = arith.maximumf %25, %26 : vector<16x128xf32>
    %c0_28 = arith.constant 0 : index
    %c0_29 = arith.constant 0 : index
    %c0_30 = arith.constant 0 : index
    %28 = vector.load %arg36[%c0_28, %c0_29, %c0_30] : memref<1x16x128xf32, #tpu.memory_space<vmem>>, vector<1x16x128xf32>
    %29 = vector.shape_cast %28 : vector<1x16x128xf32> to vector<16x128xf32>
    %30 = vector.shape_cast %27 : vector<16x128xf32> to vector<1x16x128xf32>
    tpu.vector_store %arg36[%c0_28, %c0_29, %c0_30], %30 {strides = array<i32>} : memref<1x16x128xf32, #tpu.memory_space<vmem>>, vector<1x16x128xf32>,
    %cst_31 = arith.constant 0.000000e+00 : f32
    %31 = vector.broadcast %cst_31 : f32 to vector<1x128xf32>
    %c0_32 = arith.constant 0 : index
    %c0_33 = arith.constant 0 : index
    %32 = vector.load %arg51[%c0_32, %c0_33] : memref<18x128xf32, #tpu.memory_space<vmem>>, vector<1x128xf32>
    tpu.vector_store %arg51[%c0_32, %c0_33], %31 {strides = array<i32>} : memref<18x128xf32, #tpu.memory_space<vmem>>, vector<1x128xf32>,
    %c17_34 = arith.constant 17 : index
    %c0_35 = arith.constant 0 : index
    %33 = vector.load %arg51[%c17_34, %c0_35] : memref<18x128xf32, #tpu.memory_space<vmem>>, vector<1x128xf32>
    tpu.vector_store %arg51[%c17_34, %c0_35], %31 {strides = array<i32>} : memref<18x128xf32, #tpu.memory_space<vmem>>, vector<1x128xf32>,
    %c1_36 = arith.constant 1 : index
    %c0_37 = arith.constant 0 : index
    %34 = vector.load %arg51[%c1_36, %c0_37] : memref<18x128xf32, #tpu.memory_space<vmem>>, vector<16x128xf32>
    tpu.vector_store %arg51[%c1_36, %c0_37], %27 {strides = array<i32>} : memref<18x128xf32, #tpu.memory_space<vmem>>, vector<16x128xf32>,
    %c0_38 = arith.constant 0 : index
    %c0_39 = arith.constant 0 : index
    %35 = vector.load %arg51[%c0_38, %c0_39] : memref<18x128xf32, #tpu.memory_space<vmem>>, vector<16x128xf32>
    %c0_40 = arith.constant 0 : index
    %c0_41 = arith.constant 0 : index
    %c0_42 = arith.constant 0 : index
    %36 = vector.load %arg5[%c0_40, %c0_41, %c0_42] : memref<3x128x128xf32, #tpu.memory_space<vmem>>, vector<1x128x128xf32>
    %37 = vector.shape_cast %36 : vector<1x128x128xf32> to vector<128x128xf32>
    %cst_43 = arith.constant dense<0.000000e+00> : vector<16x128xf32>
    %38 = tpu.matmul %35, %37, %cst_43 {dimension_numbers = #tpu.dot_dimension_numbers<[1], [0], [0], [1], [0, 0, 1, 1], [], []>} : vector<16x128xf32>, vector<128x128xf32>, vector<16x128xf32> -> vector<16x128xf32>
    %c1_44 = arith.constant 1 : index
    %c0_45 = arith.constant 0 : index
    %39 = vector.load %arg51[%c1_44, %c0_45] : memref<18x128xf32, #tpu.memory_space<vmem>>, vector<16x128xf32>
    %c1_46 = arith.constant 1 : index
    %c0_47 = arith.constant 0 : index
    %c0_48 = arith.constant 0 : index
    %40 = vector.load %arg5[%c1_46, %c0_47, %c0_48] : memref<3x128x128xf32, #tpu.memory_space<vmem>>, vector<1x128x128xf32>
    %41 = vector.shape_cast %40 : vector<1x128x128xf32> to vector<128x128xf32>
    %cst_49 = arith.constant dense<0.000000e+00> : vector<16x128xf32>
    %42 = tpu.matmul %39, %41, %cst_49 {dimension_numbers = #tpu.dot_dimension_numbers<[1], [0], [0], [1], [0, 0, 1, 1], [], []>} : vector<16x128xf32>, vector<128x128xf32>, vector<16x128xf32> -> vector<16x128xf32>
    %43 = arith.addf %38, %42 : vector<16x128xf32>
    %c2_50 = arith.constant 2 : index
    %c0_51 = arith.constant 0 : index
    %44 = vector.load %arg51[%c2_50, %c0_51] : memref<18x128xf32, #tpu.memory_space<vmem>>, vector<16x128xf32>
    %c2_52 = arith.constant 2 : index
    %c0_53 = arith.constant 0 : index
    %c0_54 = arith.constant 0 : index
    %45 = vector.load %arg5[%c2_52, %c0_53, %c0_54] : memref<3x128x128xf32, #tpu.memory_space<vmem>>, vector<1x128x128xf32>
    %46 = vector.shape_cast %45 : vector<1x128x128xf32> to vector<128x128xf32>
    %cst_55 = arith.constant dense<0.000000e+00> : vector<16x128xf32>
    %47 = tpu.matmul %44, %46, %cst_55 {dimension_numbers = #tpu.dot_dimension_numbers<[1], [0], [0], [1], [0, 0, 1, 1], [], []>} : vector<16x128xf32>, vector<128x128xf32>, vector<16x128xf32> -> vector<16x128xf32>
    %48 = arith.addf %43, %47 : vector<16x128xf32>
    %c0_56 = arith.constant 0 : index
    %c0_57 = arith.constant 0 : index
    %49 = vector.load %arg6[%c0_56, %c0_57] : memref<1x128xf32, #tpu.memory_space<vmem>>, vector<1x128xf32>
    %50 = vector.broadcast %49 : vector<1x128xf32> to vector<16x128xf32>
    %51 = arith.mulf %48, %50 : vector<16x128xf32>
    %c0_58 = arith.constant 0 : index
    %c0_59 = arith.constant 0 : index
    %52 = vector.load %arg7[%c0_58, %c0_59] : memref<1x128xf32, #tpu.memory_space<vmem>>, vector<1x128xf32>
    %53 = vector.broadcast %52 : vector<1x128xf32> to vector<16x128xf32>
    %54 = arith.addf %51, %53 : vector<16x128xf32>
    %cst_60 = arith.constant 0.000000e+00 : f32
    %55 = vector.broadcast %cst_60 : f32 to vector<16x128xf32>
    %56 = arith.maximumf %54, %55 : vector<16x128xf32>
    %c0_61 = arith.constant 0 : index
    %c0_62 = arith.constant 0 : index
    %c0_63 = arith.constant 0 : index
    %57 = vector.load %arg37[%c0_61, %c0_62, %c0_63] : memref<1x16x128xf32, #tpu.memory_space<vmem>>, vector<1x16x128xf32>
    %58 = vector.shape_cast %57 : vector<1x16x128xf32> to vector<16x128xf32>
    %59 = vector.shape_cast %56 : vector<16x128xf32> to vector<1x16x128xf32>
    tpu.vector_store %arg37[%c0_61, %c0_62, %c0_63], %59 {strides = array<i32>} : memref<1x16x128xf32, #tpu.memory_space<vmem>>, vector<1x16x128xf32>,
    %cst_64 = arith.constant 0.000000e+00 : f32
    %60 = vector.broadcast %cst_64 : f32 to vector<1x128xf32>
    %c0_65 = arith.constant 0 : index
    %c0_66 = arith.constant 0 : index
    %61 = vector.load %arg52[%c0_65, %c0_66] : memref<18x128xf32, #tpu.memory_space<vmem>>, vector<1x128xf32>
    tpu.vector_store %arg52[%c0_65, %c0_66], %60 {strides = array<i32>} : memref<18x128xf32, #tpu.memory_space<vmem>>, vector<1x128xf32>,
    %c17_67 = arith.constant 17 : index
    %c0_68 = arith.constant 0 : index
    %62 = vector.load %arg52[%c17_67, %c0_68] : memref<18x128xf32, #tpu.memory_space<vmem>>, vector<1x128xf32>
    tpu.vector_store %arg52[%c17_67, %c0_68], %60 {strides = array<i32>} : memref<18x128xf32, #tpu.memory_space<vmem>>, vector<1x128xf32>,
    %c1_69 = arith.constant 1 : index
    %c0_70 = arith.constant 0 : index
    %63 = vector.load %arg52[%c1_69, %c0_70] : memref<18x128xf32, #tpu.memory_space<vmem>>, vector<16x128xf32>
    tpu.vector_store %arg52[%c1_69, %c0_70], %56 {strides = array<i32>} : memref<18x128xf32, #tpu.memory_space<vmem>>, vector<16x128xf32>,
    %c0_71 = arith.constant 0 : index
    %c0_72 = arith.constant 0 : index
    %64 = vector.load %arg52[%c0_71, %c0_72] : memref<18x128xf32, #tpu.memory_space<vmem>>, vector<16x128xf32>
    %c0_73 = arith.constant 0 : index
    %c0_74 = arith.constant 0 : index
    %c0_75 = arith.constant 0 : index
    %65 = vector.load %arg8[%c0_73, %c0_74, %c0_75] : memref<3x128x128xf32, #tpu.memory_space<vmem>>, vector<1x128x128xf32>
    %66 = vector.shape_cast %65 : vector<1x128x128xf32> to vector<128x128xf32>
    %cst_76 = arith.constant dense<0.000000e+00> : vector<16x128xf32>
    %67 = tpu.matmul %64, %66, %cst_76 {dimension_numbers = #tpu.dot_dimension_numbers<[1], [0], [0], [1], [0, 0, 1, 1], [], []>} : vector<16x128xf32>, vector<128x128xf32>, vector<16x128xf32> -> vector<16x128xf32>
    %c1_77 = arith.constant 1 : index
    %c0_78 = arith.constant 0 : index
    %68 = vector.load %arg52[%c1_77, %c0_78] : memref<18x128xf32, #tpu.memory_space<vmem>>, vector<16x128xf32>
    %c1_79 = arith.constant 1 : index
    %c0_80 = arith.constant 0 : index
    %c0_81 = arith.constant 0 : index
    %69 = vector.load %arg8[%c1_79, %c0_80, %c0_81] : memref<3x128x128xf32, #tpu.memory_space<vmem>>, vector<1x128x128xf32>
    %70 = vector.shape_cast %69 : vector<1x128x128xf32> to vector<128x128xf32>
    %cst_82 = arith.constant dense<0.000000e+00> : vector<16x128xf32>
    %71 = tpu.matmul %68, %70, %cst_82 {dimension_numbers = #tpu.dot_dimension_numbers<[1], [0], [0], [1], [0, 0, 1, 1], [], []>} : vector<16x128xf32>, vector<128x128xf32>, vector<16x128xf32> -> vector<16x128xf32>
    %72 = arith.addf %67, %71 : vector<16x128xf32>
    %c2_83 = arith.constant 2 : index
    %c0_84 = arith.constant 0 : index
    %73 = vector.load %arg52[%c2_83, %c0_84] : memref<18x128xf32, #tpu.memory_space<vmem>>, vector<16x128xf32>
    %c2_85 = arith.constant 2 : index
    %c0_86 = arith.constant 0 : index
    %c0_87 = arith.constant 0 : index
    %74 = vector.load %arg8[%c2_85, %c0_86, %c0_87] : memref<3x128x128xf32, #tpu.memory_space<vmem>>, vector<1x128x128xf32>
    %75 = vector.shape_cast %74 : vector<1x128x128xf32> to vector<128x128xf32>
    %cst_88 = arith.constant dense<0.000000e+00> : vector<16x128xf32>
    %76 = tpu.matmul %73, %75, %cst_88 {dimension_numbers = #tpu.dot_dimension_numbers<[1], [0], [0], [1], [0, 0, 1, 1], [], []>} : vector<16x128xf32>, vector<128x128xf32>, vector<16x128xf32> -> vector<16x128xf32>
    %77 = arith.addf %72, %76 : vector<16x128xf32>
    %c0_89 = arith.constant 0 : index
    %c0_90 = arith.constant 0 : index
    %78 = vector.load %arg9[%c0_89, %c0_90] : memref<1x128xf32, #tpu.memory_space<vmem>>, vector<1x128xf32>
    %79 = vector.broadcast %78 : vector<1x128xf32> to vector<16x128xf32>
    %80 = arith.mulf %77, %79 : vector<16x128xf32>
    %c0_91 = arith.constant 0 : index
    %c0_92 = arith.constant 0 : index
    %81 = vector.load %arg10[%c0_91, %c0_92] : memref<1x128xf32, #tpu.memory_space<vmem>>, vector<1x128xf32>
    %82 = vector.broadcast %81 : vector<1x128xf32> to vector<16x128xf32>
    %83 = arith.addf %80, %82 : vector<16x128xf32>
    %cst_93 = arith.constant dense<0.000000e+00> : vector<128xf32>
    %84 = vector.multi_reduction <add>, %83, %cst_93 [0] : vector<16x128xf32> to vector<128xf32>
    %85 = vector.shape_cast %84 : vector<128xf32> to vector<1x128xf32>
    %c0_94 = arith.constant 0 : index
    %c0_95 = arith.constant 0 : index
    %86 = vector.load %arg11[%c0_94, %c0_95] : memref<128x128xf32, #tpu.memory_space<vmem>>, vector<128x128xf32>
    %cst_96 = arith.constant dense<0.000000e+00> : vector<1x128xf32>
    %87 = tpu.matmul %85, %86, %cst_96 {dimension_numbers = #tpu.dot_dimension_numbers<[1], [0], [0], [1], [0, 0, 1, 1], [], []>} : vector<1x128xf32>, vector<128x128xf32>, vector<1x128xf32> -> vector<1x128xf32>
    %cst_97 = arith.constant 3.906250e-03 : f32
    %88 = vector.broadcast %cst_97 : f32 to vector<1x128xf32>
    %89 = arith.mulf %87, %88 : vector<1x128xf32>
    %90 = vector.broadcast %89 : vector<1x128xf32> to vector<16x128xf32>
    %91 = arith.subf %83, %90 : vector<16x128xf32>
    %92 = arith.mulf %91, %91 : vector<16x128xf32>
    %cst_98 = arith.constant dense<0.000000e+00> : vector<128xf32>
    %93 = vector.multi_reduction <add>, %92, %cst_98 [0] : vector<16x128xf32> to vector<128xf32>
    %94 = vector.shape_cast %93 : vector<128xf32> to vector<1x128xf32>
    %c0_99 = arith.constant 0 : index
    %c0_100 = arith.constant 0 : index
    %95 = vector.load %arg11[%c0_99, %c0_100] : memref<128x128xf32, #tpu.memory_space<vmem>>, vector<128x128xf32>
    %cst_101 = arith.constant dense<0.000000e+00> : vector<1x128xf32>
    %96 = tpu.matmul %94, %95, %cst_101 {dimension_numbers = #tpu.dot_dimension_numbers<[1], [0], [0], [1], [0, 0, 1, 1], [], []>} : vector<1x128xf32>, vector<128x128xf32>, vector<1x128xf32> -> vector<1x128xf32>
    %cst_102 = arith.constant 0.00392156886 : f32
    %97 = vector.broadcast %cst_102 : f32 to vector<1x128xf32>
    %98 = arith.mulf %96, %97 : vector<1x128xf32>
    %cst_103 = arith.constant 9.99999974E-5 : f32
    %99 = vector.broadcast %cst_103 : f32 to vector<1x128xf32>
    %100 = arith.addf %98, %99 : vector<1x128xf32>
    %cst_104 = arith.constant 4.000000e+00 : f32
    %101 = vector.broadcast %cst_104 : f32 to vector<1x128xf32>
    %102 = arith.mulf %101, %100 : vector<1x128xf32>
    %103 = vector.broadcast %102 : vector<1x128xf32> to vector<16x128xf32>
    %104 = arith.divf %92, %103 : vector<16x128xf32>
    %cst_105 = arith.constant 5.000000e-01 : f32
    %105 = vector.broadcast %cst_105 : f32 to vector<16x128xf32>
    %106 = arith.addf %104, %105 : vector<16x128xf32>
    %107 = arith.negf %106 : vector<16x128xf32>
    %108 = math.exp %107 : vector<16x128xf32>
    %cst_106 = arith.constant 1.000000e+00 : f32
    %109 = vector.broadcast %cst_106 : f32 to vector<16x128xf32>
    %110 = arith.addf %109, %108 : vector<16x128xf32>
    %111 = arith.divf %109, %110 : vector<16x128xf32>
    %112 = arith.mulf %83, %111 : vector<16x128xf32>
    %c0_107 = arith.constant 0 : index
    %c0_108 = arith.constant 0 : index
    %c0_109 = arith.constant 0 : index
    %113 = vector.load %arg38[%c0_107, %c0_108, %c0_109] : memref<1x16x128xf32, #tpu.memory_space<vmem>>, vector<1x16x128xf32>
    %114 = vector.shape_cast %113 : vector<1x16x128xf32> to vector<16x128xf32>
    %115 = vector.shape_cast %112 : vector<16x128xf32> to vector<1x16x128xf32>
    tpu.vector_store %arg38[%c0_107, %c0_108, %c0_109], %115 {strides = array<i32>} : memref<1x16x128xf32, #tpu.memory_space<vmem>>, vector<1x16x128xf32>,
    %116 = arith.addf %112, %27 : vector<16x128xf32>
    %cst_110 = arith.constant 0.000000e+00 : f32
    %117 = vector.broadcast %cst_110 : f32 to vector<16x128xf32>
    %118 = arith.maximumf %116, %117 : vector<16x128xf32>
    %c0_111 = arith.constant 0 : index
    %c0_112 = arith.constant 0 : index
    %c0_113 = arith.constant 0 : index
    %119 = vector.load %arg39[%c0_111, %c0_112, %c0_113] : memref<1x16x128xf32, #tpu.memory_space<vmem>>, vector<1x16x128xf32>
    %120 = vector.shape_cast %119 : vector<1x16x128xf32> to vector<16x128xf32>
    %121 = vector.shape_cast %118 : vector<16x128xf32> to vector<1x16x128xf32>
    tpu.vector_store %arg39[%c0_111, %c0_112, %c0_113], %121 {strides = array<i32>} : memref<1x16x128xf32, #tpu.memory_space<vmem>>, vector<1x16x128xf32>,
    %cst_114 = arith.constant 0.000000e+00 : f32
    %122 = vector.broadcast %cst_114 : f32 to vector<1x128xf32>
    %c0_115 = arith.constant 0 : index
    %c0_116 = arith.constant 0 : index
    %123 = vector.load %arg51[%c0_115, %c0_116] : memref<18x128xf32, #tpu.memory_space<vmem>>, vector<1x128xf32>
    tpu.vector_store %arg51[%c0_115, %c0_116], %122 {strides = array<i32>} : memref<18x128xf32, #tpu.memory_space<vmem>>, vector<1x128xf32>,
    %c17_117 = arith.constant 17 : index
    %c0_118 = arith.constant 0 : index
    %124 = vector.load %arg51[%c17_117, %c0_118] : memref<18x128xf32, #tpu.memory_space<vmem>>, vector<1x128xf32>
    tpu.vector_store %arg51[%c17_117, %c0_118], %122 {strides = array<i32>} : memref<18x128xf32, #tpu.memory_space<vmem>>, vector<1x128xf32>,
    %c1_119 = arith.constant 1 : index
    %c0_120 = arith.constant 0 : index
    %125 = vector.load %arg51[%c1_119, %c0_120] : memref<18x128xf32, #tpu.memory_space<vmem>>, vector<16x128xf32>
    tpu.vector_store %arg51[%c1_119, %c0_120], %118 {strides = array<i32>} : memref<18x128xf32, #tpu.memory_space<vmem>>, vector<16x128xf32>,
    %c0_121 = arith.constant 0 : index
    %c0_122 = arith.constant 0 : index
    %126 = tpu.strided_load %arg51[%c0_121, %c0_122] {strides = array<i32: 2, 1>} : memref<18x128xf32, #tpu.memory_space<vmem>>, vector<8x128xf32>
    %c0_123 = arith.constant 0 : index
    %c0_124 = arith.constant 0 : index
    %c0_125 = arith.constant 0 : index
    %127 = vector.load %arg12[%c0_123, %c0_124, %c0_125] : memref<3x128x256xf32, #tpu.memory_space<vmem>>, vector<1x128x256xf32>
    %128 = vector.shape_cast %127 : vector<1x128x256xf32> to vector<128x256xf32>
    %cst_126 = arith.constant dense<0.000000e+00> : vector<8x256xf32>
    %129 = tpu.matmul %126, %128, %cst_126 {dimension_numbers = #tpu.dot_dimension_numbers<[1], [0], [0], [1], [0, 0, 1, 1], [], []>} : vector<8x128xf32>, vector<128x256xf32>, vector<8x256xf32> -> vector<8x256xf32>
    %c1_127 = arith.constant 1 : index
    %c0_128 = arith.constant 0 : index
    %130 = tpu.strided_load %arg51[%c1_127, %c0_128] {strides = array<i32: 2, 1>} : memref<18x128xf32, #tpu.memory_space<vmem>>, vector<8x128xf32>
    %c1_129 = arith.constant 1 : index
    %c0_130 = arith.constant 0 : index
    %c0_131 = arith.constant 0 : index
    %131 = vector.load %arg12[%c1_129, %c0_130, %c0_131] : memref<3x128x256xf32, #tpu.memory_space<vmem>>, vector<1x128x256xf32>
    %132 = vector.shape_cast %131 : vector<1x128x256xf32> to vector<128x256xf32>
    %cst_132 = arith.constant dense<0.000000e+00> : vector<8x256xf32>
    %133 = tpu.matmul %130, %132, %cst_132 {dimension_numbers = #tpu.dot_dimension_numbers<[1], [0], [0], [1], [0, 0, 1, 1], [], []>} : vector<8x128xf32>, vector<128x256xf32>, vector<8x256xf32> -> vector<8x256xf32>
    %134 = arith.addf %129, %133 : vector<8x256xf32>
    %c2_133 = arith.constant 2 : index
    %c0_134 = arith.constant 0 : index
    %135 = tpu.strided_load %arg51[%c2_133, %c0_134] {strides = array<i32: 2, 1>} : memref<18x128xf32, #tpu.memory_space<vmem>>, vector<8x128xf32>
    %c2_135 = arith.constant 2 : index
    %c0_136 = arith.constant 0 : index
    %c0_137 = arith.constant 0 : index
    %136 = vector.load %arg12[%c2_135, %c0_136, %c0_137] : memref<3x128x256xf32, #tpu.memory_space<vmem>>, vector<1x128x256xf32>
    %137 = vector.shape_cast %136 : vector<1x128x256xf32> to vector<128x256xf32>
    %cst_138 = arith.constant dense<0.000000e+00> : vector<8x256xf32>
    %138 = tpu.matmul %135, %137, %cst_138 {dimension_numbers = #tpu.dot_dimension_numbers<[1], [0], [0], [1], [0, 0, 1, 1], [], []>} : vector<8x128xf32>, vector<128x256xf32>, vector<8x256xf32> -> vector<8x256xf32>
    %139 = arith.addf %134, %138 : vector<8x256xf32>
    %c0_139 = arith.constant 0 : index
    %c0_140 = arith.constant 0 : index
    %140 = vector.load %arg13[%c0_139, %c0_140] : memref<1x256xf32, #tpu.memory_space<vmem>>, vector<1x256xf32>
    %141 = vector.broadcast %140 : vector<1x256xf32> to vector<8x256xf32>
    %142 = arith.mulf %139, %141 : vector<8x256xf32>
    %c0_141 = arith.constant 0 : index
    %c0_142 = arith.constant 0 : index
    %143 = vector.load %arg14[%c0_141, %c0_142] : memref<1x256xf32, #tpu.memory_space<vmem>>, vector<1x256xf32>
    %144 = vector.broadcast %143 : vector<1x256xf32> to vector<8x256xf32>
    %145 = arith.addf %142, %144 : vector<8x256xf32>
    %146 = vector.extract_strided_slice %145 {offsets = [0, 0], sizes = [8, 128], strides = [1, 1]} : vector<8x256xf32> to vector<8x128xf32>
    %cst_143 = arith.constant 0.000000e+00 : f32
    %147 = vector.broadcast %cst_143 : f32 to vector<8x128xf32>
    %148 = arith.maximumf %146, %147 : vector<8x128xf32>
    %c0_144 = arith.constant 0 : index
    %c0_145 = arith.constant 0 : index
    %c0_146 = arith.constant 0 : index
    %149 = vector.load %arg40[%c0_144, %c0_145, %c0_146] : memref<1x8x128xf32, #tpu.memory_space<vmem>>, vector<1x8x128xf32>
    %150 = vector.shape_cast %149 : vector<1x8x128xf32> to vector<8x128xf32>
    %151 = vector.shape_cast %148 : vector<8x128xf32> to vector<1x8x128xf32>
    tpu.vector_store %arg40[%c0_144, %c0_145, %c0_146], %151 {strides = array<i32>} : memref<1x8x128xf32, #tpu.memory_space<vmem>>, vector<1x8x128xf32>,
    %152 = vector.extract_strided_slice %145 {offsets = [0, 128], sizes = [8, 128], strides = [1, 1]} : vector<8x256xf32> to vector<8x128xf32>
    %cst_147 = arith.constant 0.000000e+00 : f32
    %153 = vector.broadcast %cst_147 : f32 to vector<1x128xf32>
    %c0_148 = arith.constant 0 : index
    %c0_149 = arith.constant 0 : index
    %154 = vector.load %arg52[%c0_148, %c0_149] : memref<18x128xf32, #tpu.memory_space<vmem>>, vector<1x128xf32>
    tpu.vector_store %arg52[%c0_148, %c0_149], %153 {strides = array<i32>} : memref<18x128xf32, #tpu.memory_space<vmem>>, vector<1x128xf32>,
    %c9 = arith.constant 9 : index
    %c0_150 = arith.constant 0 : index
    %155 = vector.load %arg52[%c9, %c0_150] : memref<18x128xf32, #tpu.memory_space<vmem>>, vector<1x128xf32>
    tpu.vector_store %arg52[%c9, %c0_150], %153 {strides = array<i32>} : memref<18x128xf32, #tpu.memory_space<vmem>>, vector<1x128xf32>,
    %c1_151 = arith.constant 1 : index
    %c0_152 = arith.constant 0 : index
    %156 = vector.load %arg52[%c1_151, %c0_152] : memref<18x128xf32, #tpu.memory_space<vmem>>, vector<8x128xf32>
    tpu.vector_store %arg52[%c1_151, %c0_152], %148 {strides = array<i32>} : memref<18x128xf32, #tpu.memory_space<vmem>>, vector<8x128xf32>,
    %c0_153 = arith.constant 0 : index
    %c0_154 = arith.constant 0 : index
    %157 = vector.load %arg52[%c0_153, %c0_154] : memref<18x128xf32, #tpu.memory_space<vmem>>, vector<8x128xf32>
    %c0_155 = arith.constant 0 : index
    %c0_156 = arith.constant 0 : index
    %c0_157 = arith.constant 0 : index
    %158 = vector.load %arg15[%c0_155, %c0_156, %c0_157] : memref<3x128x128xf32, #tpu.memory_space<vmem>>, vector<1x128x128xf32>
    %159 = vector.shape_cast %158 : vector<1x128x128xf32> to vector<128x128xf32>
    %cst_158 = arith.constant dense<0.000000e+00> : vector<8x128xf32>
    %160 = tpu.matmul %157, %159, %cst_158 {dimension_numbers = #tpu.dot_dimension_numbers<[1], [0], [0], [1], [0, 0, 1, 1], [], []>} : vector<8x128xf32>, vector<128x128xf32>, vector<8x128xf32> -> vector<8x128xf32>
    %c1_159 = arith.constant 1 : index
    %c0_160 = arith.constant 0 : index
    %161 = vector.load %arg52[%c1_159, %c0_160] : memref<18x128xf32, #tpu.memory_space<vmem>>, vector<8x128xf32>
    %c1_161 = arith.constant 1 : index
    %c0_162 = arith.constant 0 : index
    %c0_163 = arith.constant 0 : index
    %162 = vector.load %arg15[%c1_161, %c0_162, %c0_163] : memref<3x128x128xf32, #tpu.memory_space<vmem>>, vector<1x128x128xf32>
    %163 = vector.shape_cast %162 : vector<1x128x128xf32> to vector<128x128xf32>
    %cst_164 = arith.constant dense<0.000000e+00> : vector<8x128xf32>
    %164 = tpu.matmul %161, %163, %cst_164 {dimension_numbers = #tpu.dot_dimension_numbers<[1], [0], [0], [1], [0, 0, 1, 1], [], []>} : vector<8x128xf32>, vector<128x128xf32>, vector<8x128xf32> -> vector<8x128xf32>
    %165 = arith.addf %160, %164 : vector<8x128xf32>
    %c2_165 = arith.constant 2 : index
    %c0_166 = arith.constant 0 : index
    %166 = vector.load %arg52[%c2_165, %c0_166] : memref<18x128xf32, #tpu.memory_space<vmem>>, vector<8x128xf32>
    %c2_167 = arith.constant 2 : index
    %c0_168 = arith.constant 0 : index
    %c0_169 = arith.constant 0 : index
    %167 = vector.load %arg15[%c2_167, %c0_168, %c0_169] : memref<3x128x128xf32, #tpu.memory_space<vmem>>, vector<1x128x128xf32>
    %168 = vector.shape_cast %167 : vector<1x128x128xf32> to vector<128x128xf32>
    %cst_170 = arith.constant dense<0.000000e+00> : vector<8x128xf32>
    %169 = tpu.matmul %166, %168, %cst_170 {dimension_numbers = #tpu.dot_dimension_numbers<[1], [0], [0], [1], [0, 0, 1, 1], [], []>} : vector<8x128xf32>, vector<128x128xf32>, vector<8x128xf32> -> vector<8x128xf32>
    %170 = arith.addf %165, %169 : vector<8x128xf32>
    %c0_171 = arith.constant 0 : index
    %c0_172 = arith.constant 0 : index
    %171 = vector.load %arg16[%c0_171, %c0_172] : memref<1x128xf32, #tpu.memory_space<vmem>>, vector<1x128xf32>
    %172 = vector.broadcast %171 : vector<1x128xf32> to vector<8x128xf32>
    %173 = arith.mulf %170, %172 : vector<8x128xf32>
    %c0_173 = arith.constant 0 : index
    %c0_174 = arith.constant 0 : index
    %174 = vector.load %arg17[%c0_173, %c0_174] : memref<1x128xf32, #tpu.memory_space<vmem>>, vector<1x128xf32>
    %175 = vector.broadcast %174 : vector<1x128xf32> to vector<8x128xf32>
    %176 = arith.addf %173, %175 : vector<8x128xf32>
    %cst_175 = arith.constant dense<0.000000e+00> : vector<128xf32>
    %177 = vector.multi_reduction <add>, %176, %cst_175 [0] : vector<8x128xf32> to vector<128xf32>
    %178 = vector.shape_cast %177 : vector<128xf32> to vector<1x128xf32>
    %c0_176 = arith.constant 0 : index
    %c0_177 = arith.constant 0 : index
    %179 = vector.load %arg18[%c0_176, %c0_177] : memref<128x128xf32, #tpu.memory_space<vmem>>, vector<128x128xf32>
    %cst_178 = arith.constant dense<0.000000e+00> : vector<1x128xf32>
    %180 = tpu.matmul %178, %179, %cst_178 {dimension_numbers = #tpu.dot_dimension_numbers<[1], [0], [0], [1], [0, 0, 1, 1], [], []>} : vector<1x128xf32>, vector<128x128xf32>, vector<1x128xf32> -> vector<1x128xf32>
    %cst_179 = arith.constant 1.562500e-02 : f32
    %181 = vector.broadcast %cst_179 : f32 to vector<1x128xf32>
    %182 = arith.mulf %180, %181 : vector<1x128xf32>
    %183 = vector.broadcast %182 : vector<1x128xf32> to vector<8x128xf32>
    %184 = arith.subf %176, %183 : vector<8x128xf32>
    %185 = arith.mulf %184, %184 : vector<8x128xf32>
    %cst_180 = arith.constant dense<0.000000e+00> : vector<128xf32>
    %186 = vector.multi_reduction <add>, %185, %cst_180 [0] : vector<8x128xf32> to vector<128xf32>
    %187 = vector.shape_cast %186 : vector<128xf32> to vector<1x128xf32>
    %c0_181 = arith.constant 0 : index
    %c0_182 = arith.constant 0 : index
    %188 = vector.load %arg18[%c0_181, %c0_182] : memref<128x128xf32, #tpu.memory_space<vmem>>, vector<128x128xf32>
    %cst_183 = arith.constant dense<0.000000e+00> : vector<1x128xf32>
    %189 = tpu.matmul %187, %188, %cst_183 {dimension_numbers = #tpu.dot_dimension_numbers<[1], [0], [0], [1], [0, 0, 1, 1], [], []>} : vector<1x128xf32>, vector<128x128xf32>, vector<1x128xf32> -> vector<1x128xf32>
    %cst_184 = arith.constant 0.0158730168 : f32
    %190 = vector.broadcast %cst_184 : f32 to vector<1x128xf32>
    %191 = arith.mulf %189, %190 : vector<1x128xf32>
    %cst_185 = arith.constant 9.99999974E-5 : f32
    %192 = vector.broadcast %cst_185 : f32 to vector<1x128xf32>
    %193 = arith.addf %191, %192 : vector<1x128xf32>
    %cst_186 = arith.constant 4.000000e+00 : f32
    %194 = vector.broadcast %cst_186 : f32 to vector<1x128xf32>
    %195 = arith.mulf %194, %193 : vector<1x128xf32>
    %196 = vector.broadcast %195 : vector<1x128xf32> to vector<8x128xf32>
    %197 = arith.divf %185, %196 : vector<8x128xf32>
    %cst_187 = arith.constant 5.000000e-01 : f32
    %198 = vector.broadcast %cst_187 : f32 to vector<8x128xf32>
    %199 = arith.addf %197, %198 : vector<8x128xf32>
    %200 = arith.negf %199 : vector<8x128xf32>
    %201 = math.exp %200 : vector<8x128xf32>
    %cst_188 = arith.constant 1.000000e+00 : f32
    %202 = vector.broadcast %cst_188 : f32 to vector<8x128xf32>
    %203 = arith.addf %202, %201 : vector<8x128xf32>
    %204 = arith.divf %202, %203 : vector<8x128xf32>
    %205 = arith.mulf %176, %204 : vector<8x128xf32>
    %c0_189 = arith.constant 0 : index
    %c0_190 = arith.constant 0 : index
    %c0_191 = arith.constant 0 : index
    %206 = vector.load %arg41[%c0_189, %c0_190, %c0_191] : memref<1x8x128xf32, #tpu.memory_space<vmem>>, vector<1x8x128xf32>
    %207 = vector.shape_cast %206 : vector<1x8x128xf32> to vector<8x128xf32>
    %208 = vector.shape_cast %205 : vector<8x128xf32> to vector<1x8x128xf32>
    tpu.vector_store %arg41[%c0_189, %c0_190, %c0_191], %208 {strides = array<i32>} : memref<1x8x128xf32, #tpu.memory_space<vmem>>, vector<1x8x128xf32>,
    %209 = arith.addf %205, %152 : vector<8x128xf32>
    %cst_192 = arith.constant 0.000000e+00 : f32
    %210 = vector.broadcast %cst_192 : f32 to vector<8x128xf32>
    %211 = arith.maximumf %209, %210 : vector<8x128xf32>
    %c0_193 = arith.constant 0 : index
    %c0_194 = arith.constant 0 : index
    %c0_195 = arith.constant 0 : index
    %212 = vector.load %arg42[%c0_193, %c0_194, %c0_195] : memref<1x8x128xf32, #tpu.memory_space<vmem>>, vector<1x8x128xf32>
    %213 = vector.shape_cast %212 : vector<1x8x128xf32> to vector<8x128xf32>
    %214 = vector.shape_cast %211 : vector<8x128xf32> to vector<1x8x128xf32>
    tpu.vector_store %arg42[%c0_193, %c0_194, %c0_195], %214 {strides = array<i32>} : memref<1x8x128xf32, #tpu.memory_space<vmem>>, vector<1x8x128xf32>,
    %cst_196 = arith.constant 0.000000e+00 : f32
    %215 = vector.broadcast %cst_196 : f32 to vector<1x128xf32>
    %c0_197 = arith.constant 0 : index
    %c0_198 = arith.constant 0 : index
    %216 = vector.load %arg51[%c0_197, %c0_198] : memref<18x128xf32, #tpu.memory_space<vmem>>, vector<1x128xf32>
    tpu.vector_store %arg51[%c0_197, %c0_198], %215 {strides = array<i32>} : memref<18x128xf32, #tpu.memory_space<vmem>>, vector<1x128xf32>,
    %c9_199 = arith.constant 9 : index
    %c0_200 = arith.constant 0 : index
    %217 = vector.load %arg51[%c9_199, %c0_200] : memref<18x128xf32, #tpu.memory_space<vmem>>, vector<1x128xf32>
    tpu.vector_store %arg51[%c9_199, %c0_200], %215 {strides = array<i32>} : memref<18x128xf32, #tpu.memory_space<vmem>>, vector<1x128xf32>,
    %c1_201 = arith.constant 1 : index
    %c0_202 = arith.constant 0 : index
    %218 = vector.load %arg51[%c1_201, %c0_202] : memref<18x128xf32, #tpu.memory_space<vmem>>, vector<8x128xf32>
    tpu.vector_store %arg51[%c1_201, %c0_202], %211 {strides = array<i32>} : memref<18x128xf32, #tpu.memory_space<vmem>>, vector<8x128xf32>,
    %c0_203 = arith.constant 0 : index
    %c0_204 = arith.constant 0 : index
    %219 = tpu.strided_load %arg51[%c0_203, %c0_204] {strides = array<i32: 2, 1>} : memref<18x128xf32, #tpu.memory_space<vmem>>, vector<4x128xf32>
    %c0_205 = arith.constant 0 : index
    %c0_206 = arith.constant 0 : index
    %c0_207 = arith.constant 0 : index
    %220 = vector.load %arg19[%c0_205, %c0_206, %c0_207] : memref<3x128x256xf32, #tpu.memory_space<vmem>>, vector<1x128x256xf32>
    %221 = vector.shape_cast %220 : vector<1x128x256xf32> to vector<128x256xf32>
    %cst_208 = arith.constant dense<0.000000e+00> : vector<4x256xf32>
    %222 = tpu.matmul %219, %221, %cst_208 {dimension_numbers = #tpu.dot_dimension_numbers<[1], [0], [0], [1], [0, 0, 1, 1], [], []>} : vector<4x128xf32>, vector<128x256xf32>, vector<4x256xf32> -> vector<4x256xf32>
    %c1_209 = arith.constant 1 : index
    %c0_210 = arith.constant 0 : index
    %223 = tpu.strided_load %arg51[%c1_209, %c0_210] {strides = array<i32: 2, 1>} : memref<18x128xf32, #tpu.memory_space<vmem>>, vector<4x128xf32>
    %c1_211 = arith.constant 1 : index
    %c0_212 = arith.constant 0 : index
    %c0_213 = arith.constant 0 : index
    %224 = vector.load %arg19[%c1_211, %c0_212, %c0_213] : memref<3x128x256xf32, #tpu.memory_space<vmem>>, vector<1x128x256xf32>
    %225 = vector.shape_cast %224 : vector<1x128x256xf32> to vector<128x256xf32>
    %cst_214 = arith.constant dense<0.000000e+00> : vector<4x256xf32>
    %226 = tpu.matmul %223, %225, %cst_214 {dimension_numbers = #tpu.dot_dimension_numbers<[1], [0], [0], [1], [0, 0, 1, 1], [], []>} : vector<4x128xf32>, vector<128x256xf32>, vector<4x256xf32> -> vector<4x256xf32>
    %227 = arith.addf %222, %226 : vector<4x256xf32>
    %c2_215 = arith.constant 2 : index
    %c0_216 = arith.constant 0 : index
    %228 = tpu.strided_load %arg51[%c2_215, %c0_216] {strides = array<i32: 2, 1>} : memref<18x128xf32, #tpu.memory_space<vmem>>, vector<4x128xf32>
    %c2_217 = arith.constant 2 : index
    %c0_218 = arith.constant 0 : index
    %c0_219 = arith.constant 0 : index
    %229 = vector.load %arg19[%c2_217, %c0_218, %c0_219] : memref<3x128x256xf32, #tpu.memory_space<vmem>>, vector<1x128x256xf32>
    %230 = vector.shape_cast %229 : vector<1x128x256xf32> to vector<128x256xf32>
    %cst_220 = arith.constant dense<0.000000e+00> : vector<4x256xf32>
    %231 = tpu.matmul %228, %230, %cst_220 {dimension_numbers = #tpu.dot_dimension_numbers<[1], [0], [0], [1], [0, 0, 1, 1], [], []>} : vector<4x128xf32>, vector<128x256xf32>, vector<4x256xf32> -> vector<4x256xf32>
    %232 = arith.addf %227, %231 : vector<4x256xf32>
    %c0_221 = arith.constant 0 : index
    %c0_222 = arith.constant 0 : index
    %233 = vector.load %arg20[%c0_221, %c0_222] : memref<1x256xf32, #tpu.memory_space<vmem>>, vector<1x256xf32>
    %234 = vector.broadcast %233 : vector<1x256xf32> to vector<4x256xf32>
    %235 = arith.mulf %232, %234 : vector<4x256xf32>
    %c0_223 = arith.constant 0 : index
    %c0_224 = arith.constant 0 : index
    %236 = vector.load %arg21[%c0_223, %c0_224] : memref<1x256xf32, #tpu.memory_space<vmem>>, vector<1x256xf32>
    %237 = vector.broadcast %236 : vector<1x256xf32> to vector<4x256xf32>
    %238 = arith.addf %235, %237 : vector<4x256xf32>
    %239 = vector.extract_strided_slice %238 {offsets = [0, 0], sizes = [4, 128], strides = [1, 1]} : vector<4x256xf32> to vector<4x128xf32>
    %cst_225 = arith.constant 0.000000e+00 : f32
    %240 = vector.broadcast %cst_225 : f32 to vector<4x128xf32>
    %241 = arith.maximumf %239, %240 : vector<4x128xf32>
    %c0_226 = arith.constant 0 : index
    %c0_227 = arith.constant 0 : index
    %c0_228 = arith.constant 0 : index
    %242 = vector.load %arg43[%c0_226, %c0_227, %c0_228] : memref<1x4x128xf32, #tpu.memory_space<vmem>>, vector<1x4x128xf32>
    %243 = vector.shape_cast %242 : vector<1x4x128xf32> to vector<4x128xf32>
    %244 = vector.shape_cast %241 : vector<4x128xf32> to vector<1x4x128xf32>
    tpu.vector_store %arg43[%c0_226, %c0_227, %c0_228], %244 {strides = array<i32>} : memref<1x4x128xf32, #tpu.memory_space<vmem>>, vector<1x4x128xf32>,
    %245 = vector.extract_strided_slice %238 {offsets = [0, 128], sizes = [4, 128], strides = [1, 1]} : vector<4x256xf32> to vector<4x128xf32>
    %cst_229 = arith.constant 0.000000e+00 : f32
    %246 = vector.broadcast %cst_229 : f32 to vector<1x128xf32>
    %c0_230 = arith.constant 0 : index
    %c0_231 = arith.constant 0 : index
    %247 = vector.load %arg52[%c0_230, %c0_231] : memref<18x128xf32, #tpu.memory_space<vmem>>, vector<1x128xf32>
    tpu.vector_store %arg52[%c0_230, %c0_231], %246 {strides = array<i32>} : memref<18x128xf32, #tpu.memory_space<vmem>>, vector<1x128xf32>,
    %c5 = arith.constant 5 : index
    %c0_232 = arith.constant 0 : index
    %248 = vector.load %arg52[%c5, %c0_232] : memref<18x128xf32, #tpu.memory_space<vmem>>, vector<1x128xf32>
    tpu.vector_store %arg52[%c5, %c0_232], %246 {strides = array<i32>} : memref<18x128xf32, #tpu.memory_space<vmem>>, vector<1x128xf32>,
    %c1_233 = arith.constant 1 : index
    %c0_234 = arith.constant 0 : index
    %249 = vector.load %arg52[%c1_233, %c0_234] : memref<18x128xf32, #tpu.memory_space<vmem>>, vector<4x128xf32>
    tpu.vector_store %arg52[%c1_233, %c0_234], %241 {strides = array<i32>} : memref<18x128xf32, #tpu.memory_space<vmem>>, vector<4x128xf32>,
    %c0_235 = arith.constant 0 : index
    %c0_236 = arith.constant 0 : index
    %250 = vector.load %arg52[%c0_235, %c0_236] : memref<18x128xf32, #tpu.memory_space<vmem>>, vector<4x128xf32>
    %c0_237 = arith.constant 0 : index
    %c0_238 = arith.constant 0 : index
    %c0_239 = arith.constant 0 : index
    %251 = vector.load %arg22[%c0_237, %c0_238, %c0_239] : memref<3x128x128xf32, #tpu.memory_space<vmem>>, vector<1x128x128xf32>
    %252 = vector.shape_cast %251 : vector<1x128x128xf32> to vector<128x128xf32>
    %cst_240 = arith.constant dense<0.000000e+00> : vector<4x128xf32>
    %253 = tpu.matmul %250, %252, %cst_240 {dimension_numbers = #tpu.dot_dimension_numbers<[1], [0], [0], [1], [0, 0, 1, 1], [], []>} : vector<4x128xf32>, vector<128x128xf32>, vector<4x128xf32> -> vector<4x128xf32>
    %c1_241 = arith.constant 1 : index
    %c0_242 = arith.constant 0 : index
    %254 = vector.load %arg52[%c1_241, %c0_242] : memref<18x128xf32, #tpu.memory_space<vmem>>, vector<4x128xf32>
    %c1_243 = arith.constant 1 : index
    %c0_244 = arith.constant 0 : index
    %c0_245 = arith.constant 0 : index
    %255 = vector.load %arg22[%c1_243, %c0_244, %c0_245] : memref<3x128x128xf32, #tpu.memory_space<vmem>>, vector<1x128x128xf32>
    %256 = vector.shape_cast %255 : vector<1x128x128xf32> to vector<128x128xf32>
    %cst_246 = arith.constant dense<0.000000e+00> : vector<4x128xf32>
    %257 = tpu.matmul %254, %256, %cst_246 {dimension_numbers = #tpu.dot_dimension_numbers<[1], [0], [0], [1], [0, 0, 1, 1], [], []>} : vector<4x128xf32>, vector<128x128xf32>, vector<4x128xf32> -> vector<4x128xf32>
    %258 = arith.addf %253, %257 : vector<4x128xf32>
    %c2_247 = arith.constant 2 : index
    %c0_248 = arith.constant 0 : index
    %259 = vector.load %arg52[%c2_247, %c0_248] : memref<18x128xf32, #tpu.memory_space<vmem>>, vector<4x128xf32>
    %c2_249 = arith.constant 2 : index
    %c0_250 = arith.constant 0 : index
    %c0_251 = arith.constant 0 : index
    %260 = vector.load %arg22[%c2_249, %c0_250, %c0_251] : memref<3x128x128xf32, #tpu.memory_space<vmem>>, vector<1x128x128xf32>
    %261 = vector.shape_cast %260 : vector<1x128x128xf32> to vector<128x128xf32>
    %cst_252 = arith.constant dense<0.000000e+00> : vector<4x128xf32>
    %262 = tpu.matmul %259, %261, %cst_252 {dimension_numbers = #tpu.dot_dimension_numbers<[1], [0], [0], [1], [0, 0, 1, 1], [], []>} : vector<4x128xf32>, vector<128x128xf32>, vector<4x128xf32> -> vector<4x128xf32>
    %263 = arith.addf %258, %262 : vector<4x128xf32>
    %c0_253 = arith.constant 0 : index
    %c0_254 = arith.constant 0 : index
    %264 = vector.load %arg23[%c0_253, %c0_254] : memref<1x128xf32, #tpu.memory_space<vmem>>, vector<1x128xf32>
    %265 = vector.broadcast %264 : vector<1x128xf32> to vector<4x128xf32>
    %266 = arith.mulf %263, %265 : vector<4x128xf32>
    %c0_255 = arith.constant 0 : index
    %c0_256 = arith.constant 0 : index
    %267 = vector.load %arg24[%c0_255, %c0_256] : memref<1x128xf32, #tpu.memory_space<vmem>>, vector<1x128xf32>
    %268 = vector.broadcast %267 : vector<1x128xf32> to vector<4x128xf32>
    %269 = arith.addf %266, %268 : vector<4x128xf32>
    %cst_257 = arith.constant dense<0.000000e+00> : vector<128xf32>
    %270 = vector.multi_reduction <add>, %269, %cst_257 [0] : vector<4x128xf32> to vector<128xf32>
    %271 = vector.shape_cast %270 : vector<128xf32> to vector<1x128xf32>
    %c0_258 = arith.constant 0 : index
    %c0_259 = arith.constant 0 : index
    %272 = vector.load %arg25[%c0_258, %c0_259] : memref<128x128xf32, #tpu.memory_space<vmem>>, vector<128x128xf32>
    %cst_260 = arith.constant dense<0.000000e+00> : vector<1x128xf32>
    %273 = tpu.matmul %271, %272, %cst_260 {dimension_numbers = #tpu.dot_dimension_numbers<[1], [0], [0], [1], [0, 0, 1, 1], [], []>} : vector<1x128xf32>, vector<128x128xf32>, vector<1x128xf32> -> vector<1x128xf32>
    %cst_261 = arith.constant 6.250000e-02 : f32
    %274 = vector.broadcast %cst_261 : f32 to vector<1x128xf32>
    %275 = arith.mulf %273, %274 : vector<1x128xf32>
    %276 = vector.broadcast %275 : vector<1x128xf32> to vector<4x128xf32>
    %277 = arith.subf %269, %276 : vector<4x128xf32>
    %278 = arith.mulf %277, %277 : vector<4x128xf32>
    %cst_262 = arith.constant dense<0.000000e+00> : vector<128xf32>
    %279 = vector.multi_reduction <add>, %278, %cst_262 [0] : vector<4x128xf32> to vector<128xf32>
    %280 = vector.shape_cast %279 : vector<128xf32> to vector<1x128xf32>
    %c0_263 = arith.constant 0 : index
    %c0_264 = arith.constant 0 : index
    %281 = vector.load %arg25[%c0_263, %c0_264] : memref<128x128xf32, #tpu.memory_space<vmem>>, vector<128x128xf32>
    %cst_265 = arith.constant dense<0.000000e+00> : vector<1x128xf32>
    %282 = tpu.matmul %280, %281, %cst_265 {dimension_numbers = #tpu.dot_dimension_numbers<[1], [0], [0], [1], [0, 0, 1, 1], [], []>} : vector<1x128xf32>, vector<128x128xf32>, vector<1x128xf32> -> vector<1x128xf32>
    %cst_266 = arith.constant 0.0666666701 : f32
    %283 = vector.broadcast %cst_266 : f32 to vector<1x128xf32>
    %284 = arith.mulf %282, %283 : vector<1x128xf32>
    %cst_267 = arith.constant 9.99999974E-5 : f32
    %285 = vector.broadcast %cst_267 : f32 to vector<1x128xf32>
    %286 = arith.addf %284, %285 : vector<1x128xf32>
    %cst_268 = arith.constant 4.000000e+00 : f32
    %287 = vector.broadcast %cst_268 : f32 to vector<1x128xf32>
    %288 = arith.mulf %287, %286 : vector<1x128xf32>
    %289 = vector.broadcast %288 : vector<1x128xf32> to vector<4x128xf32>
    %290 = arith.divf %278, %289 : vector<4x128xf32>
    %cst_269 = arith.constant 5.000000e-01 : f32
    %291 = vector.broadcast %cst_269 : f32 to vector<4x128xf32>
    %292 = arith.addf %290, %291 : vector<4x128xf32>
    %293 = arith.negf %292 : vector<4x128xf32>
    %294 = math.exp %293 : vector<4x128xf32>
    %cst_270 = arith.constant 1.000000e+00 : f32
    %295 = vector.broadcast %cst_270 : f32 to vector<4x128xf32>
    %296 = arith.addf %295, %294 : vector<4x128xf32>
    %297 = arith.divf %295, %296 : vector<4x128xf32>
    %298 = arith.mulf %269, %297 : vector<4x128xf32>
    %c0_271 = arith.constant 0 : index
    %c0_272 = arith.constant 0 : index
    %c0_273 = arith.constant 0 : index
    %299 = vector.load %arg44[%c0_271, %c0_272, %c0_273] : memref<1x4x128xf32, #tpu.memory_space<vmem>>, vector<1x4x128xf32>
    %300 = vector.shape_cast %299 : vector<1x4x128xf32> to vector<4x128xf32>
    %301 = vector.shape_cast %298 : vector<4x128xf32> to vector<1x4x128xf32>
    tpu.vector_store %arg44[%c0_271, %c0_272, %c0_273], %301 {strides = array<i32>} : memref<1x4x128xf32, #tpu.memory_space<vmem>>, vector<1x4x128xf32>,
    %302 = arith.addf %298, %245 : vector<4x128xf32>
    %cst_274 = arith.constant 0.000000e+00 : f32
    %303 = vector.broadcast %cst_274 : f32 to vector<4x128xf32>
    %304 = arith.maximumf %302, %303 : vector<4x128xf32>
    %c0_275 = arith.constant 0 : index
    %c0_276 = arith.constant 0 : index
    %c0_277 = arith.constant 0 : index
    %305 = vector.load %arg45[%c0_275, %c0_276, %c0_277] : memref<1x4x128xf32, #tpu.memory_space<vmem>>, vector<1x4x128xf32>
    %306 = vector.shape_cast %305 : vector<1x4x128xf32> to vector<4x128xf32>
    %307 = vector.shape_cast %304 : vector<4x128xf32> to vector<1x4x128xf32>
    tpu.vector_store %arg45[%c0_275, %c0_276, %c0_277], %307 {strides = array<i32>} : memref<1x4x128xf32, #tpu.memory_space<vmem>>, vector<1x4x128xf32>,
    %cst_278 = arith.constant 0.000000e+00 : f32
    %308 = vector.broadcast %cst_278 : f32 to vector<1x128xf32>
    %c0_279 = arith.constant 0 : index
    %c0_280 = arith.constant 0 : index
    %309 = vector.load %arg51[%c0_279, %c0_280] : memref<18x128xf32, #tpu.memory_space<vmem>>, vector<1x128xf32>
    tpu.vector_store %arg51[%c0_279, %c0_280], %308 {strides = array<i32>} : memref<18x128xf32, #tpu.memory_space<vmem>>, vector<1x128xf32>,
    %c5_281 = arith.constant 5 : index
    %c0_282 = arith.constant 0 : index
    %310 = vector.load %arg51[%c5_281, %c0_282] : memref<18x128xf32, #tpu.memory_space<vmem>>, vector<1x128xf32>
    tpu.vector_store %arg51[%c5_281, %c0_282], %308 {strides = array<i32>} : memref<18x128xf32, #tpu.memory_space<vmem>>, vector<1x128xf32>,
    %c1_283 = arith.constant 1 : index
    %c0_284 = arith.constant 0 : index
    %311 = vector.load %arg51[%c1_283, %c0_284] : memref<18x128xf32, #tpu.memory_space<vmem>>, vector<4x128xf32>
    tpu.vector_store %arg51[%c1_283, %c0_284], %304 {strides = array<i32>} : memref<18x128xf32, #tpu.memory_space<vmem>>, vector<4x128xf32>,
    %c0_285 = arith.constant 0 : index
    %c0_286 = arith.constant 0 : index
    %312 = tpu.strided_load %arg51[%c0_285, %c0_286] {strides = array<i32: 2, 1>} : memref<18x128xf32, #tpu.memory_space<vmem>>, vector<2x128xf32>
    %c0_287 = arith.constant 0 : index
    %c0_288 = arith.constant 0 : index
    %c0_289 = arith.constant 0 : index
    %313 = vector.load %arg26[%c0_287, %c0_288, %c0_289] : memref<3x128x256xf32, #tpu.memory_space<vmem>>, vector<1x128x256xf32>
    %314 = vector.shape_cast %313 : vector<1x128x256xf32> to vector<128x256xf32>
    %cst_290 = arith.constant dense<0.000000e+00> : vector<2x256xf32>
    %315 = tpu.matmul %312, %314, %cst_290 {dimension_numbers = #tpu.dot_dimension_numbers<[1], [0], [0], [1], [0, 0, 1, 1], [], []>} : vector<2x128xf32>, vector<128x256xf32>, vector<2x256xf32> -> vector<2x256xf32>
    %c1_291 = arith.constant 1 : index
    %c0_292 = arith.constant 0 : index
    %316 = tpu.strided_load %arg51[%c1_291, %c0_292] {strides = array<i32: 2, 1>} : memref<18x128xf32, #tpu.memory_space<vmem>>, vector<2x128xf32>
    %c1_293 = arith.constant 1 : index
    %c0_294 = arith.constant 0 : index
    %c0_295 = arith.constant 0 : index
    %317 = vector.load %arg26[%c1_293, %c0_294, %c0_295] : memref<3x128x256xf32, #tpu.memory_space<vmem>>, vector<1x128x256xf32>
    %318 = vector.shape_cast %317 : vector<1x128x256xf32> to vector<128x256xf32>
    %cst_296 = arith.constant dense<0.000000e+00> : vector<2x256xf32>
    %319 = tpu.matmul %316, %318, %cst_296 {dimension_numbers = #tpu.dot_dimension_numbers<[1], [0], [0], [1], [0, 0, 1, 1], [], []>} : vector<2x128xf32>, vector<128x256xf32>, vector<2x256xf32> -> vector<2x256xf32>
    %320 = arith.addf %315, %319 : vector<2x256xf32>
    %c2_297 = arith.constant 2 : index
    %c0_298 = arith.constant 0 : index
    %321 = tpu.strided_load %arg51[%c2_297, %c0_298] {strides = array<i32: 2, 1>} : memref<18x128xf32, #tpu.memory_space<vmem>>, vector<2x128xf32>
    %c2_299 = arith.constant 2 : index
    %c0_300 = arith.constant 0 : index
    %c0_301 = arith.constant 0 : index
    %322 = vector.load %arg26[%c2_299, %c0_300, %c0_301] : memref<3x128x256xf32, #tpu.memory_space<vmem>>, vector<1x128x256xf32>
    %323 = vector.shape_cast %322 : vector<1x128x256xf32> to vector<128x256xf32>
    %cst_302 = arith.constant dense<0.000000e+00> : vector<2x256xf32>
    %324 = tpu.matmul %321, %323, %cst_302 {dimension_numbers = #tpu.dot_dimension_numbers<[1], [0], [0], [1], [0, 0, 1, 1], [], []>} : vector<2x128xf32>, vector<128x256xf32>, vector<2x256xf32> -> vector<2x256xf32>
    %325 = arith.addf %320, %324 : vector<2x256xf32>
    %c0_303 = arith.constant 0 : index
    %c0_304 = arith.constant 0 : index
    %326 = vector.load %arg27[%c0_303, %c0_304] : memref<1x256xf32, #tpu.memory_space<vmem>>, vector<1x256xf32>
    %327 = vector.broadcast %326 : vector<1x256xf32> to vector<2x256xf32>
    %328 = arith.mulf %325, %327 : vector<2x256xf32>
    %c0_305 = arith.constant 0 : index
    %c0_306 = arith.constant 0 : index
    %329 = vector.load %arg28[%c0_305, %c0_306] : memref<1x256xf32, #tpu.memory_space<vmem>>, vector<1x256xf32>
    %330 = vector.broadcast %329 : vector<1x256xf32> to vector<2x256xf32>
    %331 = arith.addf %328, %330 : vector<2x256xf32>
    %332 = vector.extract_strided_slice %331 {offsets = [0, 0], sizes = [2, 128], strides = [1, 1]} : vector<2x256xf32> to vector<2x128xf32>
    %cst_307 = arith.constant 0.000000e+00 : f32
    %333 = vector.broadcast %cst_307 : f32 to vector<2x128xf32>
    %334 = arith.maximumf %332, %333 : vector<2x128xf32>
    %c0_308 = arith.constant 0 : index
    %c0_309 = arith.constant 0 : index
    %c0_310 = arith.constant 0 : index
    %335 = vector.load %arg46[%c0_308, %c0_309, %c0_310] : memref<1x2x128xf32, #tpu.memory_space<vmem>>, vector<1x2x128xf32>
    %336 = vector.shape_cast %335 : vector<1x2x128xf32> to vector<2x128xf32>
    %337 = vector.shape_cast %334 : vector<2x128xf32> to vector<1x2x128xf32>
    tpu.vector_store %arg46[%c0_308, %c0_309, %c0_310], %337 {strides = array<i32>} : memref<1x2x128xf32, #tpu.memory_space<vmem>>, vector<1x2x128xf32>,
    %338 = vector.extract_strided_slice %331 {offsets = [0, 128], sizes = [2, 128], strides = [1, 1]} : vector<2x256xf32> to vector<2x128xf32>
    %cst_311 = arith.constant 0.000000e+00 : f32
    %339 = vector.broadcast %cst_311 : f32 to vector<1x128xf32>
    %c0_312 = arith.constant 0 : index
    %c0_313 = arith.constant 0 : index
    %340 = vector.load %arg52[%c0_312, %c0_313] : memref<18x128xf32, #tpu.memory_space<vmem>>, vector<1x128xf32>
    tpu.vector_store %arg52[%c0_312, %c0_313], %339 {strides = array<i32>} : memref<18x128xf32, #tpu.memory_space<vmem>>, vector<1x128xf32>,
    %c3 = arith.constant 3 : index
    %c0_314 = arith.constant 0 : index
    %341 = vector.load %arg52[%c3, %c0_314] : memref<18x128xf32, #tpu.memory_space<vmem>>, vector<1x128xf32>
    tpu.vector_store %arg52[%c3, %c0_314], %339 {strides = array<i32>} : memref<18x128xf32, #tpu.memory_space<vmem>>, vector<1x128xf32>,
    %c1_315 = arith.constant 1 : index
    %c0_316 = arith.constant 0 : index
    %342 = vector.load %arg52[%c1_315, %c0_316] : memref<18x128xf32, #tpu.memory_space<vmem>>, vector<2x128xf32>
    tpu.vector_store %arg52[%c1_315, %c0_316], %334 {strides = array<i32>} : memref<18x128xf32, #tpu.memory_space<vmem>>, vector<2x128xf32>,
    %c0_317 = arith.constant 0 : index
    %c0_318 = arith.constant 0 : index
    %343 = vector.load %arg52[%c0_317, %c0_318] : memref<18x128xf32, #tpu.memory_space<vmem>>, vector<2x128xf32>
    %c0_319 = arith.constant 0 : index
    %c0_320 = arith.constant 0 : index
    %c0_321 = arith.constant 0 : index
    %344 = vector.load %arg29[%c0_319, %c0_320, %c0_321] : memref<3x128x128xf32, #tpu.memory_space<vmem>>, vector<1x128x128xf32>
    %345 = vector.shape_cast %344 : vector<1x128x128xf32> to vector<128x128xf32>
    %cst_322 = arith.constant dense<0.000000e+00> : vector<2x128xf32>
    %346 = tpu.matmul %343, %345, %cst_322 {dimension_numbers = #tpu.dot_dimension_numbers<[1], [0], [0], [1], [0, 0, 1, 1], [], []>} : vector<2x128xf32>, vector<128x128xf32>, vector<2x128xf32> -> vector<2x128xf32>
    %c1_323 = arith.constant 1 : index
    %c0_324 = arith.constant 0 : index
    %347 = vector.load %arg52[%c1_323, %c0_324] : memref<18x128xf32, #tpu.memory_space<vmem>>, vector<2x128xf32>
    %c1_325 = arith.constant 1 : index
    %c0_326 = arith.constant 0 : index
    %c0_327 = arith.constant 0 : index
    %348 = vector.load %arg29[%c1_325, %c0_326, %c0_327] : memref<3x128x128xf32, #tpu.memory_space<vmem>>, vector<1x128x128xf32>
    %349 = vector.shape_cast %348 : vector<1x128x128xf32> to vector<128x128xf32>
    %cst_328 = arith.constant dense<0.000000e+00> : vector<2x128xf32>
    %350 = tpu.matmul %347, %349, %cst_328 {dimension_numbers = #tpu.dot_dimension_numbers<[1], [0], [0], [1], [0, 0, 1, 1], [], []>} : vector<2x128xf32>, vector<128x128xf32>, vector<2x128xf32> -> vector<2x128xf32>
    %351 = arith.addf %346, %350 : vector<2x128xf32>
    %c2_329 = arith.constant 2 : index
    %c0_330 = arith.constant 0 : index
    %352 = vector.load %arg52[%c2_329, %c0_330] : memref<18x128xf32, #tpu.memory_space<vmem>>, vector<2x128xf32>
    %c2_331 = arith.constant 2 : index
    %c0_332 = arith.constant 0 : index
    %c0_333 = arith.constant 0 : index
    %353 = vector.load %arg29[%c2_331, %c0_332, %c0_333] : memref<3x128x128xf32, #tpu.memory_space<vmem>>, vector<1x128x128xf32>
    %354 = vector.shape_cast %353 : vector<1x128x128xf32> to vector<128x128xf32>
    %cst_334 = arith.constant dense<0.000000e+00> : vector<2x128xf32>
    %355 = tpu.matmul %352, %354, %cst_334 {dimension_numbers = #tpu.dot_dimension_numbers<[1], [0], [0], [1], [0, 0, 1, 1], [], []>} : vector<2x128xf32>, vector<128x128xf32>, vector<2x128xf32> -> vector<2x128xf32>
    %356 = arith.addf %351, %355 : vector<2x128xf32>
    %c0_335 = arith.constant 0 : index
    %c0_336 = arith.constant 0 : index
    %357 = vector.load %arg30[%c0_335, %c0_336] : memref<1x128xf32, #tpu.memory_space<vmem>>, vector<1x128xf32>
    %358 = vector.broadcast %357 : vector<1x128xf32> to vector<2x128xf32>
    %359 = arith.mulf %356, %358 : vector<2x128xf32>
    %c0_337 = arith.constant 0 : index
    %c0_338 = arith.constant 0 : index
    %360 = vector.load %arg31[%c0_337, %c0_338] : memref<1x128xf32, #tpu.memory_space<vmem>>, vector<1x128xf32>
    %361 = vector.broadcast %360 : vector<1x128xf32> to vector<2x128xf32>
    %362 = arith.addf %359, %361 : vector<2x128xf32>
    %cst_339 = arith.constant dense<0.000000e+00> : vector<128xf32>
    %363 = vector.multi_reduction <add>, %362, %cst_339 [0] : vector<2x128xf32> to vector<128xf32>
    %364 = vector.shape_cast %363 : vector<128xf32> to vector<1x128xf32>
    %c0_340 = arith.constant 0 : index
    %c0_341 = arith.constant 0 : index
    %365 = vector.load %arg32[%c0_340, %c0_341] : memref<128x128xf32, #tpu.memory_space<vmem>>, vector<128x128xf32>
    %cst_342 = arith.constant dense<0.000000e+00> : vector<1x128xf32>
    %366 = tpu.matmul %364, %365, %cst_342 {dimension_numbers = #tpu.dot_dimension_numbers<[1], [0], [0], [1], [0, 0, 1, 1], [], []>} : vector<1x128xf32>, vector<128x128xf32>, vector<1x128xf32> -> vector<1x128xf32>
    %cst_343 = arith.constant 2.500000e-01 : f32
    %367 = vector.broadcast %cst_343 : f32 to vector<1x128xf32>
    %368 = arith.mulf %366, %367 : vector<1x128xf32>
    %369 = vector.broadcast %368 : vector<1x128xf32> to vector<2x128xf32>
    %370 = arith.subf %362, %369 : vector<2x128xf32>
    %371 = arith.mulf %370, %370 : vector<2x128xf32>
    %cst_344 = arith.constant dense<0.000000e+00> : vector<128xf32>
    %372 = vector.multi_reduction <add>, %371, %cst_344 [0] : vector<2x128xf32> to vector<128xf32>
    %373 = vector.shape_cast %372 : vector<128xf32> to vector<1x128xf32>
    %c0_345 = arith.constant 0 : index
    %c0_346 = arith.constant 0 : index
    %374 = vector.load %arg32[%c0_345, %c0_346] : memref<128x128xf32, #tpu.memory_space<vmem>>, vector<128x128xf32>
    %cst_347 = arith.constant dense<0.000000e+00> : vector<1x128xf32>
    %375 = tpu.matmul %373, %374, %cst_347 {dimension_numbers = #tpu.dot_dimension_numbers<[1], [0], [0], [1], [0, 0, 1, 1], [], []>} : vector<1x128xf32>, vector<128x128xf32>, vector<1x128xf32> -> vector<1x128xf32>
    %cst_348 = arith.constant 0.333333343 : f32
    %376 = vector.broadcast %cst_348 : f32 to vector<1x128xf32>
    %377 = arith.mulf %375, %376 : vector<1x128xf32>
    %cst_349 = arith.constant 9.99999974E-5 : f32
    %378 = vector.broadcast %cst_349 : f32 to vector<1x128xf32>
    %379 = arith.addf %377, %378 : vector<1x128xf32>
    %cst_350 = arith.constant 4.000000e+00 : f32
    %380 = vector.broadcast %cst_350 : f32 to vector<1x128xf32>
    %381 = arith.mulf %380, %379 : vector<1x128xf32>
    %382 = vector.broadcast %381 : vector<1x128xf32> to vector<2x128xf32>
    %383 = arith.divf %371, %382 : vector<2x128xf32>
    %cst_351 = arith.constant 5.000000e-01 : f32
    %384 = vector.broadcast %cst_351 : f32 to vector<2x128xf32>
    %385 = arith.addf %383, %384 : vector<2x128xf32>
    %386 = arith.negf %385 : vector<2x128xf32>
    %387 = math.exp %386 : vector<2x128xf32>
    %cst_352 = arith.constant 1.000000e+00 : f32
    %388 = vector.broadcast %cst_352 : f32 to vector<2x128xf32>
    %389 = arith.addf %388, %387 : vector<2x128xf32>
    %390 = arith.divf %388, %389 : vector<2x128xf32>
    %391 = arith.mulf %362, %390 : vector<2x128xf32>
    %c0_353 = arith.constant 0 : index
    %c0_354 = arith.constant 0 : index
    %c0_355 = arith.constant 0 : index
    %392 = vector.load %arg47[%c0_353, %c0_354, %c0_355] : memref<1x2x128xf32, #tpu.memory_space<vmem>>, vector<1x2x128xf32>
    %393 = vector.shape_cast %392 : vector<1x2x128xf32> to vector<2x128xf32>
    %394 = vector.shape_cast %391 : vector<2x128xf32> to vector<1x2x128xf32>
    tpu.vector_store %arg47[%c0_353, %c0_354, %c0_355], %394 {strides = array<i32>} : memref<1x2x128xf32, #tpu.memory_space<vmem>>, vector<1x2x128xf32>,
    %395 = arith.addf %391, %338 : vector<2x128xf32>
    %cst_356 = arith.constant 0.000000e+00 : f32
    %396 = vector.broadcast %cst_356 : f32 to vector<2x128xf32>
    %397 = arith.maximumf %395, %396 : vector<2x128xf32>
    %c0_357 = arith.constant 0 : index
    %c0_358 = arith.constant 0 : index
    %c0_359 = arith.constant 0 : index
    %398 = vector.load %arg48[%c0_357, %c0_358, %c0_359] : memref<1x2x128xf32, #tpu.memory_space<vmem>>, vector<1x2x128xf32>
    %399 = vector.shape_cast %398 : vector<1x2x128xf32> to vector<2x128xf32>
    %400 = vector.shape_cast %397 : vector<2x128xf32> to vector<1x2x128xf32>
    tpu.vector_store %arg48[%c0_357, %c0_358, %c0_359], %400 {strides = array<i32>} : memref<1x2x128xf32, #tpu.memory_space<vmem>>, vector<1x2x128xf32>,
    %cst_360 = arith.constant dense<0.000000e+00> : vector<128xf32>
    %401 = vector.multi_reduction <add>, %397, %cst_360 [0] : vector<2x128xf32> to vector<128xf32>
    %402 = vector.shape_cast %401 : vector<128xf32> to vector<1x128xf32>
    %c0_361 = arith.constant 0 : index
    %c0_362 = arith.constant 0 : index
    %403 = vector.load %arg33[%c0_361, %c0_362] : memref<128x64xf32, #tpu.memory_space<vmem>>, vector<128x64xf32>
    %cst_363 = arith.constant dense<0.000000e+00> : vector<1x64xf32>
    %404 = tpu.matmul %402, %403, %cst_363 {dimension_numbers = #tpu.dot_dimension_numbers<[1], [0], [0], [1], [0, 0, 1, 1], [], []>} : vector<1x128xf32>, vector<128x64xf32>, vector<1x64xf32> -> vector<1x64xf32>
    %cst_364 = arith.constant 2.500000e-01 : f32
    %405 = vector.broadcast %cst_364 : f32 to vector<1x64xf32>
    %406 = arith.mulf %404, %405 : vector<1x64xf32>
    %c0_365 = arith.constant 0 : index
    %c0_366 = arith.constant 0 : index
    %c0_367 = arith.constant 0 : index
    %407 = vector.load %arg49[%c0_365, %c0_366, %c0_367] : memref<1x1x64xf32, #tpu.memory_space<vmem>>, vector<1x1x64xf32>
    %408 = vector.shape_cast %407 : vector<1x1x64xf32> to vector<1x64xf32>
    %409 = vector.shape_cast %406 : vector<1x64xf32> to vector<1x1x64xf32>
    tpu.vector_store %arg49[%c0_365, %c0_366, %c0_367], %409 {strides = array<i32>} : memref<1x1x64xf32, #tpu.memory_space<vmem>>, vector<1x1x64xf32>,
    %c0_368 = arith.constant 0 : index
    %c0_369 = arith.constant 0 : index
    %410 = vector.load %arg34[%c0_368, %c0_369] : memref<64x32xf32, #tpu.memory_space<vmem>>, vector<64x32xf32>
    %cst_370 = arith.constant dense<0.000000e+00> : vector<1x32xf32>
    %411 = tpu.matmul %406, %410, %cst_370 {dimension_numbers = #tpu.dot_dimension_numbers<[1], [0], [0], [1], [0, 0, 1, 1], [], []>} : vector<1x64xf32>, vector<64x32xf32>, vector<1x32xf32> -> vector<1x32xf32>
    %c0_371 = arith.constant 0 : index
    %c0_372 = arith.constant 0 : index
    %412 = vector.load %arg35[%c0_371, %c0_372] : memref<1x32xf32, #tpu.memory_space<vmem>>, vector<1x32xf32>
    %413 = arith.addf %411, %412 : vector<1x32xf32>
    %c0_373 = arith.constant 0 : index
    %c0_374 = arith.constant 0 : index
    %c0_375 = arith.constant 0 : index
    %414 = vector.load %arg50[%c0_373, %c0_374, %c0_375] : memref<1x1x32xf32, #tpu.memory_space<vmem>>, vector<1x1x32xf32>
    %415 = vector.shape_cast %414 : vector<1x1x32xf32> to vector<1x32xf32>
    %416 = vector.shape_cast %413 : vector<1x32xf32> to vector<1x1x32xf32>
    tpu.vector_store %arg50[%c0_373, %c0_374, %c0_375], %416 {strides = array<i32>} : memref<1x1x32xf32, #tpu.memory_space<vmem>>, vector<1x1x32xf32>,
    return
  }
  func.func @transform_0(%arg0: i32) -> (i32, i32, i32) {
    %c0_i32 = arith.constant 0 : i32
    %c0_i32_0 = arith.constant 0 : i32
    %c0_i32_1 = arith.constant 0 : i32
    return %arg0, %c0_i32, %c0_i32_0 : i32, i32, i32
  }
  func.func @transform_1(%arg0: i32) -> (i32, i32, i32) {
    %c0_i32 = arith.constant 0 : i32
    %c0_i32_0 = arith.constant 0 : i32
    %c0_i32_1 = arith.constant 0 : i32
    %c0_i32_2 = arith.constant 0 : i32
    return %c0_i32, %c0_i32_0, %c0_i32_1 : i32, i32, i32
  }
  func.func @transform_2(%arg0: i32) -> (i32, i32) {
    %c0_i32 = arith.constant 0 : i32
    %c0_i32_0 = arith.constant 0 : i32
    %c0_i32_1 = arith.constant 0 : i32
    return %c0_i32, %c0_i32_0 : i32, i32
  }
  func.func @transform_3(%arg0: i32) -> (i32, i32) {
    %c0_i32 = arith.constant 0 : i32
    %c0_i32_0 = arith.constant 0 : i32
    %c0_i32_1 = arith.constant 0 : i32
    return %c0_i32, %c0_i32_0 : i32, i32
  }
  func.func @transform_4(%arg0: i32) -> (i32, i32, i32) {
    %c0_i32 = arith.constant 0 : i32
    %c0_i32_0 = arith.constant 0 : i32
    %c0_i32_1 = arith.constant 0 : i32
    %c0_i32_2 = arith.constant 0 : i32
    return %c0_i32, %c0_i32_0, %c0_i32_1 : i32, i32, i32
  }
  func.func @transform_5(%arg0: i32) -> (i32, i32) {
    %c0_i32 = arith.constant 0 : i32
    %c0_i32_0 = arith.constant 0 : i32
    %c0_i32_1 = arith.constant 0 : i32
    return %c0_i32, %c0_i32_0 : i32, i32
  }
  func.func @transform_6(%arg0: i32) -> (i32, i32) {
    %c0_i32 = arith.constant 0 : i32
    %c0_i32_0 = arith.constant 0 : i32
    %c0_i32_1 = arith.constant 0 : i32
    return %c0_i32, %c0_i32_0 : i32, i32
  }
  func.func @transform_7(%arg0: i32) -> (i32, i32, i32) {
    %c0_i32 = arith.constant 0 : i32
    %c0_i32_0 = arith.constant 0 : i32
    %c0_i32_1 = arith.constant 0 : i32
    %c0_i32_2 = arith.constant 0 : i32
    return %c0_i32, %c0_i32_0, %c0_i32_1 : i32, i32, i32
  }
  func.func @transform_8(%arg0: i32) -> (i32, i32) {
    %c0_i32 = arith.constant 0 : i32
    %c0_i32_0 = arith.constant 0 : i32
    %c0_i32_1 = arith.constant 0 : i32
    return %c0_i32, %c0_i32_0 : i32, i32
  }
  func.func @transform_9(%arg0: i32) -> (i32, i32) {
    %c0_i32 = arith.constant 0 : i32
    %c0_i32_0 = arith.constant 0 : i32
    %c0_i32_1 = arith.constant 0 : i32
    return %c0_i32, %c0_i32_0 : i32, i32
  }
  func.func @transform_10(%arg0: i32) -> (i32, i32) {
    %c0_i32 = arith.constant 0 : i32
    %c0_i32_0 = arith.constant 0 : i32
    %c0_i32_1 = arith.constant 0 : i32
    return %c0_i32, %c0_i32_0 : i32, i32
  }
  func.func @transform_11(%arg0: i32) -> (i32, i32, i32) {
    %c0_i32 = arith.constant 0 : i32
    %c0_i32_0 = arith.constant 0 : i32
    %c0_i32_1 = arith.constant 0 : i32
    %c0_i32_2 = arith.constant 0 : i32
    return %c0_i32, %c0_i32_0, %c0_i32_1 : i32, i32, i32
  }
  func.func @transform_12(%arg0: i32) -> (i32, i32) {
    %c0_i32 = arith.constant 0 : i32
    %c0_i32_0 = arith.constant 0 : i32
    %c0_i32_1 = arith.constant 0 : i32
    return %c0_i32, %c0_i32_0 : i32, i32
  }
  func.func @transform_13(%arg0: i32) -> (i32, i32) {
    %c0_i32 = arith.constant 0 : i32
    %c0_i32_0 = arith.constant 0 : i32
    %c0_i32_1 = arith.constant 0 : i32
    return %c0_i32, %c0_i32_0 : i32, i32
  }
  func.func @transform_14(%arg0: i32) -> (i32, i32, i32) {
    %c0_i32 = arith.constant 0 : i32
    %c0_i32_0 = arith.constant 0 : i32
    %c0_i32_1 = arith.constant 0 : i32
    %c0_i32_2 = arith.constant 0 : i32
    return %c0_i32, %c0_i32_0, %c0_i32_1 : i32, i32, i32
  }
  func.func @transform_15(%arg0: i32) -> (i32, i32) {
    %c0_i32 = arith.constant 0 : i32
    %c0_i32_0 = arith.constant 0 : i32
    %c0_i32_1 = arith.constant 0 : i32
    return %c0_i32, %c0_i32_0 : i32, i32
  }
  func.func @transform_16(%arg0: i32) -> (i32, i32) {
    %c0_i32 = arith.constant 0 : i32
    %c0_i32_0 = arith.constant 0 : i32
    %c0_i32_1 = arith.constant 0 : i32
    return %c0_i32, %c0_i32_0 : i32, i32
  }
  func.func @transform_17(%arg0: i32) -> (i32, i32) {
    %c0_i32 = arith.constant 0 : i32
    %c0_i32_0 = arith.constant 0 : i32
    %c0_i32_1 = arith.constant 0 : i32
    return %c0_i32, %c0_i32_0 : i32, i32
  }
  func.func @transform_18(%arg0: i32) -> (i32, i32, i32) {
    %c0_i32 = arith.constant 0 : i32
    %c0_i32_0 = arith.constant 0 : i32
    %c0_i32_1 = arith.constant 0 : i32
    %c0_i32_2 = arith.constant 0 : i32
    return %c0_i32, %c0_i32_0, %c0_i32_1 : i32, i32, i32
  }
  func.func @transform_19(%arg0: i32) -> (i32, i32) {
    %c0_i32 = arith.constant 0 : i32
    %c0_i32_0 = arith.constant 0 : i32
    %c0_i32_1 = arith.constant 0 : i32
    return %c0_i32, %c0_i32_0 : i32, i32
  }
  func.func @transform_20(%arg0: i32) -> (i32, i32) {
    %c0_i32 = arith.constant 0 : i32
    %c0_i32_0 = arith.constant 0 : i32
    %c0_i32_1 = arith.constant 0 : i32
    return %c0_i32, %c0_i32_0 : i32, i32
  }
  func.func @transform_21(%arg0: i32) -> (i32, i32, i32) {
    %c0_i32 = arith.constant 0 : i32
    %c0_i32_0 = arith.constant 0 : i32
    %c0_i32_1 = arith.constant 0 : i32
    %c0_i32_2 = arith.constant 0 : i32
    return %c0_i32, %c0_i32_0, %c0_i32_1 : i32, i32, i32
  }
  func.func @transform_22(%arg0: i32) -> (i32, i32) {
    %c0_i32 = arith.constant 0 : i32
    %c0_i32_0 = arith.constant 0 : i32
    %c0_i32_1 = arith.constant 0 : i32
    return %c0_i32, %c0_i32_0 : i32, i32
  }
  func.func @transform_23(%arg0: i32) -> (i32, i32) {
    %c0_i32 = arith.constant 0 : i32
    %c0_i32_0 = arith.constant 0 : i32
    %c0_i32_1 = arith.constant 0 : i32
    return %c0_i32, %c0_i32_0 : i32, i32
  }
  func.func @transform_24(%arg0: i32) -> (i32, i32) {
    %c0_i32 = arith.constant 0 : i32
    %c0_i32_0 = arith.constant 0 : i32
    %c0_i32_1 = arith.constant 0 : i32
    return %c0_i32, %c0_i32_0 : i32, i32
  }
  func.func @transform_25(%arg0: i32) -> (i32, i32, i32) {
    %c0_i32 = arith.constant 0 : i32
    %c0_i32_0 = arith.constant 0 : i32
    %c0_i32_1 = arith.constant 0 : i32
    %c0_i32_2 = arith.constant 0 : i32
    return %c0_i32, %c0_i32_0, %c0_i32_1 : i32, i32, i32
  }
  func.func @transform_26(%arg0: i32) -> (i32, i32) {
    %c0_i32 = arith.constant 0 : i32
    %c0_i32_0 = arith.constant 0 : i32
    %c0_i32_1 = arith.constant 0 : i32
    return %c0_i32, %c0_i32_0 : i32, i32
  }
  func.func @transform_27(%arg0: i32) -> (i32, i32) {
    %c0_i32 = arith.constant 0 : i32
    %c0_i32_0 = arith.constant 0 : i32
    %c0_i32_1 = arith.constant 0 : i32
    return %c0_i32, %c0_i32_0 : i32, i32
  }
  func.func @transform_28(%arg0: i32) -> (i32, i32, i32) {
    %c0_i32 = arith.constant 0 : i32
    %c0_i32_0 = arith.constant 0 : i32
    %c0_i32_1 = arith.constant 0 : i32
    %c0_i32_2 = arith.constant 0 : i32
    return %c0_i32, %c0_i32_0, %c0_i32_1 : i32, i32, i32
  }
  func.func @transform_29(%arg0: i32) -> (i32, i32) {
    %c0_i32 = arith.constant 0 : i32
    %c0_i32_0 = arith.constant 0 : i32
    %c0_i32_1 = arith.constant 0 : i32
    return %c0_i32, %c0_i32_0 : i32, i32
  }
  func.func @transform_30(%arg0: i32) -> (i32, i32) {
    %c0_i32 = arith.constant 0 : i32
    %c0_i32_0 = arith.constant 0 : i32
    %c0_i32_1 = arith.constant 0 : i32
    return %c0_i32, %c0_i32_0 : i32, i32
  }
  func.func @transform_31(%arg0: i32) -> (i32, i32) {
    %c0_i32 = arith.constant 0 : i32
    %c0_i32_0 = arith.constant 0 : i32
    %c0_i32_1 = arith.constant 0 : i32
    return %c0_i32, %c0_i32_0 : i32, i32
  }
  func.func @transform_32(%arg0: i32) -> (i32, i32) {
    %c0_i32 = arith.constant 0 : i32
    %c0_i32_0 = arith.constant 0 : i32
    %c0_i32_1 = arith.constant 0 : i32
    return %c0_i32, %c0_i32_0 : i32, i32
  }
  func.func @transform_33(%arg0: i32) -> (i32, i32) {
    %c0_i32 = arith.constant 0 : i32
    %c0_i32_0 = arith.constant 0 : i32
    %c0_i32_1 = arith.constant 0 : i32
    return %c0_i32, %c0_i32_0 : i32, i32
  }
  func.func @transform_34(%arg0: i32) -> (i32, i32) {
    %c0_i32 = arith.constant 0 : i32
    %c0_i32_0 = arith.constant 0 : i32
    %c0_i32_1 = arith.constant 0 : i32
    return %c0_i32, %c0_i32_0 : i32, i32
  }
  func.func @transform_35(%arg0: i32) -> (i32, i32, i32) {
    %c0_i32 = arith.constant 0 : i32
    %c0_i32_0 = arith.constant 0 : i32
    %c0_i32_1 = arith.constant 0 : i32
    return %arg0, %c0_i32, %c0_i32_0 : i32, i32, i32
  }
  func.func @transform_36(%arg0: i32) -> (i32, i32, i32) {
    %c0_i32 = arith.constant 0 : i32
    %c0_i32_0 = arith.constant 0 : i32
    %c0_i32_1 = arith.constant 0 : i32
    return %arg0, %c0_i32, %c0_i32_0 : i32, i32, i32
  }
  func.func @transform_37(%arg0: i32) -> (i32, i32, i32) {
    %c0_i32 = arith.constant 0 : i32
    %c0_i32_0 = arith.constant 0 : i32
    %c0_i32_1 = arith.constant 0 : i32
    return %arg0, %c0_i32, %c0_i32_0 : i32, i32, i32
  }
  func.func @transform_38(%arg0: i32) -> (i32, i32, i32) {
    %c0_i32 = arith.constant 0 : i32
    %c0_i32_0 = arith.constant 0 : i32
    %c0_i32_1 = arith.constant 0 : i32
    return %arg0, %c0_i32, %c0_i32_0 : i32, i32, i32
  }
  func.func @transform_39(%arg0: i32) -> (i32, i32, i32) {
    %c0_i32 = arith.constant 0 : i32
    %c0_i32_0 = arith.constant 0 : i32
    %c0_i32_1 = arith.constant 0 : i32
    return %arg0, %c0_i32, %c0_i32_0 : i32, i32, i32
  }
  func.func @transform_40(%arg0: i32) -> (i32, i32, i32) {
    %c0_i32 = arith.constant 0 : i32
    %c0_i32_0 = arith.constant 0 : i32
    %c0_i32_1 = arith.constant 0 : i32
    return %arg0, %c0_i32, %c0_i32_0 : i32, i32, i32
  }
  func.func @transform_41(%arg0: i32) -> (i32, i32, i32) {
    %c0_i32 = arith.constant 0 : i32
    %c0_i32_0 = arith.constant 0 : i32
    %c0_i32_1 = arith.constant 0 : i32
    return %arg0, %c0_i32, %c0_i32_0 : i32, i32, i32
  }
  func.func @transform_42(%arg0: i32) -> (i32, i32, i32) {
    %c0_i32 = arith.constant 0 : i32
    %c0_i32_0 = arith.constant 0 : i32
    %c0_i32_1 = arith.constant 0 : i32
    return %arg0, %c0_i32, %c0_i32_0 : i32, i32, i32
  }
  func.func @transform_43(%arg0: i32) -> (i32, i32, i32) {
    %c0_i32 = arith.constant 0 : i32
    %c0_i32_0 = arith.constant 0 : i32
    %c0_i32_1 = arith.constant 0 : i32
    return %arg0, %c0_i32, %c0_i32_0 : i32, i32, i32
  }
  func.func @transform_44(%arg0: i32) -> (i32, i32, i32) {
    %c0_i32 = arith.constant 0 : i32
    %c0_i32_0 = arith.constant 0 : i32
    %c0_i32_1 = arith.constant 0 : i32
    return %arg0, %c0_i32, %c0_i32_0 : i32, i32, i32
  }
  func.func @transform_45(%arg0: i32) -> (i32, i32, i32) {
    %c0_i32 = arith.constant 0 : i32
    %c0_i32_0 = arith.constant 0 : i32
    %c0_i32_1 = arith.constant 0 : i32
    return %arg0, %c0_i32, %c0_i32_0 : i32, i32, i32
  }
  func.func @transform_46(%arg0: i32) -> (i32, i32, i32) {
    %c0_i32 = arith.constant 0 : i32
    %c0_i32_0 = arith.constant 0 : i32
    %c0_i32_1 = arith.constant 0 : i32
    return %arg0, %c0_i32, %c0_i32_0 : i32, i32, i32
  }
  func.func @transform_47(%arg0: i32) -> (i32, i32, i32) {
    %c0_i32 = arith.constant 0 : i32
    %c0_i32_0 = arith.constant 0 : i32
    %c0_i32_1 = arith.constant 0 : i32
    return %arg0, %c0_i32, %c0_i32_0 : i32, i32, i32
  }
  func.func @transform_48(%arg0: i32) -> (i32, i32, i32) {
    %c0_i32 = arith.constant 0 : i32
    %c0_i32_0 = arith.constant 0 : i32
    %c0_i32_1 = arith.constant 0 : i32
    return %arg0, %c0_i32, %c0_i32_0 : i32, i32, i32
  }
  func.func @transform_49(%arg0: i32) -> (i32, i32, i32) {
    %c0_i32 = arith.constant 0 : i32
    %c0_i32_0 = arith.constant 0 : i32
    %c0_i32_1 = arith.constant 0 : i32
    return %arg0, %c0_i32, %c0_i32_0 : i32, i32, i32
  }
}

</mosaic_0001>

<llo_original>
// kernel: get_activations_forward.1
$region0: #{get_activations_forward.1}
  #allocation0 [shape = 'u32[]', space=smem, size = 0x4, offset = 0x4, fixed_abs, tag = 'smem constant byte address 0x4 - core index']
  #allocation1 [shape = 'u32[72,128]{1,0:T(1,128)}', space=vmem, size = 0x9000, scoped, tag = 'internal scratch']
  #allocation2 [shape = 'f32[18,128]{1,0:T(8,128)}', space=vmem, size = 0x3000, scoped, tag = 'scratch operand']
  #allocation3 [shape = 'f32[18,128]{1,0:T(8,128)}', space=vmem, size = 0x3000, scoped, tag = 'scratch operand']
  %s0 = inlined_call_operand.smem [shape: u32[50], index: -1, kind: input, shape index: {}]
  %s1 = sld [smem:[%s0]]
  %s2 = scalar_lea.smem %s0, 1
  %s3 = sld [smem:[%s2]]
  %s4 = scalar_lea.smem %s0, 2
  %s5 = sld [smem:[%s4]]
  %s6 = scalar_lea.smem %s0, 3
  %s7 = sld [smem:[%s6]]
  %s8 = scalar_lea.smem %s0, 4
  %s9 = sld [smem:[%s8]]
  %s10 = scalar_lea.smem %s0, 5
  %s11 = sld [smem:[%s10]]
  %s12 = scalar_lea.smem %s0, 6
  %s13 = sld [smem:[%s12]]
  %s14 = scalar_lea.smem %s0, 7
  %s15 = sld [smem:[%s14]]
  %s16 = scalar_lea.smem %s0, 8
  %s17 = sld [smem:[%s16]]
  %s18 = scalar_lea.smem %s0, 9
  %s19 = sld [smem:[%s18]]
  %s20 = scalar_lea.smem %s0, 10
  %s21 = sld [smem:[%s20]]
  %s22 = scalar_lea.smem %s0, 11
  %s23 = sld [smem:[%s22]]
  %s24 = scalar_lea.smem %s0, 12
  %s25 = sld [smem:[%s24]]
  %s26 = scalar_lea.smem %s0, 13
  %s27 = sld [smem:[%s26]]
  %s28 = scalar_lea.smem %s0, 14
  %s29 = sld [smem:[%s28]]
  %s30 = scalar_lea.smem %s0, 15
  %s31 = sld [smem:[%s30]]
  %s32 = scalar_lea.smem %s0, 16
  %s33 = sld [smem:[%s32]]
  %s34 = scalar_lea.smem %s0, 17
  %s35 = sld [smem:[%s34]]
  %s36 = scalar_lea.smem %s0, 18
  %s37 = sld [smem:[%s36]]
  %s38 = scalar_lea.smem %s0, 19
  %s39 = sld [smem:[%s38]]
  %s40 = scalar_lea.smem %s0, 20
  %s41 = sld [smem:[%s40]]
  %s42 = scalar_lea.smem %s0, 21
  %s43 = sld [smem:[%s42]]
  %s44 = scalar_lea.smem %s0, 22
  %s45 = sld [smem:[%s44]]
  %s46 = scalar_lea.smem %s0, 23
  %s47 = sld [smem:[%s46]]
  %s48 = scalar_lea.smem %s0, 24
  %s49 = sld [smem:[%s48]]
  %s50 = scalar_lea.smem %s0, 25
  %s51 = sld [smem:[%s50]]
  %s52 = scalar_lea.smem %s0, 26
  %s53 = sld [smem:[%s52]]
  %s54 = scalar_lea.smem %s0, 27
  %s55 = sld [smem:[%s54]]
  %s56 = scalar_lea.smem %s0, 28
  %s57 = sld [smem:[%s56]]
  %s58 = scalar_lea.smem %s0, 29
  %s59 = sld [smem:[%s58]]
  %s60 = scalar_lea.smem %s0, 30
  %s61 = sld [smem:[%s60]]
  %s62 = scalar_lea.smem %s0, 31
  %s63 = sld [smem:[%s62]]
  %s64 = scalar_lea.smem %s0, 32
  %s65 = sld [smem:[%s64]]
  %s66 = scalar_lea.smem %s0, 33
  %s67 = sld [smem:[%s66]]
  %s68 = scalar_lea.smem %s0, 34
  %s69 = sld [smem:[%s68]]
  %s70 = scalar_lea.smem %s0, 35
  %s71 = sld [smem:[%s70]]
  %s72 = scalar_lea.smem %s0, 36
  %s73 = sld [smem:[%s72]]
  %s74 = scalar_lea.smem %s0, 37
  %s75 = sld [smem:[%s74]]
  %s76 = scalar_lea.smem %s0, 38
  %s77 = sld [smem:[%s76]]
  %s78 = scalar_lea.smem %s0, 39
  %s79 = sld [smem:[%s78]]
  %s80 = scalar_lea.smem %s0, 40
  %s81 = sld [smem:[%s80]]
  %s82 = scalar_lea.smem %s0, 41
  %s83 = sld [smem:[%s82]]
  %s84 = scalar_lea.smem %s0, 42
  %s85 = sld [smem:[%s84]]
  %s86 = scalar_lea.smem %s0, 43
  %s87 = sld [smem:[%s86]]
  %s88 = scalar_lea.smem %s0, 44
  %s89 = sld [smem:[%s88]]
  %s90 = scalar_lea.smem %s0, 45
  %s91 = sld [smem:[%s90]]
  %s92 = scalar_lea.smem %s0, 46
  %s93 = sld [smem:[%s92]]
  %s94 = scalar_lea.smem %s0, 47
  %s95 = sld [smem:[%s94]]
  %s96 = scalar_lea.smem %s0, 48
  %s97 = sld [smem:[%s96]]
  %s98 = scalar_lea.smem %s0, 49
  %s99 = sld [smem:[%s98]]
  %100 = xla_tuple %s71, %s73, %s75, %s77, %s79, %s81, %s83, %s85, %s87, %s89, %s91, %s93, %s95, %s97, %s99
  %s101 = sld [smem:[#allocation0]]
  $region369: #{get_activations_forward.1} parent=0
    _
  %s103 = ssub.s32 1, %s101
  %s104 = scalar_select 0, %s103, %s101
  $region1: #{get_activations_forward.1} parent=0
    #allocation4 [shape = 'u8[24576]{0}', space=vmem, size = 0x6000, scoped, tag = 'input window, operand 1, single buffered']
    #allocation5 [shape = 's32[2]{0}', space=sflag, size = 0x8, scoped, tag = 'scoped memory for get_activations_forward.1']
    #allocation6 [shape = 's32[2]{0}', space=sflag, size = 0x8, scoped, tag = 'scoped memory for get_activations_forward.1']
    #allocation7 [shape = 'u8[196608]{0}', space=vmem, size = 0x30000, scoped, tag = 'input window, operand 4, single buffered']
    #allocation8 [shape = 's32[1]{0}', space=sflag, size = 0x4, scoped, tag = 'scoped memory for get_activations_forward.1']
    #allocation9 [shape = 'u8[196608]{0}', space=vmem, size = 0x30000, scoped, tag = 'input window, operand 7, single buffered']
    #allocation10 [shape = 'u8[65536]{0}', space=vmem, size = 0x10000, scoped, tag = 'input window, operand 10, single buffered']
    #allocation11 [shape = 's32[1]{0}', space=sflag, size = 0x4, scoped, tag = 'scoped memory for get_activations_forward.1']
    #allocation12 [shape = 'u8[393216]{0}', space=vmem, size = 0x60000, scoped, tag = 'input window, operand 11, single buffered']
    #allocation13 [shape = 'u8[196608]{0}', space=vmem, size = 0x30000, scoped, tag = 'input window, operand 14, single buffered']
    #allocation14 [shape = 's32[1]{0}', space=sflag, size = 0x4, scoped, tag = 'scoped memory for get_activations_forward.1']
    #allocation15 [shape = 'u8[65536]{0}', space=vmem, size = 0x10000, scoped, tag = 'input window, operand 17, single buffered']
    #allocation16 [shape = 'u8[393216]{0}', space=vmem, size = 0x60000, scoped, tag = 'input window, operand 18, single buffered']
    #allocation17 [shape = 's32[1]{0}', space=sflag, size = 0x4, scoped, tag = 'scoped memory for get_activations_forward.1']
    #allocation18 [shape = 'u8[196608]{0}', space=vmem, size = 0x30000, scoped, tag = 'input window, operand 21, single buffered']
    #allocation19 [shape = 'u8[512]{0}', space=vmem, size = 0x400, scoped, tag = 'input window, operand 22, single buffered']
    #allocation20 [shape = 's32[1]{0}', space=sflag, size = 0x4, scoped, tag = 'scoped memory for get_activations_forward.1']
    #allocation21 [shape = 'u8[512]{0}', space=vmem, size = 0x400, scoped, tag = 'input window, operand 23, single buffered']
    #allocation22 [shape = 'u8[65536]{0}', space=vmem, size = 0x10000, scoped, tag = 'input window, operand 24, single buffered']
    #allocation23 [shape = 's32[1]{0}', space=sflag, size = 0x4, scoped, tag = 'scoped memory for get_activations_forward.1']
    #allocation24 [shape = 'u8[393216]{0}', space=vmem, size = 0x60000, scoped, tag = 'input window, operand 25, single buffered']
    #allocation25 [shape = 'u8[1024]{0}', space=vmem, size = 0x400, scoped, tag = 'input window, operand 26, single buffered']
    #allocation26 [shape = 's32[1]{0}', space=sflag, size = 0x4, scoped, tag = 'scoped memory for get_activations_forward.1']
    #allocation27 [shape = 'u8[1024]{0}', space=vmem, size = 0x400, scoped, tag = 'input window, operand 27, single buffered']
    #allocation28 [shape = 'u8[196608]{0}', space=vmem, size = 0x30000, scoped, tag = 'input window, operand 28, single buffered']
    #allocation29 [shape = 's32[1]{0}', space=sflag, size = 0x4, scoped, tag = 'scoped memory for get_activations_forward.1']
    #allocation30 [shape = 'u8[512]{0}', space=vmem, size = 0x400, scoped, tag = 'input window, operand 29, single buffered']
    #allocation31 [shape = 'u8[512]{0}', space=vmem, size = 0x400, scoped, tag = 'input window, operand 30, single buffered']
    #allocation32 [shape = 's32[1]{0}', space=sflag, size = 0x4, scoped, tag = 'scoped memory for get_activations_forward.1']
    #allocation33 [shape = 'u8[65536]{0}', space=vmem, size = 0x10000, scoped, tag = 'input window, operand 31, single buffered']
    #allocation34 [shape = 'u8[65536]{0}', space=vmem, size = 0x10000, scoped, tag = 'input window, operand 32, single buffered']
    #allocation35 [shape = 's32[1]{0}', space=sflag, size = 0x4, scoped, tag = 'scoped memory for get_activations_forward.1']
    #allocation36 [shape = 'u8[512]{0}', space=vmem, size = 0x400, scoped, tag = 'input window, operand 34, single buffered']
    #allocation37 [shape = 'u8[1024]{0}', space=vmem, size = 0x400, scoped, tag = 'output window, operand 13']
    #allocation38 [shape = 'u8[1024]{0}', space=vmem, size = 0x400, scoped, tag = 'output window, operand 14']
    #allocation39 [shape = 's32[2]{0}', space=sflag, size = 0x8, scoped, tag = 'scoped memory for get_activations_forward.1']
    %105 = vsyncpa [#allocation5], 0
    %106 = vsyncpa [#allocation8], 0
    %107 = vsyncpa [#allocation11], 0
    %108 = vsyncpa [#allocation14], 0
    %109 = vsyncpa [#allocation17], 0
    %110 = vsyncpa [#allocation20], 0
    %111 = vsyncpa [#allocation23], 0
    %112 = vsyncpa [#allocation26], 0
    %113 = vsyncpa [#allocation29], 0
    %114 = vsyncpa [#allocation32], 0
    %115 = vsyncpa [#allocation35], 0
    %116 = vsyncpa [#allocation6], 0
    %s117 = scalar_lea.sflag [#allocation6], 1
    %118 = vsyncpa %s117, 0
    %119 = vsyncpa [#allocation39], 0
    %s120 = scalar_lea.sflag [#allocation39], 1
    %121 = vsyncpa %s120, 0
    loop: start=0, step=1, limit=4
    $region2: #{get_activations_forward.1} parent=1 // loop_pre_header
      _
    $region3: #{get_activations_forward.1} parent=1 // loop_header
      %s123 = sphi 0, %s127
      %p124 = scmp.ge.s32.totalorder %s123, 4
      %s133 = sphi 0, %s135
      %s136 = sphi 0, %s133
      %s137 = sphi 0, %s136
      %s153 = sphi 0, %s137
      %s157 = sphi 0, %s157
      %s159 = sphi 0, %s157
      %s160 = sphi 0, %s159
      %s174 = sphi 0, %s160
      %s178 = sphi 0, %s178
      %s180 = sphi 0, %s178
      %s181 = sphi 0, %s180
      %s195 = sphi 0, %s181
      %s199 = sphi 0, %s199
      %s201 = sphi 0, %s199
      %s202 = sphi 0, %s201
      %s216 = sphi 0, %s202
      %s220 = sphi 0, %s220
      %s222 = sphi 0, %s220
      %s223 = sphi 0, %s222
      %s237 = sphi 0, %s223
      %s241 = sphi 0, %s241
      %s243 = sphi 0, %s241
      %s244 = sphi 0, %s243
      %s258 = sphi 0, %s244
      %s262 = sphi 0, %s262
      %s264 = sphi 0, %s262
      %s265 = sphi 0, %s264
      %s279 = sphi 0, %s265
      %s283 = sphi 0, %s283
      %s285 = sphi 0, %s283
      %s286 = sphi 0, %s285
      %s300 = sphi 0, %s286
      %s304 = sphi 0, %s304
      %s306 = sphi 0, %s304
      %s307 = sphi 0, %s306
      %s321 = sphi 0, %s307
      %s325 = sphi 0, %s325
      %s327 = sphi 0, %s325
      %s328 = sphi 0, %s327
      %s342 = sphi 0, %s328
      %s346 = sphi 0, %s346
      %s348 = sphi 0, %s346
      %s349 = sphi 0, %s348
      %s363 = sphi 0, %s349
      %s367 = sphi 0, %s367
      %s369 = sphi 0, %s367
      %s370 = sphi 0, %s369
      %s384 = sphi 0, %s370
      %s388 = sphi 0, %s388
      %s390 = sphi 0, %s388
      %s391 = sphi 0, %s390
      %s405 = sphi 0, %s391
      %s409 = sphi 0, %s409
      %s411 = sphi 0, %s409
      %s412 = sphi 0, %s411
      %s426 = sphi 0, %s412
      %s430 = sphi 0, %s430
      %s432 = sphi 0, %s430
      %s433 = sphi 0, %s432
      %s447 = sphi 0, %s433
      %s451 = sphi 0, %s451
      %s453 = sphi 0, %s451
      %s454 = sphi 0, %s453
      %s468 = sphi 0, %s454
      %s472 = sphi 0, %s472
      %s474 = sphi 0, %s472
      %s475 = sphi 0, %s474
      %s489 = sphi 0, %s475
      %s493 = sphi 0, %s493
      %s495 = sphi 0, %s493
      %s496 = sphi 0, %s495
      %s510 = sphi 0, %s496
      %s514 = sphi 0, %s514
      %s516 = sphi 0, %s514
      %s517 = sphi 0, %s516
      %s531 = sphi 0, %s517
      %s535 = sphi 0, %s535
      %s537 = sphi 0, %s535
      %s538 = sphi 0, %s537
      %s552 = sphi 0, %s538
      %s556 = sphi 0, %s556
      %s558 = sphi 0, %s556
      %s559 = sphi 0, %s558
      %s573 = sphi 0, %s559
      %s577 = sphi 0, %s577
      %s579 = sphi 0, %s577
      %s580 = sphi 0, %s579
      %s594 = sphi 0, %s580
      %s598 = sphi 0, %s598
      %s600 = sphi 0, %s598
      %s601 = sphi 0, %s600
      %s615 = sphi 0, %s601
      %s619 = sphi 0, %s619
      %s621 = sphi 0, %s619
      %s622 = sphi 0, %s621
      %s636 = sphi 0, %s622
      %s640 = sphi 0, %s640
      %s642 = sphi 0, %s640
      %s643 = sphi 0, %s642
      %s657 = sphi 0, %s643
      %s661 = sphi 0, %s661
      %s663 = sphi 0, %s661
      %s664 = sphi 0, %s663
      %s678 = sphi 0, %s664
      %s682 = sphi 0, %s682
      %s684 = sphi 0, %s682
      %s685 = sphi 0, %s684
      %s699 = sphi 0, %s685
      %s703 = sphi 0, %s703
      %s705 = sphi 0, %s703
      %s706 = sphi 0, %s705
      %s720 = sphi 0, %s706
      %s724 = sphi 0, %s724
      %s726 = sphi 0, %s724
      %s727 = sphi 0, %s726
      %s741 = sphi 0, %s727
      %s745 = sphi 0, %s745
      %s747 = sphi 0, %s745
      %s748 = sphi 0, %s747
      %s762 = sphi 0, %s748
      %s766 = sphi 0, %s766
      %s768 = sphi 0, %s766
      %s769 = sphi 0, %s768
      %s783 = sphi 0, %s769
      %s787 = sphi 0, %s787
      %s789 = sphi 0, %s787
      %s790 = sphi 0, %s789
      %s804 = sphi 0, %s790
      %s808 = sphi 0, %s808
      %s810 = sphi 0, %s808
      %s811 = sphi 0, %s810
      %s825 = sphi 0, %s811
      %s829 = sphi 0, %s829
      %s831 = sphi 0, %s829
      %s832 = sphi 0, %s831
      %s846 = sphi 0, %s832
      %s850 = sphi 0, %s850
      %s852 = sphi 0, %s850
      %s853 = sphi 0, %s852
      %s867 = sphi 0, %s853
      %s873 = sphi 0, %s875
      %s876 = sphi 0, %s873
      %s877 = sphi 0, %s876
      %s893 = sphi 0, %s877
      %s899 = sphi 0, %s901
      %s902 = sphi 0, %s899
      %s903 = sphi 0, %s902
      %s919 = sphi 0, %s903
      %s925 = sphi 0, %s927
      %s928 = sphi 0, %s925
      %s929 = sphi 0, %s928
      %s945 = sphi 0, %s929
      %s951 = sphi 0, %s953
      %s954 = sphi 0, %s951
      %s955 = sphi 0, %s954
      %s971 = sphi 0, %s955
      %s977 = sphi 0, %s979
      %s980 = sphi 0, %s977
      %s981 = sphi 0, %s980
      %s997 = sphi 0, %s981
      %s1003 = sphi 0, %s1005
      %s1006 = sphi 0, %s1003
      %s1007 = sphi 0, %s1006
      %s1023 = sphi 0, %s1007
      %s1029 = sphi 0, %s1031
      %s1032 = sphi 0, %s1029
      %s1033 = sphi 0, %s1032
      %s1049 = sphi 0, %s1033
      %s1055 = sphi 0, %s1057
      %s1058 = sphi 0, %s1055
      %s1059 = sphi 0, %s1058
      %s1075 = sphi 0, %s1059
      %s1081 = sphi 0, %s1083
      %s1084 = sphi 0, %s1081
      %s1085 = sphi 0, %s1084
      %s1101 = sphi 0, %s1085
      %s1107 = sphi 0, %s1109
      %s1110 = sphi 0, %s1107
      %s1111 = sphi 0, %s1110
      %s1127 = sphi 0, %s1111
      %s1133 = sphi 0, %s1135
      %s1136 = sphi 0, %s1133
      %s1137 = sphi 0, %s1136
      %s1153 = sphi 0, %s1137
      %s1159 = sphi 0, %s1161
      %s1162 = sphi 0, %s1159
      %s1163 = sphi 0, %s1162
      %s1179 = sphi 0, %s1163
      %s1185 = sphi 0, %s1187
      %s1188 = sphi 0, %s1185
      %s1189 = sphi 0, %s1188
      %s1205 = sphi 0, %s1189
      %s1211 = sphi 0, %s1213
      %s1214 = sphi 0, %s1211
      %s1215 = sphi 0, %s1214
      %s1231 = sphi 0, %s1215
      %s1237 = sphi 0, %s1239
      %s1240 = sphi 0, %s1237
      %s1241 = sphi 0, %s1240
      %s1257 = sphi 0, %s1241
    $region4: #{get_activations_forward.1} parent=1 // loop_header_branch
      %126 = sbr.rel (%p124) target = $region8
    $region5: #{get_activations_forward.1} parent=1 // loop_body
      %s128 = ssub.s32 %s123, 1
      %s129 = ssub.s32 %s123, 2
      %s130 = sadd.s32 %s123, 1
      %s131 = ssub.s32 %s123, %s130
      %p132 = scmp.eq.s32.totalorder %s131, 0
      %s134 = sadd.s32 %s133, 1
      %s135 = scalar_select %p132, %s133, %s134
      %p138 = pneg %p132
      %p139 = scmp.eq.s32.totalorder %s123, 1
      %p140 = por %p138, %p139
      %p141 = scmp.ne.s32.totalorder %s133, %s136
      %p142 = scmp.eq.s32.totalorder %s123, 0
      %p143 = por %p141, %p142
      %p144 = scmp.ne.s32.totalorder %s133, %s136
      %p145 = scmp.eq.s32.totalorder %s128, 1
      %p146 = por %p144, %p145
      %p147 = scmp.ne.s32.totalorder %s136, %s137
      %p148 = scmp.eq.s32.totalorder %s128, 0
      %p149 = por %p147, %p148
      %p150 = scmp.ne.s32.totalorder %s136, %s137
      %p151 = scmp.eq.s32.totalorder %s129, 1
      %p152 = por %p150, %p151
      %p154 = scmp.ne.s32.totalorder %s137, %s153
      %p155 = scmp.eq.s32.totalorder %s129, 0
      %p156 = por %p154, %p155
      %s158 = sadd.s32 %s157, 1
      %p161 = scmp.eq.s32.totalorder %s123, 1
      %p162 = scmp.ne.s32.totalorder %s157, %s159
      %p163 = scmp.eq.s32.totalorder %s123, 0
      %p164 = por %p162, %p163
      %p165 = scmp.ne.s32.totalorder %s157, %s159
      %p166 = scmp.eq.s32.totalorder %s128, 1
      %p167 = por %p165, %p166
      %p168 = scmp.ne.s32.totalorder %s159, %s160
      %p169 = scmp.eq.s32.totalorder %s128, 0
      %p170 = por %p168, %p169
      %p171 = scmp.ne.s32.totalorder %s159, %s160
      %p172 = scmp.eq.s32.totalorder %s129, 1
      %p173 = por %p171, %p172
      %p175 = scmp.ne.s32.totalorder %s160, %s174
      %p176 = scmp.eq.s32.totalorder %s129, 0
      %p177 = por %p175, %p176
      %s179 = sadd.s32 %s178, 1
      %p182 = scmp.eq.s32.totalorder %s123, 1
      %p183 = scmp.ne.s32.totalorder %s178, %s180
      %p184 = scmp.eq.s32.totalorder %s123, 0
      %p185 = por %p183, %p184
      %p186 = scmp.ne.s32.totalorder %s178, %s180
      %p187 = scmp.eq.s32.totalorder %s128, 1
      %p188 = por %p186, %p187
      %p189 = scmp.ne.s32.totalorder %s180, %s181
      %p190 = scmp.eq.s32.totalorder %s128, 0
      %p191 = por %p189, %p190
      %p192 = scmp.ne.s32.totalorder %s180, %s181
      %p193 = scmp.eq.s32.totalorder %s129, 1
      %p194 = por %p192, %p193
      %p196 = scmp.ne.s32.totalorder %s181, %s195
      %p197 = scmp.eq.s32.totalorder %s129, 0
      %p198 = por %p196, %p197
      %s200 = sadd.s32 %s199, 1
      %p203 = scmp.eq.s32.totalorder %s123, 1
      %p204 = scmp.ne.s32.totalorder %s199, %s201
      %p205 = scmp.eq.s32.totalorder %s123, 0
      %p206 = por %p204, %p205
      %p207 = scmp.ne.s32.totalorder %s199, %s201
      %p208 = scmp.eq.s32.totalorder %s128, 1
      %p209 = por %p207, %p208
      %p210 = scmp.ne.s32.totalorder %s201, %s202
      %p211 = scmp.eq.s32.totalorder %s128, 0
      %p212 = por %p210, %p211
      %p213 = scmp.ne.s32.totalorder %s201, %s202
      %p214 = scmp.eq.s32.totalorder %s129, 1
      %p215 = por %p213, %p214
      %p217 = scmp.ne.s32.totalorder %s202, %s216
      %p218 = scmp.eq.s32.totalorder %s129, 0
      %p219 = por %p217, %p218
      %s221 = sadd.s32 %s220, 1
      %p224 = scmp.eq.s32.totalorder %s123, 1
      %p225 = scmp.ne.s32.totalorder %s220, %s222
      %p226 = scmp.eq.s32.totalorder %s123, 0
      %p227 = por %p225, %p226
      %p228 = scmp.ne.s32.totalorder %s220, %s222
      %p229 = scmp.eq.s32.totalorder %s128, 1
      %p230 = por %p228, %p229
      %p231 = scmp.ne.s32.totalorder %s222, %s223
      %p232 = scmp.eq.s32.totalorder %s128, 0
      %p233 = por %p231, %p232
      %p234 = scmp.ne.s32.totalorder %s222, %s223
      %p235 = scmp.eq.s32.totalorder %s129, 1
      %p236 = por %p234, %p235
      %p238 = scmp.ne.s32.totalorder %s223, %s237
      %p239 = scmp.eq.s32.totalorder %s129, 0
      %p240 = por %p238, %p239
      %s242 = sadd.s32 %s241, 1
      %p245 = scmp.eq.s32.totalorder %s123, 1
      %p246 = scmp.ne.s32.totalorder %s241, %s243
      %p247 = scmp.eq.s32.totalorder %s123, 0
      %p248 = por %p246, %p247
      %p249 = scmp.ne.s32.totalorder %s241, %s243
      %p250 = scmp.eq.s32.totalorder %s128, 1
      %p251 = por %p249, %p250
      %p252 = scmp.ne.s32.totalorder %s243, %s244
      %p253 = scmp.eq.s32.totalorder %s128, 0
      %p254 = por %p252, %p253
      %p255 = scmp.ne.s32.totalorder %s243, %s244
      %p256 = scmp.eq.s32.totalorder %s129, 1
      %p257 = por %p255, %p256
      %p259 = scmp.ne.s32.totalorder %s244, %s258
      %p260 = scmp.eq.s32.totalorder %s129, 0
      %p261 = por %p259, %p260
      %s263 = sadd.s32 %s262, 1
      %p266 = scmp.eq.s32.totalorder %s123, 1
      %p267 = scmp.ne.s32.totalorder %s262, %s264
      %p268 = scmp.eq.s32.totalorder %s123, 0
      %p269 = por %p267, %p268
      %p270 = scmp.ne.s32.totalorder %s262, %s264
      %p271 = scmp.eq.s32.totalorder %s128, 1
      %p272 = por %p270, %p271
      %p273 = scmp.ne.s32.totalorder %s264, %s265
      %p274 = scmp.eq.s32.totalorder %s128, 0
      %p275 = por %p273, %p274
      %p276 = scmp.ne.s32.totalorder %s264, %s265
      %p277 = scmp.eq.s32.totalorder %s129, 1
      %p278 = por %p276, %p277
      %p280 = scmp.ne.s32.totalorder %s265, %s279
      %p281 = scmp.eq.s32.totalorder %s129, 0
      %p282 = por %p280, %p281
      %s284 = sadd.s32 %s283, 1
      %p287 = scmp.eq.s32.totalorder %s123, 1
      %p288 = scmp.ne.s32.totalorder %s283, %s285
      %p289 = scmp.eq.s32.totalorder %s123, 0
      %p290 = por %p288, %p289
      %p291 = scmp.ne.s32.totalorder %s283, %s285
      %p292 = scmp.eq.s32.totalorder %s128, 1
      %p293 = por %p291, %p292
      %p294 = scmp.ne.s32.totalorder %s285, %s286
      %p295 = scmp.eq.s32.totalorder %s128, 0
      %p296 = por %p294, %p295
      %p297 = scmp.ne.s32.totalorder %s285, %s286
      %p298 = scmp.eq.s32.totalorder %s129, 1
      %p299 = por %p297, %p298
      %p301 = scmp.ne.s32.totalorder %s286, %s300
      %p302 = scmp.eq.s32.totalorder %s129, 0
      %p303 = por %p301, %p302
      %s305 = sadd.s32 %s304, 1
      %p308 = scmp.eq.s32.totalorder %s123, 1
      %p309 = scmp.ne.s32.totalorder %s304, %s306
      %p310 = scmp.eq.s32.totalorder %s123, 0
      %p311 = por %p309, %p310
      %p312 = scmp.ne.s32.totalorder %s304, %s306
      %p313 = scmp.eq.s32.totalorder %s128, 1
      %p314 = por %p312, %p313
      %p315 = scmp.ne.s32.totalorder %s306, %s307
      %p316 = scmp.eq.s32.totalorder %s128, 0
      %p317 = por %p315, %p316
      %p318 = scmp.ne.s32.totalorder %s306, %s307
      %p319 = scmp.eq.s32.totalorder %s129, 1
      %p320 = por %p318, %p319
      %p322 = scmp.ne.s32.totalorder %s307, %s321
      %p323 = scmp.eq.s32.totalorder %s129, 0
      %p324 = por %p322, %p323
      %s326 = sadd.s32 %s325, 1
      %p329 = scmp.eq.s32.totalorder %s123, 1
      %p330 = scmp.ne.s32.totalorder %s325, %s327
      %p331 = scmp.eq.s32.totalorder %s123, 0
      %p332 = por %p330, %p331
      %p333 = scmp.ne.s32.totalorder %s325, %s327
      %p334 = scmp.eq.s32.totalorder %s128, 1
      %p335 = por %p333, %p334
      %p336 = scmp.ne.s32.totalorder %s327, %s328
      %p337 = scmp.eq.s32.totalorder %s128, 0
      %p338 = por %p336, %p337
      %p339 = scmp.ne.s32.totalorder %s327, %s328
      %p340 = scmp.eq.s32.totalorder %s129, 1
      %p341 = por %p339, %p340
      %p343 = scmp.ne.s32.totalorder %s328, %s342
      %p344 = scmp.eq.s32.totalorder %s129, 0
      %p345 = por %p343, %p344
      %s347 = sadd.s32 %s346, 1
      %p350 = scmp.eq.s32.totalorder %s123, 1
      %p351 = scmp.ne.s32.totalorder %s346, %s348
      %p352 = scmp.eq.s32.totalorder %s123, 0
      %p353 = por %p351, %p352
      %p354 = scmp.ne.s32.totalorder %s346, %s348
      %p355 = scmp.eq.s32.totalorder %s128, 1
      %p356 = por %p354, %p355
      %p357 = scmp.ne.s32.totalorder %s348, %s349
      %p358 = scmp.eq.s32.totalorder %s128, 0
      %p359 = por %p357, %p358
      %p360 = scmp.ne.s32.totalorder %s348, %s349
      %p361 = scmp.eq.s32.totalorder %s129, 1
      %p362 = por %p360, %p361
      %p364 = scmp.ne.s32.totalorder %s349, %s363
      %p365 = scmp.eq.s32.totalorder %s129, 0
      %p366 = por %p364, %p365
      %s368 = sadd.s32 %s367, 1
      %p371 = scmp.eq.s32.totalorder %s123, 1
      %p372 = scmp.ne.s32.totalorder %s367, %s369
      %p373 = scmp.eq.s32.totalorder %s123, 0
      %p374 = por %p372, %p373
      %p375 = scmp.ne.s32.totalorder %s367, %s369
      %p376 = scmp.eq.s32.totalorder %s128, 1
      %p377 = por %p375, %p376
      %p378 = scmp.ne.s32.totalorder %s369, %s370
      %p379 = scmp.eq.s32.totalorder %s128, 0
      %p380 = por %p378, %p379
      %p381 = scmp.ne.s32.totalorder %s369, %s370
      %p382 = scmp.eq.s32.totalorder %s129, 1
      %p383 = por %p381, %p382
      %p385 = scmp.ne.s32.totalorder %s370, %s384
      %p386 = scmp.eq.s32.totalorder %s129, 0
      %p387 = por %p385, %p386
      %s389 = sadd.s32 %s388, 1
      %p392 = scmp.eq.s32.totalorder %s123, 1
      %p393 = scmp.ne.s32.totalorder %s388, %s390
      %p394 = scmp.eq.s32.totalorder %s123, 0
      %p395 = por %p393, %p394
      %p396 = scmp.ne.s32.totalorder %s388, %s390
      %p397 = scmp.eq.s32.totalorder %s128, 1
      %p398 = por %p396, %p397
      %p399 = scmp.ne.s32.totalorder %s390, %s391
      %p400 = scmp.eq.s32.totalorder %s128, 0
      %p401 = por %p399, %p400
      %p402 = scmp.ne.s32.totalorder %s390, %s391
      %p403 = scmp.eq.s32.totalorder %s129, 1
      %p404 = por %p402, %p403
      %p406 = scmp.ne.s32.totalorder %s391, %s405
      %p407 = scmp.eq.s32.totalorder %s129, 0
      %p408 = por %p406, %p407
      %s410 = sadd.s32 %s409, 1
      %p413 = scmp.eq.s32.totalorder %s123, 1
      %p414 = scmp.ne.s32.totalorder %s409, %s411
      %p415 = scmp.eq.s32.totalorder %s123, 0
      %p416 = por %p414, %p415
      %p417 = scmp.ne.s32.totalorder %s409, %s411
      %p418 = scmp.eq.s32.totalorder %s128, 1
      %p419 = por %p417, %p418
      %p420 = scmp.ne.s32.totalorder %s411, %s412
      %p421 = scmp.eq.s32.totalorder %s128, 0
      %p422 = por %p420, %p421
      %p423 = scmp.ne.s32.totalorder %s411, %s412
      %p424 = scmp.eq.s32.totalorder %s129, 1
      %p425 = por %p423, %p424
      %p427 = scmp.ne.s32.totalorder %s412, %s426
      %p428 = scmp.eq.s32.totalorder %s129, 0
      %p429 = por %p427, %p428
      %s431 = sadd.s32 %s430, 1
      %p434 = scmp.eq.s32.totalorder %s123, 1
      %p435 = scmp.ne.s32.totalorder %s430, %s432
      %p436 = scmp.eq.s32.totalorder %s123, 0
      %p437 = por %p435, %p436
      %p438 = scmp.ne.s32.totalorder %s430, %s432
      %p439 = scmp.eq.s32.totalorder %s128, 1
      %p440 = por %p438, %p439
      %p441 = scmp.ne.s32.totalorder %s432, %s433
      %p442 = scmp.eq.s32.totalorder %s128, 0
      %p443 = por %p441, %p442
      %p444 = scmp.ne.s32.totalorder %s432, %s433
      %p445 = scmp.eq.s32.totalorder %s129, 1
      %p446 = por %p444, %p445
      %p448 = scmp.ne.s32.totalorder %s433, %s447
      %p449 = scmp.eq.s32.totalorder %s129, 0
      %p450 = por %p448, %p449
      %s452 = sadd.s32 %s451, 1
      %p455 = scmp.eq.s32.totalorder %s123, 1
      %p456 = scmp.ne.s32.totalorder %s451, %s453
      %p457 = scmp.eq.s32.totalorder %s123, 0
      %p458 = por %p456, %p457
      %p459 = scmp.ne.s32.totalorder %s451, %s453
      %p460 = scmp.eq.s32.totalorder %s128, 1
      %p461 = por %p459, %p460
      %p462 = scmp.ne.s32.totalorder %s453, %s454
      %p463 = scmp.eq.s32.totalorder %s128, 0
      %p464 = por %p462, %p463
      %p465 = scmp.ne.s32.totalorder %s453, %s454
      %p466 = scmp.eq.s32.totalorder %s129, 1
      %p467 = por %p465, %p466
      %p469 = scmp.ne.s32.totalorder %s454, %s468
      %p470 = scmp.eq.s32.totalorder %s129, 0
      %p471 = por %p469, %p470
      %s473 = sadd.s32 %s472, 1
      %p476 = scmp.eq.s32.totalorder %s123, 1
      %p477 = scmp.ne.s32.totalorder %s472, %s474
      %p478 = scmp.eq.s32.totalorder %s123, 0
      %p479 = por %p477, %p478
      %p480 = scmp.ne.s32.totalorder %s472, %s474
      %p481 = scmp.eq.s32.totalorder %s128, 1
      %p482 = por %p480, %p481
      %p483 = scmp.ne.s32.totalorder %s474, %s475
      %p484 = scmp.eq.s32.totalorder %s128, 0
      %p485 = por %p483, %p484
      %p486 = scmp.ne.s32.totalorder %s474, %s475
      %p487 = scmp.eq.s32.totalorder %s129, 1
      %p488 = por %p486, %p487
      %p490 = scmp.ne.s32.totalorder %s475, %s489
      %p491 = scmp.eq.s32.totalorder %s129, 0
      %p492 = por %p490, %p491
      %s494 = sadd.s32 %s493, 1
      %p497 = scmp.eq.s32.totalorder %s123, 1
      %p498 = scmp.ne.s32.totalorder %s493, %s495
      %p499 = scmp.eq.s32.totalorder %s123, 0
      %p500 = por %p498, %p499
      %p501 = scmp.ne.s32.totalorder %s493, %s495
      %p502 = scmp.eq.s32.totalorder %s128, 1
      %p503 = por %p501, %p502
      %p504 = scmp.ne.s32.totalorder %s495, %s496
      %p505 = scmp.eq.s32.totalorder %s128, 0
      %p506 = por %p504, %p505
      %p507 = scmp.ne.s32.totalorder %s495, %s496
      %p508 = scmp.eq.s32.totalorder %s129, 1
      %p509 = por %p507, %p508
      %p511 = scmp.ne.s32.totalorder %s496, %s510
      %p512 = scmp.eq.s32.totalorder %s129, 0
      %p513 = por %p511, %p512
      %s515 = sadd.s32 %s514, 1
      %p518 = scmp.eq.s32.totalorder %s123, 1
      %p519 = scmp.ne.s32.totalorder %s514, %s516
      %p520 = scmp.eq.s32.totalorder %s123, 0
      %p521 = por %p519, %p520
      %p522 = scmp.ne.s32.totalorder %s514, %s516
      %p523 = scmp.eq.s32.totalorder %s128, 1
      %p524 = por %p522, %p523
      %p525 = scmp.ne.s32.totalorder %s516, %s517
      %p526 = scmp.eq.s32.totalorder %s128, 0
      %p527 = por %p525, %p526
      %p528 = scmp.ne.s32.totalorder %s516, %s517
      %p529 = scmp.eq.s32.totalorder %s129, 1
      %p530 = por %p528, %p529
      %p532 = scmp.ne.s32.totalorder %s517, %s531
      %p533 = scmp.eq.s32.totalorder %s129, 0
      %p534 = por %p532, %p533
      %s536 = sadd.s32 %s535, 1
      %p539 = scmp.eq.s32.totalorder %s123, 1
      %p540 = scmp.ne.s32.totalorder %s535, %s537
      %p541 = scmp.eq.s32.totalorder %s123, 0
      %p542 = por %p540, %p541
      %p543 = scmp.ne.s32.totalorder %s535, %s537
      %p544 = scmp.eq.s32.totalorder %s128, 1
      %p545 = por %p543, %p544
      %p546 = scmp.ne.s32.totalorder %s537, %s538
      %p547 = scmp.eq.s32.totalorder %s128, 0
      %p548 = por %p546, %p547
      %p549 = scmp.ne.s32.totalorder %s537, %s538
      %p550 = scmp.eq.s32.totalorder %s129, 1
      %p551 = por %p549, %p550
      %p553 = scmp.ne.s32.totalorder %s538, %s552
      %p554 = scmp.eq.s32.totalorder %s129, 0
      %p555 = por %p553, %p554
      %s557 = sadd.s32 %s556, 1
      %p560 = scmp.eq.s32.totalorder %s123, 1
      %p561 = scmp.ne.s32.totalorder %s556, %s558
      %p562 = scmp.eq.s32.totalorder %s123, 0
      %p563 = por %p561, %p562
      %p564 = scmp.ne.s32.totalorder %s556, %s558
      %p565 = scmp.eq.s32.totalorder %s128, 1
      %p566 = por %p564, %p565
      %p567 = scmp.ne.s32.totalorder %s558, %s559
      %p568 = scmp.eq.s32.totalorder %s128, 0
      %p569 = por %p567, %p568
      %p570 = scmp.ne.s32.totalorder %s558, %s559
      %p571 = scmp.eq.s32.totalorder %s129, 1
      %p572 = por %p570, %p571
      %p574 = scmp.ne.s32.totalorder %s559, %s573
      %p575 = scmp.eq.s32.totalorder %s129, 0
      %p576 = por %p574, %p575
      %s578 = sadd.s32 %s577, 1
      %p581 = scmp.eq.s32.totalorder %s123, 1
      %p582 = scmp.ne.s32.totalorder %s577, %s579
      %p583 = scmp.eq.s32.totalorder %s123, 0
      %p584 = por %p582, %p583
      %p585 = scmp.ne.s32.totalorder %s577, %s579
      %p586 = scmp.eq.s32.totalorder %s128, 1
      %p587 = por %p585, %p586
      %p588 = scmp.ne.s32.totalorder %s579, %s580
      %p589 = scmp.eq.s32.totalorder %s128, 0
      %p590 = por %p588, %p589
      %p591 = scmp.ne.s32.totalorder %s579, %s580
      %p592 = scmp.eq.s32.totalorder %s129, 1
      %p593 = por %p591, %p592
      %p595 = scmp.ne.s32.totalorder %s580, %s594
      %p596 = scmp.eq.s32.totalorder %s129, 0
      %p597 = por %p595, %p596
      %s599 = sadd.s32 %s598, 1
      %p602 = scmp.eq.s32.totalorder %s123, 1
      %p603 = scmp.ne.s32.totalorder %s598, %s600
      %p604 = scmp.eq.s32.totalorder %s123, 0
      %p605 = por %p603, %p604
      %p606 = scmp.ne.s32.totalorder %s598, %s600
      %p607 = scmp.eq.s32.totalorder %s128, 1
      %p608 = por %p606, %p607
      %p609 = scmp.ne.s32.totalorder %s600, %s601
      %p610 = scmp.eq.s32.totalorder %s128, 0
      %p611 = por %p609, %p610
      %p612 = scmp.ne.s32.totalorder %s600, %s601
      %p613 = scmp.eq.s32.totalorder %s129, 1
      %p614 = por %p612, %p613
      %p616 = scmp.ne.s32.totalorder %s601, %s615
      %p617 = scmp.eq.s32.totalorder %s129, 0
      %p618 = por %p616, %p617
      %s620 = sadd.s32 %s619, 1
      %p623 = scmp.eq.s32.totalorder %s123, 1
      %p624 = scmp.ne.s32.totalorder %s619, %s621
      %p625 = scmp.eq.s32.totalorder %s123, 0
      %p626 = por %p624, %p625
      %p627 = scmp.ne.s32.totalorder %s619, %s621
      %p628 = scmp.eq.s32.totalorder %s128, 1
      %p629 = por %p627, %p628
      %p630 = scmp.ne.s32.totalorder %s621, %s622
      %p631 = scmp.eq.s32.totalorder %s128, 0
      %p632 = por %p630, %p631
      %p633 = scmp.ne.s32.totalorder %s621, %s622
      %p634 = scmp.eq.s32.totalorder %s129, 1
      %p635 = por %p633, %p634
      %p637 = scmp.ne.s32.totalorder %s622, %s636
      %p638 = scmp.eq.s32.totalorder %s129, 0
      %p639 = por %p637, %p638
      %s641 = sadd.s32 %s640, 1
      %p644 = scmp.eq.s32.totalorder %s123, 1
      %p645 = scmp.ne.s32.totalorder %s640, %s642
      %p646 = scmp.eq.s32.totalorder %s123, 0
      %p647 = por %p645, %p646
      %p648 = scmp.ne.s32.totalorder %s640, %s642
      %p649 = scmp.eq.s32.totalorder %s128, 1
      %p650 = por %p648, %p649
      %p651 = scmp.ne.s32.totalorder %s642, %s643
      %p652 = scmp.eq.s32.totalorder %s128, 0
      %p653 = por %p651, %p652
      %p654 = scmp.ne.s32.totalorder %s642, %s643
      %p655 = scmp.eq.s32.totalorder %s129, 1
      %p656 = por %p654, %p655
      %p658 = scmp.ne.s32.totalorder %s643, %s657
      %p659 = scmp.eq.s32.totalorder %s129, 0
      %p660 = por %p658, %p659
      %s662 = sadd.s32 %s661, 1
      %p665 = scmp.eq.s32.totalorder %s123, 1
      %p666 = scmp.ne.s32.totalorder %s661, %s663
      %p667 = scmp.eq.s32.totalorder %s123, 0
      %p668 = por %p666, %p667
      %p669 = scmp.ne.s32.totalorder %s661, %s663
      %p670 = scmp.eq.s32.totalorder %s128, 1
      %p671 = por %p669, %p670
      %p672 = scmp.ne.s32.totalorder %s663, %s664
      %p673 = scmp.eq.s32.totalorder %s128, 0
      %p674 = por %p672, %p673
      %p675 = scmp.ne.s32.totalorder %s663, %s664
      %p676 = scmp.eq.s32.totalorder %s129, 1
      %p677 = por %p675, %p676
      %p679 = scmp.ne.s32.totalorder %s664, %s678
      %p680 = scmp.eq.s32.totalorder %s129, 0
      %p681 = por %p679, %p680
      %s683 = sadd.s32 %s682, 1
      %p686 = scmp.eq.s32.totalorder %s123, 1
      %p687 = scmp.ne.s32.totalorder %s682, %s684
      %p688 = scmp.eq.s32.totalorder %s123, 0
      %p689 = por %p687, %p688
      %p690 = scmp.ne.s32.totalorder %s682, %s684
      %p691 = scmp.eq.s32.totalorder %s128, 1
      %p692 = por %p690, %p691
      %p693 = scmp.ne.s32.totalorder %s684, %s685
      %p694 = scmp.eq.s32.totalorder %s128, 0
      %p695 = por %p693, %p694
      %p696 = scmp.ne.s32.totalorder %s684, %s685
      %p697 = scmp.eq.s32.totalorder %s129, 1
      %p698 = por %p696, %p697
      %p700 = scmp.ne.s32.totalorder %s685, %s699
      %p701 = scmp.eq.s32.totalorder %s129, 0
      %p702 = por %p700, %p701
      %s704 = sadd.s32 %s703, 1
      %p707 = scmp.eq.s32.totalorder %s123, 1
      %p708 = scmp.ne.s32.totalorder %s703, %s705
      %p709 = scmp.eq.s32.totalorder %s123, 0
      %p710 = por %p708, %p709
      %p711 = scmp.ne.s32.totalorder %s703, %s705
      %p712 = scmp.eq.s32.totalorder %s128, 1
      %p713 = por %p711, %p712
      %p714 = scmp.ne.s32.totalorder %s705, %s706
      %p715 = scmp.eq.s32.totalorder %s128, 0
      %p716 = por %p714, %p715
      %p717 = scmp.ne.s32.totalorder %s705, %s706
      %p718 = scmp.eq.s32.totalorder %s129, 1
      %p719 = por %p717, %p718
      %p721 = scmp.ne.s32.totalorder %s706, %s720
      %p722 = scmp.eq.s32.totalorder %s129, 0
      %p723 = por %p721, %p722
      %s725 = sadd.s32 %s724, 1
      %p728 = scmp.eq.s32.totalorder %s123, 1
      %p729 = scmp.ne.s32.totalorder %s724, %s726
      %p730 = scmp.eq.s32.totalorder %s123, 0
      %p731 = por %p729, %p730
      %p732 = scmp.ne.s32.totalorder %s724, %s726
      %p733 = scmp.eq.s32.totalorder %s128, 1
      %p734 = por %p732, %p733
      %p735 = scmp.ne.s32.totalorder %s726, %s727
      %p736 = scmp.eq.s32.totalorder %s128, 0
      %p737 = por %p735, %p736
      %p738 = scmp.ne.s32.totalorder %s726, %s727
      %p739 = scmp.eq.s32.totalorder %s129, 1
      %p740 = por %p738, %p739
      %p742 = scmp.ne.s32.totalorder %s727, %s741
      %p743 = scmp.eq.s32.totalorder %s129, 0
      %p744 = por %p742, %p743
      %s746 = sadd.s32 %s745, 1
      %p749 = scmp.eq.s32.totalorder %s123, 1
      %p750 = scmp.ne.s32.totalorder %s745, %s747
      %p751 = scmp.eq.s32.totalorder %s123, 0
      %p752 = por %p750, %p751
      %p753 = scmp.ne.s32.totalorder %s745, %s747
      %p754 = scmp.eq.s32.totalorder %s128, 1
      %p755 = por %p753, %p754
      %p756 = scmp.ne.s32.totalorder %s747, %s748
      %p757 = scmp.eq.s32.totalorder %s128, 0
      %p758 = por %p756, %p757
      %p759 = scmp.ne.s32.totalorder %s747, %s748
      %p760 = scmp.eq.s32.totalorder %s129, 1
      %p761 = por %p759, %p760
      %p763 = scmp.ne.s32.totalorder %s748, %s762
      %p764 = scmp.eq.s32.totalorder %s129, 0
      %p765 = por %p763, %p764
      %s767 = sadd.s32 %s766, 1
      %p770 = scmp.eq.s32.totalorder %s123, 1
      %p771 = scmp.ne.s32.totalorder %s766, %s768
      %p772 = scmp.eq.s32.totalorder %s123, 0
      %p773 = por %p771, %p772
      %p774 = scmp.ne.s32.totalorder %s766, %s768
      %p775 = scmp.eq.s32.totalorder %s128, 1
      %p776 = por %p774, %p775
      %p777 = scmp.ne.s32.totalorder %s768, %s769
      %p778 = scmp.eq.s32.totalorder %s128, 0
      %p779 = por %p777, %p778
      %p780 = scmp.ne.s32.totalorder %s768, %s769
      %p781 = scmp.eq.s32.totalorder %s129, 1
      %p782 = por %p780, %p781
      %p784 = scmp.ne.s32.totalorder %s769, %s783
      %p785 = scmp.eq.s32.totalorder %s129, 0
      %p786 = por %p784, %p785
      %s788 = sadd.s32 %s787, 1
      %p791 = scmp.eq.s32.totalorder %s123, 1
      %p792 = scmp.ne.s32.totalorder %s787, %s789
      %p793 = scmp.eq.s32.totalorder %s123, 0
      %p794 = por %p792, %p793
      %p795 = scmp.ne.s32.totalorder %s787, %s789
      %p796 = scmp.eq.s32.totalorder %s128, 1
      %p797 = por %p795, %p796
      %p798 = scmp.ne.s32.totalorder %s789, %s790
      %p799 = scmp.eq.s32.totalorder %s128, 0
      %p800 = por %p798, %p799
      %p801 = scmp.ne.s32.totalorder %s789, %s790
      %p802 = scmp.eq.s32.totalorder %s129, 1
      %p803 = por %p801, %p802
      %p805 = scmp.ne.s32.totalorder %s790, %s804
      %p806 = scmp.eq.s32.totalorder %s129, 0
      %p807 = por %p805, %p806
      %s809 = sadd.s32 %s808, 1
      %p812 = scmp.eq.s32.totalorder %s123, 1
      %p813 = scmp.ne.s32.totalorder %s808, %s810
      %p814 = scmp.eq.s32.totalorder %s123, 0
      %p815 = por %p813, %p814
      %p816 = scmp.ne.s32.totalorder %s808, %s810
      %p817 = scmp.eq.s32.totalorder %s128, 1
      %p818 = por %p816, %p817
      %p819 = scmp.ne.s32.totalorder %s810, %s811
      %p820 = scmp.eq.s32.totalorder %s128, 0
      %p821 = por %p819, %p820
      %p822 = scmp.ne.s32.totalorder %s810, %s811
      %p823 = scmp.eq.s32.totalorder %s129, 1
      %p824 = por %p822, %p823
      %p826 = scmp.ne.s32.totalorder %s811, %s825
      %p827 = scmp.eq.s32.totalorder %s129, 0
      %p828 = por %p826, %p827
      %s830 = sadd.s32 %s829, 1
      %p833 = scmp.eq.s32.totalorder %s123, 1
      %p834 = scmp.ne.s32.totalorder %s829, %s831
      %p835 = scmp.eq.s32.totalorder %s123, 0
      %p836 = por %p834, %p835
      %p837 = scmp.ne.s32.totalorder %s829, %s831
      %p838 = scmp.eq.s32.totalorder %s128, 1
      %p839 = por %p837, %p838
      %p840 = scmp.ne.s32.totalorder %s831, %s832
      %p841 = scmp.eq.s32.totalorder %s128, 0
      %p842 = por %p840, %p841
      %p843 = scmp.ne.s32.totalorder %s831, %s832
      %p844 = scmp.eq.s32.totalorder %s129, 1
      %p845 = por %p843, %p844
      %p847 = scmp.ne.s32.totalorder %s832, %s846
      %p848 = scmp.eq.s32.totalorder %s129, 0
      %p849 = por %p847, %p848
      %s851 = sadd.s32 %s850, 1
      %p854 = scmp.eq.s32.totalorder %s123, 1
      %p855 = scmp.ne.s32.totalorder %s850, %s852
      %p856 = scmp.eq.s32.totalorder %s123, 0
      %p857 = por %p855, %p856
      %p858 = scmp.ne.s32.totalorder %s850, %s852
      %p859 = scmp.eq.s32.totalorder %s128, 1
      %p860 = por %p858, %p859
      %p861 = scmp.ne.s32.totalorder %s852, %s853
      %p862 = scmp.eq.s32.totalorder %s128, 0
      %p863 = por %p861, %p862
      %p864 = scmp.ne.s32.totalorder %s852, %s853
      %p865 = scmp.eq.s32.totalorder %s129, 1
      %p866 = por %p864, %p865
      %p868 = scmp.ne.s32.totalorder %s853, %s867
      %p869 = scmp.eq.s32.totalorder %s129, 0
      %p870 = por %p868, %p869
      %s871 = ssub.s32 %s123, %s130
      %p872 = scmp.eq.s32.totalorder %s871, 0
      %s874 = sadd.s32 %s873, 1
      %s875 = scalar_select %p872, %s873, %s874
      %p878 = pneg %p872
      %p879 = scmp.eq.s32.totalorder %s123, 1
      %p880 = por %p878, %p879
      %p881 = scmp.ne.s32.totalorder %s873, %s876
      %p882 = scmp.eq.s32.totalorder %s123, 0
      %p883 = por %p881, %p882
      %p884 = scmp.ne.s32.totalorder %s873, %s876
      %p885 = scmp.eq.s32.totalorder %s128, 1
      %p886 = por %p884, %p885
      %p887 = scmp.ne.s32.totalorder %s876, %s877
      %p888 = scmp.eq.s32.totalorder %s128, 0
      %p889 = por %p887, %p888
      %p890 = scmp.ne.s32.totalorder %s876, %s877
      %p891 = scmp.eq.s32.totalorder %s129, 1
      %p892 = por %p890, %p891
      %p894 = scmp.ne.s32.totalorder %s877, %s893
      %p895 = scmp.eq.s32.totalorder %s129, 0
      %p896 = por %p894, %p895
      %s897 = ssub.s32 %s123, %s130
      %p898 = scmp.eq.s32.totalorder %s897, 0
      %s900 = sadd.s32 %s899, 1
      %s901 = scalar_select %p898, %s899, %s900
      %p904 = pneg %p898
      %p905 = scmp.eq.s32.totalorder %s123, 1
      %p906 = por %p904, %p905
      %p907 = scmp.ne.s32.totalorder %s899, %s902
      %p908 = scmp.eq.s32.totalorder %s123, 0
      %p909 = por %p907, %p908
      %p910 = scmp.ne.s32.totalorder %s899, %s902
      %p911 = scmp.eq.s32.totalorder %s128, 1
      %p912 = por %p910, %p911
      %p913 = scmp.ne.s32.totalorder %s902, %s903
      %p914 = scmp.eq.s32.totalorder %s128, 0
      %p915 = por %p913, %p914
      %p916 = scmp.ne.s32.totalorder %s902, %s903
      %p917 = scmp.eq.s32.totalorder %s129, 1
      %p918 = por %p916, %p917
      %p920 = scmp.ne.s32.totalorder %s903, %s919
      %p921 = scmp.eq.s32.totalorder %s129, 0
      %p922 = por %p920, %p921
      %s923 = ssub.s32 %s123, %s130
      %p924 = scmp.eq.s32.totalorder %s923, 0
      %s926 = sadd.s32 %s925, 1
      %s927 = scalar_select %p924, %s925, %s926
      %p930 = pneg %p924
      %p931 = scmp.eq.s32.totalorder %s123, 1
      %p932 = por %p930, %p931
      %p933 = scmp.ne.s32.totalorder %s925, %s928
      %p934 = scmp.eq.s32.totalorder %s123, 0
      %p935 = por %p933, %p934
      %p936 = scmp.ne.s32.totalorder %s925, %s928
      %p937 = scmp.eq.s32.totalorder %s128, 1
      %p938 = por %p936, %p937
      %p939 = scmp.ne.s32.totalorder %s928, %s929
      %p940 = scmp.eq.s32.totalorder %s128, 0
      %p941 = por %p939, %p940
      %p942 = scmp.ne.s32.totalorder %s928, %s929
      %p943 = scmp.eq.s32.totalorder %s129, 1
      %p944 = por %p942, %p943
      %p946 = scmp.ne.s32.totalorder %s929, %s945
      %p947 = scmp.eq.s32.totalorder %s129, 0
      %p948 = por %p946, %p947
      %s949 = ssub.s32 %s123, %s130
      %p950 = scmp.eq.s32.totalorder %s949, 0
      %s952 = sadd.s32 %s951, 1
      %s953 = scalar_select %p950, %s951, %s952
      %p956 = pneg %p950
      %p957 = scmp.eq.s32.totalorder %s123, 1
      %p958 = por %p956, %p957
      %p959 = scmp.ne.s32.totalorder %s951, %s954
      %p960 = scmp.eq.s32.totalorder %s123, 0
      %p961 = por %p959, %p960
      %p962 = scmp.ne.s32.totalorder %s951, %s954
      %p963 = scmp.eq.s32.totalorder %s128, 1
      %p964 = por %p962, %p963
      %p965 = scmp.ne.s32.totalorder %s954, %s955
      %p966 = scmp.eq.s32.totalorder %s128, 0
      %p967 = por %p965, %p966
      %p968 = scmp.ne.s32.totalorder %s954, %s955
      %p969 = scmp.eq.s32.totalorder %s129, 1
      %p970 = por %p968, %p969
      %p972 = scmp.ne.s32.totalorder %s955, %s971
      %p973 = scmp.eq.s32.totalorder %s129, 0
      %p974 = por %p972, %p973
      %s975 = ssub.s32 %s123, %s130
      %p976 = scmp.eq.s32.totalorder %s975, 0
      %s978 = sadd.s32 %s977, 1
      %s979 = scalar_select %p976, %s977, %s978
      %p982 = pneg %p976
      %p983 = scmp.eq.s32.totalorder %s123, 1
      %p984 = por %p982, %p983
      %p985 = scmp.ne.s32.totalorder %s977, %s980
      %p986 = scmp.eq.s32.totalorder %s123, 0
      %p987 = por %p985, %p986
      %p988 = scmp.ne.s32.totalorder %s977, %s980
      %p989 = scmp.eq.s32.totalorder %s128, 1
      %p990 = por %p988, %p989
      %p991 = scmp.ne.s32.totalorder %s980, %s981
      %p992 = scmp.eq.s32.totalorder %s128, 0
      %p993 = por %p991, %p992
      %p994 = scmp.ne.s32.totalorder %s980, %s981
      %p995 = scmp.eq.s32.totalorder %s129, 1
      %p996 = por %p994, %p995
      %p998 = scmp.ne.s32.totalorder %s981, %s997
      %p999 = scmp.eq.s32.totalorder %s129, 0
      %p1000 = por %p998, %p999
      %s1001 = ssub.s32 %s123, %s130
      %p1002 = scmp.eq.s32.totalorder %s1001, 0
      %s1004 = sadd.s32 %s1003, 1
      %s1005 = scalar_select %p1002, %s1003, %s1004
      %p1008 = pneg %p1002
      %p1009 = scmp.eq.s32.totalorder %s123, 1
      %p1010 = por %p1008, %p1009
      %p1011 = scmp.ne.s32.totalorder %s1003, %s1006
      %p1012 = scmp.eq.s32.totalorder %s123, 0
      %p1013 = por %p1011, %p1012
      %p1014 = scmp.ne.s32.totalorder %s1003, %s1006
      %p1015 = scmp.eq.s32.totalorder %s128, 1
      %p1016 = por %p1014, %p1015
      %p1017 = scmp.ne.s32.totalorder %s1006, %s1007
      %p1018 = scmp.eq.s32.totalorder %s128, 0
      %p1019 = por %p1017, %p1018
      %p1020 = scmp.ne.s32.totalorder %s1006, %s1007
      %p1021 = scmp.eq.s32.totalorder %s129, 1
      %p1022 = por %p1020, %p1021
      %p1024 = scmp.ne.s32.totalorder %s1007, %s1023
      %p1025 = scmp.eq.s32.totalorder %s129, 0
      %p1026 = por %p1024, %p1025
      %s1027 = ssub.s32 %s123, %s130
      %p1028 = scmp.eq.s32.totalorder %s1027, 0
      %s1030 = sadd.s32 %s1029, 1
      %s1031 = scalar_select %p1028, %s1029, %s1030
      %p1034 = pneg %p1028
      %p1035 = scmp.eq.s32.totalorder %s123, 1
      %p1036 = por %p1034, %p1035
      %p1037 = scmp.ne.s32.totalorder %s1029, %s1032
      %p1038 = scmp.eq.s32.totalorder %s123, 0
      %p1039 = por %p1037, %p1038
      %p1040 = scmp.ne.s32.totalorder %s1029, %s1032
      %p1041 = scmp.eq.s32.totalorder %s128, 1
      %p1042 = por %p1040, %p1041
      %p1043 = scmp.ne.s32.totalorder %s1032, %s1033
      %p1044 = scmp.eq.s32.totalorder %s128, 0
      %p1045 = por %p1043, %p1044
      %p1046 = scmp.ne.s32.totalorder %s1032, %s1033
      %p1047 = scmp.eq.s32.totalorder %s129, 1
      %p1048 = por %p1046, %p1047
      %p1050 = scmp.ne.s32.totalorder %s1033, %s1049
      %p1051 = scmp.eq.s32.totalorder %s129, 0
      %p1052 = por %p1050, %p1051
      %s1053 = ssub.s32 %s123, %s130
      %p1054 = scmp.eq.s32.totalorder %s1053, 0
      %s1056 = sadd.s32 %s1055, 1
      %s1057 = scalar_select %p1054, %s1055, %s1056
      %p1060 = pneg %p1054
      %p1061 = scmp.eq.s32.totalorder %s123, 1
      %p1062 = por %p1060, %p1061
      %p1063 = scmp.ne.s32.totalorder %s1055, %s1058
      %p1064 = scmp.eq.s32.totalorder %s123, 0
      %p1065 = por %p1063, %p1064
      %p1066 = scmp.ne.s32.totalorder %s1055, %s1058
      %p1067 = scmp.eq.s32.totalorder %s128, 1
      %p1068 = por %p1066, %p1067
      %p1069 = scmp.ne.s32.totalorder %s1058, %s1059
      %p1070 = scmp.eq.s32.totalorder %s128, 0
      %p1071 = por %p1069, %p1070
      %p1072 = scmp.ne.s32.totalorder %s1058, %s1059
      %p1073 = scmp.eq.s32.totalorder %s129, 1
      %p1074 = por %p1072, %p1073
      %p1076 = scmp.ne.s32.totalorder %s1059, %s1075
      %p1077 = scmp.eq.s32.totalorder %s129, 0
      %p1078 = por %p1076, %p1077
      %s1079 = ssub.s32 %s123, %s130
      %p1080 = scmp.eq.s32.totalorder %s1079, 0
      %s1082 = sadd.s32 %s1081, 1
      %s1083 = scalar_select %p1080, %s1081, %s1082
      %p1086 = pneg %p1080
      %p1087 = scmp.eq.s32.totalorder %s123, 1
      %p1088 = por %p1086, %p1087
      %p1089 = scmp.ne.s32.totalorder %s1081, %s1084
      %p1090 = scmp.eq.s32.totalorder %s123, 0
      %p1091 = por %p1089, %p1090
      %p1092 = scmp.ne.s32.totalorder %s1081, %s1084
      %p1093 = scmp.eq.s32.totalorder %s128, 1
      %p1094 = por %p1092, %p1093
      %p1095 = scmp.ne.s32.totalorder %s1084, %s1085
      %p1096 = scmp.eq.s32.totalorder %s128, 0
      %p1097 = por %p1095, %p1096
      %p1098 = scmp.ne.s32.totalorder %s1084, %s1085
      %p1099 = scmp.eq.s32.totalorder %s129, 1
      %p1100 = por %p1098, %p1099
      %p1102 = scmp.ne.s32.totalorder %s1085, %s1101
      %p1103 = scmp.eq.s32.totalorder %s129, 0
      %p1104 = por %p1102, %p1103
      %s1105 = ssub.s32 %s123, %s130
      %p1106 = scmp.eq.s32.totalorder %s1105, 0
      %s1108 = sadd.s32 %s1107, 1
      %s1109 = scalar_select %p1106, %s1107, %s1108
      %p1112 = pneg %p1106
      %p1113 = scmp.eq.s32.totalorder %s123, 1
      %p1114 = por %p1112, %p1113
      %p1115 = scmp.ne.s32.totalorder %s1107, %s1110
      %p1116 = scmp.eq.s32.totalorder %s123, 0
      %p1117 = por %p1115, %p1116
      %p1118 = scmp.ne.s32.totalorder %s1107, %s1110
      %p1119 = scmp.eq.s32.totalorder %s128, 1
      %p1120 = por %p1118, %p1119
      %p1121 = scmp.ne.s32.totalorder %s1110, %s1111
      %p1122 = scmp.eq.s32.totalorder %s128, 0
      %p1123 = por %p1121, %p1122
      %p1124 = scmp.ne.s32.totalorder %s1110, %s1111
      %p1125 = scmp.eq.s32.totalorder %s129, 1
      %p1126 = por %p1124, %p1125
      %p1128 = scmp.ne.s32.totalorder %s1111, %s1127
      %p1129 = scmp.eq.s32.totalorder %s129, 0
      %p1130 = por %p1128, %p1129
      %s1131 = ssub.s32 %s123, %s130
      %p1132 = scmp.eq.s32.totalorder %s1131, 0
      %s1134 = sadd.s32 %s1133, 1
      %s1135 = scalar_select %p1132, %s1133, %s1134
      %p1138 = pneg %p1132
      %p1139 = scmp.eq.s32.totalorder %s123, 1
      %p1140 = por %p1138, %p1139
      %p1141 = scmp.ne.s32.totalorder %s1133, %s1136
      %p1142 = scmp.eq.s32.totalorder %s123, 0
      %p1143 = por %p1141, %p1142
      %p1144 = scmp.ne.s32.totalorder %s1133, %s1136
      %p1145 = scmp.eq.s32.totalorder %s128, 1
      %p1146 = por %p1144, %p1145
      %p1147 = scmp.ne.s32.totalorder %s1136, %s1137
      %p1148 = scmp.eq.s32.totalorder %s128, 0
      %p1149 = por %p1147, %p1148
      %p1150 = scmp.ne.s32.totalorder %s1136, %s1137
      %p1151 = scmp.eq.s32.totalorder %s129, 1
      %p1152 = por %p1150, %p1151
      %p1154 = scmp.ne.s32.totalorder %s1137, %s1153
      %p1155 = scmp.eq.s32.totalorder %s129, 0
      %p1156 = por %p1154, %p1155
      %s1157 = ssub.s32 %s123, %s130
      %p1158 = scmp.eq.s32.totalorder %s1157, 0
      %s1160 = sadd.s32 %s1159, 1
      %s1161 = scalar_select %p1158, %s1159, %s1160
      %p1164 = pneg %p1158
      %p1165 = scmp.eq.s32.totalorder %s123, 1
      %p1166 = por %p1164, %p1165
      %p1167 = scmp.ne.s32.totalorder %s1159, %s1162
      %p1168 = scmp.eq.s32.totalorder %s123, 0
      %p1169 = por %p1167, %p1168
      %p1170 = scmp.ne.s32.totalorder %s1159, %s1162
      %p1171 = scmp.eq.s32.totalorder %s128, 1
      %p1172 = por %p1170, %p1171
      %p1173 = scmp.ne.s32.totalorder %s1162, %s1163
      %p1174 = scmp.eq.s32.totalorder %s128, 0
      %p1175 = por %p1173, %p1174
      %p1176 = scmp.ne.s32.totalorder %s1162, %s1163
      %p1177 = scmp.eq.s32.totalorder %s129, 1
      %p1178 = por %p1176, %p1177
      %p1180 = scmp.ne.s32.totalorder %s1163, %s1179
      %p1181 = scmp.eq.s32.totalorder %s129, 0
      %p1182 = por %p1180, %p1181
      %s1183 = ssub.s32 %s123, %s130
      %p1184 = scmp.eq.s32.totalorder %s1183, 0
      %s1186 = sadd.s32 %s1185, 1
      %s1187 = scalar_select %p1184, %s1185, %s1186
      %p1190 = pneg %p1184
      %p1191 = scmp.eq.s32.totalorder %s123, 1
      %p1192 = por %p1190, %p1191
      %p1193 = scmp.ne.s32.totalorder %s1185, %s1188
      %p1194 = scmp.eq.s32.totalorder %s123, 0
      %p1195 = por %p1193, %p1194
      %p1196 = scmp.ne.s32.totalorder %s1185, %s1188
      %p1197 = scmp.eq.s32.totalorder %s128, 1
      %p1198 = por %p1196, %p1197
      %p1199 = scmp.ne.s32.totalorder %s1188, %s1189
      %p1200 = scmp.eq.s32.totalorder %s128, 0
      %p1201 = por %p1199, %p1200
      %p1202 = scmp.ne.s32.totalorder %s1188, %s1189
      %p1203 = scmp.eq.s32.totalorder %s129, 1
      %p1204 = por %p1202, %p1203
      %p1206 = scmp.ne.s32.totalorder %s1189, %s1205
      %p1207 = scmp.eq.s32.totalorder %s129, 0
      %p1208 = por %p1206, %p1207
      %s1209 = ssub.s32 %s123, %s130
      %p1210 = scmp.eq.s32.totalorder %s1209, 0
      %s1212 = sadd.s32 %s1211, 1
      %s1213 = scalar_select %p1210, %s1211, %s1212
      %p1216 = pneg %p1210
      %p1217 = scmp.eq.s32.totalorder %s123, 1
      %p1218 = por %p1216, %p1217
      %p1219 = scmp.ne.s32.totalorder %s1211, %s1214
      %p1220 = scmp.eq.s32.totalorder %s123, 0
      %p1221 = por %p1219, %p1220
      %p1222 = scmp.ne.s32.totalorder %s1211, %s1214
      %p1223 = scmp.eq.s32.totalorder %s128, 1
      %p1224 = por %p1222, %p1223
      %p1225 = scmp.ne.s32.totalorder %s1214, %s1215
      %p1226 = scmp.eq.s32.totalorder %s128, 0
      %p1227 = por %p1225, %p1226
      %p1228 = scmp.ne.s32.totalorder %s1214, %s1215
      %p1229 = scmp.eq.s32.totalorder %s129, 1
      %p1230 = por %p1228, %p1229
      %p1232 = scmp.ne.s32.totalorder %s1215, %s1231
      %p1233 = scmp.eq.s32.totalorder %s129, 0
      %p1234 = por %p1232, %p1233
      %s1235 = ssub.s32 %s123, %s130
      %p1236 = scmp.eq.s32.totalorder %s1235, 0
      %s1238 = sadd.s32 %s1237, 1
      %s1239 = scalar_select %p1236, %s1237, %s1238
      %p1242 = pneg %p1236
      %p1243 = scmp.eq.s32.totalorder %s123, 1
      %p1244 = por %p1242, %p1243
      %p1245 = scmp.ne.s32.totalorder %s1237, %s1240
      %p1246 = scmp.eq.s32.totalorder %s123, 0
      %p1247 = por %p1245, %p1246
      %p1248 = scmp.ne.s32.totalorder %s1237, %s1240
      %p1249 = scmp.eq.s32.totalorder %s128, 1
      %p1250 = por %p1248, %p1249
      %p1251 = scmp.ne.s32.totalorder %s1240, %s1241
      %p1252 = scmp.eq.s32.totalorder %s128, 0
      %p1253 = por %p1251, %p1252
      %p1254 = scmp.ne.s32.totalorder %s1240, %s1241
      %p1255 = scmp.eq.s32.totalorder %s129, 1
      %p1256 = por %p1254, %p1255
      %p1258 = scmp.ne.s32.totalorder %s1241, %s1257
      %p1259 = scmp.eq.s32.totalorder %s129, 0
      %p1260 = por %p1258, %p1259
      %p1261 = scmp.le.s32.totalorder 1, %s123
      %p1262 = scmp.lt.s32.totalorder %s123, 3
      %p1263 = pnand %p1261, %p1262
      %p1264 = pneg %p1263
      // Predicated region
      $region9: #{get_activations_forward.1} parent=5 // pred_check
        _
      $region10: #{get_activations_forward.1} parent=5 // pred_check_branch
        %1266 = sbr.rel (%p1263) target = $region12
      $region11: #{get_activations_forward.1} parent=5 // pred_region
        %s1267 = ssub.s32 %s123, 1
        // Predicated region
        $region13: #{get_activations_forward.1} parent=11 // pred_check
          %p1268 = pneg %p170
        $region14: #{get_activations_forward.1} parent=11 // pred_check_branch
          %1270 = sbr.rel (%p1268) target = $region16
        $region15: #{get_activations_forward.1} parent=11 // pred_region
          %1272 = vsyncadd [#allocation5], 0
          %s1273 = sshll.u32 %s3, 4
          %s1274 = int_to_ptr.hbm [resolvable:$true] %s1273
          %s1275 = sshll.u32 [#allocation4], 4
          %s1276 = int_to_ptr.vmem [resolvable:$true] %s1275
          %1281 = dma.hbm_to_vmem [thread:$0]  %s1274, 768, %s1276, [#allocation5], 128, 128, 8
        $region16: #{get_activations_forward.1} parent=11 // pred_fallthru
          _
        // Predicated region
        $region17: #{get_activations_forward.1} parent=11 // pred_check
          %p1282 = pneg %p191
        $region18: #{get_activations_forward.1} parent=11 // pred_check_branch
          %1284 = sbr.rel (%p1282) target = $region20
        $region19: #{get_activations_forward.1} parent=11 // pred_region
          _
        $region20: #{get_activations_forward.1} parent=11 // pred_fallthru
          _
        // Predicated region
        $region21: #{get_activations_forward.1} parent=11 // pred_check
          %p1285 = pneg %p212
        $region22: #{get_activations_forward.1} parent=11 // pred_check_branch
          %1287 = sbr.rel (%p1285) target = $region24
        $region23: #{get_activations_forward.1} parent=11 // pred_region
          _
        $region24: #{get_activations_forward.1} parent=11 // pred_fallthru
          _
        // Predicated region
        $region25: #{get_activations_forward.1} parent=11 // pred_check
          %p1288 = pneg %p233
        $region26: #{get_activations_forward.1} parent=11 // pred_check_branch
          %1290 = sbr.rel (%p1288) target = $region28
        $region27: #{get_activations_forward.1} parent=11 // pred_region
          %1292 = vsyncadd [#allocation8], 0
          %s1293 = sshll.u32 %s9, 4
          %s1294 = int_to_ptr.hbm [resolvable:$true] %s1293
          %s1295 = sshll.u32 [#allocation7], 4
          %s1296 = int_to_ptr.vmem [resolvable:$true] %s1295
          %1301 = dma.hbm_to_vmem [thread:$0]  %s1294, 6144, %s1296, [#allocation8], 128, 128, 8
        $region28: #{get_activations_forward.1} parent=11 // pred_fallthru
          _
        // Predicated region
        $region29: #{get_activations_forward.1} parent=11 // pred_check
          %p1302 = pneg %p254
        $region30: #{get_activations_forward.1} parent=11 // pred_check_branch
          %1304 = sbr.rel (%p1302) target = $region32
        $region31: #{get_activations_forward.1} parent=11 // pred_region
          _
        $region32: #{get_activations_forward.1} parent=11 // pred_fallthru
          _
        // Predicated region
        $region33: #{get_activations_forward.1} parent=11 // pred_check
          %p1305 = pneg %p275
        $region34: #{get_activations_forward.1} parent=11 // pred_check_branch
          %1307 = sbr.rel (%p1305) target = $region36
        $region35: #{get_activations_forward.1} parent=11 // pred_region
          _
        $region36: #{get_activations_forward.1} parent=11 // pred_fallthru
          _
        // Predicated region
        $region37: #{get_activations_forward.1} parent=11 // pred_check
          %p1308 = pneg %p296
        $region38: #{get_activations_forward.1} parent=11 // pred_check_branch
          %1310 = sbr.rel (%p1308) target = $region40
        $region39: #{get_activations_forward.1} parent=11 // pred_region
          %1312 = vsyncadd [#allocation8], 0
          %s1313 = sshll.u32 %s15, 4
          %s1314 = int_to_ptr.hbm [resolvable:$true] %s1313
          %s1315 = sshll.u32 [#allocation9], 4
          %s1316 = int_to_ptr.vmem [resolvable:$true] %s1315
          %1321 = dma.hbm_to_vmem [thread:$0]  %s1314, 6144, %s1316, [#allocation8], 128, 128, 8
        $region40: #{get_activations_forward.1} parent=11 // pred_fallthru
          _
        // Predicated region
        $region41: #{get_activations_forward.1} parent=11 // pred_check
          %p1322 = pneg %p317
        $region42: #{get_activations_forward.1} parent=11 // pred_check_branch
          %1324 = sbr.rel (%p1322) target = $region44
        $region43: #{get_activations_forward.1} parent=11 // pred_region
          _
        $region44: #{get_activations_forward.1} parent=11 // pred_fallthru
          _
        // Predicated region
        $region45: #{get_activations_forward.1} parent=11 // pred_check
          %p1325 = pneg %p338
        $region46: #{get_activations_forward.1} parent=11 // pred_check_branch
          %1327 = sbr.rel (%p1325) target = $region48
        $region47: #{get_activations_forward.1} parent=11 // pred_region
          _
        $region48: #{get_activations_forward.1} parent=11 // pred_fallthru
          _
        // Predicated region
        $region49: #{get_activations_forward.1} parent=11 // pred_check
          %p1328 = pneg %p359
        $region50: #{get_activations_forward.1} parent=11 // pred_check_branch
          %1330 = sbr.rel (%p1328) target = $region52
        $region51: #{get_activations_forward.1} parent=11 // pred_region
          %1332 = vsyncadd [#allocation11], 0
          %s1333 = sshll.u32 %s21, 4
          %s1334 = int_to_ptr.hbm [resolvable:$true] %s1333
          %s1335 = sshll.u32 [#allocation10], 4
          %s1336 = int_to_ptr.vmem [resolvable:$true] %s1335
          %1341 = dma.hbm_to_vmem [thread:$0]  %s1334, 2048, %s1336, [#allocation11], 128, 128, 8
        $region52: #{get_activations_forward.1} parent=11 // pred_fallthru
          _
        // Predicated region
        $region53: #{get_activations_forward.1} parent=11 // pred_check
          %p1342 = pneg %p380
        $region54: #{get_activations_forward.1} parent=11 // pred_check_branch
          %1344 = sbr.rel (%p1342) target = $region56
        $region55: #{get_activations_forward.1} parent=11 // pred_region
          %1346 = vsyncadd [#allocation11], 0
          %s1347 = sshll.u32 %s23, 4
          %s1348 = int_to_ptr.hbm [resolvable:$true] %s1347
          %s1349 = sshll.u32 [#allocation12], 4
          %s1350 = int_to_ptr.vmem [resolvable:$true] %s1349
          %1355 = dma.hbm_to_vmem [thread:$0]  %s1348, 12288, %s1350, [#allocation11], 256, 256, 16
        $region56: #{get_activations_forward.1} parent=11 // pred_fallthru
          _
        // Predicated region
        $region57: #{get_activations_forward.1} parent=11 // pred_check
          %p1356 = pneg %p401
        $region58: #{get_activations_forward.1} parent=11 // pred_check_branch
          %1358 = sbr.rel (%p1356) target = $region60
        $region59: #{get_activations_forward.1} parent=11 // pred_region
          _
        $region60: #{get_activations_forward.1} parent=11 // pred_fallthru
          _
        // Predicated region
        $region61: #{get_activations_forward.1} parent=11 // pred_check
          %p1359 = pneg %p422
        $region62: #{get_activations_forward.1} parent=11 // pred_check_branch
          %1361 = sbr.rel (%p1359) target = $region64
        $region63: #{get_activations_forward.1} parent=11 // pred_region
          _
        $region64: #{get_activations_forward.1} parent=11 // pred_fallthru
          _
        // Predicated region
        $region65: #{get_activations_forward.1} parent=11 // pred_check
          %p1362 = pneg %p443
        $region66: #{get_activations_forward.1} parent=11 // pred_check_branch
          %1364 = sbr.rel (%p1362) target = $region68
        $region67: #{get_activations_forward.1} parent=11 // pred_region
          %1366 = vsyncadd [#allocation14], 0
          %s1367 = sshll.u32 %s29, 4
          %s1368 = int_to_ptr.hbm [resolvable:$true] %s1367
          %s1369 = sshll.u32 [#allocation13], 4
          %s1370 = int_to_ptr.vmem [resolvable:$true] %s1369
          %1375 = dma.hbm_to_vmem [thread:$0]  %s1368, 6144, %s1370, [#allocation14], 128, 128, 8
        $region68: #{get_activations_forward.1} parent=11 // pred_fallthru
          _
        // Predicated region
        $region69: #{get_activations_forward.1} parent=11 // pred_check
          %p1376 = pneg %p464
        $region70: #{get_activations_forward.1} parent=11 // pred_check_branch
          %1378 = sbr.rel (%p1376) target = $region72
        $region71: #{get_activations_forward.1} parent=11 // pred_region
          _
        $region72: #{get_activations_forward.1} parent=11 // pred_fallthru
          _
        // Predicated region
        $region73: #{get_activations_forward.1} parent=11 // pred_check
          %p1379 = pneg %p485
        $region74: #{get_activations_forward.1} parent=11 // pred_check_branch
          %1381 = sbr.rel (%p1379) target = $region76
        $region75: #{get_activations_forward.1} parent=11 // pred_region
          _
        $region76: #{get_activations_forward.1} parent=11 // pred_fallthru
          _
        // Predicated region
        $region77: #{get_activations_forward.1} parent=11 // pred_check
          %p1382 = pneg %p506
        $region78: #{get_activations_forward.1} parent=11 // pred_check_branch
          %1384 = sbr.rel (%p1382) target = $region80
        $region79: #{get_activations_forward.1} parent=11 // pred_region
          %1386 = vsyncadd [#allocation14], 0
          %s1387 = sshll.u32 %s35, 4
          %s1388 = int_to_ptr.hbm [resolvable:$true] %s1387
          %s1389 = sshll.u32 [#allocation15], 4
          %s1390 = int_to_ptr.vmem [resolvable:$true] %s1389
          %1395 = dma.hbm_to_vmem [thread:$0]  %s1388, 2048, %s1390, [#allocation14], 128, 128, 8
        $region80: #{get_activations_forward.1} parent=11 // pred_fallthru
          _
        // Predicated region
        $region81: #{get_activations_forward.1} parent=11 // pred_check
          %p1396 = pneg %p527
        $region82: #{get_activations_forward.1} parent=11 // pred_check_branch
          %1398 = sbr.rel (%p1396) target = $region84
        $region83: #{get_activations_forward.1} parent=11 // pred_region
          %1400 = vsyncadd [#allocation17], 0
          %s1401 = sshll.u32 %s37, 4
          %s1402 = int_to_ptr.hbm [resolvable:$true] %s1401
          %s1403 = sshll.u32 [#allocation16], 4
          %s1404 = int_to_ptr.vmem [resolvable:$true] %s1403
          %1409 = dma.hbm_to_vmem [thread:$0]  %s1402, 12288, %s1404, [#allocation17], 256, 256, 16
        $region84: #{get_activations_forward.1} parent=11 // pred_fallthru
          _
        // Predicated region
        $region85: #{get_activations_forward.1} parent=11 // pred_check
          %p1410 = pneg %p548
        $region86: #{get_activations_forward.1} parent=11 // pred_check_branch
          %1412 = sbr.rel (%p1410) target = $region88
        $region87: #{get_activations_forward.1} parent=11 // pred_region
          _
        $region88: #{get_activations_forward.1} parent=11 // pred_fallthru
          _
        // Predicated region
        $region89: #{get_activations_forward.1} parent=11 // pred_check
          %p1413 = pneg %p569
        $region90: #{get_activations_forward.1} parent=11 // pred_check_branch
          %1415 = sbr.rel (%p1413) target = $region92
        $region91: #{get_activations_forward.1} parent=11 // pred_region
          _
        $region92: #{get_activations_forward.1} parent=11 // pred_fallthru
          _
        // Predicated region
        $region93: #{get_activations_forward.1} parent=11 // pred_check
          %p1416 = pneg %p590
        $region94: #{get_activations_forward.1} parent=11 // pred_check_branch
          %1418 = sbr.rel (%p1416) target = $region96
        $region95: #{get_activations_forward.1} parent=11 // pred_region
          %1420 = vsyncadd [#allocation17], 0
          %s1421 = sshll.u32 %s43, 4
          %s1422 = int_to_ptr.hbm [resolvable:$true] %s1421
          %s1423 = sshll.u32 [#allocation18], 4
          %s1424 = int_to_ptr.vmem [resolvable:$true] %s1423
          %1429 = dma.hbm_to_vmem [thread:$0]  %s1422, 6144, %s1424, [#allocation17], 128, 128, 8
        $region96: #{get_activations_forward.1} parent=11 // pred_fallthru
          _
        // Predicated region
        $region97: #{get_activations_forward.1} parent=11 // pred_check
          %p1430 = pneg %p611
        $region98: #{get_activations_forward.1} parent=11 // pred_check_branch
          %1432 = sbr.rel (%p1430) target = $region100
        $region99: #{get_activations_forward.1} parent=11 // pred_region
          %1434 = vsyncadd [#allocation20], 0
          %s1436 = sshll.u32 %s45, 4
          %s1437 = int_to_ptr.hbm [resolvable:$true] %s1436
          %s1438 = sshll.u32 [#allocation19], 4
          %s1439 = int_to_ptr.vmem [resolvable:$true] %s1438
          %1441 = dma.hbm_to_vmem [thread:$0]  %s1437, 16, %s1439, [#allocation20]
        $region100: #{get_activations_forward.1} parent=11 // pred_fallthru
          _
        // Predicated region
        $region101: #{get_activations_forward.1} parent=11 // pred_check
          %p1442 = pneg %p632
        $region102: #{get_activations_forward.1} parent=11 // pred_check_branch
          %1444 = sbr.rel (%p1442) target = $region104
        $region103: #{get_activations_forward.1} parent=11 // pred_region
          %1446 = vsyncadd [#allocation20], 0
          %s1448 = sshll.u32 %s47, 4
          %s1449 = int_to_ptr.hbm [resolvable:$true] %s1448
          %s1450 = sshll.u32 [#allocation21], 4
          %s1451 = int_to_ptr.vmem [resolvable:$true] %s1450
          %1453 = dma.hbm_to_vmem [thread:$0]  %s1449, 16, %s1451, [#allocation20]
        $region104: #{get_activations_forward.1} parent=11 // pred_fallthru
          _
        // Predicated region
        $region105: #{get_activations_forward.1} parent=11 // pred_check
          %p1454 = pneg %p653
        $region106: #{get_activations_forward.1} parent=11 // pred_check_branch
          %1456 = sbr.rel (%p1454) target = $region108
        $region107: #{get_activations_forward.1} parent=11 // pred_region
          %1458 = vsyncadd [#allocation23], 0
          %s1459 = sshll.u32 %s49, 4
          %s1460 = int_to_ptr.hbm [resolvable:$true] %s1459
          %s1461 = sshll.u32 [#allocation22], 4
          %s1462 = int_to_ptr.vmem [resolvable:$true] %s1461
          %1467 = dma.hbm_to_vmem [thread:$0]  %s1460, 2048, %s1462, [#allocation23], 128, 128, 8
        $region108: #{get_activations_forward.1} parent=11 // pred_fallthru
          _
        // Predicated region
        $region109: #{get_activations_forward.1} parent=11 // pred_check
          %p1468 = pneg %p674
        $region110: #{get_activations_forward.1} parent=11 // pred_check_branch
          %1470 = sbr.rel (%p1468) target = $region112
        $region111: #{get_activations_forward.1} parent=11 // pred_region
          %1472 = vsyncadd [#allocation23], 0
          %s1473 = sshll.u32 %s51, 4
          %s1474 = int_to_ptr.hbm [resolvable:$true] %s1473
          %s1475 = sshll.u32 [#allocation24], 4
          %s1476 = int_to_ptr.vmem [resolvable:$true] %s1475
          %1481 = dma.hbm_to_vmem [thread:$0]  %s1474, 12288, %s1476, [#allocation23], 256, 256, 16
        $region112: #{get_activations_forward.1} parent=11 // pred_fallthru
          _
        // Predicated region
        $region113: #{get_activations_forward.1} parent=11 // pred_check
          %p1482 = pneg %p695
        $region114: #{get_activations_forward.1} parent=11 // pred_check_branch
          %1484 = sbr.rel (%p1482) target = $region116
        $region115: #{get_activations_forward.1} parent=11 // pred_region
          %1486 = vsyncadd [#allocation26], 0
          %s1488 = sshll.u32 %s53, 4
          %s1489 = int_to_ptr.hbm [resolvable:$true] %s1488
          %s1490 = sshll.u32 [#allocation25], 4
          %s1491 = int_to_ptr.vmem [resolvable:$true] %s1490
          %1493 = dma.hbm_to_vmem [thread:$0]  %s1489, 32, %s1491, [#allocation26]
        $region116: #{get_activations_forward.1} parent=11 // pred_fallthru
          _
        // Predicated region
        $region117: #{get_activations_forward.1} parent=11 // pred_check
          %p1494 = pneg %p716
        $region118: #{get_activations_forward.1} parent=11 // pred_check_branch
          %1496 = sbr.rel (%p1494) target = $region120
        $region119: #{get_activations_forward.1} parent=11 // pred_region
          %1498 = vsyncadd [#allocation26], 0
          %s1500 = sshll.u32 %s55, 4
          %s1501 = int_to_ptr.hbm [resolvable:$true] %s1500
          %s1502 = sshll.u32 [#allocation27], 4
          %s1503 = int_to_ptr.vmem [resolvable:$true] %s1502
          %1505 = dma.hbm_to_vmem [thread:$0]  %s1501, 32, %s1503, [#allocation26]
        $region120: #{get_activations_forward.1} parent=11 // pred_fallthru
          _
        // Predicated region
        $region121: #{get_activations_forward.1} parent=11 // pred_check
          %p1506 = pneg %p737
        $region122: #{get_activations_forward.1} parent=11 // pred_check_branch
          %1508 = sbr.rel (%p1506) target = $region124
        $region123: #{get_activations_forward.1} parent=11 // pred_region
          %1510 = vsyncadd [#allocation29], 0
          %s1511 = sshll.u32 %s57, 4
          %s1512 = int_to_ptr.hbm [resolvable:$true] %s1511
          %s1513 = sshll.u32 [#allocation28], 4
          %s1514 = int_to_ptr.vmem [resolvable:$true] %s1513
          %1519 = dma.hbm_to_vmem [thread:$0]  %s1512, 6144, %s1514, [#allocation29], 128, 128, 8
        $region124: #{get_activations_forward.1} parent=11 // pred_fallthru
          _
        // Predicated region
        $region125: #{get_activations_forward.1} parent=11 // pred_check
          %p1520 = pneg %p758
        $region126: #{get_activations_forward.1} parent=11 // pred_check_branch
          %1522 = sbr.rel (%p1520) target = $region128
        $region127: #{get_activations_forward.1} parent=11 // pred_region
          %1524 = vsyncadd [#allocation29], 0
          %s1526 = sshll.u32 %s59, 4
          %s1527 = int_to_ptr.hbm [resolvable:$true] %s1526
          %s1528 = sshll.u32 [#allocation30], 4
          %s1529 = int_to_ptr.vmem [resolvable:$true] %s1528
          %1531 = dma.hbm_to_vmem [thread:$0]  %s1527, 16, %s1529, [#allocation29]
        $region128: #{get_activations_forward.1} parent=11 // pred_fallthru
          _
        // Predicated region
        $region129: #{get_activations_forward.1} parent=11 // pred_check
          %p1532 = pneg %p779
        $region130: #{get_activations_forward.1} parent=11 // pred_check_branch
          %1534 = sbr.rel (%p1532) target = $region132
        $region131: #{get_activations_forward.1} parent=11 // pred_region
          %1536 = vsyncadd [#allocation32], 0
          %s1538 = sshll.u32 %s61, 4
          %s1539 = int_to_ptr.hbm [resolvable:$true] %s1538
          %s1540 = sshll.u32 [#allocation31], 4
          %s1541 = int_to_ptr.vmem [resolvable:$true] %s1540
          %1543 = dma.hbm_to_vmem [thread:$0]  %s1539, 16, %s1541, [#allocation32]
        $region132: #{get_activations_forward.1} parent=11 // pred_fallthru
          _
        // Predicated region
        $region133: #{get_activations_forward.1} parent=11 // pred_check
          %p1544 = pneg %p800
        $region134: #{get_activations_forward.1} parent=11 // pred_check_branch
          %1546 = sbr.rel (%p1544) target = $region136
        $region135: #{get_activations_forward.1} parent=11 // pred_region
          %1548 = vsyncadd [#allocation32], 0
          %s1549 = sshll.u32 %s63, 4
          %s1550 = int_to_ptr.hbm [resolvable:$true] %s1549
          %s1551 = sshll.u32 [#allocation33], 4
          %s1552 = int_to_ptr.vmem [resolvable:$true] %s1551
          %1557 = dma.hbm_to_vmem [thread:$0]  %s1550, 2048, %s1552, [#allocation32], 128, 128, 8
        $region136: #{get_activations_forward.1} parent=11 // pred_fallthru
          _
        // Predicated region
        $region137: #{get_activations_forward.1} parent=11 // pred_check
          %p1558 = pneg %p821
        $region138: #{get_activations_forward.1} parent=11 // pred_check_branch
          %1560 = sbr.rel (%p1558) target = $region140
        $region139: #{get_activations_forward.1} parent=11 // pred_region
          %1562 = vsyncadd [#allocation35], 0
          %s1563 = sshll.u32 %s65, 4
          %s1564 = int_to_ptr.hbm [resolvable:$true] %s1563
          %s1565 = sshll.u32 [#allocation34], 4
          %s1566 = int_to_ptr.vmem [resolvable:$true] %s1565
          %1571 = dma.hbm_to_vmem [thread:$0]  %s1564, 2048, %s1566, [#allocation35], 128, 128, 8
        $region140: #{get_activations_forward.1} parent=11 // pred_fallthru
          _
        // Predicated region
        $region141: #{get_activations_forward.1} parent=11 // pred_check
          %p1572 = pneg %p842
        $region142: #{get_activations_forward.1} parent=11 // pred_check_branch
          %1574 = sbr.rel (%p1572) target = $region144
        $region143: #{get_activations_forward.1} parent=11 // pred_region
          _
        $region144: #{get_activations_forward.1} parent=11 // pred_fallthru
          _
        // Predicated region
        $region145: #{get_activations_forward.1} parent=11 // pred_check
          %p1575 = pneg %p863
        $region146: #{get_activations_forward.1} parent=11 // pred_check_branch
          %1577 = sbr.rel (%p1575) target = $region148
        $region147: #{get_activations_forward.1} parent=11 // pred_region
          %1579 = vsyncadd [#allocation35], 0
          %s1581 = sshll.u32 %s69, 4
          %s1582 = int_to_ptr.hbm [resolvable:$true] %s1581
          %s1583 = sshll.u32 [#allocation36], 4
          %s1584 = int_to_ptr.vmem [resolvable:$true] %s1583
          %1586 = dma.hbm_to_vmem [thread:$0]  %s1582, 16, %s1584, [#allocation35]
        $region148: #{get_activations_forward.1} parent=11 // pred_fallthru
          _
      $region12: #{get_activations_forward.1} parent=5 // pred_fallthru
        _
      %p1587 = scmp.lt.s32.totalorder %s123, 2
      // Predicated region
      $region149: #{get_activations_forward.1} parent=5 // pred_check
        %p1588 = pneg %p1587
      $region150: #{get_activations_forward.1} parent=5 // pred_check_branch
        %1590 = sbr.rel (%p1588) target = $region152
      $region151: #{get_activations_forward.1} parent=5 // pred_region
        // Predicated region
        $region153: #{get_activations_forward.1} parent=151 // pred_check
          %p1591 = pneg %p143
        $region154: #{get_activations_forward.1} parent=151 // pred_check_branch
          %1593 = sbr.rel (%p1591) target = $region156
        $region155: #{get_activations_forward.1} parent=151 // pred_region
          %p1594 = scmp.lt.s32.totalorder %s123, 1
          %s1595 = scalar_select %p1594, %s123, 1
          %s1596 = smul.addr %s1595, 2
          %s1597 = smul.addr %s1596, 8
          %s1598 = scalar_lea.vmem %s1, %s1597
        $region156: #{get_activations_forward.1} parent=151 // pred_fallthru
          _
      $region152: #{get_activations_forward.1} parent=5 // pred_fallthru
        _
      %p1599 = scmp.le.s32.totalorder 1, %s123
      %p1600 = scmp.lt.s32.totalorder %s123, 3
      %p1601 = pnand %p1599, %p1600
      %p1602 = pneg %p1601
      // Predicated region
      $region157: #{get_activations_forward.1} parent=5 // pred_check
        _
      $region158: #{get_activations_forward.1} parent=5 // pred_check_branch
        %1604 = sbr.rel (%p1601) target = $region160
      $region159: #{get_activations_forward.1} parent=5 // pred_region
        %s1605 = ssub.s32 %s123, 1
        // Predicated region
        $region161: #{get_activations_forward.1} parent=159 // pred_check
          %p1606 = pneg %p170
        $region162: #{get_activations_forward.1} parent=159 // pred_check_branch
          %1608 = sbr.rel (%p1606) target = $region164
        $region163: #{get_activations_forward.1} parent=159 // pred_region
          %1610 = dma.done [#allocation5], 768
        $region164: #{get_activations_forward.1} parent=159 // pred_fallthru
          _
        // Predicated region
        $region165: #{get_activations_forward.1} parent=159 // pred_check
          %p1611 = pneg %p233
        $region166: #{get_activations_forward.1} parent=159 // pred_check_branch
          %1613 = sbr.rel (%p1611) target = $region168
        $region167: #{get_activations_forward.1} parent=159 // pred_region
          %1615 = dma.done [#allocation8], 6144
        $region168: #{get_activations_forward.1} parent=159 // pred_fallthru
          _
        // Predicated region
        $region169: #{get_activations_forward.1} parent=159 // pred_check
          %p1616 = pneg %p296
        $region170: #{get_activations_forward.1} parent=159 // pred_check_branch
          %1618 = sbr.rel (%p1616) target = $region172
        $region171: #{get_activations_forward.1} parent=159 // pred_region
          %1620 = dma.done [#allocation8], 6144
        $region172: #{get_activations_forward.1} parent=159 // pred_fallthru
          _
        // Predicated region
        $region173: #{get_activations_forward.1} parent=159 // pred_check
          %p1621 = pneg %p359
        $region174: #{get_activations_forward.1} parent=159 // pred_check_branch
          %1623 = sbr.rel (%p1621) target = $region176
        $region175: #{get_activations_forward.1} parent=159 // pred_region
          %1625 = dma.done [#allocation11], 2048
        $region176: #{get_activations_forward.1} parent=159 // pred_fallthru
          _
        // Predicated region
        $region177: #{get_activations_forward.1} parent=159 // pred_check
          %p1626 = pneg %p380
        $region178: #{get_activations_forward.1} parent=159 // pred_check_branch
          %1628 = sbr.rel (%p1626) target = $region180
        $region179: #{get_activations_forward.1} parent=159 // pred_region
          %1630 = dma.done [#allocation11], 12288
        $region180: #{get_activations_forward.1} parent=159 // pred_fallthru
          _
        // Predicated region
        $region181: #{get_activations_forward.1} parent=159 // pred_check
          %p1631 = pneg %p443
        $region182: #{get_activations_forward.1} parent=159 // pred_check_branch
          %1633 = sbr.rel (%p1631) target = $region184
        $region183: #{get_activations_forward.1} parent=159 // pred_region
          %1635 = dma.done [#allocation14], 6144
        $region184: #{get_activations_forward.1} parent=159 // pred_fallthru
          _
        // Predicated region
        $region185: #{get_activations_forward.1} parent=159 // pred_check
          %p1636 = pneg %p506
        $region186: #{get_activations_forward.1} parent=159 // pred_check_branch
          %1638 = sbr.rel (%p1636) target = $region188
        $region187: #{get_activations_forward.1} parent=159 // pred_region
          %1640 = dma.done [#allocation14], 2048
        $region188: #{get_activations_forward.1} parent=159 // pred_fallthru
          _
        // Predicated region
        $region189: #{get_activations_forward.1} parent=159 // pred_check
          %p1641 = pneg %p527
        $region190: #{get_activations_forward.1} parent=159 // pred_check_branch
          %1643 = sbr.rel (%p1641) target = $region192
        $region191: #{get_activations_forward.1} parent=159 // pred_region
          %1645 = dma.done [#allocation17], 12288
        $region192: #{get_activations_forward.1} parent=159 // pred_fallthru
          _
        // Predicated region
        $region193: #{get_activations_forward.1} parent=159 // pred_check
          %p1646 = pneg %p590
        $region194: #{get_activations_forward.1} parent=159 // pred_check_branch
          %1648 = sbr.rel (%p1646) target = $region196
        $region195: #{get_activations_forward.1} parent=159 // pred_region
          %1650 = dma.done [#allocation17], 6144
        $region196: #{get_activations_forward.1} parent=159 // pred_fallthru
          _
        // Predicated region
        $region197: #{get_activations_forward.1} parent=159 // pred_check
          %p1651 = pneg %p611
        $region198: #{get_activations_forward.1} parent=159 // pred_check_branch
          %1653 = sbr.rel (%p1651) target = $region200
        $region199: #{get_activations_forward.1} parent=159 // pred_region
          %1655 = dma.done [#allocation20], 16
        $region200: #{get_activations_forward.1} parent=159 // pred_fallthru
          _
        // Predicated region
        $region201: #{get_activations_forward.1} parent=159 // pred_check
          %p1656 = pneg %p632
        $region202: #{get_activations_forward.1} parent=159 // pred_check_branch
          %1658 = sbr.rel (%p1656) target = $region204
        $region203: #{get_activations_forward.1} parent=159 // pred_region
          %1660 = dma.done [#allocation20], 16
        $region204: #{get_activations_forward.1} parent=159 // pred_fallthru
          _
        // Predicated region
        $region205: #{get_activations_forward.1} parent=159 // pred_check
          %p1661 = pneg %p653
        $region206: #{get_activations_forward.1} parent=159 // pred_check_branch
          %1663 = sbr.rel (%p1661) target = $region208
        $region207: #{get_activations_forward.1} parent=159 // pred_region
          %1665 = dma.done [#allocation23], 2048
        $region208: #{get_activations_forward.1} parent=159 // pred_fallthru
          _
        // Predicated region
        $region209: #{get_activations_forward.1} parent=159 // pred_check
          %p1666 = pneg %p674
        $region210: #{get_activations_forward.1} parent=159 // pred_check_branch
          %1668 = sbr.rel (%p1666) target = $region212
        $region211: #{get_activations_forward.1} parent=159 // pred_region
          %1670 = dma.done [#allocation23], 12288
        $region212: #{get_activations_forward.1} parent=159 // pred_fallthru
          _
        // Predicated region
        $region213: #{get_activations_forward.1} parent=159 // pred_check
          %p1671 = pneg %p695
        $region214: #{get_activations_forward.1} parent=159 // pred_check_branch
          %1673 = sbr.rel (%p1671) target = $region216
        $region215: #{get_activations_forward.1} parent=159 // pred_region
          %1675 = dma.done [#allocation26], 32
        $region216: #{get_activations_forward.1} parent=159 // pred_fallthru
          _
        // Predicated region
        $region217: #{get_activations_forward.1} parent=159 // pred_check
          %p1676 = pneg %p716
        $region218: #{get_activations_forward.1} parent=159 // pred_check_branch
          %1678 = sbr.rel (%p1676) target = $region220
        $region219: #{get_activations_forward.1} parent=159 // pred_region
          %1680 = dma.done [#allocation26], 32
        $region220: #{get_activations_forward.1} parent=159 // pred_fallthru
          _
        // Predicated region
        $region221: #{get_activations_forward.1} parent=159 // pred_check
          %p1681 = pneg %p737
        $region222: #{get_activations_forward.1} parent=159 // pred_check_branch
          %1683 = sbr.rel (%p1681) target = $region224
        $region223: #{get_activations_forward.1} parent=159 // pred_region
          %1685 = dma.done [#allocation29], 6144
        $region224: #{get_activations_forward.1} parent=159 // pred_fallthru
          _
        // Predicated region
        $region225: #{get_activations_forward.1} parent=159 // pred_check
          %p1686 = pneg %p758
        $region226: #{get_activations_forward.1} parent=159 // pred_check_branch
          %1688 = sbr.rel (%p1686) target = $region228
        $region227: #{get_activations_forward.1} parent=159 // pred_region
          %1690 = dma.done [#allocation29], 16
        $region228: #{get_activations_forward.1} parent=159 // pred_fallthru
          _
        // Predicated region
        $region229: #{get_activations_forward.1} parent=159 // pred_check
          %p1691 = pneg %p779
        $region230: #{get_activations_forward.1} parent=159 // pred_check_branch
          %1693 = sbr.rel (%p1691) target = $region232
        $region231: #{get_activations_forward.1} parent=159 // pred_region
          %1695 = dma.done [#allocation32], 16
        $region232: #{get_activations_forward.1} parent=159 // pred_fallthru
          _
        // Predicated region
        $region233: #{get_activations_forward.1} parent=159 // pred_check
          %p1696 = pneg %p800
        $region234: #{get_activations_forward.1} parent=159 // pred_check_branch
          %1698 = sbr.rel (%p1696) target = $region236
        $region235: #{get_activations_forward.1} parent=159 // pred_region
          %1700 = dma.done [#allocation32], 2048
        $region236: #{get_activations_forward.1} parent=159 // pred_fallthru
          _
        // Predicated region
        $region237: #{get_activations_forward.1} parent=159 // pred_check
          %p1701 = pneg %p821
        $region238: #{get_activations_forward.1} parent=159 // pred_check_branch
          %1703 = sbr.rel (%p1701) target = $region240
        $region239: #{get_activations_forward.1} parent=159 // pred_region
          %1705 = dma.done [#allocation35], 2048
        $region240: #{get_activations_forward.1} parent=159 // pred_fallthru
          _
        // Predicated region
        $region241: #{get_activations_forward.1} parent=159 // pred_check
          %p1706 = pneg %p863
        $region242: #{get_activations_forward.1} parent=159 // pred_check_branch
          %1708 = sbr.rel (%p1706) target = $region244
        $region243: #{get_activations_forward.1} parent=159 // pred_region
          %1710 = dma.done [#allocation35], 16
        $region244: #{get_activations_forward.1} parent=159 // pred_fallthru
          _
        %p1711 = scmp.lt.s32.totalorder %s128, 1
        %s1712 = scalar_select %p1711, %s128, 1
        %s1713 = smul.addr %s1712, 2
        %s1714 = smul.addr %s1713, 8
        %s1715 = scalar_lea.vmem %s1, %s1714
        %p1716 = pneg %p149
        %p1717 = pneg %p146
        %p1718 = pneg %p170
        %p1719 = pneg %p167
        %p1720 = pneg %p191
        %p1721 = pneg %p188
        %p1722 = pneg %p212
        %p1723 = pneg %p209
        %p1724 = pneg %p233
        %p1725 = pneg %p230
        %p1726 = pneg %p254
        %p1727 = pneg %p251
        %p1728 = pneg %p275
        %p1729 = pneg %p272
        %p1730 = pneg %p296
        %p1731 = pneg %p293
        %p1732 = pneg %p317
        %p1733 = pneg %p314
        %p1734 = pneg %p338
        %p1735 = pneg %p335
        %p1736 = pneg %p359
        %p1737 = pneg %p356
        %p1738 = pneg %p380
        %p1739 = pneg %p377
        %p1740 = pneg %p401
        %p1741 = pneg %p398
        %p1742 = pneg %p422
        %p1743 = pneg %p419
        %p1744 = pneg %p443
        %p1745 = pneg %p440
        %p1746 = pneg %p464
        %p1747 = pneg %p461
        %p1748 = pneg %p485
        %p1749 = pneg %p482
        %p1750 = pneg %p506
        %p1751 = pneg %p503
        %p1752 = pneg %p527
        %p1753 = pneg %p524
        %p1754 = pneg %p548
        %p1755 = pneg %p545
        %p1756 = pneg %p569
        %p1757 = pneg %p566
        %p1758 = pneg %p590
        %p1759 = pneg %p587
        %p1760 = pneg %p611
        %p1761 = pneg %p608
        %p1762 = pneg %p632
        %p1763 = pneg %p629
        %p1764 = pneg %p653
        %p1765 = pneg %p650
        %p1766 = pneg %p674
        %p1767 = pneg %p671
        %p1768 = pneg %p695
        %p1769 = pneg %p692
        %p1770 = pneg %p716
        %p1771 = pneg %p713
        %p1772 = pneg %p737
        %p1773 = pneg %p734
        %p1774 = pneg %p758
        %p1775 = pneg %p755
        %p1776 = pneg %p779
        %p1777 = pneg %p776
        %p1778 = pneg %p800
        %p1779 = pneg %p797
        %p1780 = pneg %p821
        %p1781 = pneg %p818
        %p1782 = pneg %p842
        %p1783 = pneg %p839
        %p1784 = pneg %p863
        %p1785 = pneg %p860
        %p1786 = pneg %p889
        %p1787 = pneg %p886
        %p1788 = scmp.lt.s32.totalorder %s128, 1
        %s1789 = scalar_select %p1788, %s128, 1
        %s1790 = smul.addr %s1789, 2
        %s1791 = smul.addr %s1790, 8
        %s1792 = scalar_lea.vmem %s71, %s1791
        %p1793 = pneg %p915
        %p1794 = pneg %p912
        %p1795 = scmp.lt.s32.totalorder %s128, 1
        %s1796 = scalar_select %p1795, %s128, 1
        %s1797 = smul.addr %s1796, 2
        %s1798 = smul.addr %s1797, 8
        %s1799 = scalar_lea.vmem %s73, %s1798
        %p1800 = pneg %p941
        %p1801 = pneg %p938
        %p1802 = scmp.lt.s32.totalorder %s128, 1
        %s1803 = scalar_select %p1802, %s128, 1
        %s1804 = smul.addr %s1803, 2
        %s1805 = smul.addr %s1804, 8
        %s1806 = scalar_lea.vmem %s75, %s1805
        %p1807 = pneg %p967
        %p1808 = pneg %p964
        %p1809 = scmp.lt.s32.totalorder %s128, 1
        %s1810 = scalar_select %p1809, %s128, 1
        %s1811 = smul.addr %s1810, 2
        %s1812 = smul.addr %s1811, 8
        %s1813 = scalar_lea.vmem %s77, %s1812
        %p1814 = pneg %p993
        %p1815 = pneg %p990
        %p1816 = scmp.lt.s32.totalorder %s128, 1
        %s1817 = scalar_select %p1816, %s128, 1
        %s1818 = smul.addr %s1817, 8
        %s1819 = scalar_lea.vmem %s79, %s1818
        %p1820 = pneg %p1019
        %p1821 = pneg %p1016
        %p1822 = scmp.lt.s32.totalorder %s128, 1
        %s1823 = scalar_select %p1822, %s128, 1
        %s1824 = smul.addr %s1823, 8
        %s1825 = scalar_lea.vmem %s81, %s1824
        %p1826 = pneg %p1045
        %p1827 = pneg %p1042
        %p1828 = scmp.lt.s32.totalorder %s128, 1
        %s1829 = scalar_select %p1828, %s128, 1
        %s1830 = smul.addr %s1829, 8
        %s1831 = scalar_lea.vmem %s83, %s1830
        %p1832 = pneg %p1071
        %p1833 = pneg %p1068
        %p1834 = scmp.lt.s32.totalorder %s128, 1
        %s1835 = scalar_select %p1834, %s128, 1
        %s1836 = smul.addr %s1835, 4
        %s1837 = scalar_lea.vmem %s85, %s1836
        %p1838 = pneg %p1097
        %p1839 = pneg %p1094
        %p1840 = scmp.lt.s32.totalorder %s128, 1
        %s1841 = scalar_select %p1840, %s128, 1
        %s1842 = smul.addr %s1841, 4
        %s1843 = scalar_lea.vmem %s87, %s1842
        %p1844 = pneg %p1123
        %p1845 = pneg %p1120
        %p1846 = scmp.lt.s32.totalorder %s128, 1
        %s1847 = scalar_select %p1846, %s128, 1
        %s1848 = smul.addr %s1847, 4
        %s1849 = scalar_lea.vmem %s89, %s1848
        %p1850 = pneg %p1149
        %p1851 = pneg %p1146
        %p1852 = scmp.lt.s32.totalorder %s128, 1
        %s1853 = scalar_select %p1852, %s128, 1
        %s1854 = smul.addr %s1853, 2
        %s1855 = scalar_lea.vmem %s91, %s1854
        %p1856 = pneg %p1175
        %p1857 = pneg %p1172
        %p1858 = scmp.lt.s32.totalorder %s128, 1
        %s1859 = scalar_select %p1858, %s128, 1
        %s1860 = smul.addr %s1859, 2
        %s1861 = scalar_lea.vmem %s93, %s1860
        %p1862 = pneg %p1201
        %p1863 = pneg %p1198
        %p1864 = scmp.lt.s32.totalorder %s128, 1
        %s1865 = scalar_select %p1864, %s128, 1
        %s1866 = smul.addr %s1865, 2
        %s1867 = scalar_lea.vmem %s95, %s1866
        %p1868 = pneg %p1227
        %p1869 = pneg %p1224
        %s1870 = sand.u32 %s1214, 1
        %s1871 = scalar_lea.sflag [#allocation6], %s1870
        %s1872 = sand.u32 %s1214, 1
        %s1873 = scalar_lea.vmem [#allocation37], %s1872
        %p1874 = pneg %p1253
        %p1875 = pneg %p1250
        %s1876 = sand.u32 %s1240, 1
        %s1877 = scalar_lea.sflag [#allocation39], %s1876
        %s1878 = sand.u32 %s1240, 1
        %s1879 = scalar_lea.vmem [#allocation38], %s1878
        %p1880 = scmp.lt.s32.totalorder %s128, 1
        %s1881 = scalar_select %p1880, %s128, 1
        %s1882 = smul.addr %s1881, 2
        %s1883 = smul.addr %s1882, 8
        %s1884 = scalar_lea.vmem %s1, %s1883
        %p1885 = scmp.lt.s32.totalorder %s128, 1
        %s1886 = scalar_select %p1885, %s128, 1
        %s1887 = smul.addr %s1886, 2
        %s1888 = smul.addr %s1887, 8
        %s1889 = scalar_lea.vmem %s71, %s1888
        %p1890 = scmp.lt.s32.totalorder %s128, 1
        %s1891 = scalar_select %p1890, %s128, 1
        %s1892 = smul.addr %s1891, 2
        %s1893 = smul.addr %s1892, 8
        %s1894 = scalar_lea.vmem %s73, %s1893
        %p1895 = scmp.lt.s32.totalorder %s128, 1
        %s1896 = scalar_select %p1895, %s128, 1
        %s1897 = smul.addr %s1896, 2
        %s1898 = smul.addr %s1897, 8
        %s1899 = scalar_lea.vmem %s75, %s1898
        %p1900 = scmp.lt.s32.totalorder %s128, 1
        %s1901 = scalar_select %p1900, %s128, 1
        %s1902 = smul.addr %s1901, 2
        %s1903 = smul.addr %s1902, 8
        %s1904 = scalar_lea.vmem %s77, %s1903
        %p1905 = scmp.lt.s32.totalorder %s128, 1
        %s1906 = scalar_select %p1905, %s128, 1
        %s1907 = smul.addr %s1906, 8
        %s1908 = scalar_lea.vmem %s79, %s1907
        %p1909 = scmp.lt.s32.totalorder %s128, 1
        %s1910 = scalar_select %p1909, %s128, 1
        %s1911 = smul.addr %s1910, 8
        %s1912 = scalar_lea.vmem %s81, %s1911
        %p1913 = scmp.lt.s32.totalorder %s128, 1
        %s1914 = scalar_select %p1913, %s128, 1
        %s1915 = smul.addr %s1914, 8
        %s1916 = scalar_lea.vmem %s83, %s1915
        %p1917 = scmp.lt.s32.totalorder %s128, 1
        %s1918 = scalar_select %p1917, %s128, 1
        %s1919 = smul.addr %s1918, 4
        %s1920 = scalar_lea.vmem %s85, %s1919
        %p1921 = scmp.lt.s32.totalorder %s128, 1
        %s1922 = scalar_select %p1921, %s128, 1
        %s1923 = smul.addr %s1922, 4
        %s1924 = scalar_lea.vmem %s87, %s1923
        %p1925 = scmp.lt.s32.totalorder %s128, 1
        %s1926 = scalar_select %p1925, %s128, 1
        %s1927 = smul.addr %s1926, 4
        %s1928 = scalar_lea.vmem %s89, %s1927
        %p1929 = scmp.lt.s32.totalorder %s128, 1
        %s1930 = scalar_select %p1929, %s128, 1
        %s1931 = smul.addr %s1930, 2
        %s1932 = scalar_lea.vmem %s91, %s1931
        %p1933 = scmp.lt.s32.totalorder %s128, 1
        %s1934 = scalar_select %p1933, %s128, 1
        %s1935 = smul.addr %s1934, 2
        %s1936 = scalar_lea.vmem %s93, %s1935
        %p1937 = scmp.lt.s32.totalorder %s128, 1
        %s1938 = scalar_select %p1937, %s128, 1
        %s1939 = smul.addr %s1938, 2
        %s1940 = scalar_lea.vmem %s95, %s1939
        %v1941 = vld [vmem:[%s1884] sm:$0xff]
        %v1942 = vld [vmem:[%s1884 + $0x8] sm:$0xff]
        %vm1943 = vcmask 122880
        %1944 = vst.msk [vmem:[#allocation2] sm:$0x1] %vm1943, 0.0
        %1945 = vst.msk [vmem:[#allocation2 + $0x11] sm:$0x1] %vm1943, 0.0
        %vm1946 = vcmask 130048
        %1947 = vst.msk [vmem:[#allocation2 + $0x1] sm:$0xff] %vm1946, %v1941
        %1948 = vst.msk [vmem:[#allocation2 + $0x9] sm:$0xff] %vm1946, %v1942
        %v1949 = vld [vmem:[#allocation2] sm:$0xff]
        %v1950 = vld [vmem:[#allocation2 + $0x8] sm:$0xff]
        %v1951 = vld [vmem:[#allocation4] sm:$0xff]
        %v1952 = vld [vmem:[#allocation4 + $0x8] sm:$0xff]
        %v1953 = vld [vmem:[#allocation2 + $0x1] sm:$0xff]
        %v1954 = vld [vmem:[#allocation2 + $0x9] sm:$0xff]
        %s1955 = scalar_lea.vmem [#allocation4], 16
        %v1956 = vld [vmem:[%s1955] sm:$0xff]
        %v1957 = vld [vmem:[%s1955 + $0x8] sm:$0xff]
        %v1959 = vsel %vm1946, %v1953, 0
        %v1962 = vsel %vm1946, %v1954, 0
        %1964 = vmatpush.msra.mxu0 0.0
        %1965 = vmatpush.msra.mxu0 0.0
        %1966 = vmatpush.msra.mxu0 0.0
        %1967 = vmatpush.msra.mxu0 0.0
        %1968 = vmatpush.msra.mxu0 0.0
        %1969 = vmatpush.msra.mxu0 0.0
        %1970 = vmatpush.msra.mxu0 0.0
        %1971 = vmatpush.msra.mxu0 0.0
        %1972 = vmatpush.msra.mxu0 0.0
        %1973 = vmatpush.msra.mxu0 0.0
        %1974 = vmatpush.msra.mxu0 0.0
        %1975 = vmatpush.msra.mxu0 0.0
        %1976 = vmatpush.msra.mxu0 0.0
        %1977 = vmatpush.msra.mxu0 0.0
        %1978 = vmatpush.msra.mxu0 %v1957
        %1979 = vmatpush.msra.mxu0 %v1956
        %1980 = vmatmul.f32.gmra.mxu0 %v1959
        %v1981 = vpop.f32.mrf.mxu0
        %v1982 = vadd.f32 0.0, %v1981
        %1983 = vmatmul.f32.gmra.mxu0 %v1962
        %v1984 = vpop.f32.mrf.mxu0
        %v1985 = vadd.f32 0.0, %v1984
        %1986 = vdwg.mxu0
        %v1988 = vsel %vm1946, %v1949, 0
        %v1991 = vsel %vm1946, %v1950, 0
        %1993 = vmatpush.msra.mxu0 0.0
        %1994 = vmatpush.msra.mxu0 0.0
        %1995 = vmatpush.msra.mxu0 0.0
        %1996 = vmatpush.msra.mxu0 0.0
        %1997 = vmatpush.msra.mxu0 0.0
        %1998 = vmatpush.msra.mxu0 0.0
        %1999 = vmatpush.msra.mxu0 0.0
        %2000 = vmatpush.msra.mxu0 0.0
        %2001 = vmatpush.msra.mxu0 0.0
        %2002 = vmatpush.msra.mxu0 0.0
        %2003 = vmatpush.msra.mxu0 0.0
        %2004 = vmatpush.msra.mxu0 0.0
        %2005 = vmatpush.msra.mxu0 0.0
        %2006 = vmatpush.msra.mxu0 0.0
        %2007 = vmatpush.msra.mxu0 %v1952
        %2008 = vmatpush.msra.mxu0 %v1951
        %2009 = vmatmul.f32.gmra.mxu0 %v1988
        %v2010 = vpop.f32.mrf.mxu0
        %v2011 = vadd.f32 %v1982, %v2010
        %2012 = vmatmul.f32.gmra.mxu0 %v1991
        %v2013 = vpop.f32.mrf.mxu0
        %v2014 = vadd.f32 %v1985, %v2013
        %2015 = vdwg.mxu0
        %v2016 = vld [vmem:[#allocation2 + $0x2] sm:$0xff]
        %v2017 = vld [vmem:[#allocation2 + $0xa] sm:$0xff]
        %s2018 = scalar_lea.vmem [#allocation4], 32
        %v2019 = vld [vmem:[%s2018] sm:$0xff]
        %v2020 = vld [vmem:[%s2018 + $0x8] sm:$0xff]
        %v2022 = vsel %vm1946, %v2016, 0
        %v2025 = vsel %vm1946, %v2017, 0
        %2027 = vmatpush.msra.mxu0 0.0
        %2028 = vmatpush.msra.mxu0 0.0
        %2029 = vmatpush.msra.mxu0 0.0
        %2030 = vmatpush.msra.mxu0 0.0
        %2031 = vmatpush.msra.mxu0 0.0
        %2032 = vmatpush.msra.mxu0 0.0
        %2033 = vmatpush.msra.mxu0 0.0
        %2034 = vmatpush.msra.mxu0 0.0
        %2035 = vmatpush.msra.mxu0 0.0
        %2036 = vmatpush.msra.mxu0 0.0
        %2037 = vmatpush.msra.mxu0 0.0
        %2038 = vmatpush.msra.mxu0 0.0
        %2039 = vmatpush.msra.mxu0 0.0
        %2040 = vmatpush.msra.mxu0 0.0
        %2041 = vmatpush.msra.mxu0 %v2020
        %2042 = vmatpush.msra.mxu0 %v2019
        %2043 = vmatmul.f32.gmra.mxu0 %v2022
        %v2044 = vpop.f32.mrf.mxu0
        %v2045 = vadd.f32 0.0, %v2044
        %2046 = vmatmul.f32.gmra.mxu0 %v2025
        %v2047 = vpop.f32.mrf.mxu0
        %v2048 = vadd.f32 0.0, %v2047
        %2049 = vdwg.mxu0
        %v2050 = vadd.f32 %v2011, %v2045
        %v2051 = vadd.f32 %v2014, %v2048
        %v2052 = vld [vmem:[%s5] sm:$0x1]
        %v2054 = vperm.slane %v2052, 0
        %v2056 = vmul.f32 %v2050, %v2054
        %v2057 = vmul.f32 %v2051, %v2054
        %v2058 = vld [vmem:[%s7] sm:$0x1]
        %v2060 = vperm.slane %v2058, 0
        %v2062 = vadd.f32 %v2056, %v2060
        %v2063 = vadd.f32 %v2057, %v2060
        %v2064 = vmax.f32 %v2062, 0.0
        %v2065 = vmax.f32 %v2063, 0.0
        %2066 = vst [vmem:[%s1889] sm:$0xff] %v2064
        %2067 = vst [vmem:[%s1889 + $0x8] sm:$0xff] %v2065
        %2068 = vst [vmem:[#allocation2] sm:$0x1] 0.0
        %2069 = vst [vmem:[#allocation2 + $0x11] sm:$0x1] 0.0
        %2070 = vst [vmem:[#allocation2 + $0x1] sm:$0xff] %v2064
        %2071 = vst [vmem:[#allocation2 + $0x9] sm:$0xff] %v2065
        %v2072 = vld [vmem:[#allocation2] sm:$0xff]
        %v2073 = vld [vmem:[#allocation2 + $0x8] sm:$0xff]
        %v2074 = vld [vmem:[#allocation7] sm:$0xff]
        %v2075 = vld [vmem:[#allocation7 + $0x8] sm:$0xff]
        %v2076 = vld [vmem:[#allocation7 + $0x10] sm:$0xff]
        %v2077 = vld [vmem:[#allocation7 + $0x18] sm:$0xff]
        %v2078 = vld [vmem:[#allocation7 + $0x20] sm:$0xff]
        %v2079 = vld [vmem:[#allocation7 + $0x28] sm:$0xff]
        %v2080 = vld [vmem:[#allocation7 + $0x30] sm:$0xff]
        %v2081 = vld [vmem:[#allocation7 + $0x38] sm:$0xff]
        %v2082 = vld [vmem:[#allocation7 + $0x40] sm:$0xff]
        %v2083 = vld [vmem:[#allocation7 + $0x48] sm:$0xff]
        %v2084 = vld [vmem:[#allocation7 + $0x50] sm:$0xff]
        %v2085 = vld [vmem:[#allocation7 + $0x58] sm:$0xff]
        %v2086 = vld [vmem:[#allocation7 + $0x60] sm:$0xff]
        %v2087 = vld [vmem:[#allocation7 + $0x68] sm:$0xff]
        %v2088 = vld [vmem:[#allocation7 + $0x70] sm:$0xff]
        %v2089 = vld [vmem:[#allocation7 + $0x78] sm:$0xff]
        %v2090 = vld [vmem:[#allocation2 + $0x1] sm:$0xff]
        %v2091 = vld [vmem:[#allocation2 + $0x9] sm:$0xff]
        %s2092 = scalar_lea.vmem [#allocation7], 128
        %v2093 = vld [vmem:[%s2092] sm:$0xff]
        %v2094 = vld [vmem:[%s2092 + $0x8] sm:$0xff]
        %v2095 = vld [vmem:[%s2092 + $0x10] sm:$0xff]
        %v2096 = vld [vmem:[%s2092 + $0x18] sm:$0xff]
        %v2097 = vld [vmem:[%s2092 + $0x20] sm:$0xff]
        %v2098 = vld [vmem:[%s2092 + $0x28] sm:$0xff]
        %v2099 = vld [vmem:[%s2092 + $0x30] sm:$0xff]
        %v2100 = vld [vmem:[%s2092 + $0x38] sm:$0xff]
        %v2101 = vld [vmem:[%s2092 + $0x40] sm:$0xff]
        %v2102 = vld [vmem:[%s2092 + $0x48] sm:$0xff]
        %v2103 = vld [vmem:[%s2092 + $0x50] sm:$0xff]
        %v2104 = vld [vmem:[%s2092 + $0x58] sm:$0xff]
        %v2105 = vld [vmem:[%s2092 + $0x60] sm:$0xff]
        %v2106 = vld [vmem:[%s2092 + $0x68] sm:$0xff]
        %v2107 = vld [vmem:[%s2092 + $0x70] sm:$0xff]
        %v2108 = vld [vmem:[%s2092 + $0x78] sm:$0xff]
        %2109 = vmatpush.msra.mxu0 %v2108
        %2110 = vmatpush.msra.mxu0 %v2107
        %2111 = vmatpush.msra.mxu0 %v2106
        %2112 = vmatpush.msra.mxu0 %v2105
        %2113 = vmatpush.msra.mxu0 %v2104
        %2114 = vmatpush.msra.mxu0 %v2103
        %2115 = vmatpush.msra.mxu0 %v2102
        %2116 = vmatpush.msra.mxu0 %v2101
        %2117 = vmatpush.msra.mxu0 %v2100
        %2118 = vmatpush.msra.mxu0 %v2099
        %2119 = vmatpush.msra.mxu0 %v2098
        %2120 = vmatpush.msra.mxu0 %v2097
        %2121 = vmatpush.msra.mxu0 %v2096
        %2122 = vmatpush.msra.mxu0 %v2095
        %2123 = vmatpush.msra.mxu0 %v2094
        %2124 = vmatpush.msra.mxu0 %v2093
        %2125 = vmatmul.f32.gmra.mxu0 %v2090
        %v2126 = vpop.f32.mrf.mxu0
        %v2127 = vadd.f32 0.0, %v2126
        %2128 = vmatmul.f32.gmra.mxu0 %v2091
        %v2129 = vpop.f32.mrf.mxu0
        %v2130 = vadd.f32 0.0, %v2129
        %2131 = vdwg.mxu0
        %2132 = vmatpush.msra.mxu0 %v2089
        %2133 = vmatpush.msra.mxu0 %v2088
        %2134 = vmatpush.msra.mxu0 %v2087
        %2135 = vmatpush.msra.mxu0 %v2086
        %2136 = vmatpush.msra.mxu0 %v2085
        %2137 = vmatpush.msra.mxu0 %v2084
        %2138 = vmatpush.msra.mxu0 %v2083
        %2139 = vmatpush.msra.mxu0 %v2082
        %2140 = vmatpush.msra.mxu0 %v2081
        %2141 = vmatpush.msra.mxu0 %v2080
        %2142 = vmatpush.msra.mxu0 %v2079
        %2143 = vmatpush.msra.mxu0 %v2078
        %2144 = vmatpush.msra.mxu0 %v2077
        %2145 = vmatpush.msra.mxu0 %v2076
        %2146 = vmatpush.msra.mxu0 %v2075
        %2147 = vmatpush.msra.mxu0 %v2074
        %2148 = vmatmul.f32.gmra.mxu0 %v2072
        %v2149 = vpop.f32.mrf.mxu0
        %v2150 = vadd.f32 %v2127, %v2149
        %2151 = vmatmul.f32.gmra.mxu0 %v2073
        %v2152 = vpop.f32.mrf.mxu0
        %v2153 = vadd.f32 %v2130, %v2152
        %2154 = vdwg.mxu0
        %v2155 = vld [vmem:[#allocation2 + $0x2] sm:$0xff]
        %v2156 = vld [vmem:[#allocation2 + $0xa] sm:$0xff]
        %s2157 = scalar_lea.vmem [#allocation7], 256
        %v2158 = vld [vmem:[%s2157] sm:$0xff]
        %v2159 = vld [vmem:[%s2157 + $0x8] sm:$0xff]
        %v2160 = vld [vmem:[%s2157 + $0x10] sm:$0xff]
        %v2161 = vld [vmem:[%s2157 + $0x18] sm:$0xff]
        %v2162 = vld [vmem:[%s2157 + $0x20] sm:$0xff]
        %v2163 = vld [vmem:[%s2157 + $0x28] sm:$0xff]
        %v2164 = vld [vmem:[%s2157 + $0x30] sm:$0xff]
        %v2165 = vld [vmem:[%s2157 + $0x38] sm:$0xff]
        %v2166 = vld [vmem:[%s2157 + $0x40] sm:$0xff]
        %v2167 = vld [vmem:[%s2157 + $0x48] sm:$0xff]
        %v2168 = vld [vmem:[%s2157 + $0x50] sm:$0xff]
        %v2169 = vld [vmem:[%s2157 + $0x58] sm:$0xff]
        %v2170 = vld [vmem:[%s2157 + $0x60] sm:$0xff]
        %v2171 = vld [vmem:[%s2157 + $0x68] sm:$0xff]
        %v2172 = vld [vmem:[%s2157 + $0x70] sm:$0xff]
        %v2173 = vld [vmem:[%s2157 + $0x78] sm:$0xff]
        %2174 = vmatpush.msra.mxu0 %v2173
        %2175 = vmatpush.msra.mxu0 %v2172
        %2176 = vmatpush.msra.mxu0 %v2171
        %2177 = vmatpush.msra.mxu0 %v2170
        %2178 = vmatpush.msra.mxu0 %v2169
        %2179 = vmatpush.msra.mxu0 %v2168
        %2180 = vmatpush.msra.mxu0 %v2167
        %2181 = vmatpush.msra.mxu0 %v2166
        %2182 = vmatpush.msra.mxu0 %v2165
        %2183 = vmatpush.msra.mxu0 %v2164
        %2184 = vmatpush.msra.mxu0 %v2163
        %2185 = vmatpush.msra.mxu0 %v2162
        %2186 = vmatpush.msra.mxu0 %v2161
        %2187 = vmatpush.msra.mxu0 %v2160
        %2188 = vmatpush.msra.mxu0 %v2159
        %2189 = vmatpush.msra.mxu0 %v2158
        %2190 = vmatmul.f32.gmra.mxu0 %v2155
        %v2191 = vpop.f32.mrf.mxu0
        %v2192 = vadd.f32 0.0, %v2191
        %2193 = vmatmul.f32.gmra.mxu0 %v2156
        %v2194 = vpop.f32.mrf.mxu0
        %v2195 = vadd.f32 0.0, %v2194
        %2196 = vdwg.mxu0
        %v2197 = vadd.f32 %v2150, %v2192
        %v2198 = vadd.f32 %v2153, %v2195
        %v2199 = vld [vmem:[%s11] sm:$0x1]
        %v2201 = vperm.slane %v2199, 0
        %v2203 = vmul.f32 %v2197, %v2201
        %v2204 = vmul.f32 %v2198, %v2201
        %v2205 = vld [vmem:[%s13] sm:$0x1]
        %v2207 = vperm.slane %v2205, 0
        %v2209 = vadd.f32 %v2203, %v2207
        %v2210 = vadd.f32 %v2204, %v2207
        %v2211 = vmax.f32 %v2209, 0.0
        %v2212 = vmax.f32 %v2210, 0.0
        %2213 = vst [vmem:[%s1894] sm:$0xff] %v2211
        %2214 = vst [vmem:[%s1894 + $0x8] sm:$0xff] %v2212
        %2215 = vst [vmem:[#allocation3] sm:$0x1] 0.0
        %2216 = vst [vmem:[#allocation3 + $0x11] sm:$0x1] 0.0
        %2217 = vst [vmem:[#allocation3 + $0x1] sm:$0xff] %v2211
        %2218 = vst [vmem:[#allocation3 + $0x9] sm:$0xff] %v2212
        %v2219 = vld [vmem:[#allocation3] sm:$0xff]
        %v2220 = vld [vmem:[#allocation3 + $0x8] sm:$0xff]
        %v2221 = vld [vmem:[#allocation9] sm:$0xff]
        %v2222 = vld [vmem:[#allocation9 + $0x8] sm:$0xff]
        %v2223 = vld [vmem:[#allocation9 + $0x10] sm:$0xff]
        %v2224 = vld [vmem:[#allocation9 + $0x18] sm:$0xff]
        %v2225 = vld [vmem:[#allocation9 + $0x20] sm:$0xff]
        %v2226 = vld [vmem:[#allocation9 + $0x28] sm:$0xff]
        %v2227 = vld [vmem:[#allocation9 + $0x30] sm:$0xff]
        %v2228 = vld [vmem:[#allocation9 + $0x38] sm:$0xff]
        %v2229 = vld [vmem:[#allocation9 + $0x40] sm:$0xff]
        %v2230 = vld [vmem:[#allocation9 + $0x48] sm:$0xff]
        %v2231 = vld [vmem:[#allocation9 + $0x50] sm:$0xff]
        %v2232 = vld [vmem:[#allocation9 + $0x58] sm:$0xff]
        %v2233 = vld [vmem:[#allocation9 + $0x60] sm:$0xff]
        %v2234 = vld [vmem:[#allocation9 + $0x68] sm:$0xff]
        %v2235 = vld [vmem:[#allocation9 + $0x70] sm:$0xff]
        %v2236 = vld [vmem:[#allocation9 + $0x78] sm:$0xff]
        %v2237 = vld [vmem:[#allocation3 + $0x1] sm:$0xff]
        %v2238 = vld [vmem:[#allocation3 + $0x9] sm:$0xff]
        %s2239 = scalar_lea.vmem [#allocation9], 128
        %v2240 = vld [vmem:[%s2239] sm:$0xff]
        %v2241 = vld [vmem:[%s2239 + $0x8] sm:$0xff]
        %v2242 = vld [vmem:[%s2239 + $0x10] sm:$0xff]
        %v2243 = vld [vmem:[%s2239 + $0x18] sm:$0xff]
        %v2244 = vld [vmem:[%s2239 + $0x20] sm:$0xff]
        %v2245 = vld [vmem:[%s2239 + $0x28] sm:$0xff]
        %v2246 = vld [vmem:[%s2239 + $0x30] sm:$0xff]
        %v2247 = vld [vmem:[%s2239 + $0x38] sm:$0xff]
        %v2248 = vld [vmem:[%s2239 + $0x40] sm:$0xff]
        %v2249 = vld [vmem:[%s2239 + $0x48] sm:$0xff]
        %v2250 = vld [vmem:[%s2239 + $0x50] sm:$0xff]
        %v2251 = vld [vmem:[%s2239 + $0x58] sm:$0xff]
        %v2252 = vld [vmem:[%s2239 + $0x60] sm:$0xff]
        %v2253 = vld [vmem:[%s2239 + $0x68] sm:$0xff]
        %v2254 = vld [vmem:[%s2239 + $0x70] sm:$0xff]
        %v2255 = vld [vmem:[%s2239 + $0x78] sm:$0xff]
        %2256 = vmatpush.msra.mxu0 %v2255
        %2257 = vmatpush.msra.mxu0 %v2254
        %2258 = vmatpush.msra.mxu0 %v2253
        %2259 = vmatpush.msra.mxu0 %v2252
        %2260 = vmatpush.msra.mxu0 %v2251
        %2261 = vmatpush.msra.mxu0 %v2250
        %2262 = vmatpush.msra.mxu0 %v2249
        %2263 = vmatpush.msra.mxu0 %v2248
        %2264 = vmatpush.msra.mxu0 %v2247
        %2265 = vmatpush.msra.mxu0 %v2246
        %2266 = vmatpush.msra.mxu0 %v2245
        %2267 = vmatpush.msra.mxu0 %v2244
        %2268 = vmatpush.msra.mxu0 %v2243
        %2269 = vmatpush.msra.mxu0 %v2242
        %2270 = vmatpush.msra.mxu0 %v2241
        %2271 = vmatpush.msra.mxu0 %v2240
        %2272 = vmatmul.f32.gmra.mxu0 %v2237
        %v2273 = vpop.f32.mrf.mxu0
        %v2274 = vadd.f32 0.0, %v2273
        %2275 = vmatmul.f32.gmra.mxu0 %v2238
        %v2276 = vpop.f32.mrf.mxu0
        %v2277 = vadd.f32 0.0, %v2276
        %2278 = vdwg.mxu0
        %2279 = vmatpush.msra.mxu0 %v2236
        %2280 = vmatpush.msra.mxu0 %v2235
        %2281 = vmatpush.msra.mxu0 %v2234
        %2282 = vmatpush.msra.mxu0 %v2233
        %2283 = vmatpush.msra.mxu0 %v2232
        %2284 = vmatpush.msra.mxu0 %v2231
        %2285 = vmatpush.msra.mxu0 %v2230
        %2286 = vmatpush.msra.mxu0 %v2229
        %2287 = vmatpush.msra.mxu0 %v2228
        %2288 = vmatpush.msra.mxu0 %v2227
        %2289 = vmatpush.msra.mxu0 %v2226
        %2290 = vmatpush.msra.mxu0 %v2225
        %2291 = vmatpush.msra.mxu0 %v2224
        %2292 = vmatpush.msra.mxu0 %v2223
        %2293 = vmatpush.msra.mxu0 %v2222
        %2294 = vmatpush.msra.mxu0 %v2221
        %2295 = vmatmul.f32.gmra.mxu0 %v2219
        %v2296 = vpop.f32.mrf.mxu0
        %v2297 = vadd.f32 %v2274, %v2296
        %2298 = vmatmul.f32.gmra.mxu0 %v2220
        %v2299 = vpop.f32.mrf.mxu0
        %v2300 = vadd.f32 %v2277, %v2299
        %2301 = vdwg.mxu0
        %v2302 = vld [vmem:[#allocation3 + $0x2] sm:$0xff]
        %v2303 = vld [vmem:[#allocation3 + $0xa] sm:$0xff]
        %s2304 = scalar_lea.vmem [#allocation9], 256
        %v2305 = vld [vmem:[%s2304] sm:$0xff]
        %v2306 = vld [vmem:[%s2304 + $0x8] sm:$0xff]
        %v2307 = vld [vmem:[%s2304 + $0x10] sm:$0xff]
        %v2308 = vld [vmem:[%s2304 + $0x18] sm:$0xff]
        %v2309 = vld [vmem:[%s2304 + $0x20] sm:$0xff]
        %v2310 = vld [vmem:[%s2304 + $0x28] sm:$0xff]
        %v2311 = vld [vmem:[%s2304 + $0x30] sm:$0xff]
        %v2312 = vld [vmem:[%s2304 + $0x38] sm:$0xff]
        %v2313 = vld [vmem:[%s2304 + $0x40] sm:$0xff]
        %v2314 = vld [vmem:[%s2304 + $0x48] sm:$0xff]
        %v2315 = vld [vmem:[%s2304 + $0x50] sm:$0xff]
        %v2316 = vld [vmem:[%s2304 + $0x58] sm:$0xff]
        %v2317 = vld [vmem:[%s2304 + $0x60] sm:$0xff]
        %v2318 = vld [vmem:[%s2304 + $0x68] sm:$0xff]
        %v2319 = vld [vmem:[%s2304 + $0x70] sm:$0xff]
        %v2320 = vld [vmem:[%s2304 + $0x78] sm:$0xff]
        %2321 = vmatpush.msra.mxu0 %v2320
        %2322 = vmatpush.msra.mxu0 %v2319
        %2323 = vmatpush.msra.mxu0 %v2318
        %2324 = vmatpush.msra.mxu0 %v2317
        %2325 = vmatpush.msra.mxu0 %v2316
        %2326 = vmatpush.msra.mxu0 %v2315
        %2327 = vmatpush.msra.mxu0 %v2314
        %2328 = vmatpush.msra.mxu0 %v2313
        %2329 = vmatpush.msra.mxu0 %v2312
        %2330 = vmatpush.msra.mxu0 %v2311
        %2331 = vmatpush.msra.mxu0 %v2310
        %2332 = vmatpush.msra.mxu0 %v2309
        %2333 = vmatpush.msra.mxu0 %v2308
        %2334 = vmatpush.msra.mxu0 %v2307
        %2335 = vmatpush.msra.mxu0 %v2306
        %2336 = vmatpush.msra.mxu0 %v2305
        %2337 = vmatmul.f32.gmra.mxu0 %v2302
        %v2338 = vpop.f32.mrf.mxu0
        %v2339 = vadd.f32 0.0, %v2338
        %2340 = vmatmul.f32.gmra.mxu0 %v2303
        %v2341 = vpop.f32.mrf.mxu0
        %v2342 = vadd.f32 0.0, %v2341
        %2343 = vdwg.mxu0
        %v2344 = vadd.f32 %v2297, %v2339
        %v2345 = vadd.f32 %v2300, %v2342
        %v2346 = vld [vmem:[%s17] sm:$0x1]
        %v2348 = vperm.slane %v2346, 0
        %v2350 = vmul.f32 %v2344, %v2348
        %v2351 = vmul.f32 %v2345, %v2348
        %v2352 = vld [vmem:[%s19] sm:$0x1]
        %v2354 = vperm.slane %v2352, 0
        %v2356 = vadd.f32 %v2350, %v2354
        %v2357 = vadd.f32 %v2351, %v2354
        %v2358 = vadd.f32 %v2356, %v2357
        %v2359 = vrot.slane %v2358, 4
        %v2360 = vadd.f32 %v2358, %v2359
        %v2361 = vrot.slane %v2360, 2
        %v2362 = vadd.f32 %v2360, %v2361
        %v2363 = vrot.slane %v2362, 1
        %v2364 = vadd.f32 %v2362, %v2363
        %v2365 = vld [vmem:[#allocation10] sm:$0xff]
        %v2366 = vld [vmem:[#allocation10 + $0x8] sm:$0xff]
        %v2367 = vld [vmem:[#allocation10 + $0x10] sm:$0xff]
        %v2368 = vld [vmem:[#allocation10 + $0x18] sm:$0xff]
        %v2369 = vld [vmem:[#allocation10 + $0x20] sm:$0xff]
        %v2370 = vld [vmem:[#allocation10 + $0x28] sm:$0xff]
        %v2371 = vld [vmem:[#allocation10 + $0x30] sm:$0xff]
        %v2372 = vld [vmem:[#allocation10 + $0x38] sm:$0xff]
        %v2373 = vld [vmem:[#allocation10 + $0x40] sm:$0xff]
        %v2374 = vld [vmem:[#allocation10 + $0x48] sm:$0xff]
        %v2375 = vld [vmem:[#allocation10 + $0x50] sm:$0xff]
        %v2376 = vld [vmem:[#allocation10 + $0x58] sm:$0xff]
        %v2377 = vld [vmem:[#allocation10 + $0x60] sm:$0xff]
        %v2378 = vld [vmem:[#allocation10 + $0x68] sm:$0xff]
        %v2379 = vld [vmem:[#allocation10 + $0x70] sm:$0xff]
        %v2380 = vld [vmem:[#allocation10 + $0x78] sm:$0xff]
        %2381 = vmatpush.msra.mxu0 %v2380
        %2382 = vmatpush.msra.mxu0 %v2379
        %2383 = vmatpush.msra.mxu0 %v2378
        %2384 = vmatpush.msra.mxu0 %v2377
        %2385 = vmatpush.msra.mxu0 %v2376
        %2386 = vmatpush.msra.mxu0 %v2375
        %2387 = vmatpush.msra.mxu0 %v2374
        %2388 = vmatpush.msra.mxu0 %v2373
        %2389 = vmatpush.msra.mxu0 %v2372
        %2390 = vmatpush.msra.mxu0 %v2371
        %2391 = vmatpush.msra.mxu0 %v2370
        %2392 = vmatpush.msra.mxu0 %v2369
        %2393 = vmatpush.msra.mxu0 %v2368
        %2394 = vmatpush.msra.mxu0 %v2367
        %2395 = vmatpush.msra.mxu0 %v2366
        %2396 = vmatpush.msra.mxu0 %v2365
        %2397 = vmatmul.f32.gmra.mxu0 %v2364
        %v2398 = vpop.f32.mrf.mxu0
        %v2399 = vadd.f32 0.0, %v2398
        %2400 = vdwg.mxu0
        %v2401 = vmul.f32 %v2399, 0.00390625
        %v2402 = vperm.slane %v2401, 0
        %v2403 = vsub.f32 %v2356, %v2402
        %v2404 = vsub.f32 %v2357, %v2402
        %v2405 = vmul.f32 %v2403, %v2403
        %v2406 = vmul.f32 %v2404, %v2404
        %v2407 = vadd.f32 %v2405, %v2406
        %v2408 = vrot.slane %v2407, 4
        %v2409 = vadd.f32 %v2407, %v2408
        %v2410 = vrot.slane %v2409, 2
        %v2411 = vadd.f32 %v2409, %v2410
        %v2412 = vrot.slane %v2411, 1
        %v2413 = vadd.f32 %v2411, %v2412
        %2414 = vmatpush.msra.mxu0 %v2380
        %2415 = vmatpush.msra.mxu0 %v2379
        %2416 = vmatpush.msra.mxu0 %v2378
        %2417 = vmatpush.msra.mxu0 %v2377
        %2418 = vmatpush.msra.mxu0 %v2376
        %2419 = vmatpush.msra.mxu0 %v2375
        %2420 = vmatpush.msra.mxu0 %v2374
        %2421 = vmatpush.msra.mxu0 %v2373
        %2422 = vmatpush.msra.mxu0 %v2372
        %2423 = vmatpush.msra.mxu0 %v2371
        %2424 = vmatpush.msra.mxu0 %v2370
        %2425 = vmatpush.msra.mxu0 %v2369
        %2426 = vmatpush.msra.mxu0 %v2368
        %2427 = vmatpush.msra.mxu0 %v2367
        %2428 = vmatpush.msra.mxu0 %v2366
        %2429 = vmatpush.msra.mxu0 %v2365
        %2430 = vmatmul.f32.gmra.mxu0 %v2413
        %v2431 = vpop.f32.mrf.mxu0
        %v2432 = vadd.f32 0.0, %v2431
        %2433 = vdwg.mxu0
        %v2434 = vmul.f32 %v2432, 0.003921569
        %v2435 = vadd.f32 %v2434, 0.0001
        %v2436 = vmul.f32 %v2435, 4.0
        %v2437 = vperm.slane %v2436, 0
        %v2438 = vrcp.pop %v2437
        %v2439 = vmul.f32 %v2437, %v2438
        %v2440 = vsub.f32 1.0, %v2439
        %v2441 = vmul.f32 %v2438, %v2440
        %v2442 = vadd.f32 %v2438, %v2441
        %vm2443 = vweird.f32 %v2437
        %vm2444 = vweird.f32 %v2438
        %vm2445 = vmor %vm2443, %vm2444
        %v2446 = vsel %vm2445, %v2438, %v2442
        %v2447 = vand.u32 2147483647, %v2437
        %vm2448 = vcmp.eq.f32.partialorder %v2447, 8.507059e+37
        %v2449 = vand.u32 %v2437, 2147483648
        %v2450 = vor.u32 1.1754944e-38, %v2449
        %v2451 = vsel %vm2448, %v2450, %v2446
        %v2452 = vmul.f32 %v2405, %v2451
        %v2453 = vmul.f32 %v2406, %v2451
        %v2454 = vadd.f32 %v2452, 0.5
        %v2455 = vadd.f32 %v2453, 0.5
        %v2456 = vxor.u32 %v2454, 2147483648
        %v2457 = vxor.u32 %v2455, 2147483648
        %v2458 = vmul.f32 %v2456, 1.442695
        %v2459 = vpow.pop %v2458
        %v2460 = vmul.f32 %v2457, 1.442695
        %v2461 = vpow.pop %v2460
        %v2462 = vadd.f32 %v2459, 1.0
        %v2463 = vadd.f32 %v2461, 1.0
        %v2464 = vrcp.pop %v2462
        %v2465 = vmul.f32 %v2462, %v2464
        %v2466 = vsub.f32 1.0, %v2465
        %v2467 = vmul.f32 %v2464, %v2466
        %v2468 = vadd.f32 %v2464, %v2467
        %vm2469 = vweird.f32 %v2462
        %vm2470 = vweird.f32 %v2464
        %vm2471 = vmor %vm2469, %vm2470
        %v2472 = vsel %vm2471, %v2464, %v2468
        %v2473 = vand.u32 2147483647, %v2462
        %vm2474 = vcmp.eq.f32.partialorder %v2473, 8.507059e+37
        %v2475 = vand.u32 %v2462, 2147483648
        %v2476 = vor.u32 1.1754944e-38, %v2475
        %v2477 = vsel %vm2474, %v2476, %v2472
        %v2478 = vmul.f32 1.0, %v2477
        %v2479 = vrcp.pop %v2463
        %v2480 = vmul.f32 %v2463, %v2479
        %v2481 = vsub.f32 1.0, %v2480
        %v2482 = vmul.f32 %v2479, %v2481
        %v2483 = vadd.f32 %v2479, %v2482
        %vm2484 = vweird.f32 %v2463
        %vm2485 = vweird.f32 %v2479
        %vm2486 = vmor %vm2484, %vm2485
        %v2487 = vsel %vm2486, %v2479, %v2483
        %v2488 = vand.u32 2147483647, %v2463
        %vm2489 = vcmp.eq.f32.partialorder %v2488, 8.507059e+37
        %v2490 = vand.u32 %v2463, 2147483648
        %v2491 = vor.u32 1.1754944e-38, %v2490
        %v2492 = vsel %vm2489, %v2491, %v2487
        %v2493 = vmul.f32 1.0, %v2492
        %v2494 = vmul.f32 %v2356, %v2478
        %v2495 = vmul.f32 %v2357, %v2493
        %2496 = vst [vmem:[%s1899] sm:$0xff] %v2494
        %2497 = vst [vmem:[%s1899 + $0x8] sm:$0xff] %v2495
        %v2498 = vadd.f32 %v2494, %v2064
        %v2499 = vadd.f32 %v2495, %v2065
        %v2500 = vmax.f32 %v2498, 0.0
        %v2501 = vmax.f32 %v2499, 0.0
        %2502 = vst [vmem:[%s1904] sm:$0xff] %v2500
        %2503 = vst [vmem:[%s1904 + $0x8] sm:$0xff] %v2501
        %2504 = vst [vmem:[#allocation2] sm:$0x1] 0.0
        %2505 = vst [vmem:[#allocation2 + $0x11] sm:$0x1] 0.0
        %2506 = vst [vmem:[#allocation2 + $0x1] sm:$0xff] %v2500
        %2507 = vst [vmem:[#allocation2 + $0x9] sm:$0xff] %v2501
        %v2508 = vld [vmem:[#allocation2] ss:$2 sm:$0xff]
        %v2509 = vld [vmem:[#allocation12] sm:$0xff]
        %v2510 = vld [vmem:[#allocation12 + $0x8] sm:$0xff]
        %v2511 = vld [vmem:[#allocation12 + $0x10] sm:$0xff]
        %v2512 = vld [vmem:[#allocation12 + $0x18] sm:$0xff]
        %v2513 = vld [vmem:[#allocation12 + $0x20] sm:$0xff]
        %v2514 = vld [vmem:[#allocation12 + $0x28] sm:$0xff]
        %v2515 = vld [vmem:[#allocation12 + $0x30] sm:$0xff]
        %v2516 = vld [vmem:[#allocation12 + $0x38] sm:$0xff]
        %v2517 = vld [vmem:[#allocation12 + $0x40] sm:$0xff]
        %v2518 = vld [vmem:[#allocation12 + $0x48] sm:$0xff]
        %v2519 = vld [vmem:[#allocation12 + $0x50] sm:$0xff]
        %v2520 = vld [vmem:[#allocation12 + $0x58] sm:$0xff]
        %v2521 = vld [vmem:[#allocation12 + $0x60] sm:$0xff]
        %v2522 = vld [vmem:[#allocation12 + $0x68] sm:$0xff]
        %v2523 = vld [vmem:[#allocation12 + $0x70] sm:$0xff]
        %v2524 = vld [vmem:[#allocation12 + $0x78] sm:$0xff]
        %v2525 = vld [vmem:[#allocation12 + $0x80] sm:$0xff]
        %v2526 = vld [vmem:[#allocation12 + $0x88] sm:$0xff]
        %v2527 = vld [vmem:[#allocation12 + $0x90] sm:$0xff]
        %v2528 = vld [vmem:[#allocation12 + $0x98] sm:$0xff]
        %v2529 = vld [vmem:[#allocation12 + $0xa0] sm:$0xff]
        %v2530 = vld [vmem:[#allocation12 + $0xa8] sm:$0xff]
        %v2531 = vld [vmem:[#allocation12 + $0xb0] sm:$0xff]
        %v2532 = vld [vmem:[#allocation12 + $0xb8] sm:$0xff]
        %v2533 = vld [vmem:[#allocation12 + $0xc0] sm:$0xff]
        %v2534 = vld [vmem:[#allocation12 + $0xc8] sm:$0xff]
        %v2535 = vld [vmem:[#allocation12 + $0xd0] sm:$0xff]
        %v2536 = vld [vmem:[#allocation12 + $0xd8] sm:$0xff]
        %v2537 = vld [vmem:[#allocation12 + $0xe0] sm:$0xff]
        %v2538 = vld [vmem:[#allocation12 + $0xe8] sm:$0xff]
        %v2539 = vld [vmem:[#allocation12 + $0xf0] sm:$0xff]
        %v2540 = vld [vmem:[#allocation12 + $0xf8] sm:$0xff]
        %s2541 = scalar_lea.vmem [#allocation2], 1
        %v2542 = vld [vmem:[%s2541] ss:$2 sm:$0xff]
        %s2543 = scalar_lea.vmem [#allocation12], 256
        %v2544 = vld [vmem:[%s2543] sm:$0xff]
        %v2545 = vld [vmem:[%s2543 + $0x8] sm:$0xff]
        %v2546 = vld [vmem:[%s2543 + $0x10] sm:$0xff]
        %v2547 = vld [vmem:[%s2543 + $0x18] sm:$0xff]
        %v2548 = vld [vmem:[%s2543 + $0x20] sm:$0xff]
        %v2549 = vld [vmem:[%s2543 + $0x28] sm:$0xff]
        %v2550 = vld [vmem:[%s2543 + $0x30] sm:$0xff]
        %v2551 = vld [vmem:[%s2543 + $0x38] sm:$0xff]
        %v2552 = vld [vmem:[%s2543 + $0x40] sm:$0xff]
        %v2553 = vld [vmem:[%s2543 + $0x48] sm:$0xff]
        %v2554 = vld [vmem:[%s2543 + $0x50] sm:$0xff]
        %v2555 = vld [vmem:[%s2543 + $0x58] sm:$0xff]
        %v2556 = vld [vmem:[%s2543 + $0x60] sm:$0xff]
        %v2557 = vld [vmem:[%s2543 + $0x68] sm:$0xff]
        %v2558 = vld [vmem:[%s2543 + $0x70] sm:$0xff]
        %v2559 = vld [vmem:[%s2543 + $0x78] sm:$0xff]
        %v2560 = vld [vmem:[%s2543 + $0x80] sm:$0xff]
        %v2561 = vld [vmem:[%s2543 + $0x88] sm:$0xff]
        %v2562 = vld [vmem:[%s2543 + $0x90] sm:$0xff]
        %v2563 = vld [vmem:[%s2543 + $0x98] sm:$0xff]
        %v2564 = vld [vmem:[%s2543 + $0xa0] sm:$0xff]
        %v2565 = vld [vmem:[%s2543 + $0xa8] sm:$0xff]
        %v2566 = vld [vmem:[%s2543 + $0xb0] sm:$0xff]
        %v2567 = vld [vmem:[%s2543 + $0xb8] sm:$0xff]
        %v2568 = vld [vmem:[%s2543 + $0xc0] sm:$0xff]
        %v2569 = vld [vmem:[%s2543 + $0xc8] sm:$0xff]
        %v2570 = vld [vmem:[%s2543 + $0xd0] sm:$0xff]
        %v2571 = vld [vmem:[%s2543 + $0xd8] sm:$0xff]
        %v2572 = vld [vmem:[%s2543 + $0xe0] sm:$0xff]
        %v2573 = vld [vmem:[%s2543 + $0xe8] sm:$0xff]
        %v2574 = vld [vmem:[%s2543 + $0xf0] sm:$0xff]
        %v2575 = vld [vmem:[%s2543 + $0xf8] sm:$0xff]
        %2576 = vmatpush.msra.mxu0 %v2574
        %2577 = vmatpush.msra.mxu0 %v2572
        %2578 = vmatpush.msra.mxu0 %v2570
        %2579 = vmatpush.msra.mxu0 %v2568
        %2580 = vmatpush.msra.mxu0 %v2566
        %2581 = vmatpush.msra.mxu0 %v2564
        %2582 = vmatpush.msra.mxu0 %v2562
        %2583 = vmatpush.msra.mxu0 %v2560
        %2584 = vmatpush.msra.mxu0 %v2558
        %2585 = vmatpush.msra.mxu0 %v2556
        %2586 = vmatpush.msra.mxu0 %v2554
        %2587 = vmatpush.msra.mxu0 %v2552
        %2588 = vmatpush.msra.mxu0 %v2550
        %2589 = vmatpush.msra.mxu0 %v2548
        %2590 = vmatpush.msra.mxu0 %v2546
        %2591 = vmatpush.msra.mxu0 %v2544
        %2592 = vmatmul.f32.gmra.mxu0 %v2542
        %v2593 = vpop.f32.mrf.mxu0
        %v2594 = vadd.f32 0.0, %v2593
        %2595 = vdwg.mxu0
        %2596 = vmatpush.msra.mxu0 %v2575
        %2597 = vmatpush.msra.mxu0 %v2573
        %2598 = vmatpush.msra.mxu0 %v2571
        %2599 = vmatpush.msra.mxu0 %v2569
        %2600 = vmatpush.msra.mxu0 %v2567
        %2601 = vmatpush.msra.mxu0 %v2565
        %2602 = vmatpush.msra.mxu0 %v2563
        %2603 = vmatpush.msra.mxu0 %v2561
        %2604 = vmatpush.msra.mxu0 %v2559
        %2605 = vmatpush.msra.mxu0 %v2557
        %2606 = vmatpush.msra.mxu0 %v2555
        %2607 = vmatpush.msra.mxu0 %v2553
        %2608 = vmatpush.msra.mxu0 %v2551
        %2609 = vmatpush.msra.mxu0 %v2549
        %2610 = vmatpush.msra.mxu0 %v2547
        %2611 = vmatpush.msra.mxu0 %v2545
        %2612 = vmatmul.f32.gmra.mxu0 %v2542
        %v2613 = vpop.f32.mrf.mxu0
        %v2614 = vadd.f32 0.0, %v2613
        %2615 = vdwg.mxu0
        %2616 = vmatpush.msra.mxu0 %v2539
        %2617 = vmatpush.msra.mxu0 %v2537
        %2618 = vmatpush.msra.mxu0 %v2535
        %2619 = vmatpush.msra.mxu0 %v2533
        %2620 = vmatpush.msra.mxu0 %v2531
        %2621 = vmatpush.msra.mxu0 %v2529
        %2622 = vmatpush.msra.mxu0 %v2527
        %2623 = vmatpush.msra.mxu0 %v2525
        %2624 = vmatpush.msra.mxu0 %v2523
        %2625 = vmatpush.msra.mxu0 %v2521
        %2626 = vmatpush.msra.mxu0 %v2519
        %2627 = vmatpush.msra.mxu0 %v2517
        %2628 = vmatpush.msra.mxu0 %v2515
        %2629 = vmatpush.msra.mxu0 %v2513
        %2630 = vmatpush.msra.mxu0 %v2511
        %2631 = vmatpush.msra.mxu0 %v2509
        %2632 = vmatmul.f32.gmra.mxu0 %v2508
        %v2633 = vpop.f32.mrf.mxu0
        %v2634 = vadd.f32 %v2594, %v2633
        %2635 = vdwg.mxu0
        %2636 = vmatpush.msra.mxu0 %v2540
        %2637 = vmatpush.msra.mxu0 %v2538
        %2638 = vmatpush.msra.mxu0 %v2536
        %2639 = vmatpush.msra.mxu0 %v2534
        %2640 = vmatpush.msra.mxu0 %v2532
        %2641 = vmatpush.msra.mxu0 %v2530
        %2642 = vmatpush.msra.mxu0 %v2528
        %2643 = vmatpush.msra.mxu0 %v2526
        %2644 = vmatpush.msra.mxu0 %v2524
        %2645 = vmatpush.msra.mxu0 %v2522
        %2646 = vmatpush.msra.mxu0 %v2520
        %2647 = vmatpush.msra.mxu0 %v2518
        %2648 = vmatpush.msra.mxu0 %v2516
        %2649 = vmatpush.msra.mxu0 %v2514
        %2650 = vmatpush.msra.mxu0 %v2512
        %2651 = vmatpush.msra.mxu0 %v2510
        %2652 = vmatmul.f32.gmra.mxu0 %v2508
        %v2653 = vpop.f32.mrf.mxu0
        %v2654 = vadd.f32 %v2614, %v2653
        %2655 = vdwg.mxu0
        %s2656 = scalar_lea.vmem [#allocation2], 2
        %v2657 = vld [vmem:[%s2656] ss:$2 sm:$0xff]
        %s2658 = scalar_lea.vmem [#allocation12], 512
        %v2659 = vld [vmem:[%s2658] sm:$0xff]
        %v2660 = vld [vmem:[%s2658 + $0x8] sm:$0xff]
        %v2661 = vld [vmem:[%s2658 + $0x10] sm:$0xff]
        %v2662 = vld [vmem:[%s2658 + $0x18] sm:$0xff]
        %v2663 = vld [vmem:[%s2658 + $0x20] sm:$0xff]
        %v2664 = vld [vmem:[%s2658 + $0x28] sm:$0xff]
        %v2665 = vld [vmem:[%s2658 + $0x30] sm:$0xff]
        %v2666 = vld [vmem:[%s2658 + $0x38] sm:$0xff]
        %v2667 = vld [vmem:[%s2658 + $0x40] sm:$0xff]
        %v2668 = vld [vmem:[%s2658 + $0x48] sm:$0xff]
        %v2669 = vld [vmem:[%s2658 + $0x50] sm:$0xff]
        %v2670 = vld [vmem:[%s2658 + $0x58] sm:$0xff]
        %v2671 = vld [vmem:[%s2658 + $0x60] sm:$0xff]
        %v2672 = vld [vmem:[%s2658 + $0x68] sm:$0xff]
        %v2673 = vld [vmem:[%s2658 + $0x70] sm:$0xff]
        %v2674 = vld [vmem:[%s2658 + $0x78] sm:$0xff]
        %v2675 = vld [vmem:[%s2658 + $0x80] sm:$0xff]
        %v2676 = vld [vmem:[%s2658 + $0x88] sm:$0xff]
        %v2677 = vld [vmem:[%s2658 + $0x90] sm:$0xff]
        %v2678 = vld [vmem:[%s2658 + $0x98] sm:$0xff]
        %v2679 = vld [vmem:[%s2658 + $0xa0] sm:$0xff]
        %v2680 = vld [vmem:[%s2658 + $0xa8] sm:$0xff]
        %v2681 = vld [vmem:[%s2658 + $0xb0] sm:$0xff]
        %v2682 = vld [vmem:[%s2658 + $0xb8] sm:$0xff]
        %v2683 = vld [vmem:[%s2658 + $0xc0] sm:$0xff]
        %v2684 = vld [vmem:[%s2658 + $0xc8] sm:$0xff]
        %v2685 = vld [vmem:[%s2658 + $0xd0] sm:$0xff]
        %v2686 = vld [vmem:[%s2658 + $0xd8] sm:$0xff]
        %v2687 = vld [vmem:[%s2658 + $0xe0] sm:$0xff]
        %v2688 = vld [vmem:[%s2658 + $0xe8] sm:$0xff]
        %v2689 = vld [vmem:[%s2658 + $0xf0] sm:$0xff]
        %v2690 = vld [vmem:[%s2658 + $0xf8] sm:$0xff]
        %2691 = vmatpush.msra.mxu0 %v2689
        %2692 = vmatpush.msra.mxu0 %v2687
        %2693 = vmatpush.msra.mxu0 %v2685
        %2694 = vmatpush.msra.mxu0 %v2683
        %2695 = vmatpush.msra.mxu0 %v2681
        %2696 = vmatpush.msra.mxu0 %v2679
        %2697 = vmatpush.msra.mxu0 %v2677
        %2698 = vmatpush.msra.mxu0 %v2675
        %2699 = vmatpush.msra.mxu0 %v2673
        %2700 = vmatpush.msra.mxu0 %v2671
        %2701 = vmatpush.msra.mxu0 %v2669
        %2702 = vmatpush.msra.mxu0 %v2667
        %2703 = vmatpush.msra.mxu0 %v2665
        %2704 = vmatpush.msra.mxu0 %v2663
        %2705 = vmatpush.msra.mxu0 %v2661
        %2706 = vmatpush.msra.mxu0 %v2659
        %2707 = vmatmul.f32.gmra.mxu0 %v2657
        %v2708 = vpop.f32.mrf.mxu0
        %v2709 = vadd.f32 0.0, %v2708
        %2710 = vdwg.mxu0
        %2711 = vmatpush.msra.mxu0 %v2690
        %2712 = vmatpush.msra.mxu0 %v2688
        %2713 = vmatpush.msra.mxu0 %v2686
        %2714 = vmatpush.msra.mxu0 %v2684
        %2715 = vmatpush.msra.mxu0 %v2682
        %2716 = vmatpush.msra.mxu0 %v2680
        %2717 = vmatpush.msra.mxu0 %v2678
        %2718 = vmatpush.msra.mxu0 %v2676
        %2719 = vmatpush.msra.mxu0 %v2674
        %2720 = vmatpush.msra.mxu0 %v2672
        %2721 = vmatpush.msra.mxu0 %v2670
        %2722 = vmatpush.msra.mxu0 %v2668
        %2723 = vmatpush.msra.mxu0 %v2666
        %2724 = vmatpush.msra.mxu0 %v2664
        %2725 = vmatpush.msra.mxu0 %v2662
        %2726 = vmatpush.msra.mxu0 %v2660
        %2727 = vmatmul.f32.gmra.mxu0 %v2657
        %v2728 = vpop.f32.mrf.mxu0
        %v2729 = vadd.f32 0.0, %v2728
        %2730 = vdwg.mxu0
        %v2731 = vadd.f32 %v2634, %v2709
        %v2732 = vadd.f32 %v2654, %v2729
        %v2733 = vld [vmem:[%s25] sm:$0x3]
        %v2735 = vperm.slane %v2733, 0
        %v2736 = vperm.slane %v2733, 1
        %v2739 = vmul.f32 %v2731, %v2735
        %v2740 = vmul.f32 %v2732, %v2736
        %v2741 = vld [vmem:[%s27] sm:$0x3]
        %v2743 = vperm.slane %v2741, 0
        %v2744 = vperm.slane %v2741, 1
        %v2747 = vadd.f32 %v2739, %v2743
        %v2748 = vadd.f32 %v2740, %v2744
        %v2749 = vmax.f32 %v2747, 0.0
        %2750 = vst [vmem:[%s1908] sm:$0xff] %v2749
        %2751 = vst [vmem:[#allocation3] sm:$0x1] 0.0
        %2752 = vst [vmem:[#allocation3 + $0x9] sm:$0x1] 0.0
        %2753 = vst [vmem:[#allocation3 + $0x1] sm:$0xff] %v2749
        %v2754 = vld [vmem:[#allocation3] sm:$0xff]
        %v2755 = vld [vmem:[#allocation13] sm:$0xff]
        %v2756 = vld [vmem:[#allocation13 + $0x8] sm:$0xff]
        %v2757 = vld [vmem:[#allocation13 + $0x10] sm:$0xff]
        %v2758 = vld [vmem:[#allocation13 + $0x18] sm:$0xff]
        %v2759 = vld [vmem:[#allocation13 + $0x20] sm:$0xff]
        %v2760 = vld [vmem:[#allocation13 + $0x28] sm:$0xff]
        %v2761 = vld [vmem:[#allocation13 + $0x30] sm:$0xff]
        %v2762 = vld [vmem:[#allocation13 + $0x38] sm:$0xff]
        %v2763 = vld [vmem:[#allocation13 + $0x40] sm:$0xff]
        %v2764 = vld [vmem:[#allocation13 + $0x48] sm:$0xff]
        %v2765 = vld [vmem:[#allocation13 + $0x50] sm:$0xff]
        %v2766 = vld [vmem:[#allocation13 + $0x58] sm:$0xff]
        %v2767 = vld [vmem:[#allocation13 + $0x60] sm:$0xff]
        %v2768 = vld [vmem:[#allocation13 + $0x68] sm:$0xff]
        %v2769 = vld [vmem:[#allocation13 + $0x70] sm:$0xff]
        %v2770 = vld [vmem:[#allocation13 + $0x78] sm:$0xff]
        %v2771 = vld [vmem:[#allocation3 + $0x1] sm:$0xff]
        %s2772 = scalar_lea.vmem [#allocation13], 128
        %v2773 = vld [vmem:[%s2772] sm:$0xff]
        %v2774 = vld [vmem:[%s2772 + $0x8] sm:$0xff]
        %v2775 = vld [vmem:[%s2772 + $0x10] sm:$0xff]
        %v2776 = vld [vmem:[%s2772 + $0x18] sm:$0xff]
        %v2777 = vld [vmem:[%s2772 + $0x20] sm:$0xff]
        %v2778 = vld [vmem:[%s2772 + $0x28] sm:$0xff]
        %v2779 = vld [vmem:[%s2772 + $0x30] sm:$0xff]
        %v2780 = vld [vmem:[%s2772 + $0x38] sm:$0xff]
        %v2781 = vld [vmem:[%s2772 + $0x40] sm:$0xff]
        %v2782 = vld [vmem:[%s2772 + $0x48] sm:$0xff]
        %v2783 = vld [vmem:[%s2772 + $0x50] sm:$0xff]
        %v2784 = vld [vmem:[%s2772 + $0x58] sm:$0xff]
        %v2785 = vld [vmem:[%s2772 + $0x60] sm:$0xff]
        %v2786 = vld [vmem:[%s2772 + $0x68] sm:$0xff]
        %v2787 = vld [vmem:[%s2772 + $0x70] sm:$0xff]
        %v2788 = vld [vmem:[%s2772 + $0x78] sm:$0xff]
        %2789 = vmatpush.msra.mxu0 %v2788
        %2790 = vmatpush.msra.mxu0 %v2787
        %2791 = vmatpush.msra.mxu0 %v2786
        %2792 = vmatpush.msra.mxu0 %v2785
        %2793 = vmatpush.msra.mxu0 %v2784
        %2794 = vmatpush.msra.mxu0 %v2783
        %2795 = vmatpush.msra.mxu0 %v2782
        %2796 = vmatpush.msra.mxu0 %v2781
        %2797 = vmatpush.msra.mxu0 %v2780
        %2798 = vmatpush.msra.mxu0 %v2779
        %2799 = vmatpush.msra.mxu0 %v2778
        %2800 = vmatpush.msra.mxu0 %v2777
        %2801 = vmatpush.msra.mxu0 %v2776
        %2802 = vmatpush.msra.mxu0 %v2775
        %2803 = vmatpush.msra.mxu0 %v2774
        %2804 = vmatpush.msra.mxu0 %v2773
        %2805 = vmatmul.f32.gmra.mxu0 %v2771
        %v2806 = vpop.f32.mrf.mxu0
        %v2807 = vadd.f32 0.0, %v2806
        %2808 = vdwg.mxu0
        %2809 = vmatpush.msra.mxu0 %v2770
        %2810 = vmatpush.msra.mxu0 %v2769
        %2811 = vmatpush.msra.mxu0 %v2768
        %2812 = vmatpush.msra.mxu0 %v2767
        %2813 = vmatpush.msra.mxu0 %v2766
        %2814 = vmatpush.msra.mxu0 %v2765
        %2815 = vmatpush.msra.mxu0 %v2764
        %2816 = vmatpush.msra.mxu0 %v2763
        %2817 = vmatpush.msra.mxu0 %v2762
        %2818 = vmatpush.msra.mxu0 %v2761
        %2819 = vmatpush.msra.mxu0 %v2760
        %2820 = vmatpush.msra.mxu0 %v2759
        %2821 = vmatpush.msra.mxu0 %v2758
        %2822 = vmatpush.msra.mxu0 %v2757
        %2823 = vmatpush.msra.mxu0 %v2756
        %2824 = vmatpush.msra.mxu0 %v2755
        %2825 = vmatmul.f32.gmra.mxu0 %v2754
        %v2826 = vpop.f32.mrf.mxu0
        %v2827 = vadd.f32 %v2807, %v2826
        %2828 = vdwg.mxu0
        %v2829 = vld [vmem:[#allocation3 + $0x2] sm:$0xff]
        %s2830 = scalar_lea.vmem [#allocation13], 256
        %v2831 = vld [vmem:[%s2830] sm:$0xff]
        %v2832 = vld [vmem:[%s2830 + $0x8] sm:$0xff]
        %v2833 = vld [vmem:[%s2830 + $0x10] sm:$0xff]
        %v2834 = vld [vmem:[%s2830 + $0x18] sm:$0xff]
        %v2835 = vld [vmem:[%s2830 + $0x20] sm:$0xff]
        %v2836 = vld [vmem:[%s2830 + $0x28] sm:$0xff]
        %v2837 = vld [vmem:[%s2830 + $0x30] sm:$0xff]
        %v2838 = vld [vmem:[%s2830 + $0x38] sm:$0xff]
        %v2839 = vld [vmem:[%s2830 + $0x40] sm:$0xff]
        %v2840 = vld [vmem:[%s2830 + $0x48] sm:$0xff]
        %v2841 = vld [vmem:[%s2830 + $0x50] sm:$0xff]
        %v2842 = vld [vmem:[%s2830 + $0x58] sm:$0xff]
        %v2843 = vld [vmem:[%s2830 + $0x60] sm:$0xff]
        %v2844 = vld [vmem:[%s2830 + $0x68] sm:$0xff]
        %v2845 = vld [vmem:[%s2830 + $0x70] sm:$0xff]
        %v2846 = vld [vmem:[%s2830 + $0x78] sm:$0xff]
        %2847 = vmatpush.msra.mxu0 %v2846
        %2848 = vmatpush.msra.mxu0 %v2845
        %2849 = vmatpush.msra.mxu0 %v2844
        %2850 = vmatpush.msra.mxu0 %v2843
        %2851 = vmatpush.msra.mxu0 %v2842
        %2852 = vmatpush.msra.mxu0 %v2841
        %2853 = vmatpush.msra.mxu0 %v2840
        %2854 = vmatpush.msra.mxu0 %v2839
        %2855 = vmatpush.msra.mxu0 %v2838
        %2856 = vmatpush.msra.mxu0 %v2837
        %2857 = vmatpush.msra.mxu0 %v2836
        %2858 = vmatpush.msra.mxu0 %v2835
        %2859 = vmatpush.msra.mxu0 %v2834
        %2860 = vmatpush.msra.mxu0 %v2833
        %2861 = vmatpush.msra.mxu0 %v2832
        %2862 = vmatpush.msra.mxu0 %v2831
        %2863 = vmatmul.f32.gmra.mxu0 %v2829
        %v2864 = vpop.f32.mrf.mxu0
        %v2865 = vadd.f32 0.0, %v2864
        %2866 = vdwg.mxu0
        %v2867 = vadd.f32 %v2827, %v2865
        %v2868 = vld [vmem:[%s31] sm:$0x1]
        %v2870 = vperm.slane %v2868, 0
        %v2872 = vmul.f32 %v2867, %v2870
        %v2873 = vld [vmem:[%s33] sm:$0x1]
        %v2875 = vperm.slane %v2873, 0
        %v2877 = vadd.f32 %v2872, %v2875
        %v2878 = vrot.slane %v2877, 4
        %v2879 = vadd.f32 %v2877, %v2878
        %v2880 = vrot.slane %v2879, 2
        %v2881 = vadd.f32 %v2879, %v2880
        %v2882 = vrot.slane %v2881, 1
        %v2883 = vadd.f32 %v2881, %v2882
        %v2884 = vld [vmem:[#allocation15] sm:$0xff]
        %v2885 = vld [vmem:[#allocation15 + $0x8] sm:$0xff]
        %v2886 = vld [vmem:[#allocation15 + $0x10] sm:$0xff]
        %v2887 = vld [vmem:[#allocation15 + $0x18] sm:$0xff]
        %v2888 = vld [vmem:[#allocation15 + $0x20] sm:$0xff]
        %v2889 = vld [vmem:[#allocation15 + $0x28] sm:$0xff]
        %v2890 = vld [vmem:[#allocation15 + $0x30] sm:$0xff]
        %v2891 = vld [vmem:[#allocation15 + $0x38] sm:$0xff]
        %v2892 = vld [vmem:[#allocation15 + $0x40] sm:$0xff]
        %v2893 = vld [vmem:[#allocation15 + $0x48] sm:$0xff]
        %v2894 = vld [vmem:[#allocation15 + $0x50] sm:$0xff]
        %v2895 = vld [vmem:[#allocation15 + $0x58] sm:$0xff]
        %v2896 = vld [vmem:[#allocation15 + $0x60] sm:$0xff]
        %v2897 = vld [vmem:[#allocation15 + $0x68] sm:$0xff]
        %v2898 = vld [vmem:[#allocation15 + $0x70] sm:$0xff]
        %v2899 = vld [vmem:[#allocation15 + $0x78] sm:$0xff]
        %2900 = vmatpush.msra.mxu0 %v2899
        %2901 = vmatpush.msra.mxu0 %v2898
        %2902 = vmatpush.msra.mxu0 %v2897
        %2903 = vmatpush.msra.mxu0 %v2896
        %2904 = vmatpush.msra.mxu0 %v2895
        %2905 = vmatpush.msra.mxu0 %v2894
        %2906 = vmatpush.msra.mxu0 %v2893
        %2907 = vmatpush.msra.mxu0 %v2892
        %2908 = vmatpush.msra.mxu0 %v2891
        %2909 = vmatpush.msra.mxu0 %v2890
        %2910 = vmatpush.msra.mxu0 %v2889
        %2911 = vmatpush.msra.mxu0 %v2888
        %2912 = vmatpush.msra.mxu0 %v2887
        %2913 = vmatpush.msra.mxu0 %v2886
        %2914 = vmatpush.msra.mxu0 %v2885
        %2915 = vmatpush.msra.mxu0 %v2884
        %2916 = vmatmul.f32.gmra.mxu0 %v2883
        %v2917 = vpop.f32.mrf.mxu0
        %v2918 = vadd.f32 0.0, %v2917
        %2919 = vdwg.mxu0
        %v2920 = vmul.f32 %v2918, 0.015625
        %v2921 = vperm.slane %v2920, 0
        %v2922 = vsub.f32 %v2877, %v2921
        %v2923 = vmul.f32 %v2922, %v2922
        %v2924 = vrot.slane %v2923, 4
        %v2925 = vadd.f32 %v2923, %v2924
        %v2926 = vrot.slane %v2925, 2
        %v2927 = vadd.f32 %v2925, %v2926
        %v2928 = vrot.slane %v2927, 1
        %v2929 = vadd.f32 %v2927, %v2928
        %2930 = vmatpush.msra.mxu0 %v2899
        %2931 = vmatpush.msra.mxu0 %v2898
        %2932 = vmatpush.msra.mxu0 %v2897
        %2933 = vmatpush.msra.mxu0 %v2896
        %2934 = vmatpush.msra.mxu0 %v2895
        %2935 = vmatpush.msra.mxu0 %v2894
        %2936 = vmatpush.msra.mxu0 %v2893
        %2937 = vmatpush.msra.mxu0 %v2892
        %2938 = vmatpush.msra.mxu0 %v2891
        %2939 = vmatpush.msra.mxu0 %v2890
        %2940 = vmatpush.msra.mxu0 %v2889
        %2941 = vmatpush.msra.mxu0 %v2888
        %2942 = vmatpush.msra.mxu0 %v2887
        %2943 = vmatpush.msra.mxu0 %v2886
        %2944 = vmatpush.msra.mxu0 %v2885
        %2945 = vmatpush.msra.mxu0 %v2884
        %2946 = vmatmul.f32.gmra.mxu0 %v2929
        %v2947 = vpop.f32.mrf.mxu0
        %v2948 = vadd.f32 0.0, %v2947
        %2949 = vdwg.mxu0
        %v2950 = vmul.f32 %v2948, 0.015873017
        %v2951 = vadd.f32 %v2950, 0.0001
        %v2952 = vmul.f32 %v2951, 4.0
        %v2953 = vperm.slane %v2952, 0
        %v2954 = vrcp.pop %v2953
        %v2955 = vmul.f32 %v2953, %v2954
        %v2956 = vsub.f32 1.0, %v2955
        %v2957 = vmul.f32 %v2954, %v2956
        %v2958 = vadd.f32 %v2954, %v2957
        %vm2959 = vweird.f32 %v2953
        %vm2960 = vweird.f32 %v2954
        %vm2961 = vmor %vm2959, %vm2960
        %v2962 = vsel %vm2961, %v2954, %v2958
        %v2963 = vand.u32 2147483647, %v2953
        %vm2964 = vcmp.eq.f32.partialorder %v2963, 8.507059e+37
        %v2965 = vand.u32 %v2953, 2147483648
        %v2966 = vor.u32 1.1754944e-38, %v2965
        %v2967 = vsel %vm2964, %v2966, %v2962
        %v2968 = vmul.f32 %v2923, %v2967
        %v2969 = vadd.f32 %v2968, 0.5
        %v2970 = vxor.u32 %v2969, 2147483648
        %v2971 = vmul.f32 %v2970, 1.442695
        %v2972 = vpow.pop %v2971
        %v2973 = vadd.f32 %v2972, 1.0
        %v2974 = vrcp.pop %v2973
        %v2975 = vmul.f32 %v2973, %v2974
        %v2976 = vsub.f32 1.0, %v2975
        %v2977 = vmul.f32 %v2974, %v2976
        %v2978 = vadd.f32 %v2974, %v2977
        %vm2979 = vweird.f32 %v2973
        %vm2980 = vweird.f32 %v2974
        %vm2981 = vmor %vm2979, %vm2980
        %v2982 = vsel %vm2981, %v2974, %v2978
        %v2983 = vand.u32 2147483647, %v2973
        %vm2984 = vcmp.eq.f32.partialorder %v2983, 8.507059e+37
        %v2985 = vand.u32 %v2973, 2147483648
        %v2986 = vor.u32 1.1754944e-38, %v2985
        %v2987 = vsel %vm2984, %v2986, %v2982
        %v2988 = vmul.f32 1.0, %v2987
        %v2989 = vmul.f32 %v2877, %v2988
        %2990 = vst [vmem:[%s1912] sm:$0xff] %v2989
        %v2991 = vadd.f32 %v2989, %v2748
        %v2992 = vmax.f32 %v2991, 0.0
        %2993 = vst [vmem:[%s1916] sm:$0xff] %v2992
        %2994 = vst [vmem:[#allocation2] sm:$0x1] 0.0
        %2995 = vst [vmem:[#allocation2 + $0x9] sm:$0x1] 0.0
        %2996 = vst [vmem:[#allocation2 + $0x1] sm:$0xff] %v2992
        %v2997 = vld [vmem:[#allocation2] ss:$2 sm:$0xf]
        %v2998 = vld [vmem:[#allocation16] sm:$0xff]
        %v2999 = vld [vmem:[#allocation16 + $0x8] sm:$0xff]
        %v3000 = vld [vmem:[#allocation16 + $0x10] sm:$0xff]
        %v3001 = vld [vmem:[#allocation16 + $0x18] sm:$0xff]
        %v3002 = vld [vmem:[#allocation16 + $0x20] sm:$0xff]
        %v3003 = vld [vmem:[#allocation16 + $0x28] sm:$0xff]
        %v3004 = vld [vmem:[#allocation16 + $0x30] sm:$0xff]
        %v3005 = vld [vmem:[#allocation16 + $0x38] sm:$0xff]
        %v3006 = vld [vmem:[#allocation16 + $0x40] sm:$0xff]
        %v3007 = vld [vmem:[#allocation16 + $0x48] sm:$0xff]
        %v3008 = vld [vmem:[#allocation16 + $0x50] sm:$0xff]
        %v3009 = vld [vmem:[#allocation16 + $0x58] sm:$0xff]
        %v3010 = vld [vmem:[#allocation16 + $0x60] sm:$0xff]
        %v3011 = vld [vmem:[#allocation16 + $0x68] sm:$0xff]
        %v3012 = vld [vmem:[#allocation16 + $0x70] sm:$0xff]
        %v3013 = vld [vmem:[#allocation16 + $0x78] sm:$0xff]
        %v3014 = vld [vmem:[#allocation16 + $0x80] sm:$0xff]
        %v3015 = vld [vmem:[#allocation16 + $0x88] sm:$0xff]
        %v3016 = vld [vmem:[#allocation16 + $0x90] sm:$0xff]
        %v3017 = vld [vmem:[#allocation16 + $0x98] sm:$0xff]
        %v3018 = vld [vmem:[#allocation16 + $0xa0] sm:$0xff]
        %v3019 = vld [vmem:[#allocation16 + $0xa8] sm:$0xff]
        %v3020 = vld [vmem:[#allocation16 + $0xb0] sm:$0xff]
        %v3021 = vld [vmem:[#allocation16 + $0xb8] sm:$0xff]
        %v3022 = vld [vmem:[#allocation16 + $0xc0] sm:$0xff]
        %v3023 = vld [vmem:[#allocation16 + $0xc8] sm:$0xff]
        %v3024 = vld [vmem:[#allocation16 + $0xd0] sm:$0xff]
        %v3025 = vld [vmem:[#allocation16 + $0xd8] sm:$0xff]
        %v3026 = vld [vmem:[#allocation16 + $0xe0] sm:$0xff]
        %v3027 = vld [vmem:[#allocation16 + $0xe8] sm:$0xff]
        %v3028 = vld [vmem:[#allocation16 + $0xf0] sm:$0xff]
        %v3029 = vld [vmem:[#allocation16 + $0xf8] sm:$0xff]
        %v3030 = vld [vmem:[%s2541] ss:$2 sm:$0xf]
        %s3031 = scalar_lea.vmem [#allocation16], 256
        %v3032 = vld [vmem:[%s3031] sm:$0xff]
        %v3033 = vld [vmem:[%s3031 + $0x8] sm:$0xff]
        %v3034 = vld [vmem:[%s3031 + $0x10] sm:$0xff]
        %v3035 = vld [vmem:[%s3031 + $0x18] sm:$0xff]
        %v3036 = vld [vmem:[%s3031 + $0x20] sm:$0xff]
        %v3037 = vld [vmem:[%s3031 + $0x28] sm:$0xff]
        %v3038 = vld [vmem:[%s3031 + $0x30] sm:$0xff]
        %v3039 = vld [vmem:[%s3031 + $0x38] sm:$0xff]
        %v3040 = vld [vmem:[%s3031 + $0x40] sm:$0xff]
        %v3041 = vld [vmem:[%s3031 + $0x48] sm:$0xff]
        %v3042 = vld [vmem:[%s3031 + $0x50] sm:$0xff]
        %v3043 = vld [vmem:[%s3031 + $0x58] sm:$0xff]
        %v3044 = vld [vmem:[%s3031 + $0x60] sm:$0xff]
        %v3045 = vld [vmem:[%s3031 + $0x68] sm:$0xff]
        %v3046 = vld [vmem:[%s3031 + $0x70] sm:$0xff]
        %v3047 = vld [vmem:[%s3031 + $0x78] sm:$0xff]
        %v3048 = vld [vmem:[%s3031 + $0x80] sm:$0xff]
        %v3049 = vld [vmem:[%s3031 + $0x88] sm:$0xff]
        %v3050 = vld [vmem:[%s3031 + $0x90] sm:$0xff]
        %v3051 = vld [vmem:[%s3031 + $0x98] sm:$0xff]
        %v3052 = vld [vmem:[%s3031 + $0xa0] sm:$0xff]
        %v3053 = vld [vmem:[%s3031 + $0xa8] sm:$0xff]
        %v3054 = vld [vmem:[%s3031 + $0xb0] sm:$0xff]
        %v3055 = vld [vmem:[%s3031 + $0xb8] sm:$0xff]
        %v3056 = vld [vmem:[%s3031 + $0xc0] sm:$0xff]
        %v3057 = vld [vmem:[%s3031 + $0xc8] sm:$0xff]
        %v3058 = vld [vmem:[%s3031 + $0xd0] sm:$0xff]
        %v3059 = vld [vmem:[%s3031 + $0xd8] sm:$0xff]
        %v3060 = vld [vmem:[%s3031 + $0xe0] sm:$0xff]
        %v3061 = vld [vmem:[%s3031 + $0xe8] sm:$0xff]
        %v3062 = vld [vmem:[%s3031 + $0xf0] sm:$0xff]
        %v3063 = vld [vmem:[%s3031 + $0xf8] sm:$0xff]
        %3064 = vmatpush.msra.mxu0 %v3062
        %3065 = vmatpush.msra.mxu0 %v3060
        %3066 = vmatpush.msra.mxu0 %v3058
        %3067 = vmatpush.msra.mxu0 %v3056
        %3068 = vmatpush.msra.mxu0 %v3054
        %3069 = vmatpush.msra.mxu0 %v3052
        %3070 = vmatpush.msra.mxu0 %v3050
        %3071 = vmatpush.msra.mxu0 %v3048
        %3072 = vmatpush.msra.mxu0 %v3046
        %3073 = vmatpush.msra.mxu0 %v3044
        %3074 = vmatpush.msra.mxu0 %v3042
        %3075 = vmatpush.msra.mxu0 %v3040
        %3076 = vmatpush.msra.mxu0 %v3038
        %3077 = vmatpush.msra.mxu0 %v3036
        %3078 = vmatpush.msra.mxu0 %v3034
        %3079 = vmatpush.msra.mxu0 %v3032
        %3080 = vmatmul.f32.gmra.mxu0 %v3030
        %v3081 = vpop.f32.mrf.mxu0
        %v3082 = vadd.f32 0.0, %v3081
        %3083 = vdwg.mxu0
        %3084 = vmatpush.msra.mxu0 %v3063
        %3085 = vmatpush.msra.mxu0 %v3061
        %3086 = vmatpush.msra.mxu0 %v3059
        %3087 = vmatpush.msra.mxu0 %v3057
        %3088 = vmatpush.msra.mxu0 %v3055
        %3089 = vmatpush.msra.mxu0 %v3053
        %3090 = vmatpush.msra.mxu0 %v3051
        %3091 = vmatpush.msra.mxu0 %v3049
        %3092 = vmatpush.msra.mxu0 %v3047
        %3093 = vmatpush.msra.mxu0 %v3045
        %3094 = vmatpush.msra.mxu0 %v3043
        %3095 = vmatpush.msra.mxu0 %v3041
        %3096 = vmatpush.msra.mxu0 %v3039
        %3097 = vmatpush.msra.mxu0 %v3037
        %3098 = vmatpush.msra.mxu0 %v3035
        %3099 = vmatpush.msra.mxu0 %v3033
        %3100 = vmatmul.f32.gmra.mxu0 %v3030
        %v3101 = vpop.f32.mrf.mxu0
        %v3102 = vadd.f32 0.0, %v3101
        %3103 = vdwg.mxu0
        %3104 = vmatpush.msra.mxu0 %v3028
        %3105 = vmatpush.msra.mxu0 %v3026
        %3106 = vmatpush.msra.mxu0 %v3024
        %3107 = vmatpush.msra.mxu0 %v3022
        %3108 = vmatpush.msra.mxu0 %v3020
        %3109 = vmatpush.msra.mxu0 %v3018
        %3110 = vmatpush.msra.mxu0 %v3016
        %3111 = vmatpush.msra.mxu0 %v3014
        %3112 = vmatpush.msra.mxu0 %v3012
        %3113 = vmatpush.msra.mxu0 %v3010
        %3114 = vmatpush.msra.mxu0 %v3008
        %3115 = vmatpush.msra.mxu0 %v3006
        %3116 = vmatpush.msra.mxu0 %v3004
        %3117 = vmatpush.msra.mxu0 %v3002
        %3118 = vmatpush.msra.mxu0 %v3000
        %3119 = vmatpush.msra.mxu0 %v2998
        %3120 = vmatmul.f32.gmra.mxu0 %v2997
        %v3121 = vpop.f32.mrf.mxu0
        %v3122 = vadd.f32 %v3082, %v3121
        %3123 = vdwg.mxu0
        %3124 = vmatpush.msra.mxu0 %v3029
        %3125 = vmatpush.msra.mxu0 %v3027
        %3126 = vmatpush.msra.mxu0 %v3025
        %3127 = vmatpush.msra.mxu0 %v3023
        %3128 = vmatpush.msra.mxu0 %v3021
        %3129 = vmatpush.msra.mxu0 %v3019
        %3130 = vmatpush.msra.mxu0 %v3017
        %3131 = vmatpush.msra.mxu0 %v3015
        %3132 = vmatpush.msra.mxu0 %v3013
        %3133 = vmatpush.msra.mxu0 %v3011
        %3134 = vmatpush.msra.mxu0 %v3009
        %3135 = vmatpush.msra.mxu0 %v3007
        %3136 = vmatpush.msra.mxu0 %v3005
        %3137 = vmatpush.msra.mxu0 %v3003
        %3138 = vmatpush.msra.mxu0 %v3001
        %3139 = vmatpush.msra.mxu0 %v2999
        %3140 = vmatmul.f32.gmra.mxu0 %v2997
        %v3141 = vpop.f32.mrf.mxu0
        %v3142 = vadd.f32 %v3102, %v3141
        %3143 = vdwg.mxu0
        %s3144 = scalar_lea.vmem [#allocation2], 2
        %v3145 = vld [vmem:[%s3144] ss:$2 sm:$0xf]
        %s3146 = scalar_lea.vmem [#allocation16], 512
        %v3147 = vld [vmem:[%s3146] sm:$0xff]
        %v3148 = vld [vmem:[%s3146 + $0x8] sm:$0xff]
        %v3149 = vld [vmem:[%s3146 + $0x10] sm:$0xff]
        %v3150 = vld [vmem:[%s3146 + $0x18] sm:$0xff]
        %v3151 = vld [vmem:[%s3146 + $0x20] sm:$0xff]
        %v3152 = vld [vmem:[%s3146 + $0x28] sm:$0xff]
        %v3153 = vld [vmem:[%s3146 + $0x30] sm:$0xff]
        %v3154 = vld [vmem:[%s3146 + $0x38] sm:$0xff]
        %v3155 = vld [vmem:[%s3146 + $0x40] sm:$0xff]
        %v3156 = vld [vmem:[%s3146 + $0x48] sm:$0xff]
        %v3157 = vld [vmem:[%s3146 + $0x50] sm:$0xff]
        %v3158 = vld [vmem:[%s3146 + $0x58] sm:$0xff]
        %v3159 = vld [vmem:[%s3146 + $0x60] sm:$0xff]
        %v3160 = vld [vmem:[%s3146 + $0x68] sm:$0xff]
        %v3161 = vld [vmem:[%s3146 + $0x70] sm:$0xff]
        %v3162 = vld [vmem:[%s3146 + $0x78] sm:$0xff]
        %v3163 = vld [vmem:[%s3146 + $0x80] sm:$0xff]
        %v3164 = vld [vmem:[%s3146 + $0x88] sm:$0xff]
        %v3165 = vld [vmem:[%s3146 + $0x90] sm:$0xff]
        %v3166 = vld [vmem:[%s3146 + $0x98] sm:$0xff]
        %v3167 = vld [vmem:[%s3146 + $0xa0] sm:$0xff]
        %v3168 = vld [vmem:[%s3146 + $0xa8] sm:$0xff]
        %v3169 = vld [vmem:[%s3146 + $0xb0] sm:$0xff]
        %v3170 = vld [vmem:[%s3146 + $0xb8] sm:$0xff]
        %v3171 = vld [vmem:[%s3146 + $0xc0] sm:$0xff]
        %v3172 = vld [vmem:[%s3146 + $0xc8] sm:$0xff]
        %v3173 = vld [vmem:[%s3146 + $0xd0] sm:$0xff]
        %v3174 = vld [vmem:[%s3146 + $0xd8] sm:$0xff]
        %v3175 = vld [vmem:[%s3146 + $0xe0] sm:$0xff]
        %v3176 = vld [vmem:[%s3146 + $0xe8] sm:$0xff]
        %v3177 = vld [vmem:[%s3146 + $0xf0] sm:$0xff]
        %v3178 = vld [vmem:[%s3146 + $0xf8] sm:$0xff]
        %3179 = vmatpush.msra.mxu0 %v3177
        %3180 = vmatpush.msra.mxu0 %v3175
        %3181 = vmatpush.msra.mxu0 %v3173
        %3182 = vmatpush.msra.mxu0 %v3171
        %3183 = vmatpush.msra.mxu0 %v3169
        %3184 = vmatpush.msra.mxu0 %v3167
        %3185 = vmatpush.msra.mxu0 %v3165
        %3186 = vmatpush.msra.mxu0 %v3163
        %3187 = vmatpush.msra.mxu0 %v3161
        %3188 = vmatpush.msra.mxu0 %v3159
        %3189 = vmatpush.msra.mxu0 %v3157
        %3190 = vmatpush.msra.mxu0 %v3155
        %3191 = vmatpush.msra.mxu0 %v3153
        %3192 = vmatpush.msra.mxu0 %v3151
        %3193 = vmatpush.msra.mxu0 %v3149
        %3194 = vmatpush.msra.mxu0 %v3147
        %3195 = vmatmul.f32.gmra.mxu0 %v3145
        %v3196 = vpop.f32.mrf.mxu0
        %v3197 = vadd.f32 0.0, %v3196
        %3198 = vdwg.mxu0
        %3199 = vmatpush.msra.mxu0 %v3178
        %3200 = vmatpush.msra.mxu0 %v3176
        %3201 = vmatpush.msra.mxu0 %v3174
        %3202 = vmatpush.msra.mxu0 %v3172
        %3203 = vmatpush.msra.mxu0 %v3170
        %3204 = vmatpush.msra.mxu0 %v3168
        %3205 = vmatpush.msra.mxu0 %v3166
        %3206 = vmatpush.msra.mxu0 %v3164
        %3207 = vmatpush.msra.mxu0 %v3162
        %3208 = vmatpush.msra.mxu0 %v3160
        %3209 = vmatpush.msra.mxu0 %v3158
        %3210 = vmatpush.msra.mxu0 %v3156
        %3211 = vmatpush.msra.mxu0 %v3154
        %3212 = vmatpush.msra.mxu0 %v3152
        %3213 = vmatpush.msra.mxu0 %v3150
        %3214 = vmatpush.msra.mxu0 %v3148
        %3215 = vmatmul.f32.gmra.mxu0 %v3145
        %v3216 = vpop.f32.mrf.mxu0
        %v3217 = vadd.f32 0.0, %v3216
        %3218 = vdwg.mxu0
        %v3219 = vadd.f32 %v3122, %v3197
        %v3220 = vadd.f32 %v3142, %v3217
        %v3221 = vld [vmem:[%s39] sm:$0x3]
        %v3223 = vperm.slane %v3221, 0
        %v3224 = vperm.slane %v3221, 1
        %v3227 = vmul.f32 %v3219, %v3223
        %v3228 = vmul.f32 %v3220, %v3224
        %v3229 = vld [vmem:[%s41] sm:$0x3]
        %v3231 = vperm.slane %v3229, 0
        %v3232 = vperm.slane %v3229, 1
        %v3235 = vadd.f32 %v3227, %v3231
        %v3236 = vadd.f32 %v3228, %v3232
        %v3237 = vmax.f32 %v3235, 0.0
        %3238 = vst [vmem:[%s1920] sm:$0xf] %v3237
        %3239 = vst [vmem:[#allocation3] sm:$0x1] 0.0
        %3240 = vst [vmem:[#allocation3 + $0x5] sm:$0x1] 0.0
        %3241 = vst [vmem:[#allocation3 + $0x1] sm:$0xf] %v3237
        %v3242 = vld [vmem:[#allocation3] sm:$0xf]
        %v3243 = vld [vmem:[#allocation18] sm:$0xff]
        %v3244 = vld [vmem:[#allocation18 + $0x8] sm:$0xff]
        %v3245 = vld [vmem:[#allocation18 + $0x10] sm:$0xff]
        %v3246 = vld [vmem:[#allocation18 + $0x18] sm:$0xff]
        %v3247 = vld [vmem:[#allocation18 + $0x20] sm:$0xff]
        %v3248 = vld [vmem:[#allocation18 + $0x28] sm:$0xff]
        %v3249 = vld [vmem:[#allocation18 + $0x30] sm:$0xff]
        %v3250 = vld [vmem:[#allocation18 + $0x38] sm:$0xff]
        %v3251 = vld [vmem:[#allocation18 + $0x40] sm:$0xff]
        %v3252 = vld [vmem:[#allocation18 + $0x48] sm:$0xff]
        %v3253 = vld [vmem:[#allocation18 + $0x50] sm:$0xff]
        %v3254 = vld [vmem:[#allocation18 + $0x58] sm:$0xff]
        %v3255 = vld [vmem:[#allocation18 + $0x60] sm:$0xff]
        %v3256 = vld [vmem:[#allocation18 + $0x68] sm:$0xff]
        %v3257 = vld [vmem:[#allocation18 + $0x70] sm:$0xff]
        %v3258 = vld [vmem:[#allocation18 + $0x78] sm:$0xff]
        %v3259 = vld [vmem:[#allocation3 + $0x1] sm:$0xf]
        %s3260 = scalar_lea.vmem [#allocation18], 128
        %v3261 = vld [vmem:[%s3260] sm:$0xff]
        %v3262 = vld [vmem:[%s3260 + $0x8] sm:$0xff]
        %v3263 = vld [vmem:[%s3260 + $0x10] sm:$0xff]
        %v3264 = vld [vmem:[%s3260 + $0x18] sm:$0xff]
        %v3265 = vld [vmem:[%s3260 + $0x20] sm:$0xff]
        %v3266 = vld [vmem:[%s3260 + $0x28] sm:$0xff]
        %v3267 = vld [vmem:[%s3260 + $0x30] sm:$0xff]
        %v3268 = vld [vmem:[%s3260 + $0x38] sm:$0xff]
        %v3269 = vld [vmem:[%s3260 + $0x40] sm:$0xff]
        %v3270 = vld [vmem:[%s3260 + $0x48] sm:$0xff]
        %v3271 = vld [vmem:[%s3260 + $0x50] sm:$0xff]
        %v3272 = vld [vmem:[%s3260 + $0x58] sm:$0xff]
        %v3273 = vld [vmem:[%s3260 + $0x60] sm:$0xff]
        %v3274 = vld [vmem:[%s3260 + $0x68] sm:$0xff]
        %v3275 = vld [vmem:[%s3260 + $0x70] sm:$0xff]
        %v3276 = vld [vmem:[%s3260 + $0x78] sm:$0xff]
        %3277 = vmatpush.msra.mxu0 %v3276
        %3278 = vmatpush.msra.mxu0 %v3275
        %3279 = vmatpush.msra.mxu0 %v3274
        %3280 = vmatpush.msra.mxu0 %v3273
        %3281 = vmatpush.msra.mxu0 %v3272
        %3282 = vmatpush.msra.mxu0 %v3271
        %3283 = vmatpush.msra.mxu0 %v3270
        %3284 = vmatpush.msra.mxu0 %v3269
        %3285 = vmatpush.msra.mxu0 %v3268
        %3286 = vmatpush.msra.mxu0 %v3267
        %3287 = vmatpush.msra.mxu0 %v3266
        %3288 = vmatpush.msra.mxu0 %v3265
        %3289 = vmatpush.msra.mxu0 %v3264
        %3290 = vmatpush.msra.mxu0 %v3263
        %3291 = vmatpush.msra.mxu0 %v3262
        %3292 = vmatpush.msra.mxu0 %v3261
        %3293 = vmatmul.f32.gmra.mxu0 %v3259
        %v3294 = vpop.f32.mrf.mxu0
        %v3295 = vadd.f32 0.0, %v3294
        %3296 = vdwg.mxu0
        %3297 = vmatpush.msra.mxu0 %v3258
        %3298 = vmatpush.msra.mxu0 %v3257
        %3299 = vmatpush.msra.mxu0 %v3256
        %3300 = vmatpush.msra.mxu0 %v3255
        %3301 = vmatpush.msra.mxu0 %v3254
        %3302 = vmatpush.msra.mxu0 %v3253
        %3303 = vmatpush.msra.mxu0 %v3252
        %3304 = vmatpush.msra.mxu0 %v3251
        %3305 = vmatpush.msra.mxu0 %v3250
        %3306 = vmatpush.msra.mxu0 %v3249
        %3307 = vmatpush.msra.mxu0 %v3248
        %3308 = vmatpush.msra.mxu0 %v3247
        %3309 = vmatpush.msra.mxu0 %v3246
        %3310 = vmatpush.msra.mxu0 %v3245
        %3311 = vmatpush.msra.mxu0 %v3244
        %3312 = vmatpush.msra.mxu0 %v3243
        %3313 = vmatmul.f32.gmra.mxu0 %v3242
        %v3314 = vpop.f32.mrf.mxu0
        %v3315 = vadd.f32 %v3295, %v3314
        %3316 = vdwg.mxu0
        %v3317 = vld [vmem:[#allocation3 + $0x2] sm:$0xf]
        %s3318 = scalar_lea.vmem [#allocation18], 256
        %v3319 = vld [vmem:[%s3318] sm:$0xff]
        %v3320 = vld [vmem:[%s3318 + $0x8] sm:$0xff]
        %v3321 = vld [vmem:[%s3318 + $0x10] sm:$0xff]
        %v3322 = vld [vmem:[%s3318 + $0x18] sm:$0xff]
        %v3323 = vld [vmem:[%s3318 + $0x20] sm:$0xff]
        %v3324 = vld [vmem:[%s3318 + $0x28] sm:$0xff]
        %v3325 = vld [vmem:[%s3318 + $0x30] sm:$0xff]
        %v3326 = vld [vmem:[%s3318 + $0x38] sm:$0xff]
        %v3327 = vld [vmem:[%s3318 + $0x40] sm:$0xff]
        %v3328 = vld [vmem:[%s3318 + $0x48] sm:$0xff]
        %v3329 = vld [vmem:[%s3318 + $0x50] sm:$0xff]
        %v3330 = vld [vmem:[%s3318 + $0x58] sm:$0xff]
        %v3331 = vld [vmem:[%s3318 + $0x60] sm:$0xff]
        %v3332 = vld [vmem:[%s3318 + $0x68] sm:$0xff]
        %v3333 = vld [vmem:[%s3318 + $0x70] sm:$0xff]
        %v3334 = vld [vmem:[%s3318 + $0x78] sm:$0xff]
        %3335 = vmatpush.msra.mxu0 %v3334
        %3336 = vmatpush.msra.mxu0 %v3333
        %3337 = vmatpush.msra.mxu0 %v3332
        %3338 = vmatpush.msra.mxu0 %v3331
        %3339 = vmatpush.msra.mxu0 %v3330
        %3340 = vmatpush.msra.mxu0 %v3329
        %3341 = vmatpush.msra.mxu0 %v3328
        %3342 = vmatpush.msra.mxu0 %v3327
        %3343 = vmatpush.msra.mxu0 %v3326
        %3344 = vmatpush.msra.mxu0 %v3325
        %3345 = vmatpush.msra.mxu0 %v3324
        %3346 = vmatpush.msra.mxu0 %v3323
        %3347 = vmatpush.msra.mxu0 %v3322
        %3348 = vmatpush.msra.mxu0 %v3321
        %3349 = vmatpush.msra.mxu0 %v3320
        %3350 = vmatpush.msra.mxu0 %v3319
        %3351 = vmatmul.f32.gmra.mxu0 %v3317
        %v3352 = vpop.f32.mrf.mxu0
        %v3353 = vadd.f32 0.0, %v3352
        %3354 = vdwg.mxu0
        %v3355 = vadd.f32 %v3315, %v3353
        %v3356 = vld [vmem:[#allocation19] sm:$0x1]
        %v3358 = vperm.slane %v3356, 0
        %v3360 = vmul.f32 %v3355, %v3358
        %v3361 = vld [vmem:[#allocation21] sm:$0x1]
        %v3363 = vperm.slane %v3361, 0
        %v3365 = vadd.f32 %v3360, %v3363
        %vm3366 = vcmask 1043456
        %v3367 = vsel %vm3366, %v3365, 0.0
        %v3368 = vrot.slane %v3367, 4
        %v3369 = vadd.f32 %v3367, %v3368
        %v3370 = vrot.slane %v3369, 2
        %v3371 = vadd.f32 %v3369, %v3370
        %v3372 = vrot.slane %v3371, 1
        %v3373 = vadd.f32 %v3371, %v3372
        %v3374 = vld [vmem:[#allocation22] sm:$0xff]
        %v3375 = vld [vmem:[#allocation22 + $0x8] sm:$0xff]
        %v3376 = vld [vmem:[#allocation22 + $0x10] sm:$0xff]
        %v3377 = vld [vmem:[#allocation22 + $0x18] sm:$0xff]
        %v3378 = vld [vmem:[#allocation22 + $0x20] sm:$0xff]
        %v3379 = vld [vmem:[#allocation22 + $0x28] sm:$0xff]
        %v3380 = vld [vmem:[#allocation22 + $0x30] sm:$0xff]
        %v3381 = vld [vmem:[#allocation22 + $0x38] sm:$0xff]
        %v3382 = vld [vmem:[#allocation22 + $0x40] sm:$0xff]
        %v3383 = vld [vmem:[#allocation22 + $0x48] sm:$0xff]
        %v3384 = vld [vmem:[#allocation22 + $0x50] sm:$0xff]
        %v3385 = vld [vmem:[#allocation22 + $0x58] sm:$0xff]
        %v3386 = vld [vmem:[#allocation22 + $0x60] sm:$0xff]
        %v3387 = vld [vmem:[#allocation22 + $0x68] sm:$0xff]
        %v3388 = vld [vmem:[#allocation22 + $0x70] sm:$0xff]
        %v3389 = vld [vmem:[#allocation22 + $0x78] sm:$0xff]
        %3390 = vmatpush.msra.mxu0 %v3389
        %3391 = vmatpush.msra.mxu0 %v3388
        %3392 = vmatpush.msra.mxu0 %v3387
        %3393 = vmatpush.msra.mxu0 %v3386
        %3394 = vmatpush.msra.mxu0 %v3385
        %3395 = vmatpush.msra.mxu0 %v3384
        %3396 = vmatpush.msra.mxu0 %v3383
        %3397 = vmatpush.msra.mxu0 %v3382
        %3398 = vmatpush.msra.mxu0 %v3381
        %3399 = vmatpush.msra.mxu0 %v3380
        %3400 = vmatpush.msra.mxu0 %v3379
        %3401 = vmatpush.msra.mxu0 %v3378
        %3402 = vmatpush.msra.mxu0 %v3377
        %3403 = vmatpush.msra.mxu0 %v3376
        %3404 = vmatpush.msra.mxu0 %v3375
        %3405 = vmatpush.msra.mxu0 %v3374
        %3406 = vmatmul.f32.gmra.mxu0 %v3373
        %v3407 = vpop.f32.mrf.mxu0
        %v3408 = vadd.f32 0.0, %v3407
        %3409 = vdwg.mxu0
        %v3410 = vmul.f32 %v3408, 0.0625
        %v3411 = vperm.slane %v3410, 0
        %v3412 = vsub.f32 %v3365, %v3411
        %v3413 = vmul.f32 %v3412, %v3412
        %v3414 = vsel %vm3366, %v3413, 0.0
        %v3415 = vrot.slane %v3414, 4
        %v3416 = vadd.f32 %v3414, %v3415
        %v3417 = vrot.slane %v3416, 2
        %v3418 = vadd.f32 %v3416, %v3417
        %v3419 = vrot.slane %v3418, 1
        %v3420 = vadd.f32 %v3418, %v3419
        %3421 = vmatpush.msra.mxu0 %v3389
        %3422 = vmatpush.msra.mxu0 %v3388
        %3423 = vmatpush.msra.mxu0 %v3387
        %3424 = vmatpush.msra.mxu0 %v3386
        %3425 = vmatpush.msra.mxu0 %v3385
        %3426 = vmatpush.msra.mxu0 %v3384
        %3427 = vmatpush.msra.mxu0 %v3383
        %3428 = vmatpush.msra.mxu0 %v3382
        %3429 = vmatpush.msra.mxu0 %v3381
        %3430 = vmatpush.msra.mxu0 %v3380
        %3431 = vmatpush.msra.mxu0 %v3379
        %3432 = vmatpush.msra.mxu0 %v3378
        %3433 = vmatpush.msra.mxu0 %v3377
        %3434 = vmatpush.msra.mxu0 %v3376
        %3435 = vmatpush.msra.mxu0 %v3375
        %3436 = vmatpush.msra.mxu0 %v3374
        %3437 = vmatmul.f32.gmra.mxu0 %v3420
        %v3438 = vpop.f32.mrf.mxu0
        %v3439 = vadd.f32 0.0, %v3438
        %3440 = vdwg.mxu0
        %v3441 = vmul.f32 %v3439, 0.06666667
        %v3442 = vadd.f32 %v3441, 0.0001
        %v3443 = vmul.f32 %v3442, 4.0
        %v3444 = vperm.slane %v3443, 0
        %v3445 = vrcp.pop %v3444
        %v3446 = vmul.f32 %v3444, %v3445
        %v3447 = vsub.f32 1.0, %v3446
        %v3448 = vmul.f32 %v3445, %v3447
        %v3449 = vadd.f32 %v3445, %v3448
        %vm3450 = vweird.f32 %v3444
        %vm3451 = vweird.f32 %v3445
        %vm3452 = vmor %vm3450, %vm3451
        %v3453 = vsel %vm3452, %v3445, %v3449
        %v3454 = vand.u32 2147483647, %v3444
        %vm3455 = vcmp.eq.f32.partialorder %v3454, 8.507059e+37
        %v3456 = vand.u32 %v3444, 2147483648
        %v3457 = vor.u32 1.1754944e-38, %v3456
        %v3458 = vsel %vm3455, %v3457, %v3453
        %v3459 = vmul.f32 %v3413, %v3458
        %v3460 = vadd.f32 %v3459, 0.5
        %v3461 = vxor.u32 %v3460, 2147483648
        %v3462 = vmul.f32 %v3461, 1.442695
        %v3463 = vpow.pop %v3462
        %v3464 = vadd.f32 %v3463, 1.0
        %v3465 = vrcp.pop %v3464
        %v3466 = vmul.f32 %v3464, %v3465
        %v3467 = vsub.f32 1.0, %v3466
        %v3468 = vmul.f32 %v3465, %v3467
        %v3469 = vadd.f32 %v3465, %v3468
        %vm3470 = vweird.f32 %v3464
        %vm3471 = vweird.f32 %v3465
        %vm3472 = vmor %vm3470, %vm3471
        %v3473 = vsel %vm3472, %v3465, %v3469
        %v3474 = vand.u32 2147483647, %v3464
        %vm3475 = vcmp.eq.f32.partialorder %v3474, 8.507059e+37
        %v3476 = vand.u32 %v3464, 2147483648
        %v3477 = vor.u32 1.1754944e-38, %v3476
        %v3478 = vsel %vm3475, %v3477, %v3473
        %v3479 = vmul.f32 1.0, %v3478
        %v3480 = vmul.f32 %v3365, %v3479
        %3481 = vst [vmem:[%s1924] sm:$0xf] %v3480
        %v3482 = vadd.f32 %v3480, %v3236
        %v3483 = vmax.f32 %v3482, 0.0
        %3484 = vst [vmem:[%s1928] sm:$0xf] %v3483
        %3485 = vst [vmem:[#allocation2] sm:$0x1] 0.0
        %3486 = vst [vmem:[#allocation2 + $0x5] sm:$0x1] 0.0
        %3487 = vst [vmem:[#allocation2 + $0x1] sm:$0xf] %v3483
        %v3488 = vld [vmem:[#allocation2] ss:$2 sm:$0x3]
        %v3489 = vld [vmem:[#allocation24] sm:$0xff]
        %v3490 = vld [vmem:[#allocation24 + $0x8] sm:$0xff]
        %v3491 = vld [vmem:[#allocation24 + $0x10] sm:$0xff]
        %v3492 = vld [vmem:[#allocation24 + $0x18] sm:$0xff]
        %v3493 = vld [vmem:[#allocation24 + $0x20] sm:$0xff]
        %v3494 = vld [vmem:[#allocation24 + $0x28] sm:$0xff]
        %v3495 = vld [vmem:[#allocation24 + $0x30] sm:$0xff]
        %v3496 = vld [vmem:[#allocation24 + $0x38] sm:$0xff]
        %v3497 = vld [vmem:[#allocation24 + $0x40] sm:$0xff]
        %v3498 = vld [vmem:[#allocation24 + $0x48] sm:$0xff]
        %v3499 = vld [vmem:[#allocation24 + $0x50] sm:$0xff]
        %v3500 = vld [vmem:[#allocation24 + $0x58] sm:$0xff]
        %v3501 = vld [vmem:[#allocation24 + $0x60] sm:$0xff]
        %v3502 = vld [vmem:[#allocation24 + $0x68] sm:$0xff]
        %v3503 = vld [vmem:[#allocation24 + $0x70] sm:$0xff]
        %v3504 = vld [vmem:[#allocation24 + $0x78] sm:$0xff]
        %v3505 = vld [vmem:[#allocation24 + $0x80] sm:$0xff]
        %v3506 = vld [vmem:[#allocation24 + $0x88] sm:$0xff]
        %v3507 = vld [vmem:[#allocation24 + $0x90] sm:$0xff]
        %v3508 = vld [vmem:[#allocation24 + $0x98] sm:$0xff]
        %v3509 = vld [vmem:[#allocation24 + $0xa0] sm:$0xff]
        %v3510 = vld [vmem:[#allocation24 + $0xa8] sm:$0xff]
        %v3511 = vld [vmem:[#allocation24 + $0xb0] sm:$0xff]
        %v3512 = vld [vmem:[#allocation24 + $0xb8] sm:$0xff]
        %v3513 = vld [vmem:[#allocation24 + $0xc0] sm:$0xff]
        %v3514 = vld [vmem:[#allocation24 + $0xc8] sm:$0xff]
        %v3515 = vld [vmem:[#allocation24 + $0xd0] sm:$0xff]
        %v3516 = vld [vmem:[#allocation24 + $0xd8] sm:$0xff]
        %v3517 = vld [vmem:[#allocation24 + $0xe0] sm:$0xff]
        %v3518 = vld [vmem:[#allocation24 + $0xe8] sm:$0xff]
        %v3519 = vld [vmem:[#allocation24 + $0xf0] sm:$0xff]
        %v3520 = vld [vmem:[#allocation24 + $0xf8] sm:$0xff]
        %v3521 = vld [vmem:[%s2541] ss:$2 sm:$0x3]
        %s3522 = scalar_lea.vmem [#allocation24], 256
        %v3523 = vld [vmem:[%s3522] sm:$0xff]
        %v3524 = vld [vmem:[%s3522 + $0x8] sm:$0xff]
        %v3525 = vld [vmem:[%s3522 + $0x10] sm:$0xff]
        %v3526 = vld [vmem:[%s3522 + $0x18] sm:$0xff]
        %v3527 = vld [vmem:[%s3522 + $0x20] sm:$0xff]
        %v3528 = vld [vmem:[%s3522 + $0x28] sm:$0xff]
        %v3529 = vld [vmem:[%s3522 + $0x30] sm:$0xff]
        %v3530 = vld [vmem:[%s3522 + $0x38] sm:$0xff]
        %v3531 = vld [vmem:[%s3522 + $0x40] sm:$0xff]
        %v3532 = vld [vmem:[%s3522 + $0x48] sm:$0xff]
        %v3533 = vld [vmem:[%s3522 + $0x50] sm:$0xff]
        %v3534 = vld [vmem:[%s3522 + $0x58] sm:$0xff]
        %v3535 = vld [vmem:[%s3522 + $0x60] sm:$0xff]
        %v3536 = vld [vmem:[%s3522 + $0x68] sm:$0xff]
        %v3537 = vld [vmem:[%s3522 + $0x70] sm:$0xff]
        %v3538 = vld [vmem:[%s3522 + $0x78] sm:$0xff]
        %v3539 = vld [vmem:[%s3522 + $0x80] sm:$0xff]
        %v3540 = vld [vmem:[%s3522 + $0x88] sm:$0xff]
        %v3541 = vld [vmem:[%s3522 + $0x90] sm:$0xff]
        %v3542 = vld [vmem:[%s3522 + $0x98] sm:$0xff]
        %v3543 = vld [vmem:[%s3522 + $0xa0] sm:$0xff]
        %v3544 = vld [vmem:[%s3522 + $0xa8] sm:$0xff]
        %v3545 = vld [vmem:[%s3522 + $0xb0] sm:$0xff]
        %v3546 = vld [vmem:[%s3522 + $0xb8] sm:$0xff]
        %v3547 = vld [vmem:[%s3522 + $0xc0] sm:$0xff]
        %v3548 = vld [vmem:[%s3522 + $0xc8] sm:$0xff]
        %v3549 = vld [vmem:[%s3522 + $0xd0] sm:$0xff]
        %v3550 = vld [vmem:[%s3522 + $0xd8] sm:$0xff]
        %v3551 = vld [vmem:[%s3522 + $0xe0] sm:$0xff]
        %v3552 = vld [vmem:[%s3522 + $0xe8] sm:$0xff]
        %v3553 = vld [vmem:[%s3522 + $0xf0] sm:$0xff]
        %v3554 = vld [vmem:[%s3522 + $0xf8] sm:$0xff]
        %3555 = vmatpush.msra.mxu0 %v3553
        %3556 = vmatpush.msra.mxu0 %v3551
        %3557 = vmatpush.msra.mxu0 %v3549
        %3558 = vmatpush.msra.mxu0 %v3547
        %3559 = vmatpush.msra.mxu0 %v3545
        %3560 = vmatpush.msra.mxu0 %v3543
        %3561 = vmatpush.msra.mxu0 %v3541
        %3562 = vmatpush.msra.mxu0 %v3539
        %3563 = vmatpush.msra.mxu0 %v3537
        %3564 = vmatpush.msra.mxu0 %v3535
        %3565 = vmatpush.msra.mxu0 %v3533
        %3566 = vmatpush.msra.mxu0 %v3531
        %3567 = vmatpush.msra.mxu0 %v3529
        %3568 = vmatpush.msra.mxu0 %v3527
        %3569 = vmatpush.msra.mxu0 %v3525
        %3570 = vmatpush.msra.mxu0 %v3523
        %3571 = vmatmul.f32.gmra.mxu0 %v3521
        %v3572 = vpop.f32.mrf.mxu0
        %v3573 = vadd.f32 0.0, %v3572
        %3574 = vdwg.mxu0
        %3575 = vmatpush.msra.mxu0 %v3554
        %3576 = vmatpush.msra.mxu0 %v3552
        %3577 = vmatpush.msra.mxu0 %v3550
        %3578 = vmatpush.msra.mxu0 %v3548
        %3579 = vmatpush.msra.mxu0 %v3546
        %3580 = vmatpush.msra.mxu0 %v3544
        %3581 = vmatpush.msra.mxu0 %v3542
        %3582 = vmatpush.msra.mxu0 %v3540
        %3583 = vmatpush.msra.mxu0 %v3538
        %3584 = vmatpush.msra.mxu0 %v3536
        %3585 = vmatpush.msra.mxu0 %v3534
        %3586 = vmatpush.msra.mxu0 %v3532
        %3587 = vmatpush.msra.mxu0 %v3530
        %3588 = vmatpush.msra.mxu0 %v3528
        %3589 = vmatpush.msra.mxu0 %v3526
        %3590 = vmatpush.msra.mxu0 %v3524
        %3591 = vmatmul.f32.gmra.mxu0 %v3521
        %v3592 = vpop.f32.mrf.mxu0
        %v3593 = vadd.f32 0.0, %v3592
        %3594 = vdwg.mxu0
        %3595 = vmatpush.msra.mxu0 %v3519
        %3596 = vmatpush.msra.mxu0 %v3517
        %3597 = vmatpush.msra.mxu0 %v3515
        %3598 = vmatpush.msra.mxu0 %v3513
        %3599 = vmatpush.msra.mxu0 %v3511
        %3600 = vmatpush.msra.mxu0 %v3509
        %3601 = vmatpush.msra.mxu0 %v3507
        %3602 = vmatpush.msra.mxu0 %v3505
        %3603 = vmatpush.msra.mxu0 %v3503
        %3604 = vmatpush.msra.mxu0 %v3501
        %3605 = vmatpush.msra.mxu0 %v3499
        %3606 = vmatpush.msra.mxu0 %v3497
        %3607 = vmatpush.msra.mxu0 %v3495
        %3608 = vmatpush.msra.mxu0 %v3493
        %3609 = vmatpush.msra.mxu0 %v3491
        %3610 = vmatpush.msra.mxu0 %v3489
        %3611 = vmatmul.f32.gmra.mxu0 %v3488
        %v3612 = vpop.f32.mrf.mxu0
        %v3613 = vadd.f32 %v3573, %v3612
        %3614 = vdwg.mxu0
        %3615 = vmatpush.msra.mxu0 %v3520
        %3616 = vmatpush.msra.mxu0 %v3518
        %3617 = vmatpush.msra.mxu0 %v3516
        %3618 = vmatpush.msra.mxu0 %v3514
        %3619 = vmatpush.msra.mxu0 %v3512
        %3620 = vmatpush.msra.mxu0 %v3510
        %3621 = vmatpush.msra.mxu0 %v3508
        %3622 = vmatpush.msra.mxu0 %v3506
        %3623 = vmatpush.msra.mxu0 %v3504
        %3624 = vmatpush.msra.mxu0 %v3502
        %3625 = vmatpush.msra.mxu0 %v3500
        %3626 = vmatpush.msra.mxu0 %v3498
        %3627 = vmatpush.msra.mxu0 %v3496
        %3628 = vmatpush.msra.mxu0 %v3494
        %3629 = vmatpush.msra.mxu0 %v3492
        %3630 = vmatpush.msra.mxu0 %v3490
        %3631 = vmatmul.f32.gmra.mxu0 %v3488
        %v3632 = vpop.f32.mrf.mxu0
        %v3633 = vadd.f32 %v3593, %v3632
        %3634 = vdwg.mxu0
        %v3635 = vld [vmem:[%s3144] ss:$2 sm:$0x3]
        %s3636 = scalar_lea.vmem [#allocation24], 512
        %v3637 = vld [vmem:[%s3636] sm:$0xff]
        %v3638 = vld [vmem:[%s3636 + $0x8] sm:$0xff]
        %v3639 = vld [vmem:[%s3636 + $0x10] sm:$0xff]
        %v3640 = vld [vmem:[%s3636 + $0x18] sm:$0xff]
        %v3641 = vld [vmem:[%s3636 + $0x20] sm:$0xff]
        %v3642 = vld [vmem:[%s3636 + $0x28] sm:$0xff]
        %v3643 = vld [vmem:[%s3636 + $0x30] sm:$0xff]
        %v3644 = vld [vmem:[%s3636 + $0x38] sm:$0xff]
        %v3645 = vld [vmem:[%s3636 + $0x40] sm:$0xff]
        %v3646 = vld [vmem:[%s3636 + $0x48] sm:$0xff]
        %v3647 = vld [vmem:[%s3636 + $0x50] sm:$0xff]
        %v3648 = vld [vmem:[%s3636 + $0x58] sm:$0xff]
        %v3649 = vld [vmem:[%s3636 + $0x60] sm:$0xff]
        %v3650 = vld [vmem:[%s3636 + $0x68] sm:$0xff]
        %v3651 = vld [vmem:[%s3636 + $0x70] sm:$0xff]
        %v3652 = vld [vmem:[%s3636 + $0x78] sm:$0xff]
        %v3653 = vld [vmem:[%s3636 + $0x80] sm:$0xff]
        %v3654 = vld [vmem:[%s3636 + $0x88] sm:$0xff]
        %v3655 = vld [vmem:[%s3636 + $0x90] sm:$0xff]
        %v3656 = vld [vmem:[%s3636 + $0x98] sm:$0xff]
        %v3657 = vld [vmem:[%s3636 + $0xa0] sm:$0xff]
        %v3658 = vld [vmem:[%s3636 + $0xa8] sm:$0xff]
        %v3659 = vld [vmem:[%s3636 + $0xb0] sm:$0xff]
        %v3660 = vld [vmem:[%s3636 + $0xb8] sm:$0xff]
        %v3661 = vld [vmem:[%s3636 + $0xc0] sm:$0xff]
        %v3662 = vld [vmem:[%s3636 + $0xc8] sm:$0xff]
        %v3663 = vld [vmem:[%s3636 + $0xd0] sm:$0xff]
        %v3664 = vld [vmem:[%s3636 + $0xd8] sm:$0xff]
        %v3665 = vld [vmem:[%s3636 + $0xe0] sm:$0xff]
        %v3666 = vld [vmem:[%s3636 + $0xe8] sm:$0xff]
        %v3667 = vld [vmem:[%s3636 + $0xf0] sm:$0xff]
        %v3668 = vld [vmem:[%s3636 + $0xf8] sm:$0xff]
        %3669 = vmatpush.msra.mxu0 %v3667
        %3670 = vmatpush.msra.mxu0 %v3665
        %3671 = vmatpush.msra.mxu0 %v3663
        %3672 = vmatpush.msra.mxu0 %v3661
        %3673 = vmatpush.msra.mxu0 %v3659
        %3674 = vmatpush.msra.mxu0 %v3657
        %3675 = vmatpush.msra.mxu0 %v3655
        %3676 = vmatpush.msra.mxu0 %v3653
        %3677 = vmatpush.msra.mxu0 %v3651
        %3678 = vmatpush.msra.mxu0 %v3649
        %3679 = vmatpush.msra.mxu0 %v3647
        %3680 = vmatpush.msra.mxu0 %v3645
        %3681 = vmatpush.msra.mxu0 %v3643
        %3682 = vmatpush.msra.mxu0 %v3641
        %3683 = vmatpush.msra.mxu0 %v3639
        %3684 = vmatpush.msra.mxu0 %v3637
        %3685 = vmatmul.f32.gmra.mxu0 %v3635
        %v3686 = vpop.f32.mrf.mxu0
        %v3687 = vadd.f32 0.0, %v3686
        %3688 = vdwg.mxu0
        %3689 = vmatpush.msra.mxu0 %v3668
        %3690 = vmatpush.msra.mxu0 %v3666
        %3691 = vmatpush.msra.mxu0 %v3664
        %3692 = vmatpush.msra.mxu0 %v3662
        %3693 = vmatpush.msra.mxu0 %v3660
        %3694 = vmatpush.msra.mxu0 %v3658
        %3695 = vmatpush.msra.mxu0 %v3656
        %3696 = vmatpush.msra.mxu0 %v3654
        %3697 = vmatpush.msra.mxu0 %v3652
        %3698 = vmatpush.msra.mxu0 %v3650
        %3699 = vmatpush.msra.mxu0 %v3648
        %3700 = vmatpush.msra.mxu0 %v3646
        %3701 = vmatpush.msra.mxu0 %v3644
        %3702 = vmatpush.msra.mxu0 %v3642
        %3703 = vmatpush.msra.mxu0 %v3640
        %3704 = vmatpush.msra.mxu0 %v3638
        %3705 = vmatmul.f32.gmra.mxu0 %v3635
        %v3706 = vpop.f32.mrf.mxu0
        %v3707 = vadd.f32 0.0, %v3706
        %3708 = vdwg.mxu0
        %v3709 = vadd.f32 %v3613, %v3687
        %v3710 = vadd.f32 %v3633, %v3707
        %v3711 = vld [vmem:[#allocation25] sm:$0x3]
        %v3713 = vperm.slane %v3711, 0
        %v3714 = vperm.slane %v3711, 1
        %v3717 = vmul.f32 %v3709, %v3713
        %v3718 = vmul.f32 %v3710, %v3714
        %v3719 = vld [vmem:[#allocation27] sm:$0x3]
        %v3721 = vperm.slane %v3719, 0
        %v3722 = vperm.slane %v3719, 1
        %v3725 = vadd.f32 %v3717, %v3721
        %v3726 = vadd.f32 %v3718, %v3722
        %v3727 = vmax.f32 %v3725, 0.0
        %3728 = vst [vmem:[%s1932] sm:$0x3] %v3727
        %3729 = vst [vmem:[#allocation3] sm:$0x1] 0.0
        %3730 = vst [vmem:[#allocation3 + $0x3] sm:$0x1] 0.0
        %3731 = vst [vmem:[#allocation3 + $0x1] sm:$0x3] %v3727
        %v3732 = vld [vmem:[#allocation3] sm:$0x3]
        %v3733 = vld [vmem:[#allocation28] sm:$0xff]
        %v3734 = vld [vmem:[#allocation28 + $0x8] sm:$0xff]
        %v3735 = vld [vmem:[#allocation28 + $0x10] sm:$0xff]
        %v3736 = vld [vmem:[#allocation28 + $0x18] sm:$0xff]
        %v3737 = vld [vmem:[#allocation28 + $0x20] sm:$0xff]
        %v3738 = vld [vmem:[#allocation28 + $0x28] sm:$0xff]
        %v3739 = vld [vmem:[#allocation28 + $0x30] sm:$0xff]
        %v3740 = vld [vmem:[#allocation28 + $0x38] sm:$0xff]
        %v3741 = vld [vmem:[#allocation28 + $0x40] sm:$0xff]
        %v3742 = vld [vmem:[#allocation28 + $0x48] sm:$0xff]
        %v3743 = vld [vmem:[#allocation28 + $0x50] sm:$0xff]
        %v3744 = vld [vmem:[#allocation28 + $0x58] sm:$0xff]
        %v3745 = vld [vmem:[#allocation28 + $0x60] sm:$0xff]
        %v3746 = vld [vmem:[#allocation28 + $0x68] sm:$0xff]
        %v3747 = vld [vmem:[#allocation28 + $0x70] sm:$0xff]
        %v3748 = vld [vmem:[#allocation28 + $0x78] sm:$0xff]
        %v3749 = vld [vmem:[#allocation3 + $0x1] sm:$0x3]
        %s3750 = scalar_lea.vmem [#allocation28], 128
        %v3751 = vld [vmem:[%s3750] sm:$0xff]
        %v3752 = vld [vmem:[%s3750 + $0x8] sm:$0xff]
        %v3753 = vld [vmem:[%s3750 + $0x10] sm:$0xff]
        %v3754 = vld [vmem:[%s3750 + $0x18] sm:$0xff]
        %v3755 = vld [vmem:[%s3750 + $0x20] sm:$0xff]
        %v3756 = vld [vmem:[%s3750 + $0x28] sm:$0xff]
        %v3757 = vld [vmem:[%s3750 + $0x30] sm:$0xff]
        %v3758 = vld [vmem:[%s3750 + $0x38] sm:$0xff]
        %v3759 = vld [vmem:[%s3750 + $0x40] sm:$0xff]
        %v3760 = vld [vmem:[%s3750 + $0x48] sm:$0xff]
        %v3761 = vld [vmem:[%s3750 + $0x50] sm:$0xff]
        %v3762 = vld [vmem:[%s3750 + $0x58] sm:$0xff]
        %v3763 = vld [vmem:[%s3750 + $0x60] sm:$0xff]
        %v3764 = vld [vmem:[%s3750 + $0x68] sm:$0xff]
        %v3765 = vld [vmem:[%s3750 + $0x70] sm:$0xff]
        %v3766 = vld [vmem:[%s3750 + $0x78] sm:$0xff]
        %3767 = vmatpush.msra.mxu0 %v3766
        %3768 = vmatpush.msra.mxu0 %v3765
        %3769 = vmatpush.msra.mxu0 %v3764
        %3770 = vmatpush.msra.mxu0 %v3763
        %3771 = vmatpush.msra.mxu0 %v3762
        %3772 = vmatpush.msra.mxu0 %v3761
        %3773 = vmatpush.msra.mxu0 %v3760
        %3774 = vmatpush.msra.mxu0 %v3759
        %3775 = vmatpush.msra.mxu0 %v3758
        %3776 = vmatpush.msra.mxu0 %v3757
        %3777 = vmatpush.msra.mxu0 %v3756
        %3778 = vmatpush.msra.mxu0 %v3755
        %3779 = vmatpush.msra.mxu0 %v3754
        %3780 = vmatpush.msra.mxu0 %v3753
        %3781 = vmatpush.msra.mxu0 %v3752
        %3782 = vmatpush.msra.mxu0 %v3751
        %3783 = vmatmul.f32.gmra.mxu0 %v3749
        %v3784 = vpop.f32.mrf.mxu0
        %v3785 = vadd.f32 0.0, %v3784
        %3786 = vdwg.mxu0
        %3787 = vmatpush.msra.mxu0 %v3748
        %3788 = vmatpush.msra.mxu0 %v3747
        %3789 = vmatpush.msra.mxu0 %v3746
        %3790 = vmatpush.msra.mxu0 %v3745
        %3791 = vmatpush.msra.mxu0 %v3744
        %3792 = vmatpush.msra.mxu0 %v3743
        %3793 = vmatpush.msra.mxu0 %v3742
        %3794 = vmatpush.msra.mxu0 %v3741
        %3795 = vmatpush.msra.mxu0 %v3740
        %3796 = vmatpush.msra.mxu0 %v3739
        %3797 = vmatpush.msra.mxu0 %v3738
        %3798 = vmatpush.msra.mxu0 %v3737
        %3799 = vmatpush.msra.mxu0 %v3736
        %3800 = vmatpush.msra.mxu0 %v3735
        %3801 = vmatpush.msra.mxu0 %v3734
        %3802 = vmatpush.msra.mxu0 %v3733
        %3803 = vmatmul.f32.gmra.mxu0 %v3732
        %v3804 = vpop.f32.mrf.mxu0
        %v3805 = vadd.f32 %v3785, %v3804
        %3806 = vdwg.mxu0
        %v3807 = vld [vmem:[#allocation3 + $0x2] sm:$0x3]
        %s3808 = scalar_lea.vmem [#allocation28], 256
        %v3809 = vld [vmem:[%s3808] sm:$0xff]
        %v3810 = vld [vmem:[%s3808 + $0x8] sm:$0xff]
        %v3811 = vld [vmem:[%s3808 + $0x10] sm:$0xff]
        %v3812 = vld [vmem:[%s3808 + $0x18] sm:$0xff]
        %v3813 = vld [vmem:[%s3808 + $0x20] sm:$0xff]
        %v3814 = vld [vmem:[%s3808 + $0x28] sm:$0xff]
        %v3815 = vld [vmem:[%s3808 + $0x30] sm:$0xff]
        %v3816 = vld [vmem:[%s3808 + $0x38] sm:$0xff]
        %v3817 = vld [vmem:[%s3808 + $0x40] sm:$0xff]
        %v3818 = vld [vmem:[%s3808 + $0x48] sm:$0xff]
        %v3819 = vld [vmem:[%s3808 + $0x50] sm:$0xff]
        %v3820 = vld [vmem:[%s3808 + $0x58] sm:$0xff]
        %v3821 = vld [vmem:[%s3808 + $0x60] sm:$0xff]
        %v3822 = vld [vmem:[%s3808 + $0x68] sm:$0xff]
        %v3823 = vld [vmem:[%s3808 + $0x70] sm:$0xff]
        %v3824 = vld [vmem:[%s3808 + $0x78] sm:$0xff]
        %3825 = vmatpush.msra.mxu0 %v3824
        %3826 = vmatpush.msra.mxu0 %v3823
        %3827 = vmatpush.msra.mxu0 %v3822
        %3828 = vmatpush.msra.mxu0 %v3821
        %3829 = vmatpush.msra.mxu0 %v3820
        %3830 = vmatpush.msra.mxu0 %v3819
        %3831 = vmatpush.msra.mxu0 %v3818
        %3832 = vmatpush.msra.mxu0 %v3817
        %3833 = vmatpush.msra.mxu0 %v3816
        %3834 = vmatpush.msra.mxu0 %v3815
        %3835 = vmatpush.msra.mxu0 %v3814
        %3836 = vmatpush.msra.mxu0 %v3813
        %3837 = vmatpush.msra.mxu0 %v3812
        %3838 = vmatpush.msra.mxu0 %v3811
        %3839 = vmatpush.msra.mxu0 %v3810
        %3840 = vmatpush.msra.mxu0 %v3809
        %3841 = vmatmul.f32.gmra.mxu0 %v3807
        %v3842 = vpop.f32.mrf.mxu0
        %v3843 = vadd.f32 0.0, %v3842
        %3844 = vdwg.mxu0
        %v3845 = vadd.f32 %v3805, %v3843
        %v3846 = vld [vmem:[#allocation30] sm:$0x1]
        %v3848 = vperm.slane %v3846, 0
        %v3850 = vmul.f32 %v3845, %v3848
        %v3851 = vld [vmem:[#allocation31] sm:$0x1]
        %v3853 = vperm.slane %v3851, 0
        %v3855 = vadd.f32 %v3850, %v3853
        %vm3856 = vcmask 1041408
        %v3857 = vsel %vm3856, %v3855, 0.0
        %v3858 = vrot.slane %v3857, 4
        %v3859 = vadd.f32 %v3857, %v3858
        %v3860 = vrot.slane %v3859, 2
        %v3861 = vadd.f32 %v3859, %v3860
        %v3862 = vrot.slane %v3861, 1
        %v3863 = vadd.f32 %v3861, %v3862
        %v3864 = vld [vmem:[#allocation33] sm:$0xff]
        %v3865 = vld [vmem:[#allocation33 + $0x8] sm:$0xff]
        %v3866 = vld [vmem:[#allocation33 + $0x10] sm:$0xff]
        %v3867 = vld [vmem:[#allocation33 + $0x18] sm:$0xff]
        %v3868 = vld [vmem:[#allocation33 + $0x20] sm:$0xff]
        %v3869 = vld [vmem:[#allocation33 + $0x28] sm:$0xff]
        %v3870 = vld [vmem:[#allocation33 + $0x30] sm:$0xff]
        %v3871 = vld [vmem:[#allocation33 + $0x38] sm:$0xff]
        %v3872 = vld [vmem:[#allocation33 + $0x40] sm:$0xff]
        %v3873 = vld [vmem:[#allocation33 + $0x48] sm:$0xff]
        %v3874 = vld [vmem:[#allocation33 + $0x50] sm:$0xff]
        %v3875 = vld [vmem:[#allocation33 + $0x58] sm:$0xff]
        %v3876 = vld [vmem:[#allocation33 + $0x60] sm:$0xff]
        %v3877 = vld [vmem:[#allocation33 + $0x68] sm:$0xff]
        %v3878 = vld [vmem:[#allocation33 + $0x70] sm:$0xff]
        %v3879 = vld [vmem:[#allocation33 + $0x78] sm:$0xff]
        %3880 = vmatpush.msra.mxu0 %v3879
        %3881 = vmatpush.msra.mxu0 %v3878
        %3882 = vmatpush.msra.mxu0 %v3877
        %3883 = vmatpush.msra.mxu0 %v3876
        %3884 = vmatpush.msra.mxu0 %v3875
        %3885 = vmatpush.msra.mxu0 %v3874
        %3886 = vmatpush.msra.mxu0 %v3873
        %3887 = vmatpush.msra.mxu0 %v3872
        %3888 = vmatpush.msra.mxu0 %v3871
        %3889 = vmatpush.msra.mxu0 %v3870
        %3890 = vmatpush.msra.mxu0 %v3869
        %3891 = vmatpush.msra.mxu0 %v3868
        %3892 = vmatpush.msra.mxu0 %v3867
        %3893 = vmatpush.msra.mxu0 %v3866
        %3894 = vmatpush.msra.mxu0 %v3865
        %3895 = vmatpush.msra.mxu0 %v3864
        %3896 = vmatmul.f32.gmra.mxu0 %v3863
        %v3897 = vpop.f32.mrf.mxu0
        %v3898 = vadd.f32 0.0, %v3897
        %3899 = vdwg.mxu0
        %v3900 = vmul.f32 %v3898, 0.25
        %v3901 = vperm.slane %v3900, 0
        %v3902 = vsub.f32 %v3855, %v3901
        %v3903 = vmul.f32 %v3902, %v3902
        %v3904 = vsel %vm3856, %v3903, 0.0
        %v3905 = vrot.slane %v3904, 4
        %v3906 = vadd.f32 %v3904, %v3905
        %v3907 = vrot.slane %v3906, 2
        %v3908 = vadd.f32 %v3906, %v3907
        %v3909 = vrot.slane %v3908, 1
        %v3910 = vadd.f32 %v3908, %v3909
        %3911 = vmatpush.msra.mxu0 %v3879
        %3912 = vmatpush.msra.mxu0 %v3878
        %3913 = vmatpush.msra.mxu0 %v3877
        %3914 = vmatpush.msra.mxu0 %v3876
        %3915 = vmatpush.msra.mxu0 %v3875
        %3916 = vmatpush.msra.mxu0 %v3874
        %3917 = vmatpush.msra.mxu0 %v3873
        %3918 = vmatpush.msra.mxu0 %v3872
        %3919 = vmatpush.msra.mxu0 %v3871
        %3920 = vmatpush.msra.mxu0 %v3870
        %3921 = vmatpush.msra.mxu0 %v3869
        %3922 = vmatpush.msra.mxu0 %v3868
        %3923 = vmatpush.msra.mxu0 %v3867
        %3924 = vmatpush.msra.mxu0 %v3866
        %3925 = vmatpush.msra.mxu0 %v3865
        %3926 = vmatpush.msra.mxu0 %v3864
        %3927 = vmatmul.f32.gmra.mxu0 %v3910
        %v3928 = vpop.f32.mrf.mxu0
        %v3929 = vadd.f32 0.0, %v3928
        %3930 = vdwg.mxu0
        %v3931 = vmul.f32 %v3929, 0.33333334
        %v3932 = vadd.f32 %v3931, 0.0001
        %v3933 = vmul.f32 %v3932, 4.0
        %v3934 = vperm.slane %v3933, 0
        %v3935 = vrcp.pop %v3934
        %v3936 = vmul.f32 %v3934, %v3935
        %v3937 = vsub.f32 1.0, %v3936
        %v3938 = vmul.f32 %v3935, %v3937
        %v3939 = vadd.f32 %v3935, %v3938
        %vm3940 = vweird.f32 %v3934
        %vm3941 = vweird.f32 %v3935
        %vm3942 = vmor %vm3940, %vm3941
        %v3943 = vsel %vm3942, %v3935, %v3939
        %v3944 = vand.u32 2147483647, %v3934
        %vm3945 = vcmp.eq.f32.partialorder %v3944, 8.507059e+37
        %v3946 = vand.u32 %v3934, 2147483648
        %v3947 = vor.u32 1.1754944e-38, %v3946
        %v3948 = vsel %vm3945, %v3947, %v3943
        %v3949 = vmul.f32 %v3903, %v3948
        %v3950 = vadd.f32 %v3949, 0.5
        %v3951 = vxor.u32 %v3950, 2147483648
        %v3952 = vmul.f32 %v3951, 1.442695
        %v3953 = vpow.pop %v3952
        %v3954 = vadd.f32 %v3953, 1.0
        %v3955 = vrcp.pop %v3954
        %v3956 = vmul.f32 %v3954, %v3955
        %v3957 = vsub.f32 1.0, %v3956
        %v3958 = vmul.f32 %v3955, %v3957
        %v3959 = vadd.f32 %v3955, %v3958
        %vm3960 = vweird.f32 %v3954
        %vm3961 = vweird.f32 %v3955
        %vm3962 = vmor %vm3960, %vm3961
        %v3963 = vsel %vm3962, %v3955, %v3959
        %v3964 = vand.u32 2147483647, %v3954
        %vm3965 = vcmp.eq.f32.partialorder %v3964, 8.507059e+37
        %v3966 = vand.u32 %v3954, 2147483648
        %v3967 = vor.u32 1.1754944e-38, %v3966
        %v3968 = vsel %vm3965, %v3967, %v3963
        %v3969 = vmul.f32 1.0, %v3968
        %v3970 = vmul.f32 %v3855, %v3969
        %3971 = vst [vmem:[%s1936] sm:$0x3] %v3970
        %v3972 = vadd.f32 %v3970, %v3726
        %v3973 = vmax.f32 %v3972, 0.0
        %3974 = vst [vmem:[%s1940] sm:$0x3] %v3973
        %v3975 = vsel %vm3856, %v3973, 0.0
        %v3976 = vrot.slane %v3975, 4
        %v3977 = vadd.f32 %v3975, %v3976
        %v3978 = vrot.slane %v3977, 2
        %v3979 = vadd.f32 %v3977, %v3978
        %v3980 = vrot.slane %v3979, 1
        %v3981 = vadd.f32 %v3979, %v3980
        %v3982 = vld [vmem:[#allocation34] sm:$0xff]
        %v3983 = vld [vmem:[#allocation34 + $0x8] sm:$0xff]
        %v3984 = vld [vmem:[#allocation34 + $0x10] sm:$0xff]
        %v3985 = vld [vmem:[#allocation34 + $0x18] sm:$0xff]
        %v3986 = vld [vmem:[#allocation34 + $0x20] sm:$0xff]
        %v3987 = vld [vmem:[#allocation34 + $0x28] sm:$0xff]
        %v3988 = vld [vmem:[#allocation34 + $0x30] sm:$0xff]
        %v3989 = vld [vmem:[#allocation34 + $0x38] sm:$0xff]
        %v3990 = vld [vmem:[#allocation34 + $0x40] sm:$0xff]
        %v3991 = vld [vmem:[#allocation34 + $0x48] sm:$0xff]
        %v3992 = vld [vmem:[#allocation34 + $0x50] sm:$0xff]
        %v3993 = vld [vmem:[#allocation34 + $0x58] sm:$0xff]
        %v3994 = vld [vmem:[#allocation34 + $0x60] sm:$0xff]
        %v3995 = vld [vmem:[#allocation34 + $0x68] sm:$0xff]
        %v3996 = vld [vmem:[#allocation34 + $0x70] sm:$0xff]
        %v3997 = vld [vmem:[#allocation34 + $0x78] sm:$0xff]
        %3998 = vmatpush.msra.mxu0 %v3997
        %3999 = vmatpush.msra.mxu0 %v3996
        %4000 = vmatpush.msra.mxu0 %v3995
        %4001 = vmatpush.msra.mxu0 %v3994
        %4002 = vmatpush.msra.mxu0 %v3993
        %4003 = vmatpush.msra.mxu0 %v3992
        %4004 = vmatpush.msra.mxu0 %v3991
        %4005 = vmatpush.msra.mxu0 %v3990
        %4006 = vmatpush.msra.mxu0 %v3989
        %4007 = vmatpush.msra.mxu0 %v3988
        %4008 = vmatpush.msra.mxu0 %v3987
        %4009 = vmatpush.msra.mxu0 %v3986
        %4010 = vmatpush.msra.mxu0 %v3985
        %4011 = vmatpush.msra.mxu0 %v3984
        %4012 = vmatpush.msra.mxu0 %v3983
        %4013 = vmatpush.msra.mxu0 %v3982
        %4014 = vmatmul.f32.gmra.mxu0 %v3981
        %v4015 = vpop.f32.mrf.mxu0
        %v4016 = vadd.f32 0.0, %v4015
        %4017 = vdwg.mxu0
        %v4018 = vmul.f32 %v4016, 0.25
        %vm4019 = vcmask 516096
        %4020 = vst.msk [vmem:[%s1873] sm:$0x1] %vm4019, %v4018
        %v4021 = vld [vmem:[%s67] sm:$0xff]
        %v4022 = vld [vmem:[%s67 + $0x8] sm:$0xff]
        %v4023 = vld [vmem:[%s67 + $0x10] sm:$0xff]
        %v4024 = vld [vmem:[%s67 + $0x18] sm:$0xff]
        %v4025 = vld [vmem:[%s67 + $0x20] sm:$0xff]
        %v4026 = vld [vmem:[%s67 + $0x28] sm:$0xff]
        %v4027 = vld [vmem:[%s67 + $0x30] sm:$0xff]
        %v4028 = vld [vmem:[%s67 + $0x38] sm:$0xff]
        %v4029 = vld [vmem:[#allocation36] sm:$0x1]
        %vm4030 = vcmask 523264
        %v4032 = vsel %vm4030, %v4018, 0
        %4034 = vmatpush.msra.mxu0 0.0
        %4035 = vmatpush.msra.mxu0 0.0
        %4036 = vmatpush.msra.mxu0 0.0
        %4037 = vmatpush.msra.mxu0 0.0
        %4038 = vmatpush.msra.mxu0 0.0
        %4039 = vmatpush.msra.mxu0 0.0
        %4040 = vmatpush.msra.mxu0 0.0
        %4041 = vmatpush.msra.mxu0 0.0
        %4042 = vmatpush.msra.mxu0 %v4028
        %4043 = vmatpush.msra.mxu0 %v4027
        %4044 = vmatpush.msra.mxu0 %v4026
        %4045 = vmatpush.msra.mxu0 %v4025
        %4046 = vmatpush.msra.mxu0 %v4024
        %4047 = vmatpush.msra.mxu0 %v4023
        %4048 = vmatpush.msra.mxu0 %v4022
        %4049 = vmatpush.msra.mxu0 %v4021
        %4050 = vmatmul.f32.gmra.mxu0 %v4032
        %v4051 = vpop.f32.mrf.mxu0
        %v4052 = vadd.f32 %v4029, %v4051
        %4053 = vdwg.mxu0
        %vm4054 = vcmask 253952
        %4055 = vst.msk [vmem:[%s1879] sm:$0x1] %vm4054, %v4052
        %p4056 = scmp.lt.s32.totalorder %s128, 1
        %s4057 = scalar_select %p4056, %s128, 1
        %s4058 = smul.addr %s4057, 2
        %s4059 = smul.addr %s4058, 8
        %s4060 = scalar_lea.vmem %s71, %s4059
        %p4061 = scmp.lt.s32.totalorder %s128, 1
        %s4062 = scalar_select %p4061, %s128, 1
        %s4063 = smul.addr %s4062, 2
        %s4064 = smul.addr %s4063, 8
        %s4065 = scalar_lea.vmem %s73, %s4064
        %p4066 = scmp.lt.s32.totalorder %s128, 1
        %s4067 = scalar_select %p4066, %s128, 1
        %s4068 = smul.addr %s4067, 2
        %s4069 = smul.addr %s4068, 8
        %s4070 = scalar_lea.vmem %s75, %s4069
        %p4071 = scmp.lt.s32.totalorder %s128, 1
        %s4072 = scalar_select %p4071, %s128, 1
        %s4073 = smul.addr %s4072, 2
        %s4074 = smul.addr %s4073, 8
        %s4075 = scalar_lea.vmem %s77, %s4074
        %p4076 = scmp.lt.s32.totalorder %s128, 1
        %s4077 = scalar_select %p4076, %s128, 1
        %s4078 = smul.addr %s4077, 8
        %s4079 = scalar_lea.vmem %s79, %s4078
        %p4080 = scmp.lt.s32.totalorder %s128, 1
        %s4081 = scalar_select %p4080, %s128, 1
        %s4082 = smul.addr %s4081, 8
        %s4083 = scalar_lea.vmem %s81, %s4082
        %p4084 = scmp.lt.s32.totalorder %s128, 1
        %s4085 = scalar_select %p4084, %s128, 1
        %s4086 = smul.addr %s4085, 8
        %s4087 = scalar_lea.vmem %s83, %s4086
        %p4088 = scmp.lt.s32.totalorder %s128, 1
        %s4089 = scalar_select %p4088, %s128, 1
        %s4090 = smul.addr %s4089, 4
        %s4091 = scalar_lea.vmem %s85, %s4090
        %p4092 = scmp.lt.s32.totalorder %s128, 1
        %s4093 = scalar_select %p4092, %s128, 1
        %s4094 = smul.addr %s4093, 4
        %s4095 = scalar_lea.vmem %s87, %s4094
        %p4096 = scmp.lt.s32.totalorder %s128, 1
        %s4097 = scalar_select %p4096, %s128, 1
        %s4098 = smul.addr %s4097, 4
        %s4099 = scalar_lea.vmem %s89, %s4098
        %p4100 = scmp.lt.s32.totalorder %s128, 1
        %s4101 = scalar_select %p4100, %s128, 1
        %s4102 = smul.addr %s4101, 2
        %s4103 = scalar_lea.vmem %s91, %s4102
        %p4104 = scmp.lt.s32.totalorder %s128, 1
        %s4105 = scalar_select %p4104, %s128, 1
        %s4106 = smul.addr %s4105, 2
        %s4107 = scalar_lea.vmem %s93, %s4106
        %p4108 = scmp.lt.s32.totalorder %s128, 1
        %s4109 = scalar_select %p4108, %s128, 1
        %s4110 = smul.addr %s4109, 2
        %s4111 = scalar_lea.vmem %s95, %s4110
        %s4112 = sand.u32 %s1214, 1
        %s4113 = scalar_lea.sflag [#allocation6], %s4112
        %s4114 = sand.u32 %s1214, 1
        %s4115 = scalar_lea.vmem [#allocation37], %s4114
        %s4116 = sand.u32 %s1240, 1
        %s4117 = scalar_lea.sflag [#allocation39], %s4116
        %s4118 = sand.u32 %s1240, 1
        %s4119 = scalar_lea.vmem [#allocation38], %s4118
        // Predicated region
        $region245: #{get_activations_forward.1} parent=159 // pred_check
          %p4120 = pneg %p886
        $region246: #{get_activations_forward.1} parent=159 // pred_check_branch
          %4122 = sbr.rel (%p4120) target = $region248
        $region247: #{get_activations_forward.1} parent=159 // pred_region
          _
        $region248: #{get_activations_forward.1} parent=159 // pred_fallthru
          _
        // Predicated region
        $region249: #{get_activations_forward.1} parent=159 // pred_check
          %p4123 = pneg %p912
        $region250: #{get_activations_forward.1} parent=159 // pred_check_branch
          %4125 = sbr.rel (%p4123) target = $region252
        $region251: #{get_activations_forward.1} parent=159 // pred_region
          _
        $region252: #{get_activations_forward.1} parent=159 // pred_fallthru
          _
        // Predicated region
        $region253: #{get_activations_forward.1} parent=159 // pred_check
          %p4126 = pneg %p938
        $region254: #{get_activations_forward.1} parent=159 // pred_check_branch
          %4128 = sbr.rel (%p4126) target = $region256
        $region255: #{get_activations_forward.1} parent=159 // pred_region
          _
        $region256: #{get_activations_forward.1} parent=159 // pred_fallthru
          _
        // Predicated region
        $region257: #{get_activations_forward.1} parent=159 // pred_check
          %p4129 = pneg %p964
        $region258: #{get_activations_forward.1} parent=159 // pred_check_branch
          %4131 = sbr.rel (%p4129) target = $region260
        $region259: #{get_activations_forward.1} parent=159 // pred_region
          _
        $region260: #{get_activations_forward.1} parent=159 // pred_fallthru
          _
        // Predicated region
        $region261: #{get_activations_forward.1} parent=159 // pred_check
          %p4132 = pneg %p990
        $region262: #{get_activations_forward.1} parent=159 // pred_check_branch
          %4134 = sbr.rel (%p4132) target = $region264
        $region263: #{get_activations_forward.1} parent=159 // pred_region
          _
        $region264: #{get_activations_forward.1} parent=159 // pred_fallthru
          _
        // Predicated region
        $region265: #{get_activations_forward.1} parent=159 // pred_check
          %p4135 = pneg %p1016
        $region266: #{get_activations_forward.1} parent=159 // pred_check_branch
          %4137 = sbr.rel (%p4135) target = $region268
        $region267: #{get_activations_forward.1} parent=159 // pred_region
          _
        $region268: #{get_activations_forward.1} parent=159 // pred_fallthru
          _
        // Predicated region
        $region269: #{get_activations_forward.1} parent=159 // pred_check
          %p4138 = pneg %p1042
        $region270: #{get_activations_forward.1} parent=159 // pred_check_branch
          %4140 = sbr.rel (%p4138) target = $region272
        $region271: #{get_activations_forward.1} parent=159 // pred_region
          _
        $region272: #{get_activations_forward.1} parent=159 // pred_fallthru
          _
        // Predicated region
        $region273: #{get_activations_forward.1} parent=159 // pred_check
          %p4141 = pneg %p1068
        $region274: #{get_activations_forward.1} parent=159 // pred_check_branch
          %4143 = sbr.rel (%p4141) target = $region276
        $region275: #{get_activations_forward.1} parent=159 // pred_region
          _
        $region276: #{get_activations_forward.1} parent=159 // pred_fallthru
          _
        // Predicated region
        $region277: #{get_activations_forward.1} parent=159 // pred_check
          %p4144 = pneg %p1094
        $region278: #{get_activations_forward.1} parent=159 // pred_check_branch
          %4146 = sbr.rel (%p4144) target = $region280
        $region279: #{get_activations_forward.1} parent=159 // pred_region
          _
        $region280: #{get_activations_forward.1} parent=159 // pred_fallthru
          _
        // Predicated region
        $region281: #{get_activations_forward.1} parent=159 // pred_check
          %p4147 = pneg %p1120
        $region282: #{get_activations_forward.1} parent=159 // pred_check_branch
          %4149 = sbr.rel (%p4147) target = $region284
        $region283: #{get_activations_forward.1} parent=159 // pred_region
          _
        $region284: #{get_activations_forward.1} parent=159 // pred_fallthru
          _
        // Predicated region
        $region285: #{get_activations_forward.1} parent=159 // pred_check
          %p4150 = pneg %p1146
        $region286: #{get_activations_forward.1} parent=159 // pred_check_branch
          %4152 = sbr.rel (%p4150) target = $region288
        $region287: #{get_activations_forward.1} parent=159 // pred_region
          _
        $region288: #{get_activations_forward.1} parent=159 // pred_fallthru
          _
        // Predicated region
        $region289: #{get_activations_forward.1} parent=159 // pred_check
          %p4153 = pneg %p1172
        $region290: #{get_activations_forward.1} parent=159 // pred_check_branch
          %4155 = sbr.rel (%p4153) target = $region292
        $region291: #{get_activations_forward.1} parent=159 // pred_region
          _
        $region292: #{get_activations_forward.1} parent=159 // pred_fallthru
          _
        // Predicated region
        $region293: #{get_activations_forward.1} parent=159 // pred_check
          %p4156 = pneg %p1198
        $region294: #{get_activations_forward.1} parent=159 // pred_check_branch
          %4158 = sbr.rel (%p4156) target = $region296
        $region295: #{get_activations_forward.1} parent=159 // pred_region
          _
        $region296: #{get_activations_forward.1} parent=159 // pred_fallthru
          _
        // Predicated region
        $region297: #{get_activations_forward.1} parent=159 // pred_check
          %p4159 = pneg %p1224
        $region298: #{get_activations_forward.1} parent=159 // pred_check_branch
          %4161 = sbr.rel (%p4159) target = $region300
        $region299: #{get_activations_forward.1} parent=159 // pred_region
          %4163 = vsyncadd %s4113, 0
          %s4164 = scalar_lea.hbm %s97, %s128
          %s4166 = sshll.u32 %s4115, 4
          %s4167 = int_to_ptr.vmem [resolvable:$true] %s4166
          %s4168 = sshll.u32 %s4164, 4
          %s4169 = int_to_ptr.hbm [resolvable:$true] %s4168
          %4171 = dma.vmem_to_hbm [thread:$0]  %s4167, 16, %s4169, %s4113
        $region300: #{get_activations_forward.1} parent=159 // pred_fallthru
          _
        // Predicated region
        $region301: #{get_activations_forward.1} parent=159 // pred_check
          %p4172 = pneg %p1250
        $region302: #{get_activations_forward.1} parent=159 // pred_check_branch
          %4174 = sbr.rel (%p4172) target = $region304
        $region303: #{get_activations_forward.1} parent=159 // pred_region
          %4176 = vsyncadd %s4117, 0
          %s4177 = scalar_lea.hbm %s99, %s128
          %s4179 = sshll.u32 %s4119, 4
          %s4180 = int_to_ptr.vmem [resolvable:$true] %s4179
          %s4181 = sshll.u32 %s4177, 4
          %s4182 = int_to_ptr.hbm [resolvable:$true] %s4181
          %4184 = dma.vmem_to_hbm [thread:$0]  %s4180, 16, %s4182, %s4117
        $region304: #{get_activations_forward.1} parent=159 // pred_fallthru
          _
      $region160: #{get_activations_forward.1} parent=5 // pred_fallthru
        _
      %p4185 = scmp.le.s32.totalorder 2, %s123
      // Predicated region
      $region305: #{get_activations_forward.1} parent=5 // pred_check
        %p4186 = pneg %p4185
      $region306: #{get_activations_forward.1} parent=5 // pred_check_branch
        %4188 = sbr.rel (%p4186) target = $region308
      $region307: #{get_activations_forward.1} parent=5 // pred_region
        %s4189 = ssub.s32 %s123, 2
        // Predicated region
        $region309: #{get_activations_forward.1} parent=307 // pred_check
          %p4190 = pneg %p892
        $region310: #{get_activations_forward.1} parent=307 // pred_check_branch
          %4192 = sbr.rel (%p4190) target = $region312
        $region311: #{get_activations_forward.1} parent=307 // pred_region
          %p4193 = scmp.lt.s32.totalorder %s129, 1
          %s4194 = scalar_select %p4193, %s129, 1
          %s4195 = smul.addr %s4194, 2
          %s4196 = smul.addr %s4195, 8
          %s4197 = scalar_lea.vmem %s71, %s4196
        $region312: #{get_activations_forward.1} parent=307 // pred_fallthru
          _
        // Predicated region
        $region313: #{get_activations_forward.1} parent=307 // pred_check
          %p4198 = pneg %p918
        $region314: #{get_activations_forward.1} parent=307 // pred_check_branch
          %4200 = sbr.rel (%p4198) target = $region316
        $region315: #{get_activations_forward.1} parent=307 // pred_region
          %p4201 = scmp.lt.s32.totalorder %s129, 1
          %s4202 = scalar_select %p4201, %s129, 1
          %s4203 = smul.addr %s4202, 2
          %s4204 = smul.addr %s4203, 8
          %s4205 = scalar_lea.vmem %s73, %s4204
        $region316: #{get_activations_forward.1} parent=307 // pred_fallthru
          _
        // Predicated region
        $region317: #{get_activations_forward.1} parent=307 // pred_check
          %p4206 = pneg %p944
        $region318: #{get_activations_forward.1} parent=307 // pred_check_branch
          %4208 = sbr.rel (%p4206) target = $region320
        $region319: #{get_activations_forward.1} parent=307 // pred_region
          %p4209 = scmp.lt.s32.totalorder %s129, 1
          %s4210 = scalar_select %p4209, %s129, 1
          %s4211 = smul.addr %s4210, 2
          %s4212 = smul.addr %s4211, 8
          %s4213 = scalar_lea.vmem %s75, %s4212
        $region320: #{get_activations_forward.1} parent=307 // pred_fallthru
          _
        // Predicated region
        $region321: #{get_activations_forward.1} parent=307 // pred_check
          %p4214 = pneg %p970
        $region322: #{get_activations_forward.1} parent=307 // pred_check_branch
          %4216 = sbr.rel (%p4214) target = $region324
        $region323: #{get_activations_forward.1} parent=307 // pred_region
          %p4217 = scmp.lt.s32.totalorder %s129, 1
          %s4218 = scalar_select %p4217, %s129, 1
          %s4219 = smul.addr %s4218, 2
          %s4220 = smul.addr %s4219, 8
          %s4221 = scalar_lea.vmem %s77, %s4220
        $region324: #{get_activations_forward.1} parent=307 // pred_fallthru
          _
        // Predicated region
        $region325: #{get_activations_forward.1} parent=307 // pred_check
          %p4222 = pneg %p996
        $region326: #{get_activations_forward.1} parent=307 // pred_check_branch
          %4224 = sbr.rel (%p4222) target = $region328
        $region327: #{get_activations_forward.1} parent=307 // pred_region
          %p4225 = scmp.lt.s32.totalorder %s129, 1
          %s4226 = scalar_select %p4225, %s129, 1
          %s4227 = smul.addr %s4226, 8
          %s4228 = scalar_lea.vmem %s79, %s4227
        $region328: #{get_activations_forward.1} parent=307 // pred_fallthru
          _
        // Predicated region
        $region329: #{get_activations_forward.1} parent=307 // pred_check
          %p4229 = pneg %p1022
        $region330: #{get_activations_forward.1} parent=307 // pred_check_branch
          %4231 = sbr.rel (%p4229) target = $region332
        $region331: #{get_activations_forward.1} parent=307 // pred_region
          %p4232 = scmp.lt.s32.totalorder %s129, 1
          %s4233 = scalar_select %p4232, %s129, 1
          %s4234 = smul.addr %s4233, 8
          %s4235 = scalar_lea.vmem %s81, %s4234
        $region332: #{get_activations_forward.1} parent=307 // pred_fallthru
          _
        // Predicated region
        $region333: #{get_activations_forward.1} parent=307 // pred_check
          %p4236 = pneg %p1048
        $region334: #{get_activations_forward.1} parent=307 // pred_check_branch
          %4238 = sbr.rel (%p4236) target = $region336
        $region335: #{get_activations_forward.1} parent=307 // pred_region
          %p4239 = scmp.lt.s32.totalorder %s129, 1
          %s4240 = scalar_select %p4239, %s129, 1
          %s4241 = smul.addr %s4240, 8
          %s4242 = scalar_lea.vmem %s83, %s4241
        $region336: #{get_activations_forward.1} parent=307 // pred_fallthru
          _
        // Predicated region
        $region337: #{get_activations_forward.1} parent=307 // pred_check
          %p4243 = pneg %p1074
        $region338: #{get_activations_forward.1} parent=307 // pred_check_branch
          %4245 = sbr.rel (%p4243) target = $region340
        $region339: #{get_activations_forward.1} parent=307 // pred_region
          %p4246 = scmp.lt.s32.totalorder %s129, 1
          %s4247 = scalar_select %p4246, %s129, 1
          %s4248 = smul.addr %s4247, 4
          %s4249 = scalar_lea.vmem %s85, %s4248
        $region340: #{get_activations_forward.1} parent=307 // pred_fallthru
          _
        // Predicated region
        $region341: #{get_activations_forward.1} parent=307 // pred_check
          %p4250 = pneg %p1100
        $region342: #{get_activations_forward.1} parent=307 // pred_check_branch
          %4252 = sbr.rel (%p4250) target = $region344
        $region343: #{get_activations_forward.1} parent=307 // pred_region
          %p4253 = scmp.lt.s32.totalorder %s129, 1
          %s4254 = scalar_select %p4253, %s129, 1
          %s4255 = smul.addr %s4254, 4
          %s4256 = scalar_lea.vmem %s87, %s4255
        $region344: #{get_activations_forward.1} parent=307 // pred_fallthru
          _
        // Predicated region
        $region345: #{get_activations_forward.1} parent=307 // pred_check
          %p4257 = pneg %p1126
        $region346: #{get_activations_forward.1} parent=307 // pred_check_branch
          %4259 = sbr.rel (%p4257) target = $region348
        $region347: #{get_activations_forward.1} parent=307 // pred_region
          %p4260 = scmp.lt.s32.totalorder %s129, 1
          %s4261 = scalar_select %p4260, %s129, 1
          %s4262 = smul.addr %s4261, 4
          %s4263 = scalar_lea.vmem %s89, %s4262
        $region348: #{get_activations_forward.1} parent=307 // pred_fallthru
          _
        // Predicated region
        $region349: #{get_activations_forward.1} parent=307 // pred_check
          %p4264 = pneg %p1152
        $region350: #{get_activations_forward.1} parent=307 // pred_check_branch
          %4266 = sbr.rel (%p4264) target = $region352
        $region351: #{get_activations_forward.1} parent=307 // pred_region
          %p4267 = scmp.lt.s32.totalorder %s129, 1
          %s4268 = scalar_select %p4267, %s129, 1
          %s4269 = smul.addr %s4268, 2
          %s4270 = scalar_lea.vmem %s91, %s4269
        $region352: #{get_activations_forward.1} parent=307 // pred_fallthru
          _
        // Predicated region
        $region353: #{get_activations_forward.1} parent=307 // pred_check
          %p4271 = pneg %p1178
        $region354: #{get_activations_forward.1} parent=307 // pred_check_branch
          %4273 = sbr.rel (%p4271) target = $region356
        $region355: #{get_activations_forward.1} parent=307 // pred_region
          %p4274 = scmp.lt.s32.totalorder %s129, 1
          %s4275 = scalar_select %p4274, %s129, 1
          %s4276 = smul.addr %s4275, 2
          %s4277 = scalar_lea.vmem %s93, %s4276
        $region356: #{get_activations_forward.1} parent=307 // pred_fallthru
          _
        // Predicated region
        $region357: #{get_activations_forward.1} parent=307 // pred_check
          %p4278 = pneg %p1204
        $region358: #{get_activations_forward.1} parent=307 // pred_check_branch
          %4280 = sbr.rel (%p4278) target = $region360
        $region359: #{get_activations_forward.1} parent=307 // pred_region
          %p4281 = scmp.lt.s32.totalorder %s129, 1
          %s4282 = scalar_select %p4281, %s129, 1
          %s4283 = smul.addr %s4282, 2
          %s4284 = scalar_lea.vmem %s95, %s4283
        $region360: #{get_activations_forward.1} parent=307 // pred_fallthru
          _
        // Predicated region
        $region361: #{get_activations_forward.1} parent=307 // pred_check
          %p4285 = pneg %p1230
        $region362: #{get_activations_forward.1} parent=307 // pred_check_branch
          %4287 = sbr.rel (%p4285) target = $region364
        $region363: #{get_activations_forward.1} parent=307 // pred_region
          %s4288 = sand.u32 %s1215, 1
          %s4289 = scalar_lea.sflag [#allocation6], %s4288
          %s4290 = sand.u32 %s1215, 1
          %s4291 = scalar_lea.vmem [#allocation37], %s4290
          %4293 = dma.done %s4289, 16
        $region364: #{get_activations_forward.1} parent=307 // pred_fallthru
          _
        // Predicated region
        $region365: #{get_activations_forward.1} parent=307 // pred_check
          %p4294 = pneg %p1256
        $region366: #{get_activations_forward.1} parent=307 // pred_check_branch
          %4296 = sbr.rel (%p4294) target = $region368
        $region367: #{get_activations_forward.1} parent=307 // pred_region
          %s4297 = sand.u32 %s1241, 1
          %s4298 = scalar_lea.sflag [#allocation39], %s4297
          %s4299 = sand.u32 %s1241, 1
          %s4300 = scalar_lea.vmem [#allocation38], %s4299
          %4302 = dma.done %s4298, 16
        $region368: #{get_activations_forward.1} parent=307 // pred_fallthru
          _
      $region308: #{get_activations_forward.1} parent=5 // pred_fallthru
        _
    $region6: #{get_activations_forward.1} parent=1 // loop_footer
      %s127 = sadd.s32 1, %s123
    $region7: #{get_activations_forward.1} parent=1 // loop_footer_branch
      %122 = sbr.rel target = $region3
    $region8: #{get_activations_forward.1} parent=1 // loop_exit
      _
    %4303 = vsyncpa [#allocation5], 1
    %s4304 = scalar_lea.sflag [#allocation5], 1
    %4305 = vsyncpa %s4304, 1
    %4306 = vsyncpa [#allocation8], 1
    %4307 = vsyncpa [#allocation11], 1
    %4308 = vsyncpa [#allocation14], 1
    %4309 = vsyncpa [#allocation17], 1
    %4310 = vsyncpa [#allocation20], 1
    %4311 = vsyncpa [#allocation23], 1
    %4312 = vsyncpa [#allocation26], 1
    %4313 = vsyncpa [#allocation29], 1
    %4314 = vsyncpa [#allocation32], 1
    %4315 = vsyncpa [#allocation35], 1
    %4316 = vsyncpa [#allocation6], 1
    %s4317 = scalar_lea.sflag [#allocation6], 1
    %4318 = vsyncpa %s4317, 1
    %4319 = vsyncpa [#allocation39], 1
    %s4320 = scalar_lea.sflag [#allocation39], 1
    %4321 = vsyncpa %s4320, 1

</llo_original>
